<compile_context>
chip_gen: v5e
topology: v5e:2x2
jax: 0.10.0
libtpu: 0.0.40
codegen_flags: <defaults>
</compile_context>

<pallas_src>
import functools
import math

import jax
import jax.numpy as jnp
from jax.experimental import pallas as pl
from jax.experimental.pallas import tpu as pltpu


# ------------------------------------------------------------------ shared attention epilogue

def _attention_epilogue(x_res, q, k, v, q_valid, k_valid, wo_ref, bo_ref,
                        g_ref, beta_ref, o_ref, ctx_ref, *, num_heads, causal):
    """Per-head softmax attention + single W_o matmul + residual + LayerNorm."""
    Sq, D = q.shape
    Sk = k.shape[0]
    dk = D // num_heads
    neg = jnp.float32(-1e9)

    # Combined boolean mask, computed ONCE and reused by every head
    # (matches PyTorch masked_fill semantics, incl. fully-masked padded-query rows).
    allowed = (q_valid > 0.0) & (k_valid > 0.0)            # (Sq,1)&(1,Sk) -> (Sq,Sk)
    if causal:
        row = jax.lax.broadcasted_iota(jnp.int32, (Sq, Sk), 0)
        col = jax.lax.broadcasted_iota(jnp.int32, (Sq, Sk), 1)
        allowed = allowed & (col <= row)

    # One K transpose for all heads (hoisted out of the loop); bf16 matmul operands.
    kT = k.T.astype(jnp.bfloat16)                          # (D, Sk)
    q_b = q.astype(jnp.bfloat16)
    v_b = v.astype(jnp.bfloat16)

    # TODO(synk): use lax.fori_loop for large num_heads to bound live ranges.
    for h in range(num_heads):
        sl = slice(h * dk, (h + 1) * dk)
        s = jnp.dot(q_b[:, sl], kT[sl, :], preferred_element_type=jnp.float32)  # (Sq,Sk)
        s = jnp.where(allowed, s, neg)
        m = jnp.max(s, axis=-1, keepdims=True)
        p = jnp.exp(s - m)
        p = p * pl.reciprocal(jnp.sum(p, axis=-1, keepdims=True), approx=True)
        ctx_ref[:, sl] = jnp.dot(p.astype(jnp.bfloat16), v_b[:, sl],
                                 preferred_element_type=jnp.float32)            # (Sq,dk)

    # Single W_o matmul with contraction K = D (instead of H small K = dk matmuls).
    attn = (jnp.dot(ctx_ref[...].astype(jnp.bfloat16), wo_ref[...],
                    preferred_element_type=jnp.float32) + bo_ref[...])
    y = x_res + attn

    # LayerNorm (PyTorch semantics: biased variance, eps=1e-5), f32 math.
    mean = jnp.mean(y, axis=-1, keepdims=True)
    var = jnp.mean((y - mean) ** 2, axis=-1, keepdims=True)
    norm = (y - mean) * jax.lax.rsqrt(var + 1e-5)
    o_ref[0] = (norm * g_ref[...] + beta_ref[...]).astype(o_ref.dtype)


# ------------------------------------------------------------------ kernels

def _self_attn_ln_kernel(x_ref, qv_ref, kv_ref, wqkv_ref, bqkv_ref, wo_ref, bo_ref,
                         g_ref, beta_ref, o_ref, ctx_ref, *, num_heads, causal):
    """Fused self-attention (single [D,3D] QKV proj) + residual + LN for one batch element."""
    x = x_ref[0].astype(jnp.float32)                       # (S, D)
    D = x.shape[-1]
    qkv = (jnp.dot(x.astype(jnp.bfloat16), wqkv_ref[...],
                   preferred_element_type=jnp.float32) + bqkv_ref[...])   # (S, 3D)
    q = qkv[:, :D]          # 1/sqrt(dk) already folded into the Q weights/bias
    k = qkv[:, D:2 * D]
    v = qkv[:, 2 * D:]
    _attention_epilogue(x, q, k, v, qv_ref[0], kv_ref[0], wo_ref, bo_ref,
                        g_ref, beta_ref, o_ref, ctx_ref,
                        num_heads=num_heads, causal=causal)


def _cross_attn_ln_kernel(xq_ref, xkv_ref, qv_ref, kv_ref, wq_ref, bq_ref,
                          wkv_ref, bkv_ref, wo_ref, bo_ref, g_ref, beta_ref,
                          o_ref, ctx_ref, *, num_heads):
    """Fused cross-attention (Q proj + fused [D,2D] KV proj) + residual + LN."""
    xq = xq_ref[0].astype(jnp.float32)                     # (Sq, D)
    xkv = xkv_ref[0].astype(jnp.float32)                   # (Sk, D)
    D = xq.shape[-1]
    q = (jnp.dot(xq.astype(jnp.bfloat16), wq_ref[...],
                 preferred_element_type=jnp.float32) + bq_ref[...])
    kv = (jnp.dot(xkv.astype(jnp.bfloat16), wkv_ref[...],
                  preferred_element_type=jnp.float32) + bkv_ref[...])
    k = kv[:, :D]
    v = kv[:, D:]
    _attention_epilogue(xq, q, k, v, qv_ref[0], kv_ref[0], wo_ref, bo_ref,
                        g_ref, beta_ref, o_ref, ctx_ref,
                        num_heads=num_heads, causal=False)


def _ffn_ln_kernel(x_ref, w1_ref, b1_ref, w2_ref, b2_ref, g_ref, beta_ref, o_ref):
    """Fused fc2(relu(fc1(x))) + residual + LayerNorm on a (tm, D) row tile."""
    x = x_ref[...].astype(jnp.float32)                     # (tm, D)
    h = jnp.dot(x.astype(jnp.bfloat16), w1_ref[...],
                preferred_element_type=jnp.float32) + b1_ref[...]
    h = jnp.maximum(h, 0.0)
    o = jnp.dot(h.astype(jnp.bfloat16), w2_ref[...],
                preferred_element_type=jnp.float32) + b2_ref[...]
    y = x + o
    mean = jnp.mean(y, axis=-1, keepdims=True)
    var = jnp.mean((y - mean) ** 2, axis=-1, keepdims=True)
    norm = (y - mean) * jax.lax.rsqrt(var + 1e-5)
    o_ref[...] = (norm * g_ref[...] + beta_ref[...]).astype(o_ref.dtype)


def _linear_kernel(x_ref, w_ref, b_ref, o_ref):
    """Final vocab projection on a (tm, D) x (D, tn) tile."""
    o_ref[...] = (jnp.dot(x_ref[...].astype(jnp.bfloat16), w_ref[...],
                          preferred_element_type=jnp.float32)
                  + b_ref[...]).astype(o_ref.dtype)


# ------------------------------------------------------------------ wrappers

def _pick_tile(n, pref):
    """Largest of (pref, n) that evenly tiles n (falls back to full extent)."""
    return pref if (n >= pref and n % pref == 0) else n


def fused_self_attn_ln(x, q_valid, k_valid, p, gamma, beta, num_heads, causal):
    B, S, D = x.shape
    kernel = functools.partial(_self_attn_ln_kernel, num_heads=num_heads, causal=causal)
    return pl.pallas_call(
        kernel,
        out_shape=jax.ShapeDtypeStruct((B, S, D), x.dtype),
        grid=(B,),
        in_specs=[
            pl.BlockSpec((1, S, D), lambda b: (b, 0, 0)),
            pl.BlockSpec((1, S, 1), lambda b: (b, 0, 0)),      # query-axis validity
            pl.BlockSpec((1, 1, S), lambda b: (b, 0, 0)),      # key-axis validity
            pl.BlockSpec((D, 3 * D), lambda b: (0, 0)),        # wqkv (VMEM-resident)
            pl.BlockSpec((1, 3 * D), lambda b: (0, 0)),        # bqkv
            pl.BlockSpec((D, D), lambda b: (0, 0)),            # wo
            pl.BlockSpec((1, D), lambda b: (0, 0)),            # bo
            pl.BlockSpec((1, D), lambda b: (0, 0)),            # gamma
            pl.BlockSpec((1, D), lambda b: (0, 0)),            # beta
        ],
        out_specs=pl.BlockSpec((1, S, D), lambda b: (b, 0, 0)),
        scratch_shapes=[pltpu.VMEM((S, D), jnp.float32)],      # per-head context buffer
        compiler_params=pltpu.CompilerParams(dimension_semantics=("parallel",)),
    )(x, q_valid, k_valid,
      p["wqkv"], p["bqkv"].reshape(1, 3 * D),
      p["wo"], p["bo"].reshape(1, D),
      gamma.reshape(1, D), beta.reshape(1, D))


def fused_cross_attn_ln(x_q, x_kv, q_valid, k_valid, p, gamma, beta, num_heads):
    B, Sq, D = x_q.shape
    Sk = x_kv.shape[1]
    kernel = functools.partial(_cross_attn_ln_kernel, num_heads=num_heads)
    return pl.pallas_call(
        kernel,
        out_shape=jax.ShapeDtypeStruct((B, Sq, D), x_q.dtype),
        grid=(B,),
        in_specs=[
            pl.BlockSpec((1, Sq, D), lambda b: (b, 0, 0)),
            pl.BlockSpec((1, Sk, D), lambda b: (b, 0, 0)),
            pl.BlockSpec((1, Sq, 1), lambda b: (b, 0, 0)),
            pl.BlockSpec((1, 1, Sk), lambda b: (b, 0, 0)),
            pl.BlockSpec((D, D), lambda b: (0, 0)),            # wq
            pl.BlockSpec((1, D), lambda b: (0, 0)),            # bq
            pl.BlockSpec((D, 2 * D), lambda b: (0, 0)),        # wkv
            pl.BlockSpec((1, 2 * D), lambda b: (0, 0)),        # bkv
            pl.BlockSpec((D, D), lambda b: (0, 0)),            # wo
            pl.BlockSpec((1, D), lambda b: (0, 0)),            # bo
            pl.BlockSpec((1, D), lambda b: (0, 0)),            # gamma
            pl.BlockSpec((1, D), lambda b: (0, 0)),            # beta
        ],
        out_specs=pl.BlockSpec((1, Sq, D), lambda b: (b, 0, 0)),
        scratch_shapes=[pltpu.VMEM((Sq, D), jnp.float32)],
        compiler_params=pltpu.CompilerParams(dimension_semantics=("parallel",)),
    )(x_q, x_kv, q_valid, k_valid,
      p["wq"], p["bq"].reshape(1, D),
      p["wkv"], p["bkv"].reshape(1, 2 * D),
      p["wo"], p["bo"].reshape(1, D),
      gamma.reshape(1, D), beta.reshape(1, D))


def fused_ffn_ln(x, w1, b1, w2, b2, gamma, beta):
    B, S, D = x.shape
    F = w1.shape[1]
    R = B * S
    tm = _pick_tile(R, 256)
    xr = x.reshape(R, D)
    out = pl.pallas_call(
        _ffn_ln_kernel,
        out_shape=jax.ShapeDtypeStruct((R, D), x.dtype),
        grid=(R // tm,),
        in_specs=[
            pl.BlockSpec((tm, D), lambda i: (i, 0)),
            pl.BlockSpec((D, F), lambda i: (0, 0)),
            pl.BlockSpec((1, F), lambda i: (0, 0)),
            pl.BlockSpec((F, D), lambda i: (0, 0)),
            pl.BlockSpec((1, D), lambda i: (0, 0)),
            pl.BlockSpec((1, D), lambda i: (0, 0)),
            pl.BlockSpec((1, D), lambda i: (0, 0)),
        ],
        out_specs=pl.BlockSpec((tm, D), lambda i: (i, 0)),
        compiler_params=pltpu.CompilerParams(dimension_semantics=("parallel",)),
    )(xr, w1, b1.reshape(1, F), w2, b2.reshape(1, D),
      gamma.reshape(1, D), beta.reshape(1, D))
    return out.reshape(B, S, D)


def final_linear(x, w, b):
    B, S, D = x.shape
    V = w.shape[1]
    R = B * S
    tm = _pick_tile(R, 256)
    tn = _pick_tile(V, 512)        # lane-dense vocab tiles; bounds VMEM for the (D,V) weight
    xr = x.reshape(R, D)
    out = pl.pallas_call(
        _linear_kernel,
        out_shape=jax.ShapeDtypeStruct((R, V), x.dtype),
        grid=(R // tm, V // tn),
        in_specs=[
            pl.BlockSpec((tm, D), lambda i, j: (i, 0)),
            pl.BlockSpec((D, tn), lambda i, j: (0, j)),
            pl.BlockSpec((1, tn), lambda i, j: (0, j)),
        ],
        out_specs=pl.BlockSpec((tm, tn), lambda i, j: (i, j)),
        compiler_params=pltpu.CompilerParams(dimension_semantics=("parallel", "parallel")),
    )(xr, w, b.reshape(1, V))
    return out.reshape(B, S, V)


# ------------------------------------------------------------------ model

def transformer_forward(src, tgt, params, *, num_heads):
    # TODO(synk): dropout is identity (eval mode); training-mode stochastic masking not implemented.
    B, Ss = src.shape
    _, St = tgt.shape

    # ---- O(B*S) validity vectors only; full masks are rebuilt in-kernel ----
    src_valid = (src != 0).astype(jnp.float32)              # (B, Ss)
    tgt_valid = (tgt != 0).astype(jnp.float32)              # (B, St)
    ones_q_src = jnp.ones((B, Ss, 1), jnp.float32)
    ones_q_tgt = jnp.ones((B, St, 1), jnp.float32)
    ones_k_tgt = jnp.ones((B, 1, St), jnp.float32)
    src_key_valid = src_valid[:, None, :]                   # (B, 1, Ss) key-axis padding
    tgt_query_valid = tgt_valid[:, :, None]                 # (B, St, 1) query-axis padding

    # ---- embeddings + positional encoding (tiny gather/add, left to XLA) ----
    pe = params["pe"]
    src_x = params["enc_emb"][src] + pe[None, :Ss, :]
    tgt_x = params["dec_emb"][tgt] + pe[None, :St, :]

    enc = src_x
    for p in params["enc_layers"]:
        enc = fused_self_attn_ln(enc, ones_q_src, src_key_valid, p["self_attn"],
                                 p["norm1_g"], p["norm1_b"], num_heads, causal=False)
        enc = fused_ffn_ln(enc, p["ff_w1"], p["ff_b1"], p["ff_w2"], p["ff_b2"],
                           p["norm2_g"], p["norm2_b"])

    dec = tgt_x
    for p in params["dec_layers"]:
        # PyTorch tgt_mask = (tgt != 0) on the QUERY axis & causal (no key-axis padding mask).
        dec = fused_self_attn_ln(dec, tgt_query_valid, ones_k_tgt, p["self_attn"],
                                 p["norm1_g"], p["norm1_b"], num_heads, causal=True)
        dec = fused_cross_attn_ln(dec, enc, ones_q_tgt, src_key_valid, p["cross_attn"],
                                  p["norm2_g"], p["norm2_b"], num_heads)
        dec = fused_ffn_ln(dec, p["ff_w1"], p["ff_b1"], p["ff_w2"], p["ff_b2"],
                           p["norm3_g"], p["norm3_b"])

    return final_linear(dec, params["fc_w"], params["fc_b"])


# ------------------------------------------------------------------ params

def init_params(key, src_vocab, tgt_vocab, d_model, num_heads, d_ff, num_layers, max_seq_len):
    keys = iter(jax.random.split(key, 256))
    dk = d_model // num_heads
    scale = 1.0 / math.sqrt(dk)

    def lin(din, dout):
        kw, kb = jax.random.split(next(keys))
        s = 1.0 / math.sqrt(din)
        return (jax.random.uniform(kw, (din, dout), jnp.float32, -s, s),
                jax.random.uniform(kb, (dout,), jnp.float32, -s, s))

    def self_mha():
        wq, bq = lin(d_model, d_model)
        wk, bk = lin(d_model, d_model)
        wv, bv = lin(d_model, d_model)
        wo, bo = lin(d_model, d_model)
        # fused [D, 3D] QKV weight; 1/sqrt(dk) folded into the Q portion; bf16 weights in HBM
        return dict(
            wqkv=jnp.concatenate([wq * scale, wk, wv], axis=1).astype(jnp.bfloat16),
            bqkv=jnp.concatenate([bq * scale, bk, bv], axis=0),
            wo=wo.astype(jnp.bfloat16), bo=bo)

    def cross_mha():
        wq, bq = lin(d_model, d_model)
        wk, bk = lin(d_model, d_model)
        wv, bv = lin(d_model, d_model)
        wo, bo = lin(d_model, d_model)
        return dict(
            wq=(wq * scale).astype(jnp.bfloat16), bq=bq * scale,
            wkv=jnp.concatenate([wk, wv], axis=1).astype(jnp.bfloat16),
            bkv=jnp.concatenate([bk, bv], axis=0),
            wo=wo.astype(jnp.bfloat16), bo=bo)

    def ln():
        return jnp.ones((d_model,), jnp.float32), jnp.zeros((d_model,), jnp.float32)

    enc_layers = []
    for _ in range(num_layers):
        g1, be1 = ln()
        g2, be2 = ln()
        w1, b1 = lin(d_model, d_ff)
        w2, b2 = lin(d_ff, d_model)
        enc_layers.append(dict(self_attn=self_mha(),
                               norm1_g=g1, norm1_b=be1,
                               ff_w1=w1.astype(jnp.bfloat16), ff_b1=b1,
                               ff_w2=w2.astype(jnp.bfloat16), ff_b2=b2,
                               norm2_g=g2, norm2_b=be2))

    dec_layers = []
    for _ in range(num_layers):
        g1, be1 = ln()
        g2, be2 = ln()
        g3, be3 = ln()
        w1, b1 = lin(d_model, d_ff)
        w2, b2 = lin(d_ff, d_model)
        dec_layers.append(dict(self_attn=self_mha(), cross_attn=cross_mha(),
                               norm1_g=g1, norm1_b=be1,
                               norm2_g=g2, norm2_b=be2,
                               ff_w1=w1.astype(jnp.bfloat16), ff_b1=b1,
                               ff_w2=w2.astype(jnp.bfloat16), ff_b2=b2,
                               norm3_g=g3, norm3_b=be3))

    fc_w, fc_b = lin(d_model, tgt_vocab)

    # positional encoding table (same formula as the PyTorch module)
    pos = jnp.arange(max_seq_len, dtype=jnp.float32)[:, None]
    div = jnp.exp(jnp.arange(0, d_model, 2, dtype=jnp.float32) * (-math.log(10000.0) / d_model))
    pe = jnp.zeros((max_seq_len, d_model), jnp.float32)
    pe = pe.at[:, 0::2].set(jnp.sin(pos * div))
    pe = pe.at[:, 1::2].set(jnp.cos(pos * div))

    enc_emb = jax.random.normal(next(keys), (src_vocab, d_model), jnp.float32)
    dec_emb = jax.random.normal(next(keys), (tgt_vocab, d_model), jnp.float32)

    return dict(enc_emb=enc_emb, dec_emb=dec_emb, pe=pe,
                enc_layers=enc_layers, dec_layers=dec_layers,
                fc_w=fc_w.astype(jnp.bfloat16), fc_b=fc_b)


# ------------------------------------------------------------------ main

if __name__ == "__main__":
    src_vocab, tgt_vocab = 48, 48
    d_model, num_heads, num_layers, d_ff, max_seq = 32, 4, 2, 64, 16
    B, S_src, S_tgt = 2, 8, 8

    key = jax.random.PRNGKey(0)
    k_p, k_src, k_tgt = jax.random.split(key, 3)

    params = init_params(k_p, src_vocab, tgt_vocab, d_model, num_heads,
                         d_ff, num_layers, max_seq)

    src = jax.random.randint(k_src, (B, S_src), 1, src_vocab)
    tgt = jax.random.randint(k_tgt, (B, S_tgt), 1, tgt_vocab)
    # add a little padding (token 0) so the masks are actually exercised
    src = src.at[1, S_src - 2:].set(0)
    tgt = tgt.at[1, S_tgt - 1:].set(0)

    fwd = jax.jit(functools.partial(transformer_forward, num_heads=num_heads))
    out = fwd(src, tgt, params)
    jax.block_until_ready(out)

    assert out.shape == (B, S_tgt, tgt_vocab)
    assert bool(jnp.all(jnp.isfinite(out)))
    print("KERNEL_OK")
</pallas_src>

<mosaic_0001>
module attributes {stable_mosaic.version = 11 : i64} {
  func.func @_self_attn_ln_kernel(%arg0: i32, %arg1: memref<1x8x32xf32, #tpu.memory_space<vmem>>, %arg2: memref<1x8x1xf32, #tpu.memory_space<vmem>>, %arg3: memref<1x1x8xf32, #tpu.memory_space<vmem>>, %arg4: memref<32x96xbf16, #tpu.memory_space<vmem>>, %arg5: memref<1x96xf32, #tpu.memory_space<vmem>>, %arg6: memref<32x32xbf16, #tpu.memory_space<vmem>>, %arg7: memref<1x32xf32, #tpu.memory_space<vmem>>, %arg8: memref<1x32xf32, #tpu.memory_space<vmem>>, %arg9: memref<1x32xf32, #tpu.memory_space<vmem>>, %arg10: memref<1x8x32xf32, #tpu.memory_space<vmem>>, %arg11: memref<8x32xf32, #tpu.memory_space<vmem>>) attributes {dimension_semantics = [#tpu.dimension_semantics<parallel>], iteration_bounds = array<i64: 2>, scalar_prefetch = 0 : i64, scratch_operands = 1 : i64, tpu.core_type = #tpu.core_type<tc>, window_params = [{transform_indices = @transform_0, window_bounds = array<i64: 1, 8, 32>}, {transform_indices = @transform_1, window_bounds = array<i64: 1, 8, 1>}, {transform_indices = @transform_2, window_bounds = array<i64: 1, 1, 8>}, {pipeline_mode = #tpu.pipeline_mode<synchronous>, transform_indices = @transform_3, window_bounds = array<i64: 32, 96>}, {pipeline_mode = #tpu.pipeline_mode<synchronous>, transform_indices = @transform_4, window_bounds = array<i64: 1, 96>}, {pipeline_mode = #tpu.pipeline_mode<synchronous>, transform_indices = @transform_5, window_bounds = array<i64: 32, 32>}, {pipeline_mode = #tpu.pipeline_mode<synchronous>, transform_indices = @transform_6, window_bounds = array<i64: 1, 32>}, {pipeline_mode = #tpu.pipeline_mode<synchronous>, transform_indices = @transform_7, window_bounds = array<i64: 1, 32>}, {pipeline_mode = #tpu.pipeline_mode<synchronous>, transform_indices = @transform_8, window_bounds = array<i64: 1, 32>}, {transform_indices = @transform_9, window_bounds = array<i64: 1, 8, 32>}]} {
    %c0 = arith.constant 0 : index
    %c0_0 = arith.constant 0 : index
    %c0_1 = arith.constant 0 : index
    %0 = vector.load %arg1[%c0, %c0_0, %c0_1] : memref<1x8x32xf32, #tpu.memory_space<vmem>>, vector<1x8x32xf32>
    %1 = vector.shape_cast %0 : vector<1x8x32xf32> to vector<8x32xf32>
    %2 = arith.truncf %1 : vector<8x32xf32> to vector<8x32xbf16>
    %c0_2 = arith.constant 0 : index
    %c0_3 = arith.constant 0 : index
    %3 = vector.load %arg4[%c0_2, %c0_3] : memref<32x96xbf16, #tpu.memory_space<vmem>>, vector<32x96xbf16>
    %cst = arith.constant dense<0.000000e+00> : vector<8x96xf32>
    %4 = tpu.matmul %2, %3, %cst {dimension_numbers = #tpu.dot_dimension_numbers<[1], [0], [0], [1], [0, 0, 1, 1], [], []>} : vector<8x32xbf16>, vector<32x96xbf16>, vector<8x96xf32> -> vector<8x96xf32>
    %c0_4 = arith.constant 0 : index
    %c0_5 = arith.constant 0 : index
    %5 = vector.load %arg5[%c0_4, %c0_5] : memref<1x96xf32, #tpu.memory_space<vmem>>, vector<1x96xf32>
    %6 = vector.broadcast %5 : vector<1x96xf32> to vector<8x96xf32>
    %7 = arith.addf %4, %6 : vector<8x96xf32>
    %8 = vector.extract_strided_slice %7 {offsets = [0, 0], sizes = [8, 32], strides = [1, 1]} : vector<8x96xf32> to vector<8x32xf32>
    %9 = vector.extract_strided_slice %7 {offsets = [0, 32], sizes = [8, 32], strides = [1, 1]} : vector<8x96xf32> to vector<8x32xf32>
    %10 = vector.extract_strided_slice %7 {offsets = [0, 64], sizes = [8, 32], strides = [1, 1]} : vector<8x96xf32> to vector<8x32xf32>
    %c0_6 = arith.constant 0 : index
    %c0_7 = arith.constant 0 : index
    %c0_8 = arith.constant 0 : index
    %11 = vector.load %arg2[%c0_6, %c0_7, %c0_8] : memref<1x8x1xf32, #tpu.memory_space<vmem>>, vector<1x8x1xf32>
    %12 = vector.shape_cast %11 : vector<1x8x1xf32> to vector<8x1xf32>
    %c0_9 = arith.constant 0 : index
    %c0_10 = arith.constant 0 : index
    %c0_11 = arith.constant 0 : index
    %13 = vector.load %arg3[%c0_9, %c0_10, %c0_11] : memref<1x1x8xf32, #tpu.memory_space<vmem>>, vector<1x1x8xf32>
    %14 = vector.shape_cast %13 : vector<1x1x8xf32> to vector<1x8xf32>
    %cst_12 = arith.constant 0.000000e+00 : f32
    %15 = vector.broadcast %cst_12 : f32 to vector<8x1xf32>
    %16 = arith.cmpf ogt, %12, %15 : vector<8x1xf32>
    %cst_13 = arith.constant 0.000000e+00 : f32
    %17 = vector.broadcast %cst_13 : f32 to vector<1x8xf32>
    %18 = arith.cmpf ogt, %14, %17 : vector<1x8xf32>
    %19 = vector.broadcast %16 : vector<8x1xi1> to vector<8x8xi1>
    %20 = vector.broadcast %18 : vector<1x8xi1> to vector<8x8xi1>
    %21 = arith.andi %19, %20 : vector<8x8xi1>
    %22 = tpu.transpose %9, [1, 0] : vector<8x32xf32> -> vector<32x8xf32>
    %23 = arith.truncf %22 : vector<32x8xf32> to vector<32x8xbf16>
    %24 = arith.truncf %8 : vector<8x32xf32> to vector<8x32xbf16>
    %25 = arith.truncf %10 : vector<8x32xf32> to vector<8x32xbf16>
    %26 = vector.extract_strided_slice %24 {offsets = [0, 0], sizes = [8, 8], strides = [1, 1]} : vector<8x32xbf16> to vector<8x8xbf16>
    %27 = vector.extract_strided_slice %23 {offsets = [0, 0], sizes = [8, 8], strides = [1, 1]} : vector<32x8xbf16> to vector<8x8xbf16>
    %cst_14 = arith.constant dense<0.000000e+00> : vector<8x8xf32>
    %28 = tpu.matmul %26, %27, %cst_14 {dimension_numbers = #tpu.dot_dimension_numbers<[1], [0], [0], [1], [0, 0, 1, 1], [], []>} : vector<8x8xbf16>, vector<8x8xbf16>, vector<8x8xf32> -> vector<8x8xf32>
    %cst_15 = arith.constant -1.000000e+09 : f32
    %29 = vector.broadcast %cst_15 : f32 to vector<8x8xf32>
    %30 = arith.select %21, %28, %29 : vector<8x8xi1>, vector<8x8xf32>
    %cst_16 = arith.constant dense<0xFF800000> : vector<8xf32>
    %31 = vector.multi_reduction <maximumf>, %30, %cst_16 [1] : vector<8x8xf32> to vector<8xf32>
    %32 = vector.shape_cast %31 : vector<8xf32> to vector<8x1xf32>
    %33 = vector.broadcast %32 : vector<8x1xf32> to vector<8x8xf32>
    %34 = arith.subf %30, %33 : vector<8x8xf32>
    %35 = math.exp %34 : vector<8x8xf32>
    %cst_17 = arith.constant dense<0.000000e+00> : vector<8xf32>
    %36 = vector.multi_reduction <add>, %35, %cst_17 [1] : vector<8x8xf32> to vector<8xf32>
    %37 = vector.shape_cast %36 : vector<8xf32> to vector<8x1xf32>
    %38 = tpu.reciprocal %37 {approx = true} : vector<8x1xf32> -> vector<8x1xf32>
    %39 = vector.broadcast %38 : vector<8x1xf32> to vector<8x8xf32>
    %40 = arith.mulf %35, %39 : vector<8x8xf32>
    %41 = arith.truncf %40 : vector<8x8xf32> to vector<8x8xbf16>
    %42 = vector.extract_strided_slice %25 {offsets = [0, 0], sizes = [8, 8], strides = [1, 1]} : vector<8x32xbf16> to vector<8x8xbf16>
    %cst_18 = arith.constant dense<0.000000e+00> : vector<8x8xf32>
    %43 = tpu.matmul %41, %42, %cst_18 {dimension_numbers = #tpu.dot_dimension_numbers<[1], [0], [0], [1], [0, 0, 1, 1], [], []>} : vector<8x8xbf16>, vector<8x8xbf16>, vector<8x8xf32> -> vector<8x8xf32>
    %c0_19 = arith.constant 0 : index
    %c0_20 = arith.constant 0 : index
    %44 = vector.load %arg11[%c0_19, %c0_20] : memref<8x32xf32, #tpu.memory_space<vmem>>, vector<8x8xf32>
    tpu.vector_store %arg11[%c0_19, %c0_20], %43 {strides = array<i32>} : memref<8x32xf32, #tpu.memory_space<vmem>>, vector<8x8xf32>,
    %45 = vector.extract_strided_slice %24 {offsets = [0, 8], sizes = [8, 8], strides = [1, 1]} : vector<8x32xbf16> to vector<8x8xbf16>
    %46 = vector.extract_strided_slice %23 {offsets = [8, 0], sizes = [8, 8], strides = [1, 1]} : vector<32x8xbf16> to vector<8x8xbf16>
    %cst_21 = arith.constant dense<0.000000e+00> : vector<8x8xf32>
    %47 = tpu.matmul %45, %46, %cst_21 {dimension_numbers = #tpu.dot_dimension_numbers<[1], [0], [0], [1], [0, 0, 1, 1], [], []>} : vector<8x8xbf16>, vector<8x8xbf16>, vector<8x8xf32> -> vector<8x8xf32>
    %cst_22 = arith.constant -1.000000e+09 : f32
    %48 = vector.broadcast %cst_22 : f32 to vector<8x8xf32>
    %49 = arith.select %21, %47, %48 : vector<8x8xi1>, vector<8x8xf32>
    %cst_23 = arith.constant dense<0xFF800000> : vector<8xf32>
    %50 = vector.multi_reduction <maximumf>, %49, %cst_23 [1] : vector<8x8xf32> to vector<8xf32>
    %51 = vector.shape_cast %50 : vector<8xf32> to vector<8x1xf32>
    %52 = vector.broadcast %51 : vector<8x1xf32> to vector<8x8xf32>
    %53 = arith.subf %49, %52 : vector<8x8xf32>
    %54 = math.exp %53 : vector<8x8xf32>
    %cst_24 = arith.constant dense<0.000000e+00> : vector<8xf32>
    %55 = vector.multi_reduction <add>, %54, %cst_24 [1] : vector<8x8xf32> to vector<8xf32>
    %56 = vector.shape_cast %55 : vector<8xf32> to vector<8x1xf32>
    %57 = tpu.reciprocal %56 {approx = true} : vector<8x1xf32> -> vector<8x1xf32>
    %58 = vector.broadcast %57 : vector<8x1xf32> to vector<8x8xf32>
    %59 = arith.mulf %54, %58 : vector<8x8xf32>
    %60 = arith.truncf %59 : vector<8x8xf32> to vector<8x8xbf16>
    %61 = vector.extract_strided_slice %25 {offsets = [0, 8], sizes = [8, 8], strides = [1, 1]} : vector<8x32xbf16> to vector<8x8xbf16>
    %cst_25 = arith.constant dense<0.000000e+00> : vector<8x8xf32>
    %62 = tpu.matmul %60, %61, %cst_25 {dimension_numbers = #tpu.dot_dimension_numbers<[1], [0], [0], [1], [0, 0, 1, 1], [], []>} : vector<8x8xbf16>, vector<8x8xbf16>, vector<8x8xf32> -> vector<8x8xf32>
    %c0_26 = arith.constant 0 : index
    %c8 = arith.constant 8 : index
    %63 = vector.load %arg11[%c0_26, %c8] : memref<8x32xf32, #tpu.memory_space<vmem>>, vector<8x8xf32>
    tpu.vector_store %arg11[%c0_26, %c8], %62 {strides = array<i32>} : memref<8x32xf32, #tpu.memory_space<vmem>>, vector<8x8xf32>,
    %64 = vector.extract_strided_slice %24 {offsets = [0, 16], sizes = [8, 8], strides = [1, 1]} : vector<8x32xbf16> to vector<8x8xbf16>
    %65 = vector.extract_strided_slice %23 {offsets = [16, 0], sizes = [8, 8], strides = [1, 1]} : vector<32x8xbf16> to vector<8x8xbf16>
    %cst_27 = arith.constant dense<0.000000e+00> : vector<8x8xf32>
    %66 = tpu.matmul %64, %65, %cst_27 {dimension_numbers = #tpu.dot_dimension_numbers<[1], [0], [0], [1], [0, 0, 1, 1], [], []>} : vector<8x8xbf16>, vector<8x8xbf16>, vector<8x8xf32> -> vector<8x8xf32>
    %cst_28 = arith.constant -1.000000e+09 : f32
    %67 = vector.broadcast %cst_28 : f32 to vector<8x8xf32>
    %68 = arith.select %21, %66, %67 : vector<8x8xi1>, vector<8x8xf32>
    %cst_29 = arith.constant dense<0xFF800000> : vector<8xf32>
    %69 = vector.multi_reduction <maximumf>, %68, %cst_29 [1] : vector<8x8xf32> to vector<8xf32>
    %70 = vector.shape_cast %69 : vector<8xf32> to vector<8x1xf32>
    %71 = vector.broadcast %70 : vector<8x1xf32> to vector<8x8xf32>
    %72 = arith.subf %68, %71 : vector<8x8xf32>
    %73 = math.exp %72 : vector<8x8xf32>
    %cst_30 = arith.constant dense<0.000000e+00> : vector<8xf32>
    %74 = vector.multi_reduction <add>, %73, %cst_30 [1] : vector<8x8xf32> to vector<8xf32>
    %75 = vector.shape_cast %74 : vector<8xf32> to vector<8x1xf32>
    %76 = tpu.reciprocal %75 {approx = true} : vector<8x1xf32> -> vector<8x1xf32>
    %77 = vector.broadcast %76 : vector<8x1xf32> to vector<8x8xf32>
    %78 = arith.mulf %73, %77 : vector<8x8xf32>
    %79 = arith.truncf %78 : vector<8x8xf32> to vector<8x8xbf16>
    %80 = vector.extract_strided_slice %25 {offsets = [0, 16], sizes = [8, 8], strides = [1, 1]} : vector<8x32xbf16> to vector<8x8xbf16>
    %cst_31 = arith.constant dense<0.000000e+00> : vector<8x8xf32>
    %81 = tpu.matmul %79, %80, %cst_31 {dimension_numbers = #tpu.dot_dimension_numbers<[1], [0], [0], [1], [0, 0, 1, 1], [], []>} : vector<8x8xbf16>, vector<8x8xbf16>, vector<8x8xf32> -> vector<8x8xf32>
    %c0_32 = arith.constant 0 : index
    %c16 = arith.constant 16 : index
    %82 = vector.load %arg11[%c0_32, %c16] : memref<8x32xf32, #tpu.memory_space<vmem>>, vector<8x8xf32>
    tpu.vector_store %arg11[%c0_32, %c16], %81 {strides = array<i32>} : memref<8x32xf32, #tpu.memory_space<vmem>>, vector<8x8xf32>,
    %83 = vector.extract_strided_slice %24 {offsets = [0, 24], sizes = [8, 8], strides = [1, 1]} : vector<8x32xbf16> to vector<8x8xbf16>
    %84 = vector.extract_strided_slice %23 {offsets = [24, 0], sizes = [8, 8], strides = [1, 1]} : vector<32x8xbf16> to vector<8x8xbf16>
    %cst_33 = arith.constant dense<0.000000e+00> : vector<8x8xf32>
    %85 = tpu.matmul %83, %84, %cst_33 {dimension_numbers = #tpu.dot_dimension_numbers<[1], [0], [0], [1], [0, 0, 1, 1], [], []>} : vector<8x8xbf16>, vector<8x8xbf16>, vector<8x8xf32> -> vector<8x8xf32>
    %cst_34 = arith.constant -1.000000e+09 : f32
    %86 = vector.broadcast %cst_34 : f32 to vector<8x8xf32>
    %87 = arith.select %21, %85, %86 : vector<8x8xi1>, vector<8x8xf32>
    %cst_35 = arith.constant dense<0xFF800000> : vector<8xf32>
    %88 = vector.multi_reduction <maximumf>, %87, %cst_35 [1] : vector<8x8xf32> to vector<8xf32>
    %89 = vector.shape_cast %88 : vector<8xf32> to vector<8x1xf32>
    %90 = vector.broadcast %89 : vector<8x1xf32> to vector<8x8xf32>
    %91 = arith.subf %87, %90 : vector<8x8xf32>
    %92 = math.exp %91 : vector<8x8xf32>
    %cst_36 = arith.constant dense<0.000000e+00> : vector<8xf32>
    %93 = vector.multi_reduction <add>, %92, %cst_36 [1] : vector<8x8xf32> to vector<8xf32>
    %94 = vector.shape_cast %93 : vector<8xf32> to vector<8x1xf32>
    %95 = tpu.reciprocal %94 {approx = true} : vector<8x1xf32> -> vector<8x1xf32>
    %96 = vector.broadcast %95 : vector<8x1xf32> to vector<8x8xf32>
    %97 = arith.mulf %92, %96 : vector<8x8xf32>
    %98 = arith.truncf %97 : vector<8x8xf32> to vector<8x8xbf16>
    %99 = vector.extract_strided_slice %25 {offsets = [0, 24], sizes = [8, 8], strides = [1, 1]} : vector<8x32xbf16> to vector<8x8xbf16>
    %cst_37 = arith.constant dense<0.000000e+00> : vector<8x8xf32>
    %100 = tpu.matmul %98, %99, %cst_37 {dimension_numbers = #tpu.dot_dimension_numbers<[1], [0], [0], [1], [0, 0, 1, 1], [], []>} : vector<8x8xbf16>, vector<8x8xbf16>, vector<8x8xf32> -> vector<8x8xf32>
    %c0_38 = arith.constant 0 : index
    %c24 = arith.constant 24 : index
    %101 = vector.load %arg11[%c0_38, %c24] : memref<8x32xf32, #tpu.memory_space<vmem>>, vector<8x8xf32>
    tpu.vector_store %arg11[%c0_38, %c24], %100 {strides = array<i32>} : memref<8x32xf32, #tpu.memory_space<vmem>>, vector<8x8xf32>,
    %c0_39 = arith.constant 0 : index
    %c0_40 = arith.constant 0 : index
    %102 = vector.load %arg11[%c0_39, %c0_40] : memref<8x32xf32, #tpu.memory_space<vmem>>, vector<8x32xf32>
    %103 = arith.truncf %102 : vector<8x32xf32> to vector<8x32xbf16>
    %c0_41 = arith.constant 0 : index
    %c0_42 = arith.constant 0 : index
    %104 = vector.load %arg6[%c0_41, %c0_42] : memref<32x32xbf16, #tpu.memory_space<vmem>>, vector<32x32xbf16>
    %cst_43 = arith.constant dense<0.000000e+00> : vector<8x32xf32>
    %105 = tpu.matmul %103, %104, %cst_43 {dimension_numbers = #tpu.dot_dimension_numbers<[1], [0], [0], [1], [0, 0, 1, 1], [], []>} : vector<8x32xbf16>, vector<32x32xbf16>, vector<8x32xf32> -> vector<8x32xf32>
    %c0_44 = arith.constant 0 : index
    %c0_45 = arith.constant 0 : index
    %106 = vector.load %arg7[%c0_44, %c0_45] : memref<1x32xf32, #tpu.memory_space<vmem>>, vector<1x32xf32>
    %107 = vector.broadcast %106 : vector<1x32xf32> to vector<8x32xf32>
    %108 = arith.addf %105, %107 : vector<8x32xf32>
    %109 = arith.addf %1, %108 : vector<8x32xf32>
    %cst_46 = arith.constant dense<0.000000e+00> : vector<8xf32>
    %110 = vector.multi_reduction <add>, %109, %cst_46 [1] : vector<8x32xf32> to vector<8xf32>
    %111 = vector.shape_cast %110 : vector<8xf32> to vector<8x1xf32>
    %cst_47 = arith.constant 3.200000e+01 : f32
    %112 = vector.broadcast %cst_47 : f32 to vector<8x1xf32>
    %113 = arith.divf %111, %112 : vector<8x1xf32>
    %114 = vector.broadcast %113 : vector<8x1xf32> to vector<8x32xf32>
    %115 = arith.subf %109, %114 : vector<8x32xf32>
    %116 = arith.mulf %115, %115 : vector<8x32xf32>
    %cst_48 = arith.constant dense<0.000000e+00> : vector<8xf32>
    %117 = vector.multi_reduction <add>, %116, %cst_48 [1] : vector<8x32xf32> to vector<8xf32>
    %118 = vector.shape_cast %117 : vector<8xf32> to vector<8x1xf32>
    %cst_49 = arith.constant 3.200000e+01 : f32
    %119 = vector.broadcast %cst_49 : f32 to vector<8x1xf32>
    %120 = arith.divf %118, %119 : vector<8x1xf32>
    %121 = vector.broadcast %113 : vector<8x1xf32> to vector<8x32xf32>
    %122 = arith.subf %109, %121 : vector<8x32xf32>
    %cst_50 = arith.constant 9.99999974E-6 : f32
    %123 = vector.broadcast %cst_50 : f32 to vector<8x1xf32>
    %124 = arith.addf %120, %123 : vector<8x1xf32>
    %125 = math.rsqrt %124 : vector<8x1xf32>
    %126 = vector.broadcast %125 : vector<8x1xf32> to vector<8x32xf32>
    %127 = arith.mulf %122, %126 : vector<8x32xf32>
    %c0_51 = arith.constant 0 : index
    %c0_52 = arith.constant 0 : index
    %128 = vector.load %arg8[%c0_51, %c0_52] : memref<1x32xf32, #tpu.memory_space<vmem>>, vector<1x32xf32>
    %129 = vector.broadcast %128 : vector<1x32xf32> to vector<8x32xf32>
    %130 = arith.mulf %127, %129 : vector<8x32xf32>
    %c0_53 = arith.constant 0 : index
    %c0_54 = arith.constant 0 : index
    %131 = vector.load %arg9[%c0_53, %c0_54] : memref<1x32xf32, #tpu.memory_space<vmem>>, vector<1x32xf32>
    %132 = vector.broadcast %131 : vector<1x32xf32> to vector<8x32xf32>
    %133 = arith.addf %130, %132 : vector<8x32xf32>
    %c0_55 = arith.constant 0 : index
    %c0_56 = arith.constant 0 : index
    %c0_57 = arith.constant 0 : index
    %134 = vector.load %arg10[%c0_55, %c0_56, %c0_57] : memref<1x8x32xf32, #tpu.memory_space<vmem>>, vector<1x8x32xf32>
    %135 = vector.shape_cast %134 : vector<1x8x32xf32> to vector<8x32xf32>
    %136 = vector.shape_cast %133 : vector<8x32xf32> to vector<1x8x32xf32>
    tpu.vector_store %arg10[%c0_55, %c0_56, %c0_57], %136 {strides = array<i32>} : memref<1x8x32xf32, #tpu.memory_space<vmem>>, vector<1x8x32xf32>,
    return
  }
  func.func @transform_0(%arg0: i32) -> (i32, i32, i32) {
    %c0_i32 = arith.constant 0 : i32
    %c0_i32_0 = arith.constant 0 : i32
    %c0_i32_1 = arith.constant 0 : i32
    return %arg0, %c0_i32, %c0_i32_0 : i32, i32, i32
  }
  func.func @transform_1(%arg0: i32) -> (i32, i32, i32) {
    %c0_i32 = arith.constant 0 : i32
    %c0_i32_0 = arith.constant 0 : i32
    %c0_i32_1 = arith.constant 0 : i32
    return %arg0, %c0_i32, %c0_i32_0 : i32, i32, i32
  }
  func.func @transform_2(%arg0: i32) -> (i32, i32, i32) {
    %c0_i32 = arith.constant 0 : i32
    %c0_i32_0 = arith.constant 0 : i32
    %c0_i32_1 = arith.constant 0 : i32
    return %arg0, %c0_i32, %c0_i32_0 : i32, i32, i32
  }
  func.func @transform_3(%arg0: i32) -> (i32, i32) {
    %c0_i32 = arith.constant 0 : i32
    %c0_i32_0 = arith.constant 0 : i32
    %c0_i32_1 = arith.constant 0 : i32
    return %c0_i32, %c0_i32_0 : i32, i32
  }
  func.func @transform_4(%arg0: i32) -> (i32, i32) {
    %c0_i32 = arith.constant 0 : i32
    %c0_i32_0 = arith.constant 0 : i32
    %c0_i32_1 = arith.constant 0 : i32
    return %c0_i32, %c0_i32_0 : i32, i32
  }
  func.func @transform_5(%arg0: i32) -> (i32, i32) {
    %c0_i32 = arith.constant 0 : i32
    %c0_i32_0 = arith.constant 0 : i32
    %c0_i32_1 = arith.constant 0 : i32
    return %c0_i32, %c0_i32_0 : i32, i32
  }
  func.func @transform_6(%arg0: i32) -> (i32, i32) {
    %c0_i32 = arith.constant 0 : i32
    %c0_i32_0 = arith.constant 0 : i32
    %c0_i32_1 = arith.constant 0 : i32
    return %c0_i32, %c0_i32_0 : i32, i32
  }
  func.func @transform_7(%arg0: i32) -> (i32, i32) {
    %c0_i32 = arith.constant 0 : i32
    %c0_i32_0 = arith.constant 0 : i32
    %c0_i32_1 = arith.constant 0 : i32
    return %c0_i32, %c0_i32_0 : i32, i32
  }
  func.func @transform_8(%arg0: i32) -> (i32, i32) {
    %c0_i32 = arith.constant 0 : i32
    %c0_i32_0 = arith.constant 0 : i32
    %c0_i32_1 = arith.constant 0 : i32
    return %c0_i32, %c0_i32_0 : i32, i32
  }
  func.func @transform_9(%arg0: i32) -> (i32, i32, i32) {
    %c0_i32 = arith.constant 0 : i32
    %c0_i32_0 = arith.constant 0 : i32
    %c0_i32_1 = arith.constant 0 : i32
    return %arg0, %c0_i32, %c0_i32_0 : i32, i32, i32
  }
}

module attributes {stable_mosaic.version = 11 : i64} {
  func.func @_ffn_ln_kernel(%arg0: i32, %arg1: memref<16x32xf32, #tpu.memory_space<vmem>>, %arg2: memref<32x64xbf16, #tpu.memory_space<vmem>>, %arg3: memref<1x64xf32, #tpu.memory_space<vmem>>, %arg4: memref<64x32xbf16, #tpu.memory_space<vmem>>, %arg5: memref<1x32xf32, #tpu.memory_space<vmem>>, %arg6: memref<1x32xf32, #tpu.memory_space<vmem>>, %arg7: memref<1x32xf32, #tpu.memory_space<vmem>>, %arg8: memref<16x32xf32, #tpu.memory_space<vmem>>) attributes {dimension_semantics = [#tpu.dimension_semantics<parallel>], iteration_bounds = array<i64: 1>, scalar_prefetch = 0 : i64, scratch_operands = 0 : i64, tpu.core_type = #tpu.core_type<tc>, window_params = [{transform_indices = @transform_0, window_bounds = array<i64: 16, 32>}, {pipeline_mode = #tpu.pipeline_mode<synchronous>, transform_indices = @transform_1, window_bounds = array<i64: 32, 64>}, {pipeline_mode = #tpu.pipeline_mode<synchronous>, transform_indices = @transform_2, window_bounds = array<i64: 1, 64>}, {pipeline_mode = #tpu.pipeline_mode<synchronous>, transform_indices = @transform_3, window_bounds = array<i64: 64, 32>}, {pipeline_mode = #tpu.pipeline_mode<synchronous>, transform_indices = @transform_4, window_bounds = array<i64: 1, 32>}, {pipeline_mode = #tpu.pipeline_mode<synchronous>, transform_indices = @transform_5, window_bounds = array<i64: 1, 32>}, {pipeline_mode = #tpu.pipeline_mode<synchronous>, transform_indices = @transform_6, window_bounds = array<i64: 1, 32>}, {transform_indices = @transform_7, window_bounds = array<i64: 16, 32>}]} {
    %c0 = arith.constant 0 : index
    %c0_0 = arith.constant 0 : index
    %0 = vector.load %arg1[%c0, %c0_0] : memref<16x32xf32, #tpu.memory_space<vmem>>, vector<16x32xf32>
    %1 = arith.truncf %0 : vector<16x32xf32> to vector<16x32xbf16>
    %c0_1 = arith.constant 0 : index
    %c0_2 = arith.constant 0 : index
    %2 = vector.load %arg2[%c0_1, %c0_2] : memref<32x64xbf16, #tpu.memory_space<vmem>>, vector<32x64xbf16>
    %cst = arith.constant dense<0.000000e+00> : vector<16x64xf32>
    %3 = tpu.matmul %1, %2, %cst {dimension_numbers = #tpu.dot_dimension_numbers<[1], [0], [0], [1], [0, 0, 1, 1], [], []>} : vector<16x32xbf16>, vector<32x64xbf16>, vector<16x64xf32> -> vector<16x64xf32>
    %c0_3 = arith.constant 0 : index
    %c0_4 = arith.constant 0 : index
    %4 = vector.load %arg3[%c0_3, %c0_4] : memref<1x64xf32, #tpu.memory_space<vmem>>, vector<1x64xf32>
    %5 = vector.broadcast %4 : vector<1x64xf32> to vector<16x64xf32>
    %6 = arith.addf %3, %5 : vector<16x64xf32>
    %cst_5 = arith.constant 0.000000e+00 : f32
    %7 = vector.broadcast %cst_5 : f32 to vector<16x64xf32>
    %8 = arith.maximumf %6, %7 : vector<16x64xf32>
    %9 = arith.truncf %8 : vector<16x64xf32> to vector<16x64xbf16>
    %c0_6 = arith.constant 0 : index
    %c0_7 = arith.constant 0 : index
    %10 = vector.load %arg4[%c0_6, %c0_7] : memref<64x32xbf16, #tpu.memory_space<vmem>>, vector<64x32xbf16>
    %cst_8 = arith.constant dense<0.000000e+00> : vector<16x32xf32>
    %11 = tpu.matmul %9, %10, %cst_8 {dimension_numbers = #tpu.dot_dimension_numbers<[1], [0], [0], [1], [0, 0, 1, 1], [], []>} : vector<16x64xbf16>, vector<64x32xbf16>, vector<16x32xf32> -> vector<16x32xf32>
    %c0_9 = arith.constant 0 : index
    %c0_10 = arith.constant 0 : index
    %12 = vector.load %arg5[%c0_9, %c0_10] : memref<1x32xf32, #tpu.memory_space<vmem>>, vector<1x32xf32>
    %13 = vector.broadcast %12 : vector<1x32xf32> to vector<16x32xf32>
    %14 = arith.addf %11, %13 : vector<16x32xf32>
    %15 = arith.addf %0, %14 : vector<16x32xf32>
    %cst_11 = arith.constant dense<0.000000e+00> : vector<16xf32>
    %16 = vector.multi_reduction <add>, %15, %cst_11 [1] : vector<16x32xf32> to vector<16xf32>
    %17 = vector.shape_cast %16 : vector<16xf32> to vector<16x1xf32>
    %cst_12 = arith.constant 3.200000e+01 : f32
    %18 = vector.broadcast %cst_12 : f32 to vector<16x1xf32>
    %19 = arith.divf %17, %18 : vector<16x1xf32>
    %20 = vector.broadcast %19 : vector<16x1xf32> to vector<16x32xf32>
    %21 = arith.subf %15, %20 : vector<16x32xf32>
    %22 = arith.mulf %21, %21 : vector<16x32xf32>
    %cst_13 = arith.constant dense<0.000000e+00> : vector<16xf32>
    %23 = vector.multi_reduction <add>, %22, %cst_13 [1] : vector<16x32xf32> to vector<16xf32>
    %24 = vector.shape_cast %23 : vector<16xf32> to vector<16x1xf32>
    %cst_14 = arith.constant 3.200000e+01 : f32
    %25 = vector.broadcast %cst_14 : f32 to vector<16x1xf32>
    %26 = arith.divf %24, %25 : vector<16x1xf32>
    %27 = vector.broadcast %19 : vector<16x1xf32> to vector<16x32xf32>
    %28 = arith.subf %15, %27 : vector<16x32xf32>
    %cst_15 = arith.constant 9.99999974E-6 : f32
    %29 = vector.broadcast %cst_15 : f32 to vector<16x1xf32>
    %30 = arith.addf %26, %29 : vector<16x1xf32>
    %31 = math.rsqrt %30 : vector<16x1xf32>
    %32 = vector.broadcast %31 : vector<16x1xf32> to vector<16x32xf32>
    %33 = arith.mulf %28, %32 : vector<16x32xf32>
    %c0_16 = arith.constant 0 : index
    %c0_17 = arith.constant 0 : index
    %34 = vector.load %arg6[%c0_16, %c0_17] : memref<1x32xf32, #tpu.memory_space<vmem>>, vector<1x32xf32>
    %35 = vector.broadcast %34 : vector<1x32xf32> to vector<16x32xf32>
    %36 = arith.mulf %33, %35 : vector<16x32xf32>
    %c0_18 = arith.constant 0 : index
    %c0_19 = arith.constant 0 : index
    %37 = vector.load %arg7[%c0_18, %c0_19] : memref<1x32xf32, #tpu.memory_space<vmem>>, vector<1x32xf32>
    %38 = vector.broadcast %37 : vector<1x32xf32> to vector<16x32xf32>
    %39 = arith.addf %36, %38 : vector<16x32xf32>
    %c0_20 = arith.constant 0 : index
    %c0_21 = arith.constant 0 : index
    %40 = vector.load %arg8[%c0_20, %c0_21] : memref<16x32xf32, #tpu.memory_space<vmem>>, vector<16x32xf32>
    tpu.vector_store %arg8[%c0_20, %c0_21], %39 {strides = array<i32>} : memref<16x32xf32, #tpu.memory_space<vmem>>, vector<16x32xf32>,
    return
  }
  func.func @transform_0(%arg0: i32) -> (i32, i32) {
    %c0_i32 = arith.constant 0 : i32
    %c0_i32_0 = arith.constant 0 : i32
    return %arg0, %c0_i32 : i32, i32
  }
  func.func @transform_1(%arg0: i32) -> (i32, i32) {
    %c0_i32 = arith.constant 0 : i32
    %c0_i32_0 = arith.constant 0 : i32
    %c0_i32_1 = arith.constant 0 : i32
    return %c0_i32, %c0_i32_0 : i32, i32
  }
  func.func @transform_2(%arg0: i32) -> (i32, i32) {
    %c0_i32 = arith.constant 0 : i32
    %c0_i32_0 = arith.constant 0 : i32
    %c0_i32_1 = arith.constant 0 : i32
    return %c0_i32, %c0_i32_0 : i32, i32
  }
  func.func @transform_3(%arg0: i32) -> (i32, i32) {
    %c0_i32 = arith.constant 0 : i32
    %c0_i32_0 = arith.constant 0 : i32
    %c0_i32_1 = arith.constant 0 : i32
    return %c0_i32, %c0_i32_0 : i32, i32
  }
  func.func @transform_4(%arg0: i32) -> (i32, i32) {
    %c0_i32 = arith.constant 0 : i32
    %c0_i32_0 = arith.constant 0 : i32
    %c0_i32_1 = arith.constant 0 : i32
    return %c0_i32, %c0_i32_0 : i32, i32
  }
  func.func @transform_5(%arg0: i32) -> (i32, i32) {
    %c0_i32 = arith.constant 0 : i32
    %c0_i32_0 = arith.constant 0 : i32
    %c0_i32_1 = arith.constant 0 : i32
    return %c0_i32, %c0_i32_0 : i32, i32
  }
  func.func @transform_6(%arg0: i32) -> (i32, i32) {
    %c0_i32 = arith.constant 0 : i32
    %c0_i32_0 = arith.constant 0 : i32
    %c0_i32_1 = arith.constant 0 : i32
    return %c0_i32, %c0_i32_0 : i32, i32
  }
  func.func @transform_7(%arg0: i32) -> (i32, i32) {
    %c0_i32 = arith.constant 0 : i32
    %c0_i32_0 = arith.constant 0 : i32
    return %arg0, %c0_i32 : i32, i32
  }
}

module attributes {stable_mosaic.version = 11 : i64} {
  func.func @_self_attn_ln_kernel(%arg0: i32, %arg1: memref<1x8x32xf32, #tpu.memory_space<vmem>>, %arg2: memref<1x8x1xf32, #tpu.memory_space<vmem>>, %arg3: memref<1x1x8xf32, #tpu.memory_space<vmem>>, %arg4: memref<32x96xbf16, #tpu.memory_space<vmem>>, %arg5: memref<1x96xf32, #tpu.memory_space<vmem>>, %arg6: memref<32x32xbf16, #tpu.memory_space<vmem>>, %arg7: memref<1x32xf32, #tpu.memory_space<vmem>>, %arg8: memref<1x32xf32, #tpu.memory_space<vmem>>, %arg9: memref<1x32xf32, #tpu.memory_space<vmem>>, %arg10: memref<1x8x32xf32, #tpu.memory_space<vmem>>, %arg11: memref<8x32xf32, #tpu.memory_space<vmem>>) attributes {dimension_semantics = [#tpu.dimension_semantics<parallel>], iteration_bounds = array<i64: 2>, scalar_prefetch = 0 : i64, scratch_operands = 1 : i64, tpu.core_type = #tpu.core_type<tc>, window_params = [{transform_indices = @transform_0, window_bounds = array<i64: 1, 8, 32>}, {transform_indices = @transform_1, window_bounds = array<i64: 1, 8, 1>}, {transform_indices = @transform_2, window_bounds = array<i64: 1, 1, 8>}, {pipeline_mode = #tpu.pipeline_mode<synchronous>, transform_indices = @transform_3, window_bounds = array<i64: 32, 96>}, {pipeline_mode = #tpu.pipeline_mode<synchronous>, transform_indices = @transform_4, window_bounds = array<i64: 1, 96>}, {pipeline_mode = #tpu.pipeline_mode<synchronous>, transform_indices = @transform_5, window_bounds = array<i64: 32, 32>}, {pipeline_mode = #tpu.pipeline_mode<synchronous>, transform_indices = @transform_6, window_bounds = array<i64: 1, 32>}, {pipeline_mode = #tpu.pipeline_mode<synchronous>, transform_indices = @transform_7, window_bounds = array<i64: 1, 32>}, {pipeline_mode = #tpu.pipeline_mode<synchronous>, transform_indices = @transform_8, window_bounds = array<i64: 1, 32>}, {transform_indices = @transform_9, window_bounds = array<i64: 1, 8, 32>}]} {
    %c0 = arith.constant 0 : index
    %c0_0 = arith.constant 0 : index
    %c0_1 = arith.constant 0 : index
    %0 = vector.load %arg1[%c0, %c0_0, %c0_1] : memref<1x8x32xf32, #tpu.memory_space<vmem>>, vector<1x8x32xf32>
    %1 = vector.shape_cast %0 : vector<1x8x32xf32> to vector<8x32xf32>
    %2 = arith.truncf %1 : vector<8x32xf32> to vector<8x32xbf16>
    %c0_2 = arith.constant 0 : index
    %c0_3 = arith.constant 0 : index
    %3 = vector.load %arg4[%c0_2, %c0_3] : memref<32x96xbf16, #tpu.memory_space<vmem>>, vector<32x96xbf16>
    %cst = arith.constant dense<0.000000e+00> : vector<8x96xf32>
    %4 = tpu.matmul %2, %3, %cst {dimension_numbers = #tpu.dot_dimension_numbers<[1], [0], [0], [1], [0, 0, 1, 1], [], []>} : vector<8x32xbf16>, vector<32x96xbf16>, vector<8x96xf32> -> vector<8x96xf32>
    %c0_4 = arith.constant 0 : index
    %c0_5 = arith.constant 0 : index
    %5 = vector.load %arg5[%c0_4, %c0_5] : memref<1x96xf32, #tpu.memory_space<vmem>>, vector<1x96xf32>
    %6 = vector.broadcast %5 : vector<1x96xf32> to vector<8x96xf32>
    %7 = arith.addf %4, %6 : vector<8x96xf32>
    %8 = vector.extract_strided_slice %7 {offsets = [0, 0], sizes = [8, 32], strides = [1, 1]} : vector<8x96xf32> to vector<8x32xf32>
    %9 = vector.extract_strided_slice %7 {offsets = [0, 32], sizes = [8, 32], strides = [1, 1]} : vector<8x96xf32> to vector<8x32xf32>
    %10 = vector.extract_strided_slice %7 {offsets = [0, 64], sizes = [8, 32], strides = [1, 1]} : vector<8x96xf32> to vector<8x32xf32>
    %c0_6 = arith.constant 0 : index
    %c0_7 = arith.constant 0 : index
    %c0_8 = arith.constant 0 : index
    %11 = vector.load %arg2[%c0_6, %c0_7, %c0_8] : memref<1x8x1xf32, #tpu.memory_space<vmem>>, vector<1x8x1xf32>
    %12 = vector.shape_cast %11 : vector<1x8x1xf32> to vector<8x1xf32>
    %c0_9 = arith.constant 0 : index
    %c0_10 = arith.constant 0 : index
    %c0_11 = arith.constant 0 : index
    %13 = vector.load %arg3[%c0_9, %c0_10, %c0_11] : memref<1x1x8xf32, #tpu.memory_space<vmem>>, vector<1x1x8xf32>
    %14 = vector.shape_cast %13 : vector<1x1x8xf32> to vector<1x8xf32>
    %cst_12 = arith.constant 0.000000e+00 : f32
    %15 = vector.broadcast %cst_12 : f32 to vector<8x1xf32>
    %16 = arith.cmpf ogt, %12, %15 : vector<8x1xf32>
    %cst_13 = arith.constant 0.000000e+00 : f32
    %17 = vector.broadcast %cst_13 : f32 to vector<1x8xf32>
    %18 = arith.cmpf ogt, %14, %17 : vector<1x8xf32>
    %19 = vector.broadcast %16 : vector<8x1xi1> to vector<8x8xi1>
    %20 = vector.broadcast %18 : vector<1x8xi1> to vector<8x8xi1>
    %21 = arith.andi %19, %20 : vector<8x8xi1>
    %22 = tpu.iota {dimensions = array<i32: 0>} : vector<8x8xi32>
    %23 = tpu.iota {dimensions = array<i32: 1>} : vector<8x8xi32>
    %24 = arith.cmpi sle, %23, %22 : vector<8x8xi32>
    %25 = arith.andi %21, %24 : vector<8x8xi1>
    %26 = tpu.transpose %9, [1, 0] : vector<8x32xf32> -> vector<32x8xf32>
    %27 = arith.truncf %26 : vector<32x8xf32> to vector<32x8xbf16>
    %28 = arith.truncf %8 : vector<8x32xf32> to vector<8x32xbf16>
    %29 = arith.truncf %10 : vector<8x32xf32> to vector<8x32xbf16>
    %30 = vector.extract_strided_slice %28 {offsets = [0, 0], sizes = [8, 8], strides = [1, 1]} : vector<8x32xbf16> to vector<8x8xbf16>
    %31 = vector.extract_strided_slice %27 {offsets = [0, 0], sizes = [8, 8], strides = [1, 1]} : vector<32x8xbf16> to vector<8x8xbf16>
    %cst_14 = arith.constant dense<0.000000e+00> : vector<8x8xf32>
    %32 = tpu.matmul %30, %31, %cst_14 {dimension_numbers = #tpu.dot_dimension_numbers<[1], [0], [0], [1], [0, 0, 1, 1], [], []>} : vector<8x8xbf16>, vector<8x8xbf16>, vector<8x8xf32> -> vector<8x8xf32>
    %cst_15 = arith.constant -1.000000e+09 : f32
    %33 = vector.broadcast %cst_15 : f32 to vector<8x8xf32>
    %34 = arith.select %25, %32, %33 : vector<8x8xi1>, vector<8x8xf32>
    %cst_16 = arith.constant dense<0xFF800000> : vector<8xf32>
    %35 = vector.multi_reduction <maximumf>, %34, %cst_16 [1] : vector<8x8xf32> to vector<8xf32>
    %36 = vector.shape_cast %35 : vector<8xf32> to vector<8x1xf32>
    %37 = vector.broadcast %36 : vector<8x1xf32> to vector<8x8xf32>
    %38 = arith.subf %34, %37 : vector<8x8xf32>
    %39 = math.exp %38 : vector<8x8xf32>
    %cst_17 = arith.constant dense<0.000000e+00> : vector<8xf32>
    %40 = vector.multi_reduction <add>, %39, %cst_17 [1] : vector<8x8xf32> to vector<8xf32>
    %41 = vector.shape_cast %40 : vector<8xf32> to vector<8x1xf32>
    %42 = tpu.reciprocal %41 {approx = true} : vector<8x1xf32> -> vector<8x1xf32>
    %43 = vector.broadcast %42 : vector<8x1xf32> to vector<8x8xf32>
    %44 = arith.mulf %39, %43 : vector<8x8xf32>
    %45 = arith.truncf %44 : vector<8x8xf32> to vector<8x8xbf16>
    %46 = vector.extract_strided_slice %29 {offsets = [0, 0], sizes = [8, 8], strides = [1, 1]} : vector<8x32xbf16> to vector<8x8xbf16>
    %cst_18 = arith.constant dense<0.000000e+00> : vector<8x8xf32>
    %47 = tpu.matmul %45, %46, %cst_18 {dimension_numbers = #tpu.dot_dimension_numbers<[1], [0], [0], [1], [0, 0, 1, 1], [], []>} : vector<8x8xbf16>, vector<8x8xbf16>, vector<8x8xf32> -> vector<8x8xf32>
    %c0_19 = arith.constant 0 : index
    %c0_20 = arith.constant 0 : index
    %48 = vector.load %arg11[%c0_19, %c0_20] : memref<8x32xf32, #tpu.memory_space<vmem>>, vector<8x8xf32>
    tpu.vector_store %arg11[%c0_19, %c0_20], %47 {strides = array<i32>} : memref<8x32xf32, #tpu.memory_space<vmem>>, vector<8x8xf32>,
    %49 = vector.extract_strided_slice %28 {offsets = [0, 8], sizes = [8, 8], strides = [1, 1]} : vector<8x32xbf16> to vector<8x8xbf16>
    %50 = vector.extract_strided_slice %27 {offsets = [8, 0], sizes = [8, 8], strides = [1, 1]} : vector<32x8xbf16> to vector<8x8xbf16>
    %cst_21 = arith.constant dense<0.000000e+00> : vector<8x8xf32>
    %51 = tpu.matmul %49, %50, %cst_21 {dimension_numbers = #tpu.dot_dimension_numbers<[1], [0], [0], [1], [0, 0, 1, 1], [], []>} : vector<8x8xbf16>, vector<8x8xbf16>, vector<8x8xf32> -> vector<8x8xf32>
    %cst_22 = arith.constant -1.000000e+09 : f32
    %52 = vector.broadcast %cst_22 : f32 to vector<8x8xf32>
    %53 = arith.select %25, %51, %52 : vector<8x8xi1>, vector<8x8xf32>
    %cst_23 = arith.constant dense<0xFF800000> : vector<8xf32>
    %54 = vector.multi_reduction <maximumf>, %53, %cst_23 [1] : vector<8x8xf32> to vector<8xf32>
    %55 = vector.shape_cast %54 : vector<8xf32> to vector<8x1xf32>
    %56 = vector.broadcast %55 : vector<8x1xf32> to vector<8x8xf32>
    %57 = arith.subf %53, %56 : vector<8x8xf32>
    %58 = math.exp %57 : vector<8x8xf32>
    %cst_24 = arith.constant dense<0.000000e+00> : vector<8xf32>
    %59 = vector.multi_reduction <add>, %58, %cst_24 [1] : vector<8x8xf32> to vector<8xf32>
    %60 = vector.shape_cast %59 : vector<8xf32> to vector<8x1xf32>
    %61 = tpu.reciprocal %60 {approx = true} : vector<8x1xf32> -> vector<8x1xf32>
    %62 = vector.broadcast %61 : vector<8x1xf32> to vector<8x8xf32>
    %63 = arith.mulf %58, %62 : vector<8x8xf32>
    %64 = arith.truncf %63 : vector<8x8xf32> to vector<8x8xbf16>
    %65 = vector.extract_strided_slice %29 {offsets = [0, 8], sizes = [8, 8], strides = [1, 1]} : vector<8x32xbf16> to vector<8x8xbf16>
    %cst_25 = arith.constant dense<0.000000e+00> : vector<8x8xf32>
    %66 = tpu.matmul %64, %65, %cst_25 {dimension_numbers = #tpu.dot_dimension_numbers<[1], [0], [0], [1], [0, 0, 1, 1], [], []>} : vector<8x8xbf16>, vector<8x8xbf16>, vector<8x8xf32> -> vector<8x8xf32>
    %c0_26 = arith.constant 0 : index
    %c8 = arith.constant 8 : index
    %67 = vector.load %arg11[%c0_26, %c8] : memref<8x32xf32, #tpu.memory_space<vmem>>, vector<8x8xf32>
    tpu.vector_store %arg11[%c0_26, %c8], %66 {strides = array<i32>} : memref<8x32xf32, #tpu.memory_space<vmem>>, vector<8x8xf32>,
    %68 = vector.extract_strided_slice %28 {offsets = [0, 16], sizes = [8, 8], strides = [1, 1]} : vector<8x32xbf16> to vector<8x8xbf16>
    %69 = vector.extract_strided_slice %27 {offsets = [16, 0], sizes = [8, 8], strides = [1, 1]} : vector<32x8xbf16> to vector<8x8xbf16>
    %cst_27 = arith.constant dense<0.000000e+00> : vector<8x8xf32>
    %70 = tpu.matmul %68, %69, %cst_27 {dimension_numbers = #tpu.dot_dimension_numbers<[1], [0], [0], [1], [0, 0, 1, 1], [], []>} : vector<8x8xbf16>, vector<8x8xbf16>, vector<8x8xf32> -> vector<8x8xf32>
    %cst_28 = arith.constant -1.000000e+09 : f32
    %71 = vector.broadcast %cst_28 : f32 to vector<8x8xf32>
    %72 = arith.select %25, %70, %71 : vector<8x8xi1>, vector<8x8xf32>
    %cst_29 = arith.constant dense<0xFF800000> : vector<8xf32>
    %73 = vector.multi_reduction <maximumf>, %72, %cst_29 [1] : vector<8x8xf32> to vector<8xf32>
    %74 = vector.shape_cast %73 : vector<8xf32> to vector<8x1xf32>
    %75 = vector.broadcast %74 : vector<8x1xf32> to vector<8x8xf32>
    %76 = arith.subf %72, %75 : vector<8x8xf32>
    %77 = math.exp %76 : vector<8x8xf32>
    %cst_30 = arith.constant dense<0.000000e+00> : vector<8xf32>
    %78 = vector.multi_reduction <add>, %77, %cst_30 [1] : vector<8x8xf32> to vector<8xf32>
    %79 = vector.shape_cast %78 : vector<8xf32> to vector<8x1xf32>
    %80 = tpu.reciprocal %79 {approx = true} : vector<8x1xf32> -> vector<8x1xf32>
    %81 = vector.broadcast %80 : vector<8x1xf32> to vector<8x8xf32>
    %82 = arith.mulf %77, %81 : vector<8x8xf32>
    %83 = arith.truncf %82 : vector<8x8xf32> to vector<8x8xbf16>
    %84 = vector.extract_strided_slice %29 {offsets = [0, 16], sizes = [8, 8], strides = [1, 1]} : vector<8x32xbf16> to vector<8x8xbf16>
    %cst_31 = arith.constant dense<0.000000e+00> : vector<8x8xf32>
    %85 = tpu.matmul %83, %84, %cst_31 {dimension_numbers = #tpu.dot_dimension_numbers<[1], [0], [0], [1], [0, 0, 1, 1], [], []>} : vector<8x8xbf16>, vector<8x8xbf16>, vector<8x8xf32> -> vector<8x8xf32>
    %c0_32 = arith.constant 0 : index
    %c16 = arith.constant 16 : index
    %86 = vector.load %arg11[%c0_32, %c16] : memref<8x32xf32, #tpu.memory_space<vmem>>, vector<8x8xf32>
    tpu.vector_store %arg11[%c0_32, %c16], %85 {strides = array<i32>} : memref<8x32xf32, #tpu.memory_space<vmem>>, vector<8x8xf32>,
    %87 = vector.extract_strided_slice %28 {offsets = [0, 24], sizes = [8, 8], strides = [1, 1]} : vector<8x32xbf16> to vector<8x8xbf16>
    %88 = vector.extract_strided_slice %27 {offsets = [24, 0], sizes = [8, 8], strides = [1, 1]} : vector<32x8xbf16> to vector<8x8xbf16>
    %cst_33 = arith.constant dense<0.000000e+00> : vector<8x8xf32>
    %89 = tpu.matmul %87, %88, %cst_33 {dimension_numbers = #tpu.dot_dimension_numbers<[1], [0], [0], [1], [0, 0, 1, 1], [], []>} : vector<8x8xbf16>, vector<8x8xbf16>, vector<8x8xf32> -> vector<8x8xf32>
    %cst_34 = arith.constant -1.000000e+09 : f32
    %90 = vector.broadcast %cst_34 : f32 to vector<8x8xf32>
    %91 = arith.select %25, %89, %90 : vector<8x8xi1>, vector<8x8xf32>
    %cst_35 = arith.constant dense<0xFF800000> : vector<8xf32>
    %92 = vector.multi_reduction <maximumf>, %91, %cst_35 [1] : vector<8x8xf32> to vector<8xf32>
    %93 = vector.shape_cast %92 : vector<8xf32> to vector<8x1xf32>
    %94 = vector.broadcast %93 : vector<8x1xf32> to vector<8x8xf32>
    %95 = arith.subf %91, %94 : vector<8x8xf32>
    %96 = math.exp %95 : vector<8x8xf32>
    %cst_36 = arith.constant dense<0.000000e+00> : vector<8xf32>
    %97 = vector.multi_reduction <add>, %96, %cst_36 [1] : vector<8x8xf32> to vector<8xf32>
    %98 = vector.shape_cast %97 : vector<8xf32> to vector<8x1xf32>
    %99 = tpu.reciprocal %98 {approx = true} : vector<8x1xf32> -> vector<8x1xf32>
    %100 = vector.broadcast %99 : vector<8x1xf32> to vector<8x8xf32>
    %101 = arith.mulf %96, %100 : vector<8x8xf32>
    %102 = arith.truncf %101 : vector<8x8xf32> to vector<8x8xbf16>
    %103 = vector.extract_strided_slice %29 {offsets = [0, 24], sizes = [8, 8], strides = [1, 1]} : vector<8x32xbf16> to vector<8x8xbf16>
    %cst_37 = arith.constant dense<0.000000e+00> : vector<8x8xf32>
    %104 = tpu.matmul %102, %103, %cst_37 {dimension_numbers = #tpu.dot_dimension_numbers<[1], [0], [0], [1], [0, 0, 1, 1], [], []>} : vector<8x8xbf16>, vector<8x8xbf16>, vector<8x8xf32> -> vector<8x8xf32>
    %c0_38 = arith.constant 0 : index
    %c24 = arith.constant 24 : index
    %105 = vector.load %arg11[%c0_38, %c24] : memref<8x32xf32, #tpu.memory_space<vmem>>, vector<8x8xf32>
    tpu.vector_store %arg11[%c0_38, %c24], %104 {strides = array<i32>} : memref<8x32xf32, #tpu.memory_space<vmem>>, vector<8x8xf32>,
    %c0_39 = arith.constant 0 : index
    %c0_40 = arith.constant 0 : index
    %106 = vector.load %arg11[%c0_39, %c0_40] : memref<8x32xf32, #tpu.memory_space<vmem>>, vector<8x32xf32>
    %107 = arith.truncf %106 : vector<8x32xf32> to vector<8x32xbf16>
    %c0_41 = arith.constant 0 : index
    %c0_42 = arith.constant 0 : index
    %108 = vector.load %arg6[%c0_41, %c0_42] : memref<32x32xbf16, #tpu.memory_space<vmem>>, vector<32x32xbf16>
    %cst_43 = arith.constant dense<0.000000e+00> : vector<8x32xf32>
    %109 = tpu.matmul %107, %108, %cst_43 {dimension_numbers = #tpu.dot_dimension_numbers<[1], [0], [0], [1], [0, 0, 1, 1], [], []>} : vector<8x32xbf16>, vector<32x32xbf16>, vector<8x32xf32> -> vector<8x32xf32>
    %c0_44 = arith.constant 0 : index
    %c0_45 = arith.constant 0 : index
    %110 = vector.load %arg7[%c0_44, %c0_45] : memref<1x32xf32, #tpu.memory_space<vmem>>, vector<1x32xf32>
    %111 = vector.broadcast %110 : vector<1x32xf32> to vector<8x32xf32>
    %112 = arith.addf %109, %111 : vector<8x32xf32>
    %113 = arith.addf %1, %112 : vector<8x32xf32>
    %cst_46 = arith.constant dense<0.000000e+00> : vector<8xf32>
    %114 = vector.multi_reduction <add>, %113, %cst_46 [1] : vector<8x32xf32> to vector<8xf32>
    %115 = vector.shape_cast %114 : vector<8xf32> to vector<8x1xf32>
    %cst_47 = arith.constant 3.200000e+01 : f32
    %116 = vector.broadcast %cst_47 : f32 to vector<8x1xf32>
    %117 = arith.divf %115, %116 : vector<8x1xf32>
    %118 = vector.broadcast %117 : vector<8x1xf32> to vector<8x32xf32>
    %119 = arith.subf %113, %118 : vector<8x32xf32>
    %120 = arith.mulf %119, %119 : vector<8x32xf32>
    %cst_48 = arith.constant dense<0.000000e+00> : vector<8xf32>
    %121 = vector.multi_reduction <add>, %120, %cst_48 [1] : vector<8x32xf32> to vector<8xf32>
    %122 = vector.shape_cast %121 : vector<8xf32> to vector<8x1xf32>
    %cst_49 = arith.constant 3.200000e+01 : f32
    %123 = vector.broadcast %cst_49 : f32 to vector<8x1xf32>
    %124 = arith.divf %122, %123 : vector<8x1xf32>
    %125 = vector.broadcast %117 : vector<8x1xf32> to vector<8x32xf32>
    %126 = arith.subf %113, %125 : vector<8x32xf32>
    %cst_50 = arith.constant 9.99999974E-6 : f32
    %127 = vector.broadcast %cst_50 : f32 to vector<8x1xf32>
    %128 = arith.addf %124, %127 : vector<8x1xf32>
    %129 = math.rsqrt %128 : vector<8x1xf32>
    %130 = vector.broadcast %129 : vector<8x1xf32> to vector<8x32xf32>
    %131 = arith.mulf %126, %130 : vector<8x32xf32>
    %c0_51 = arith.constant 0 : index
    %c0_52 = arith.constant 0 : index
    %132 = vector.load %arg8[%c0_51, %c0_52] : memref<1x32xf32, #tpu.memory_space<vmem>>, vector<1x32xf32>
    %133 = vector.broadcast %132 : vector<1x32xf32> to vector<8x32xf32>
    %134 = arith.mulf %131, %133 : vector<8x32xf32>
    %c0_53 = arith.constant 0 : index
    %c0_54 = arith.constant 0 : index
    %135 = vector.load %arg9[%c0_53, %c0_54] : memref<1x32xf32, #tpu.memory_space<vmem>>, vector<1x32xf32>
    %136 = vector.broadcast %135 : vector<1x32xf32> to vector<8x32xf32>
    %137 = arith.addf %134, %136 : vector<8x32xf32>
    %c0_55 = arith.constant 0 : index
    %c0_56 = arith.constant 0 : index
    %c0_57 = arith.constant 0 : index
    %138 = vector.load %arg10[%c0_55, %c0_56, %c0_57] : memref<1x8x32xf32, #tpu.memory_space<vmem>>, vector<1x8x32xf32>
    %139 = vector.shape_cast %138 : vector<1x8x32xf32> to vector<8x32xf32>
    %140 = vector.shape_cast %137 : vector<8x32xf32> to vector<1x8x32xf32>
    tpu.vector_store %arg10[%c0_55, %c0_56, %c0_57], %140 {strides = array<i32>} : memref<1x8x32xf32, #tpu.memory_space<vmem>>, vector<1x8x32xf32>,
    return
  }
  func.func @transform_0(%arg0: i32) -> (i32, i32, i32) {
    %c0_i32 = arith.constant 0 : i32
    %c0_i32_0 = arith.constant 0 : i32
    %c0_i32_1 = arith.constant 0 : i32
    return %arg0, %c0_i32, %c0_i32_0 : i32, i32, i32
  }
  func.func @transform_1(%arg0: i32) -> (i32, i32, i32) {
    %c0_i32 = arith.constant 0 : i32
    %c0_i32_0 = arith.constant 0 : i32
    %c0_i32_1 = arith.constant 0 : i32
    return %arg0, %c0_i32, %c0_i32_0 : i32, i32, i32
  }
  func.func @transform_2(%arg0: i32) -> (i32, i32, i32) {
    %c0_i32 = arith.constant 0 : i32
    %c0_i32_0 = arith.constant 0 : i32
    %c0_i32_1 = arith.constant 0 : i32
    return %arg0, %c0_i32, %c0_i32_0 : i32, i32, i32
  }
  func.func @transform_3(%arg0: i32) -> (i32, i32) {
    %c0_i32 = arith.constant 0 : i32
    %c0_i32_0 = arith.constant 0 : i32
    %c0_i32_1 = arith.constant 0 : i32
    return %c0_i32, %c0_i32_0 : i32, i32
  }
  func.func @transform_4(%arg0: i32) -> (i32, i32) {
    %c0_i32 = arith.constant 0 : i32
    %c0_i32_0 = arith.constant 0 : i32
    %c0_i32_1 = arith.constant 0 : i32
    return %c0_i32, %c0_i32_0 : i32, i32
  }
  func.func @transform_5(%arg0: i32) -> (i32, i32) {
    %c0_i32 = arith.constant 0 : i32
    %c0_i32_0 = arith.constant 0 : i32
    %c0_i32_1 = arith.constant 0 : i32
    return %c0_i32, %c0_i32_0 : i32, i32
  }
  func.func @transform_6(%arg0: i32) -> (i32, i32) {
    %c0_i32 = arith.constant 0 : i32
    %c0_i32_0 = arith.constant 0 : i32
    %c0_i32_1 = arith.constant 0 : i32
    return %c0_i32, %c0_i32_0 : i32, i32
  }
  func.func @transform_7(%arg0: i32) -> (i32, i32) {
    %c0_i32 = arith.constant 0 : i32
    %c0_i32_0 = arith.constant 0 : i32
    %c0_i32_1 = arith.constant 0 : i32
    return %c0_i32, %c0_i32_0 : i32, i32
  }
  func.func @transform_8(%arg0: i32) -> (i32, i32) {
    %c0_i32 = arith.constant 0 : i32
    %c0_i32_0 = arith.constant 0 : i32
    %c0_i32_1 = arith.constant 0 : i32
    return %c0_i32, %c0_i32_0 : i32, i32
  }
  func.func @transform_9(%arg0: i32) -> (i32, i32, i32) {
    %c0_i32 = arith.constant 0 : i32
    %c0_i32_0 = arith.constant 0 : i32
    %c0_i32_1 = arith.constant 0 : i32
    return %arg0, %c0_i32, %c0_i32_0 : i32, i32, i32
  }
}

module attributes {stable_mosaic.version = 11 : i64} {
  func.func @_cross_attn_ln_kernel(%arg0: i32, %arg1: memref<1x8x32xf32, #tpu.memory_space<vmem>>, %arg2: memref<1x8x32xf32, #tpu.memory_space<vmem>>, %arg3: memref<1x8x1xf32, #tpu.memory_space<vmem>>, %arg4: memref<1x1x8xf32, #tpu.memory_space<vmem>>, %arg5: memref<32x32xbf16, #tpu.memory_space<vmem>>, %arg6: memref<1x32xf32, #tpu.memory_space<vmem>>, %arg7: memref<32x64xbf16, #tpu.memory_space<vmem>>, %arg8: memref<1x64xf32, #tpu.memory_space<vmem>>, %arg9: memref<32x32xbf16, #tpu.memory_space<vmem>>, %arg10: memref<1x32xf32, #tpu.memory_space<vmem>>, %arg11: memref<1x32xf32, #tpu.memory_space<vmem>>, %arg12: memref<1x32xf32, #tpu.memory_space<vmem>>, %arg13: memref<1x8x32xf32, #tpu.memory_space<vmem>>, %arg14: memref<8x32xf32, #tpu.memory_space<vmem>>) attributes {dimension_semantics = [#tpu.dimension_semantics<parallel>], iteration_bounds = array<i64: 2>, scalar_prefetch = 0 : i64, scratch_operands = 1 : i64, tpu.core_type = #tpu.core_type<tc>, window_params = [{transform_indices = @transform_0, window_bounds = array<i64: 1, 8, 32>}, {transform_indices = @transform_1, window_bounds = array<i64: 1, 8, 32>}, {transform_indices = @transform_2, window_bounds = array<i64: 1, 8, 1>}, {transform_indices = @transform_3, window_bounds = array<i64: 1, 1, 8>}, {pipeline_mode = #tpu.pipeline_mode<synchronous>, transform_indices = @transform_4, window_bounds = array<i64: 32, 32>}, {pipeline_mode = #tpu.pipeline_mode<synchronous>, transform_indices = @transform_5, window_bounds = array<i64: 1, 32>}, {pipeline_mode = #tpu.pipeline_mode<synchronous>, transform_indices = @transform_6, window_bounds = array<i64: 32, 64>}, {pipeline_mode = #tpu.pipeline_mode<synchronous>, transform_indices = @transform_7, window_bounds = array<i64: 1, 64>}, {pipeline_mode = #tpu.pipeline_mode<synchronous>, transform_indices = @transform_8, window_bounds = array<i64: 32, 32>}, {pipeline_mode = #tpu.pipeline_mode<synchronous>, transform_indices = @transform_9, window_bounds = array<i64: 1, 32>}, {pipeline_mode = #tpu.pipeline_mode<synchronous>, transform_indices = @transform_10, window_bounds = array<i64: 1, 32>}, {pipeline_mode = #tpu.pipeline_mode<synchronous>, transform_indices = @transform_11, window_bounds = array<i64: 1, 32>}, {transform_indices = @transform_12, window_bounds = array<i64: 1, 8, 32>}]} {
    %c0 = arith.constant 0 : index
    %c0_0 = arith.constant 0 : index
    %c0_1 = arith.constant 0 : index
    %0 = vector.load %arg1[%c0, %c0_0, %c0_1] : memref<1x8x32xf32, #tpu.memory_space<vmem>>, vector<1x8x32xf32>
    %1 = vector.shape_cast %0 : vector<1x8x32xf32> to vector<8x32xf32>
    %c0_2 = arith.constant 0 : index
    %c0_3 = arith.constant 0 : index
    %c0_4 = arith.constant 0 : index
    %2 = vector.load %arg2[%c0_2, %c0_3, %c0_4] : memref<1x8x32xf32, #tpu.memory_space<vmem>>, vector<1x8x32xf32>
    %3 = vector.shape_cast %2 : vector<1x8x32xf32> to vector<8x32xf32>
    %4 = arith.truncf %1 : vector<8x32xf32> to vector<8x32xbf16>
    %c0_5 = arith.constant 0 : index
    %c0_6 = arith.constant 0 : index
    %5 = vector.load %arg5[%c0_5, %c0_6] : memref<32x32xbf16, #tpu.memory_space<vmem>>, vector<32x32xbf16>
    %cst = arith.constant dense<0.000000e+00> : vector<8x32xf32>
    %6 = tpu.matmul %4, %5, %cst {dimension_numbers = #tpu.dot_dimension_numbers<[1], [0], [0], [1], [0, 0, 1, 1], [], []>} : vector<8x32xbf16>, vector<32x32xbf16>, vector<8x32xf32> -> vector<8x32xf32>
    %c0_7 = arith.constant 0 : index
    %c0_8 = arith.constant 0 : index
    %7 = vector.load %arg6[%c0_7, %c0_8] : memref<1x32xf32, #tpu.memory_space<vmem>>, vector<1x32xf32>
    %8 = vector.broadcast %7 : vector<1x32xf32> to vector<8x32xf32>
    %9 = arith.addf %6, %8 : vector<8x32xf32>
    %10 = arith.truncf %3 : vector<8x32xf32> to vector<8x32xbf16>
    %c0_9 = arith.constant 0 : index
    %c0_10 = arith.constant 0 : index
    %11 = vector.load %arg7[%c0_9, %c0_10] : memref<32x64xbf16, #tpu.memory_space<vmem>>, vector<32x64xbf16>
    %cst_11 = arith.constant dense<0.000000e+00> : vector<8x64xf32>
    %12 = tpu.matmul %10, %11, %cst_11 {dimension_numbers = #tpu.dot_dimension_numbers<[1], [0], [0], [1], [0, 0, 1, 1], [], []>} : vector<8x32xbf16>, vector<32x64xbf16>, vector<8x64xf32> -> vector<8x64xf32>
    %c0_12 = arith.constant 0 : index
    %c0_13 = arith.constant 0 : index
    %13 = vector.load %arg8[%c0_12, %c0_13] : memref<1x64xf32, #tpu.memory_space<vmem>>, vector<1x64xf32>
    %14 = vector.broadcast %13 : vector<1x64xf32> to vector<8x64xf32>
    %15 = arith.addf %12, %14 : vector<8x64xf32>
    %16 = vector.extract_strided_slice %15 {offsets = [0, 0], sizes = [8, 32], strides = [1, 1]} : vector<8x64xf32> to vector<8x32xf32>
    %17 = vector.extract_strided_slice %15 {offsets = [0, 32], sizes = [8, 32], strides = [1, 1]} : vector<8x64xf32> to vector<8x32xf32>
    %c0_14 = arith.constant 0 : index
    %c0_15 = arith.constant 0 : index
    %c0_16 = arith.constant 0 : index
    %18 = vector.load %arg3[%c0_14, %c0_15, %c0_16] : memref<1x8x1xf32, #tpu.memory_space<vmem>>, vector<1x8x1xf32>
    %19 = vector.shape_cast %18 : vector<1x8x1xf32> to vector<8x1xf32>
    %c0_17 = arith.constant 0 : index
    %c0_18 = arith.constant 0 : index
    %c0_19 = arith.constant 0 : index
    %20 = vector.load %arg4[%c0_17, %c0_18, %c0_19] : memref<1x1x8xf32, #tpu.memory_space<vmem>>, vector<1x1x8xf32>
    %21 = vector.shape_cast %20 : vector<1x1x8xf32> to vector<1x8xf32>
    %cst_20 = arith.constant 0.000000e+00 : f32
    %22 = vector.broadcast %cst_20 : f32 to vector<8x1xf32>
    %23 = arith.cmpf ogt, %19, %22 : vector<8x1xf32>
    %cst_21 = arith.constant 0.000000e+00 : f32
    %24 = vector.broadcast %cst_21 : f32 to vector<1x8xf32>
    %25 = arith.cmpf ogt, %21, %24 : vector<1x8xf32>
    %26 = vector.broadcast %23 : vector<8x1xi1> to vector<8x8xi1>
    %27 = vector.broadcast %25 : vector<1x8xi1> to vector<8x8xi1>
    %28 = arith.andi %26, %27 : vector<8x8xi1>
    %29 = tpu.transpose %16, [1, 0] : vector<8x32xf32> -> vector<32x8xf32>
    %30 = arith.truncf %29 : vector<32x8xf32> to vector<32x8xbf16>
    %31 = arith.truncf %9 : vector<8x32xf32> to vector<8x32xbf16>
    %32 = arith.truncf %17 : vector<8x32xf32> to vector<8x32xbf16>
    %33 = vector.extract_strided_slice %31 {offsets = [0, 0], sizes = [8, 8], strides = [1, 1]} : vector<8x32xbf16> to vector<8x8xbf16>
    %34 = vector.extract_strided_slice %30 {offsets = [0, 0], sizes = [8, 8], strides = [1, 1]} : vector<32x8xbf16> to vector<8x8xbf16>
    %cst_22 = arith.constant dense<0.000000e+00> : vector<8x8xf32>
    %35 = tpu.matmul %33, %34, %cst_22 {dimension_numbers = #tpu.dot_dimension_numbers<[1], [0], [0], [1], [0, 0, 1, 1], [], []>} : vector<8x8xbf16>, vector<8x8xbf16>, vector<8x8xf32> -> vector<8x8xf32>
    %cst_23 = arith.constant -1.000000e+09 : f32
    %36 = vector.broadcast %cst_23 : f32 to vector<8x8xf32>
    %37 = arith.select %28, %35, %36 : vector<8x8xi1>, vector<8x8xf32>
    %cst_24 = arith.constant dense<0xFF800000> : vector<8xf32>
    %38 = vector.multi_reduction <maximumf>, %37, %cst_24 [1] : vector<8x8xf32> to vector<8xf32>
    %39 = vector.shape_cast %38 : vector<8xf32> to vector<8x1xf32>
    %40 = vector.broadcast %39 : vector<8x1xf32> to vector<8x8xf32>
    %41 = arith.subf %37, %40 : vector<8x8xf32>
    %42 = math.exp %41 : vector<8x8xf32>
    %cst_25 = arith.constant dense<0.000000e+00> : vector<8xf32>
    %43 = vector.multi_reduction <add>, %42, %cst_25 [1] : vector<8x8xf32> to vector<8xf32>
    %44 = vector.shape_cast %43 : vector<8xf32> to vector<8x1xf32>
    %45 = tpu.reciprocal %44 {approx = true} : vector<8x1xf32> -> vector<8x1xf32>
    %46 = vector.broadcast %45 : vector<8x1xf32> to vector<8x8xf32>
    %47 = arith.mulf %42, %46 : vector<8x8xf32>
    %48 = arith.truncf %47 : vector<8x8xf32> to vector<8x8xbf16>
    %49 = vector.extract_strided_slice %32 {offsets = [0, 0], sizes = [8, 8], strides = [1, 1]} : vector<8x32xbf16> to vector<8x8xbf16>
    %cst_26 = arith.constant dense<0.000000e+00> : vector<8x8xf32>
    %50 = tpu.matmul %48, %49, %cst_26 {dimension_numbers = #tpu.dot_dimension_numbers<[1], [0], [0], [1], [0, 0, 1, 1], [], []>} : vector<8x8xbf16>, vector<8x8xbf16>, vector<8x8xf32> -> vector<8x8xf32>
    %c0_27 = arith.constant 0 : index
    %c0_28 = arith.constant 0 : index
    %51 = vector.load %arg14[%c0_27, %c0_28] : memref<8x32xf32, #tpu.memory_space<vmem>>, vector<8x8xf32>
    tpu.vector_store %arg14[%c0_27, %c0_28], %50 {strides = array<i32>} : memref<8x32xf32, #tpu.memory_space<vmem>>, vector<8x8xf32>,
    %52 = vector.extract_strided_slice %31 {offsets = [0, 8], sizes = [8, 8], strides = [1, 1]} : vector<8x32xbf16> to vector<8x8xbf16>
    %53 = vector.extract_strided_slice %30 {offsets = [8, 0], sizes = [8, 8], strides = [1, 1]} : vector<32x8xbf16> to vector<8x8xbf16>
    %cst_29 = arith.constant dense<0.000000e+00> : vector<8x8xf32>
    %54 = tpu.matmul %52, %53, %cst_29 {dimension_numbers = #tpu.dot_dimension_numbers<[1], [0], [0], [1], [0, 0, 1, 1], [], []>} : vector<8x8xbf16>, vector<8x8xbf16>, vector<8x8xf32> -> vector<8x8xf32>
    %cst_30 = arith.constant -1.000000e+09 : f32
    %55 = vector.broadcast %cst_30 : f32 to vector<8x8xf32>
    %56 = arith.select %28, %54, %55 : vector<8x8xi1>, vector<8x8xf32>
    %cst_31 = arith.constant dense<0xFF800000> : vector<8xf32>
    %57 = vector.multi_reduction <maximumf>, %56, %cst_31 [1] : vector<8x8xf32> to vector<8xf32>
    %58 = vector.shape_cast %57 : vector<8xf32> to vector<8x1xf32>
    %59 = vector.broadcast %58 : vector<8x1xf32> to vector<8x8xf32>
    %60 = arith.subf %56, %59 : vector<8x8xf32>
    %61 = math.exp %60 : vector<8x8xf32>
    %cst_32 = arith.constant dense<0.000000e+00> : vector<8xf32>
    %62 = vector.multi_reduction <add>, %61, %cst_32 [1] : vector<8x8xf32> to vector<8xf32>
    %63 = vector.shape_cast %62 : vector<8xf32> to vector<8x1xf32>
    %64 = tpu.reciprocal %63 {approx = true} : vector<8x1xf32> -> vector<8x1xf32>
    %65 = vector.broadcast %64 : vector<8x1xf32> to vector<8x8xf32>
    %66 = arith.mulf %61, %65 : vector<8x8xf32>
    %67 = arith.truncf %66 : vector<8x8xf32> to vector<8x8xbf16>
    %68 = vector.extract_strided_slice %32 {offsets = [0, 8], sizes = [8, 8], strides = [1, 1]} : vector<8x32xbf16> to vector<8x8xbf16>
    %cst_33 = arith.constant dense<0.000000e+00> : vector<8x8xf32>
    %69 = tpu.matmul %67, %68, %cst_33 {dimension_numbers = #tpu.dot_dimension_numbers<[1], [0], [0], [1], [0, 0, 1, 1], [], []>} : vector<8x8xbf16>, vector<8x8xbf16>, vector<8x8xf32> -> vector<8x8xf32>
    %c0_34 = arith.constant 0 : index
    %c8 = arith.constant 8 : index
    %70 = vector.load %arg14[%c0_34, %c8] : memref<8x32xf32, #tpu.memory_space<vmem>>, vector<8x8xf32>
    tpu.vector_store %arg14[%c0_34, %c8], %69 {strides = array<i32>} : memref<8x32xf32, #tpu.memory_space<vmem>>, vector<8x8xf32>,
    %71 = vector.extract_strided_slice %31 {offsets = [0, 16], sizes = [8, 8], strides = [1, 1]} : vector<8x32xbf16> to vector<8x8xbf16>
    %72 = vector.extract_strided_slice %30 {offsets = [16, 0], sizes = [8, 8], strides = [1, 1]} : vector<32x8xbf16> to vector<8x8xbf16>
    %cst_35 = arith.constant dense<0.000000e+00> : vector<8x8xf32>
    %73 = tpu.matmul %71, %72, %cst_35 {dimension_numbers = #tpu.dot_dimension_numbers<[1], [0], [0], [1], [0, 0, 1, 1], [], []>} : vector<8x8xbf16>, vector<8x8xbf16>, vector<8x8xf32> -> vector<8x8xf32>
    %cst_36 = arith.constant -1.000000e+09 : f32
    %74 = vector.broadcast %cst_36 : f32 to vector<8x8xf32>
    %75 = arith.select %28, %73, %74 : vector<8x8xi1>, vector<8x8xf32>
    %cst_37 = arith.constant dense<0xFF800000> : vector<8xf32>
    %76 = vector.multi_reduction <maximumf>, %75, %cst_37 [1] : vector<8x8xf32> to vector<8xf32>
    %77 = vector.shape_cast %76 : vector<8xf32> to vector<8x1xf32>
    %78 = vector.broadcast %77 : vector<8x1xf32> to vector<8x8xf32>
    %79 = arith.subf %75, %78 : vector<8x8xf32>
    %80 = math.exp %79 : vector<8x8xf32>
    %cst_38 = arith.constant dense<0.000000e+00> : vector<8xf32>
    %81 = vector.multi_reduction <add>, %80, %cst_38 [1] : vector<8x8xf32> to vector<8xf32>
    %82 = vector.shape_cast %81 : vector<8xf32> to vector<8x1xf32>
    %83 = tpu.reciprocal %82 {approx = true} : vector<8x1xf32> -> vector<8x1xf32>
    %84 = vector.broadcast %83 : vector<8x1xf32> to vector<8x8xf32>
    %85 = arith.mulf %80, %84 : vector<8x8xf32>
    %86 = arith.truncf %85 : vector<8x8xf32> to vector<8x8xbf16>
    %87 = vector.extract_strided_slice %32 {offsets = [0, 16], sizes = [8, 8], strides = [1, 1]} : vector<8x32xbf16> to vector<8x8xbf16>
    %cst_39 = arith.constant dense<0.000000e+00> : vector<8x8xf32>
    %88 = tpu.matmul %86, %87, %cst_39 {dimension_numbers = #tpu.dot_dimension_numbers<[1], [0], [0], [1], [0, 0, 1, 1], [], []>} : vector<8x8xbf16>, vector<8x8xbf16>, vector<8x8xf32> -> vector<8x8xf32>
    %c0_40 = arith.constant 0 : index
    %c16 = arith.constant 16 : index
    %89 = vector.load %arg14[%c0_40, %c16] : memref<8x32xf32, #tpu.memory_space<vmem>>, vector<8x8xf32>
    tpu.vector_store %arg14[%c0_40, %c16], %88 {strides = array<i32>} : memref<8x32xf32, #tpu.memory_space<vmem>>, vector<8x8xf32>,
    %90 = vector.extract_strided_slice %31 {offsets = [0, 24], sizes = [8, 8], strides = [1, 1]} : vector<8x32xbf16> to vector<8x8xbf16>
    %91 = vector.extract_strided_slice %30 {offsets = [24, 0], sizes = [8, 8], strides = [1, 1]} : vector<32x8xbf16> to vector<8x8xbf16>
    %cst_41 = arith.constant dense<0.000000e+00> : vector<8x8xf32>
    %92 = tpu.matmul %90, %91, %cst_41 {dimension_numbers = #tpu.dot_dimension_numbers<[1], [0], [0], [1], [0, 0, 1, 1], [], []>} : vector<8x8xbf16>, vector<8x8xbf16>, vector<8x8xf32> -> vector<8x8xf32>
    %cst_42 = arith.constant -1.000000e+09 : f32
    %93 = vector.broadcast %cst_42 : f32 to vector<8x8xf32>
    %94 = arith.select %28, %92, %93 : vector<8x8xi1>, vector<8x8xf32>
    %cst_43 = arith.constant dense<0xFF800000> : vector<8xf32>
    %95 = vector.multi_reduction <maximumf>, %94, %cst_43 [1] : vector<8x8xf32> to vector<8xf32>
    %96 = vector.shape_cast %95 : vector<8xf32> to vector<8x1xf32>
    %97 = vector.broadcast %96 : vector<8x1xf32> to vector<8x8xf32>
    %98 = arith.subf %94, %97 : vector<8x8xf32>
    %99 = math.exp %98 : vector<8x8xf32>
    %cst_44 = arith.constant dense<0.000000e+00> : vector<8xf32>
    %100 = vector.multi_reduction <add>, %99, %cst_44 [1] : vector<8x8xf32> to vector<8xf32>
    %101 = vector.shape_cast %100 : vector<8xf32> to vector<8x1xf32>
    %102 = tpu.reciprocal %101 {approx = true} : vector<8x1xf32> -> vector<8x1xf32>
    %103 = vector.broadcast %102 : vector<8x1xf32> to vector<8x8xf32>
    %104 = arith.mulf %99, %103 : vector<8x8xf32>
    %105 = arith.truncf %104 : vector<8x8xf32> to vector<8x8xbf16>
    %106 = vector.extract_strided_slice %32 {offsets = [0, 24], sizes = [8, 8], strides = [1, 1]} : vector<8x32xbf16> to vector<8x8xbf16>
    %cst_45 = arith.constant dense<0.000000e+00> : vector<8x8xf32>
    %107 = tpu.matmul %105, %106, %cst_45 {dimension_numbers = #tpu.dot_dimension_numbers<[1], [0], [0], [1], [0, 0, 1, 1], [], []>} : vector<8x8xbf16>, vector<8x8xbf16>, vector<8x8xf32> -> vector<8x8xf32>
    %c0_46 = arith.constant 0 : index
    %c24 = arith.constant 24 : index
    %108 = vector.load %arg14[%c0_46, %c24] : memref<8x32xf32, #tpu.memory_space<vmem>>, vector<8x8xf32>
    tpu.vector_store %arg14[%c0_46, %c24], %107 {strides = array<i32>} : memref<8x32xf32, #tpu.memory_space<vmem>>, vector<8x8xf32>,
    %c0_47 = arith.constant 0 : index
    %c0_48 = arith.constant 0 : index
    %109 = vector.load %arg14[%c0_47, %c0_48] : memref<8x32xf32, #tpu.memory_space<vmem>>, vector<8x32xf32>
    %110 = arith.truncf %109 : vector<8x32xf32> to vector<8x32xbf16>
    %c0_49 = arith.constant 0 : index
    %c0_50 = arith.constant 0 : index
    %111 = vector.load %arg9[%c0_49, %c0_50] : memref<32x32xbf16, #tpu.memory_space<vmem>>, vector<32x32xbf16>
    %cst_51 = arith.constant dense<0.000000e+00> : vector<8x32xf32>
    %112 = tpu.matmul %110, %111, %cst_51 {dimension_numbers = #tpu.dot_dimension_numbers<[1], [0], [0], [1], [0, 0, 1, 1], [], []>} : vector<8x32xbf16>, vector<32x32xbf16>, vector<8x32xf32> -> vector<8x32xf32>
    %c0_52 = arith.constant 0 : index
    %c0_53 = arith.constant 0 : index
    %113 = vector.load %arg10[%c0_52, %c0_53] : memref<1x32xf32, #tpu.memory_space<vmem>>, vector<1x32xf32>
    %114 = vector.broadcast %113 : vector<1x32xf32> to vector<8x32xf32>
    %115 = arith.addf %112, %114 : vector<8x32xf32>
    %116 = arith.addf %1, %115 : vector<8x32xf32>
    %cst_54 = arith.constant dense<0.000000e+00> : vector<8xf32>
    %117 = vector.multi_reduction <add>, %116, %cst_54 [1] : vector<8x32xf32> to vector<8xf32>
    %118 = vector.shape_cast %117 : vector<8xf32> to vector<8x1xf32>
    %cst_55 = arith.constant 3.200000e+01 : f32
    %119 = vector.broadcast %cst_55 : f32 to vector<8x1xf32>
    %120 = arith.divf %118, %119 : vector<8x1xf32>
    %121 = vector.broadcast %120 : vector<8x1xf32> to vector<8x32xf32>
    %122 = arith.subf %116, %121 : vector<8x32xf32>
    %123 = arith.mulf %122, %122 : vector<8x32xf32>
    %cst_56 = arith.constant dense<0.000000e+00> : vector<8xf32>
    %124 = vector.multi_reduction <add>, %123, %cst_56 [1] : vector<8x32xf32> to vector<8xf32>
    %125 = vector.shape_cast %124 : vector<8xf32> to vector<8x1xf32>
    %cst_57 = arith.constant 3.200000e+01 : f32
    %126 = vector.broadcast %cst_57 : f32 to vector<8x1xf32>
    %127 = arith.divf %125, %126 : vector<8x1xf32>
    %128 = vector.broadcast %120 : vector<8x1xf32> to vector<8x32xf32>
    %129 = arith.subf %116, %128 : vector<8x32xf32>
    %cst_58 = arith.constant 9.99999974E-6 : f32
    %130 = vector.broadcast %cst_58 : f32 to vector<8x1xf32>
    %131 = arith.addf %127, %130 : vector<8x1xf32>
    %132 = math.rsqrt %131 : vector<8x1xf32>
    %133 = vector.broadcast %132 : vector<8x1xf32> to vector<8x32xf32>
    %134 = arith.mulf %129, %133 : vector<8x32xf32>
    %c0_59 = arith.constant 0 : index
    %c0_60 = arith.constant 0 : index
    %135 = vector.load %arg11[%c0_59, %c0_60] : memref<1x32xf32, #tpu.memory_space<vmem>>, vector<1x32xf32>
    %136 = vector.broadcast %135 : vector<1x32xf32> to vector<8x32xf32>
    %137 = arith.mulf %134, %136 : vector<8x32xf32>
    %c0_61 = arith.constant 0 : index
    %c0_62 = arith.constant 0 : index
    %138 = vector.load %arg12[%c0_61, %c0_62] : memref<1x32xf32, #tpu.memory_space<vmem>>, vector<1x32xf32>
    %139 = vector.broadcast %138 : vector<1x32xf32> to vector<8x32xf32>
    %140 = arith.addf %137, %139 : vector<8x32xf32>
    %c0_63 = arith.constant 0 : index
    %c0_64 = arith.constant 0 : index
    %c0_65 = arith.constant 0 : index
    %141 = vector.load %arg13[%c0_63, %c0_64, %c0_65] : memref<1x8x32xf32, #tpu.memory_space<vmem>>, vector<1x8x32xf32>
    %142 = vector.shape_cast %141 : vector<1x8x32xf32> to vector<8x32xf32>
    %143 = vector.shape_cast %140 : vector<8x32xf32> to vector<1x8x32xf32>
    tpu.vector_store %arg13[%c0_63, %c0_64, %c0_65], %143 {strides = array<i32>} : memref<1x8x32xf32, #tpu.memory_space<vmem>>, vector<1x8x32xf32>,
    return
  }
  func.func @transform_0(%arg0: i32) -> (i32, i32, i32) {
    %c0_i32 = arith.constant 0 : i32
    %c0_i32_0 = arith.constant 0 : i32
    %c0_i32_1 = arith.constant 0 : i32
    return %arg0, %c0_i32, %c0_i32_0 : i32, i32, i32
  }
  func.func @transform_1(%arg0: i32) -> (i32, i32, i32) {
    %c0_i32 = arith.constant 0 : i32
    %c0_i32_0 = arith.constant 0 : i32
    %c0_i32_1 = arith.constant 0 : i32
    return %arg0, %c0_i32, %c0_i32_0 : i32, i32, i32
  }
  func.func @transform_2(%arg0: i32) -> (i32, i32, i32) {
    %c0_i32 = arith.constant 0 : i32
    %c0_i32_0 = arith.constant 0 : i32
    %c0_i32_1 = arith.constant 0 : i32
    return %arg0, %c0_i32, %c0_i32_0 : i32, i32, i32
  }
  func.func @transform_3(%arg0: i32) -> (i32, i32, i32) {
    %c0_i32 = arith.constant 0 : i32
    %c0_i32_0 = arith.constant 0 : i32
    %c0_i32_1 = arith.constant 0 : i32
    return %arg0, %c0_i32, %c0_i32_0 : i32, i32, i32
  }
  func.func @transform_4(%arg0: i32) -> (i32, i32) {
    %c0_i32 = arith.constant 0 : i32
    %c0_i32_0 = arith.constant 0 : i32
    %c0_i32_1 = arith.constant 0 : i32
    return %c0_i32, %c0_i32_0 : i32, i32
  }
  func.func @transform_5(%arg0: i32) -> (i32, i32) {
    %c0_i32 = arith.constant 0 : i32
    %c0_i32_0 = arith.constant 0 : i32
    %c0_i32_1 = arith.constant 0 : i32
    return %c0_i32, %c0_i32_0 : i32, i32
  }
  func.func @transform_6(%arg0: i32) -> (i32, i32) {
    %c0_i32 = arith.constant 0 : i32
    %c0_i32_0 = arith.constant 0 : i32
    %c0_i32_1 = arith.constant 0 : i32
    return %c0_i32, %c0_i32_0 : i32, i32
  }
  func.func @transform_7(%arg0: i32) -> (i32, i32) {
    %c0_i32 = arith.constant 0 : i32
    %c0_i32_0 = arith.constant 0 : i32
    %c0_i32_1 = arith.constant 0 : i32
    return %c0_i32, %c0_i32_0 : i32, i32
  }
  func.func @transform_8(%arg0: i32) -> (i32, i32) {
    %c0_i32 = arith.constant 0 : i32
    %c0_i32_0 = arith.constant 0 : i32
    %c0_i32_1 = arith.constant 0 : i32
    return %c0_i32, %c0_i32_0 : i32, i32
  }
  func.func @transform_9(%arg0: i32) -> (i32, i32) {
    %c0_i32 = arith.constant 0 : i32
    %c0_i32_0 = arith.constant 0 : i32
    %c0_i32_1 = arith.constant 0 : i32
    return %c0_i32, %c0_i32_0 : i32, i32
  }
  func.func @transform_10(%arg0: i32) -> (i32, i32) {
    %c0_i32 = arith.constant 0 : i32
    %c0_i32_0 = arith.constant 0 : i32
    %c0_i32_1 = arith.constant 0 : i32
    return %c0_i32, %c0_i32_0 : i32, i32
  }
  func.func @transform_11(%arg0: i32) -> (i32, i32) {
    %c0_i32 = arith.constant 0 : i32
    %c0_i32_0 = arith.constant 0 : i32
    %c0_i32_1 = arith.constant 0 : i32
    return %c0_i32, %c0_i32_0 : i32, i32
  }
  func.func @transform_12(%arg0: i32) -> (i32, i32, i32) {
    %c0_i32 = arith.constant 0 : i32
    %c0_i32_0 = arith.constant 0 : i32
    %c0_i32_1 = arith.constant 0 : i32
    return %arg0, %c0_i32, %c0_i32_0 : i32, i32, i32
  }
}

module attributes {stable_mosaic.version = 11 : i64} {
  func.func @_ffn_ln_kernel(%arg0: i32, %arg1: memref<16x32xf32, #tpu.memory_space<vmem>>, %arg2: memref<32x64xbf16, #tpu.memory_space<vmem>>, %arg3: memref<1x64xf32, #tpu.memory_space<vmem>>, %arg4: memref<64x32xbf16, #tpu.memory_space<vmem>>, %arg5: memref<1x32xf32, #tpu.memory_space<vmem>>, %arg6: memref<1x32xf32, #tpu.memory_space<vmem>>, %arg7: memref<1x32xf32, #tpu.memory_space<vmem>>, %arg8: memref<16x32xf32, #tpu.memory_space<vmem>>) attributes {dimension_semantics = [#tpu.dimension_semantics<parallel>], iteration_bounds = array<i64: 1>, scalar_prefetch = 0 : i64, scratch_operands = 0 : i64, tpu.core_type = #tpu.core_type<tc>, window_params = [{transform_indices = @transform_0, window_bounds = array<i64: 16, 32>}, {pipeline_mode = #tpu.pipeline_mode<synchronous>, transform_indices = @transform_1, window_bounds = array<i64: 32, 64>}, {pipeline_mode = #tpu.pipeline_mode<synchronous>, transform_indices = @transform_2, window_bounds = array<i64: 1, 64>}, {pipeline_mode = #tpu.pipeline_mode<synchronous>, transform_indices = @transform_3, window_bounds = array<i64: 64, 32>}, {pipeline_mode = #tpu.pipeline_mode<synchronous>, transform_indices = @transform_4, window_bounds = array<i64: 1, 32>}, {pipeline_mode = #tpu.pipeline_mode<synchronous>, transform_indices = @transform_5, window_bounds = array<i64: 1, 32>}, {pipeline_mode = #tpu.pipeline_mode<synchronous>, transform_indices = @transform_6, window_bounds = array<i64: 1, 32>}, {transform_indices = @transform_7, window_bounds = array<i64: 16, 32>}]} {
    %c0 = arith.constant 0 : index
    %c0_0 = arith.constant 0 : index
    %0 = vector.load %arg1[%c0, %c0_0] : memref<16x32xf32, #tpu.memory_space<vmem>>, vector<16x32xf32>
    %1 = arith.truncf %0 : vector<16x32xf32> to vector<16x32xbf16>
    %c0_1 = arith.constant 0 : index
    %c0_2 = arith.constant 0 : index
    %2 = vector.load %arg2[%c0_1, %c0_2] : memref<32x64xbf16, #tpu.memory_space<vmem>>, vector<32x64xbf16>
    %cst = arith.constant dense<0.000000e+00> : vector<16x64xf32>
    %3 = tpu.matmul %1, %2, %cst {dimension_numbers = #tpu.dot_dimension_numbers<[1], [0], [0], [1], [0, 0, 1, 1], [], []>} : vector<16x32xbf16>, vector<32x64xbf16>, vector<16x64xf32> -> vector<16x64xf32>
    %c0_3 = arith.constant 0 : index
    %c0_4 = arith.constant 0 : index
    %4 = vector.load %arg3[%c0_3, %c0_4] : memref<1x64xf32, #tpu.memory_space<vmem>>, vector<1x64xf32>
    %5 = vector.broadcast %4 : vector<1x64xf32> to vector<16x64xf32>
    %6 = arith.addf %3, %5 : vector<16x64xf32>
    %cst_5 = arith.constant 0.000000e+00 : f32
    %7 = vector.broadcast %cst_5 : f32 to vector<16x64xf32>
    %8 = arith.maximumf %6, %7 : vector<16x64xf32>
    %9 = arith.truncf %8 : vector<16x64xf32> to vector<16x64xbf16>
    %c0_6 = arith.constant 0 : index
    %c0_7 = arith.constant 0 : index
    %10 = vector.load %arg4[%c0_6, %c0_7] : memref<64x32xbf16, #tpu.memory_space<vmem>>, vector<64x32xbf16>
    %cst_8 = arith.constant dense<0.000000e+00> : vector<16x32xf32>
    %11 = tpu.matmul %9, %10, %cst_8 {dimension_numbers = #tpu.dot_dimension_numbers<[1], [0], [0], [1], [0, 0, 1, 1], [], []>} : vector<16x64xbf16>, vector<64x32xbf16>, vector<16x32xf32> -> vector<16x32xf32>
    %c0_9 = arith.constant 0 : index
    %c0_10 = arith.constant 0 : index
    %12 = vector.load %arg5[%c0_9, %c0_10] : memref<1x32xf32, #tpu.memory_space<vmem>>, vector<1x32xf32>
    %13 = vector.broadcast %12 : vector<1x32xf32> to vector<16x32xf32>
    %14 = arith.addf %11, %13 : vector<16x32xf32>
    %15 = arith.addf %0, %14 : vector<16x32xf32>
    %cst_11 = arith.constant dense<0.000000e+00> : vector<16xf32>
    %16 = vector.multi_reduction <add>, %15, %cst_11 [1] : vector<16x32xf32> to vector<16xf32>
    %17 = vector.shape_cast %16 : vector<16xf32> to vector<16x1xf32>
    %cst_12 = arith.constant 3.200000e+01 : f32
    %18 = vector.broadcast %cst_12 : f32 to vector<16x1xf32>
    %19 = arith.divf %17, %18 : vector<16x1xf32>
    %20 = vector.broadcast %19 : vector<16x1xf32> to vector<16x32xf32>
    %21 = arith.subf %15, %20 : vector<16x32xf32>
    %22 = arith.mulf %21, %21 : vector<16x32xf32>
    %cst_13 = arith.constant dense<0.000000e+00> : vector<16xf32>
    %23 = vector.multi_reduction <add>, %22, %cst_13 [1] : vector<16x32xf32> to vector<16xf32>
    %24 = vector.shape_cast %23 : vector<16xf32> to vector<16x1xf32>
    %cst_14 = arith.constant 3.200000e+01 : f32
    %25 = vector.broadcast %cst_14 : f32 to vector<16x1xf32>
    %26 = arith.divf %24, %25 : vector<16x1xf32>
    %27 = vector.broadcast %19 : vector<16x1xf32> to vector<16x32xf32>
    %28 = arith.subf %15, %27 : vector<16x32xf32>
    %cst_15 = arith.constant 9.99999974E-6 : f32
    %29 = vector.broadcast %cst_15 : f32 to vector<16x1xf32>
    %30 = arith.addf %26, %29 : vector<16x1xf32>
    %31 = math.rsqrt %30 : vector<16x1xf32>
    %32 = vector.broadcast %31 : vector<16x1xf32> to vector<16x32xf32>
    %33 = arith.mulf %28, %32 : vector<16x32xf32>
    %c0_16 = arith.constant 0 : index
    %c0_17 = arith.constant 0 : index
    %34 = vector.load %arg6[%c0_16, %c0_17] : memref<1x32xf32, #tpu.memory_space<vmem>>, vector<1x32xf32>
    %35 = vector.broadcast %34 : vector<1x32xf32> to vector<16x32xf32>
    %36 = arith.mulf %33, %35 : vector<16x32xf32>
    %c0_18 = arith.constant 0 : index
    %c0_19 = arith.constant 0 : index
    %37 = vector.load %arg7[%c0_18, %c0_19] : memref<1x32xf32, #tpu.memory_space<vmem>>, vector<1x32xf32>
    %38 = vector.broadcast %37 : vector<1x32xf32> to vector<16x32xf32>
    %39 = arith.addf %36, %38 : vector<16x32xf32>
    %c0_20 = arith.constant 0 : index
    %c0_21 = arith.constant 0 : index
    %40 = vector.load %arg8[%c0_20, %c0_21] : memref<16x32xf32, #tpu.memory_space<vmem>>, vector<16x32xf32>
    tpu.vector_store %arg8[%c0_20, %c0_21], %39 {strides = array<i32>} : memref<16x32xf32, #tpu.memory_space<vmem>>, vector<16x32xf32>,
    return
  }
  func.func @transform_0(%arg0: i32) -> (i32, i32) {
    %c0_i32 = arith.constant 0 : i32
    %c0_i32_0 = arith.constant 0 : i32
    return %arg0, %c0_i32 : i32, i32
  }
  func.func @transform_1(%arg0: i32) -> (i32, i32) {
    %c0_i32 = arith.constant 0 : i32
    %c0_i32_0 = arith.constant 0 : i32
    %c0_i32_1 = arith.constant 0 : i32
    return %c0_i32, %c0_i32_0 : i32, i32
  }
  func.func @transform_2(%arg0: i32) -> (i32, i32) {
    %c0_i32 = arith.constant 0 : i32
    %c0_i32_0 = arith.constant 0 : i32
    %c0_i32_1 = arith.constant 0 : i32
    return %c0_i32, %c0_i32_0 : i32, i32
  }
  func.func @transform_3(%arg0: i32) -> (i32, i32) {
    %c0_i32 = arith.constant 0 : i32
    %c0_i32_0 = arith.constant 0 : i32
    %c0_i32_1 = arith.constant 0 : i32
    return %c0_i32, %c0_i32_0 : i32, i32
  }
  func.func @transform_4(%arg0: i32) -> (i32, i32) {
    %c0_i32 = arith.constant 0 : i32
    %c0_i32_0 = arith.constant 0 : i32
    %c0_i32_1 = arith.constant 0 : i32
    return %c0_i32, %c0_i32_0 : i32, i32
  }
  func.func @transform_5(%arg0: i32) -> (i32, i32) {
    %c0_i32 = arith.constant 0 : i32
    %c0_i32_0 = arith.constant 0 : i32
    %c0_i32_1 = arith.constant 0 : i32
    return %c0_i32, %c0_i32_0 : i32, i32
  }
  func.func @transform_6(%arg0: i32) -> (i32, i32) {
    %c0_i32 = arith.constant 0 : i32
    %c0_i32_0 = arith.constant 0 : i32
    %c0_i32_1 = arith.constant 0 : i32
    return %c0_i32, %c0_i32_0 : i32, i32
  }
  func.func @transform_7(%arg0: i32) -> (i32, i32) {
    %c0_i32 = arith.constant 0 : i32
    %c0_i32_0 = arith.constant 0 : i32
    return %arg0, %c0_i32 : i32, i32
  }
}

module attributes {stable_mosaic.version = 11 : i64} {
  func.func @_cross_attn_ln_kernel(%arg0: i32, %arg1: memref<1x8x32xf32, #tpu.memory_space<vmem>>, %arg2: memref<1x8x32xf32, #tpu.memory_space<vmem>>, %arg3: memref<1x8x1xf32, #tpu.memory_space<vmem>>, %arg4: memref<1x1x8xf32, #tpu.memory_space<vmem>>, %arg5: memref<32x32xbf16, #tpu.memory_space<vmem>>, %arg6: memref<1x32xf32, #tpu.memory_space<vmem>>, %arg7: memref<32x64xbf16, #tpu.memory_space<vmem>>, %arg8: memref<1x64xf32, #tpu.memory_space<vmem>>, %arg9: memref<32x32xbf16, #tpu.memory_space<vmem>>, %arg10: memref<1x32xf32, #tpu.memory_space<vmem>>, %arg11: memref<1x32xf32, #tpu.memory_space<vmem>>, %arg12: memref<1x32xf32, #tpu.memory_space<vmem>>, %arg13: memref<1x8x32xf32, #tpu.memory_space<vmem>>, %arg14: memref<8x32xf32, #tpu.memory_space<vmem>>) attributes {dimension_semantics = [#tpu.dimension_semantics<parallel>], iteration_bounds = array<i64: 2>, scalar_prefetch = 0 : i64, scratch_operands = 1 : i64, tpu.core_type = #tpu.core_type<tc>, window_params = [{transform_indices = @transform_0, window_bounds = array<i64: 1, 8, 32>}, {transform_indices = @transform_1, window_bounds = array<i64: 1, 8, 32>}, {transform_indices = @transform_2, window_bounds = array<i64: 1, 8, 1>}, {transform_indices = @transform_3, window_bounds = array<i64: 1, 1, 8>}, {pipeline_mode = #tpu.pipeline_mode<synchronous>, transform_indices = @transform_4, window_bounds = array<i64: 32, 32>}, {pipeline_mode = #tpu.pipeline_mode<synchronous>, transform_indices = @transform_5, window_bounds = array<i64: 1, 32>}, {pipeline_mode = #tpu.pipeline_mode<synchronous>, transform_indices = @transform_6, window_bounds = array<i64: 32, 64>}, {pipeline_mode = #tpu.pipeline_mode<synchronous>, transform_indices = @transform_7, window_bounds = array<i64: 1, 64>}, {pipeline_mode = #tpu.pipeline_mode<synchronous>, transform_indices = @transform_8, window_bounds = array<i64: 32, 32>}, {pipeline_mode = #tpu.pipeline_mode<synchronous>, transform_indices = @transform_9, window_bounds = array<i64: 1, 32>}, {pipeline_mode = #tpu.pipeline_mode<synchronous>, transform_indices = @transform_10, window_bounds = array<i64: 1, 32>}, {pipeline_mode = #tpu.pipeline_mode<synchronous>, transform_indices = @transform_11, window_bounds = array<i64: 1, 32>}, {transform_indices = @transform_12, window_bounds = array<i64: 1, 8, 32>}]} {
    %c0 = arith.constant 0 : index
    %c0_0 = arith.constant 0 : index
    %c0_1 = arith.constant 0 : index
    %0 = vector.load %arg1[%c0, %c0_0, %c0_1] : memref<1x8x32xf32, #tpu.memory_space<vmem>>, vector<1x8x32xf32>
    %1 = vector.shape_cast %0 : vector<1x8x32xf32> to vector<8x32xf32>
    %c0_2 = arith.constant 0 : index
    %c0_3 = arith.constant 0 : index
    %c0_4 = arith.constant 0 : index
    %2 = vector.load %arg2[%c0_2, %c0_3, %c0_4] : memref<1x8x32xf32, #tpu.memory_space<vmem>>, vector<1x8x32xf32>
    %3 = vector.shape_cast %2 : vector<1x8x32xf32> to vector<8x32xf32>
    %4 = arith.truncf %1 : vector<8x32xf32> to vector<8x32xbf16>
    %c0_5 = arith.constant 0 : index
    %c0_6 = arith.constant 0 : index
    %5 = vector.load %arg5[%c0_5, %c0_6] : memref<32x32xbf16, #tpu.memory_space<vmem>>, vector<32x32xbf16>
    %cst = arith.constant dense<0.000000e+00> : vector<8x32xf32>
    %6 = tpu.matmul %4, %5, %cst {dimension_numbers = #tpu.dot_dimension_numbers<[1], [0], [0], [1], [0, 0, 1, 1], [], []>} : vector<8x32xbf16>, vector<32x32xbf16>, vector<8x32xf32> -> vector<8x32xf32>
    %c0_7 = arith.constant 0 : index
    %c0_8 = arith.constant 0 : index
    %7 = vector.load %arg6[%c0_7, %c0_8] : memref<1x32xf32, #tpu.memory_space<vmem>>, vector<1x32xf32>
    %8 = vector.broadcast %7 : vector<1x32xf32> to vector<8x32xf32>
    %9 = arith.addf %6, %8 : vector<8x32xf32>
    %10 = arith.truncf %3 : vector<8x32xf32> to vector<8x32xbf16>
    %c0_9 = arith.constant 0 : index
    %c0_10 = arith.constant 0 : index
    %11 = vector.load %arg7[%c0_9, %c0_10] : memref<32x64xbf16, #tpu.memory_space<vmem>>, vector<32x64xbf16>
    %cst_11 = arith.constant dense<0.000000e+00> : vector<8x64xf32>
    %12 = tpu.matmul %10, %11, %cst_11 {dimension_numbers = #tpu.dot_dimension_numbers<[1], [0], [0], [1], [0, 0, 1, 1], [], []>} : vector<8x32xbf16>, vector<32x64xbf16>, vector<8x64xf32> -> vector<8x64xf32>
    %c0_12 = arith.constant 0 : index
    %c0_13 = arith.constant 0 : index
    %13 = vector.load %arg8[%c0_12, %c0_13] : memref<1x64xf32, #tpu.memory_space<vmem>>, vector<1x64xf32>
    %14 = vector.broadcast %13 : vector<1x64xf32> to vector<8x64xf32>
    %15 = arith.addf %12, %14 : vector<8x64xf32>
    %16 = vector.extract_strided_slice %15 {offsets = [0, 0], sizes = [8, 32], strides = [1, 1]} : vector<8x64xf32> to vector<8x32xf32>
    %17 = vector.extract_strided_slice %15 {offsets = [0, 32], sizes = [8, 32], strides = [1, 1]} : vector<8x64xf32> to vector<8x32xf32>
    %c0_14 = arith.constant 0 : index
    %c0_15 = arith.constant 0 : index
    %c0_16 = arith.constant 0 : index
    %18 = vector.load %arg3[%c0_14, %c0_15, %c0_16] : memref<1x8x1xf32, #tpu.memory_space<vmem>>, vector<1x8x1xf32>
    %19 = vector.shape_cast %18 : vector<1x8x1xf32> to vector<8x1xf32>
    %c0_17 = arith.constant 0 : index
    %c0_18 = arith.constant 0 : index
    %c0_19 = arith.constant 0 : index
    %20 = vector.load %arg4[%c0_17, %c0_18, %c0_19] : memref<1x1x8xf32, #tpu.memory_space<vmem>>, vector<1x1x8xf32>
    %21 = vector.shape_cast %20 : vector<1x1x8xf32> to vector<1x8xf32>
    %cst_20 = arith.constant 0.000000e+00 : f32
    %22 = vector.broadcast %cst_20 : f32 to vector<8x1xf32>
    %23 = arith.cmpf ogt, %19, %22 : vector<8x1xf32>
    %cst_21 = arith.constant 0.000000e+00 : f32
    %24 = vector.broadcast %cst_21 : f32 to vector<1x8xf32>
    %25 = arith.cmpf ogt, %21, %24 : vector<1x8xf32>
    %26 = vector.broadcast %23 : vector<8x1xi1> to vector<8x8xi1>
    %27 = vector.broadcast %25 : vector<1x8xi1> to vector<8x8xi1>
    %28 = arith.andi %26, %27 : vector<8x8xi1>
    %29 = tpu.transpose %16, [1, 0] : vector<8x32xf32> -> vector<32x8xf32>
    %30 = arith.truncf %29 : vector<32x8xf32> to vector<32x8xbf16>
    %31 = arith.truncf %9 : vector<8x32xf32> to vector<8x32xbf16>
    %32 = arith.truncf %17 : vector<8x32xf32> to vector<8x32xbf16>
    %33 = vector.extract_strided_slice %31 {offsets = [0, 0], sizes = [8, 8], strides = [1, 1]} : vector<8x32xbf16> to vector<8x8xbf16>
    %34 = vector.extract_strided_slice %30 {offsets = [0, 0], sizes = [8, 8], strides = [1, 1]} : vector<32x8xbf16> to vector<8x8xbf16>
    %cst_22 = arith.constant dense<0.000000e+00> : vector<8x8xf32>
    %35 = tpu.matmul %33, %34, %cst_22 {dimension_numbers = #tpu.dot_dimension_numbers<[1], [0], [0], [1], [0, 0, 1, 1], [], []>} : vector<8x8xbf16>, vector<8x8xbf16>, vector<8x8xf32> -> vector<8x8xf32>
    %cst_23 = arith.constant -1.000000e+09 : f32
    %36 = vector.broadcast %cst_23 : f32 to vector<8x8xf32>
    %37 = arith.select %28, %35, %36 : vector<8x8xi1>, vector<8x8xf32>
    %cst_24 = arith.constant dense<0xFF800000> : vector<8xf32>
    %38 = vector.multi_reduction <maximumf>, %37, %cst_24 [1] : vector<8x8xf32> to vector<8xf32>
    %39 = vector.shape_cast %38 : vector<8xf32> to vector<8x1xf32>
    %40 = vector.broadcast %39 : vector<8x1xf32> to vector<8x8xf32>
    %41 = arith.subf %37, %40 : vector<8x8xf32>
    %42 = math.exp %41 : vector<8x8xf32>
    %cst_25 = arith.constant dense<0.000000e+00> : vector<8xf32>
    %43 = vector.multi_reduction <add>, %42, %cst_25 [1] : vector<8x8xf32> to vector<8xf32>
    %44 = vector.shape_cast %43 : vector<8xf32> to vector<8x1xf32>
    %45 = tpu.reciprocal %44 {approx = true} : vector<8x1xf32> -> vector<8x1xf32>
    %46 = vector.broadcast %45 : vector<8x1xf32> to vector<8x8xf32>
    %47 = arith.mulf %42, %46 : vector<8x8xf32>
    %48 = arith.truncf %47 : vector<8x8xf32> to vector<8x8xbf16>
    %49 = vector.extract_strided_slice %32 {offsets = [0, 0], sizes = [8, 8], strides = [1, 1]} : vector<8x32xbf16> to vector<8x8xbf16>
    %cst_26 = arith.constant dense<0.000000e+00> : vector<8x8xf32>
    %50 = tpu.matmul %48, %49, %cst_26 {dimension_numbers = #tpu.dot_dimension_numbers<[1], [0], [0], [1], [0, 0, 1, 1], [], []>} : vector<8x8xbf16>, vector<8x8xbf16>, vector<8x8xf32> -> vector<8x8xf32>
    %c0_27 = arith.constant 0 : index
    %c0_28 = arith.constant 0 : index
    %51 = vector.load %arg14[%c0_27, %c0_28] : memref<8x32xf32, #tpu.memory_space<vmem>>, vector<8x8xf32>
    tpu.vector_store %arg14[%c0_27, %c0_28], %50 {strides = array<i32>} : memref<8x32xf32, #tpu.memory_space<vmem>>, vector<8x8xf32>,
    %52 = vector.extract_strided_slice %31 {offsets = [0, 8], sizes = [8, 8], strides = [1, 1]} : vector<8x32xbf16> to vector<8x8xbf16>
    %53 = vector.extract_strided_slice %30 {offsets = [8, 0], sizes = [8, 8], strides = [1, 1]} : vector<32x8xbf16> to vector<8x8xbf16>
    %cst_29 = arith.constant dense<0.000000e+00> : vector<8x8xf32>
    %54 = tpu.matmul %52, %53, %cst_29 {dimension_numbers = #tpu.dot_dimension_numbers<[1], [0], [0], [1], [0, 0, 1, 1], [], []>} : vector<8x8xbf16>, vector<8x8xbf16>, vector<8x8xf32> -> vector<8x8xf32>
    %cst_30 = arith.constant -1.000000e+09 : f32
    %55 = vector.broadcast %cst_30 : f32 to vector<8x8xf32>
    %56 = arith.select %28, %54, %55 : vector<8x8xi1>, vector<8x8xf32>
    %cst_31 = arith.constant dense<0xFF800000> : vector<8xf32>
    %57 = vector.multi_reduction <maximumf>, %56, %cst_31 [1] : vector<8x8xf32> to vector<8xf32>
    %58 = vector.shape_cast %57 : vector<8xf32> to vector<8x1xf32>
    %59 = vector.broadcast %58 : vector<8x1xf32> to vector<8x8xf32>
    %60 = arith.subf %56, %59 : vector<8x8xf32>
    %61 = math.exp %60 : vector<8x8xf32>
    %cst_32 = arith.constant dense<0.000000e+00> : vector<8xf32>
    %62 = vector.multi_reduction <add>, %61, %cst_32 [1] : vector<8x8xf32> to vector<8xf32>
    %63 = vector.shape_cast %62 : vector<8xf32> to vector<8x1xf32>
    %64 = tpu.reciprocal %63 {approx = true} : vector<8x1xf32> -> vector<8x1xf32>
    %65 = vector.broadcast %64 : vector<8x1xf32> to vector<8x8xf32>
    %66 = arith.mulf %61, %65 : vector<8x8xf32>
    %67 = arith.truncf %66 : vector<8x8xf32> to vector<8x8xbf16>
    %68 = vector.extract_strided_slice %32 {offsets = [0, 8], sizes = [8, 8], strides = [1, 1]} : vector<8x32xbf16> to vector<8x8xbf16>
    %cst_33 = arith.constant dense<0.000000e+00> : vector<8x8xf32>
    %69 = tpu.matmul %67, %68, %cst_33 {dimension_numbers = #tpu.dot_dimension_numbers<[1], [0], [0], [1], [0, 0, 1, 1], [], []>} : vector<8x8xbf16>, vector<8x8xbf16>, vector<8x8xf32> -> vector<8x8xf32>
    %c0_34 = arith.constant 0 : index
    %c8 = arith.constant 8 : index
    %70 = vector.load %arg14[%c0_34, %c8] : memref<8x32xf32, #tpu.memory_space<vmem>>, vector<8x8xf32>
    tpu.vector_store %arg14[%c0_34, %c8], %69 {strides = array<i32>} : memref<8x32xf32, #tpu.memory_space<vmem>>, vector<8x8xf32>,
    %71 = vector.extract_strided_slice %31 {offsets = [0, 16], sizes = [8, 8], strides = [1, 1]} : vector<8x32xbf16> to vector<8x8xbf16>
    %72 = vector.extract_strided_slice %30 {offsets = [16, 0], sizes = [8, 8], strides = [1, 1]} : vector<32x8xbf16> to vector<8x8xbf16>
    %cst_35 = arith.constant dense<0.000000e+00> : vector<8x8xf32>
    %73 = tpu.matmul %71, %72, %cst_35 {dimension_numbers = #tpu.dot_dimension_numbers<[1], [0], [0], [1], [0, 0, 1, 1], [], []>} : vector<8x8xbf16>, vector<8x8xbf16>, vector<8x8xf32> -> vector<8x8xf32>
    %cst_36 = arith.constant -1.000000e+09 : f32
    %74 = vector.broadcast %cst_36 : f32 to vector<8x8xf32>
    %75 = arith.select %28, %73, %74 : vector<8x8xi1>, vector<8x8xf32>
    %cst_37 = arith.constant dense<0xFF800000> : vector<8xf32>
    %76 = vector.multi_reduction <maximumf>, %75, %cst_37 [1] : vector<8x8xf32> to vector<8xf32>
    %77 = vector.shape_cast %76 : vector<8xf32> to vector<8x1xf32>
    %78 = vector.broadcast %77 : vector<8x1xf32> to vector<8x8xf32>
    %79 = arith.subf %75, %78 : vector<8x8xf32>
    %80 = math.exp %79 : vector<8x8xf32>
    %cst_38 = arith.constant dense<0.000000e+00> : vector<8xf32>
    %81 = vector.multi_reduction <add>, %80, %cst_38 [1] : vector<8x8xf32> to vector<8xf32>
    %82 = vector.shape_cast %81 : vector<8xf32> to vector<8x1xf32>
    %83 = tpu.reciprocal %82 {approx = true} : vector<8x1xf32> -> vector<8x1xf32>
    %84 = vector.broadcast %83 : vector<8x1xf32> to vector<8x8xf32>
    %85 = arith.mulf %80, %84 : vector<8x8xf32>
    %86 = arith.truncf %85 : vector<8x8xf32> to vector<8x8xbf16>
    %87 = vector.extract_strided_slice %32 {offsets = [0, 16], sizes = [8, 8], strides = [1, 1]} : vector<8x32xbf16> to vector<8x8xbf16>
    %cst_39 = arith.constant dense<0.000000e+00> : vector<8x8xf32>
    %88 = tpu.matmul %86, %87, %cst_39 {dimension_numbers = #tpu.dot_dimension_numbers<[1], [0], [0], [1], [0, 0, 1, 1], [], []>} : vector<8x8xbf16>, vector<8x8xbf16>, vector<8x8xf32> -> vector<8x8xf32>
    %c0_40 = arith.constant 0 : index
    %c16 = arith.constant 16 : index
    %89 = vector.load %arg14[%c0_40, %c16] : memref<8x32xf32, #tpu.memory_space<vmem>>, vector<8x8xf32>
    tpu.vector_store %arg14[%c0_40, %c16], %88 {strides = array<i32>} : memref<8x32xf32, #tpu.memory_space<vmem>>, vector<8x8xf32>,
    %90 = vector.extract_strided_slice %31 {offsets = [0, 24], sizes = [8, 8], strides = [1, 1]} : vector<8x32xbf16> to vector<8x8xbf16>
    %91 = vector.extract_strided_slice %30 {offsets = [24, 0], sizes = [8, 8], strides = [1, 1]} : vector<32x8xbf16> to vector<8x8xbf16>
    %cst_41 = arith.constant dense<0.000000e+00> : vector<8x8xf32>
    %92 = tpu.matmul %90, %91, %cst_41 {dimension_numbers = #tpu.dot_dimension_numbers<[1], [0], [0], [1], [0, 0, 1, 1], [], []>} : vector<8x8xbf16>, vector<8x8xbf16>, vector<8x8xf32> -> vector<8x8xf32>
    %cst_42 = arith.constant -1.000000e+09 : f32
    %93 = vector.broadcast %cst_42 : f32 to vector<8x8xf32>
    %94 = arith.select %28, %92, %93 : vector<8x8xi1>, vector<8x8xf32>
    %cst_43 = arith.constant dense<0xFF800000> : vector<8xf32>
    %95 = vector.multi_reduction <maximumf>, %94, %cst_43 [1] : vector<8x8xf32> to vector<8xf32>
    %96 = vector.shape_cast %95 : vector<8xf32> to vector<8x1xf32>
    %97 = vector.broadcast %96 : vector<8x1xf32> to vector<8x8xf32>
    %98 = arith.subf %94, %97 : vector<8x8xf32>
    %99 = math.exp %98 : vector<8x8xf32>
    %cst_44 = arith.constant dense<0.000000e+00> : vector<8xf32>
    %100 = vector.multi_reduction <add>, %99, %cst_44 [1] : vector<8x8xf32> to vector<8xf32>
    %101 = vector.shape_cast %100 : vector<8xf32> to vector<8x1xf32>
    %102 = tpu.reciprocal %101 {approx = true} : vector<8x1xf32> -> vector<8x1xf32>
    %103 = vector.broadcast %102 : vector<8x1xf32> to vector<8x8xf32>
    %104 = arith.mulf %99, %103 : vector<8x8xf32>
    %105 = arith.truncf %104 : vector<8x8xf32> to vector<8x8xbf16>
    %106 = vector.extract_strided_slice %32 {offsets = [0, 24], sizes = [8, 8], strides = [1, 1]} : vector<8x32xbf16> to vector<8x8xbf16>
    %cst_45 = arith.constant dense<0.000000e+00> : vector<8x8xf32>
    %107 = tpu.matmul %105, %106, %cst_45 {dimension_numbers = #tpu.dot_dimension_numbers<[1], [0], [0], [1], [0, 0, 1, 1], [], []>} : vector<8x8xbf16>, vector<8x8xbf16>, vector<8x8xf32> -> vector<8x8xf32>
    %c0_46 = arith.constant 0 : index
    %c24 = arith.constant 24 : index
    %108 = vector.load %arg14[%c0_46, %c24] : memref<8x32xf32, #tpu.memory_space<vmem>>, vector<8x8xf32>
    tpu.vector_store %arg14[%c0_46, %c24], %107 {strides = array<i32>} : memref<8x32xf32, #tpu.memory_space<vmem>>, vector<8x8xf32>,
    %c0_47 = arith.constant 0 : index
    %c0_48 = arith.constant 0 : index
    %109 = vector.load %arg14[%c0_47, %c0_48] : memref<8x32xf32, #tpu.memory_space<vmem>>, vector<8x32xf32>
    %110 = arith.truncf %109 : vector<8x32xf32> to vector<8x32xbf16>
    %c0_49 = arith.constant 0 : index
    %c0_50 = arith.constant 0 : index
    %111 = vector.load %arg9[%c0_49, %c0_50] : memref<32x32xbf16, #tpu.memory_space<vmem>>, vector<32x32xbf16>
    %cst_51 = arith.constant dense<0.000000e+00> : vector<8x32xf32>
    %112 = tpu.matmul %110, %111, %cst_51 {dimension_numbers = #tpu.dot_dimension_numbers<[1], [0], [0], [1], [0, 0, 1, 1], [], []>} : vector<8x32xbf16>, vector<32x32xbf16>, vector<8x32xf32> -> vector<8x32xf32>
    %c0_52 = arith.constant 0 : index
    %c0_53 = arith.constant 0 : index
    %113 = vector.load %arg10[%c0_52, %c0_53] : memref<1x32xf32, #tpu.memory_space<vmem>>, vector<1x32xf32>
    %114 = vector.broadcast %113 : vector<1x32xf32> to vector<8x32xf32>
    %115 = arith.addf %112, %114 : vector<8x32xf32>
    %116 = arith.addf %1, %115 : vector<8x32xf32>
    %cst_54 = arith.constant dense<0.000000e+00> : vector<8xf32>
    %117 = vector.multi_reduction <add>, %116, %cst_54 [1] : vector<8x32xf32> to vector<8xf32>
    %118 = vector.shape_cast %117 : vector<8xf32> to vector<8x1xf32>
    %cst_55 = arith.constant 3.200000e+01 : f32
    %119 = vector.broadcast %cst_55 : f32 to vector<8x1xf32>
    %120 = arith.divf %118, %119 : vector<8x1xf32>
    %121 = vector.broadcast %120 : vector<8x1xf32> to vector<8x32xf32>
    %122 = arith.subf %116, %121 : vector<8x32xf32>
    %123 = arith.mulf %122, %122 : vector<8x32xf32>
    %cst_56 = arith.constant dense<0.000000e+00> : vector<8xf32>
    %124 = vector.multi_reduction <add>, %123, %cst_56 [1] : vector<8x32xf32> to vector<8xf32>
    %125 = vector.shape_cast %124 : vector<8xf32> to vector<8x1xf32>
    %cst_57 = arith.constant 3.200000e+01 : f32
    %126 = vector.broadcast %cst_57 : f32 to vector<8x1xf32>
    %127 = arith.divf %125, %126 : vector<8x1xf32>
    %128 = vector.broadcast %120 : vector<8x1xf32> to vector<8x32xf32>
    %129 = arith.subf %116, %128 : vector<8x32xf32>
    %cst_58 = arith.constant 9.99999974E-6 : f32
    %130 = vector.broadcast %cst_58 : f32 to vector<8x1xf32>
    %131 = arith.addf %127, %130 : vector<8x1xf32>
    %132 = math.rsqrt %131 : vector<8x1xf32>
    %133 = vector.broadcast %132 : vector<8x1xf32> to vector<8x32xf32>
    %134 = arith.mulf %129, %133 : vector<8x32xf32>
    %c0_59 = arith.constant 0 : index
    %c0_60 = arith.constant 0 : index
    %135 = vector.load %arg11[%c0_59, %c0_60] : memref<1x32xf32, #tpu.memory_space<vmem>>, vector<1x32xf32>
    %136 = vector.broadcast %135 : vector<1x32xf32> to vector<8x32xf32>
    %137 = arith.mulf %134, %136 : vector<8x32xf32>
    %c0_61 = arith.constant 0 : index
    %c0_62 = arith.constant 0 : index
    %138 = vector.load %arg12[%c0_61, %c0_62] : memref<1x32xf32, #tpu.memory_space<vmem>>, vector<1x32xf32>
    %139 = vector.broadcast %138 : vector<1x32xf32> to vector<8x32xf32>
    %140 = arith.addf %137, %139 : vector<8x32xf32>
    %c0_63 = arith.constant 0 : index
    %c0_64 = arith.constant 0 : index
    %c0_65 = arith.constant 0 : index
    %141 = vector.load %arg13[%c0_63, %c0_64, %c0_65] : memref<1x8x32xf32, #tpu.memory_space<vmem>>, vector<1x8x32xf32>
    %142 = vector.shape_cast %141 : vector<1x8x32xf32> to vector<8x32xf32>
    %143 = vector.shape_cast %140 : vector<8x32xf32> to vector<1x8x32xf32>
    tpu.vector_store %arg13[%c0_63, %c0_64, %c0_65], %143 {strides = array<i32>} : memref<1x8x32xf32, #tpu.memory_space<vmem>>, vector<1x8x32xf32>,
    return
  }
  func.func @transform_0(%arg0: i32) -> (i32, i32, i32) {
    %c0_i32 = arith.constant 0 : i32
    %c0_i32_0 = arith.constant 0 : i32
    %c0_i32_1 = arith.constant 0 : i32
    return %arg0, %c0_i32, %c0_i32_0 : i32, i32, i32
  }
  func.func @transform_1(%arg0: i32) -> (i32, i32, i32) {
    %c0_i32 = arith.constant 0 : i32
    %c0_i32_0 = arith.constant 0 : i32
    %c0_i32_1 = arith.constant 0 : i32
    return %arg0, %c0_i32, %c0_i32_0 : i32, i32, i32
  }
  func.func @transform_2(%arg0: i32) -> (i32, i32, i32) {
    %c0_i32 = arith.constant 0 : i32
    %c0_i32_0 = arith.constant 0 : i32
    %c0_i32_1 = arith.constant 0 : i32
    return %arg0, %c0_i32, %c0_i32_0 : i32, i32, i32
  }
  func.func @transform_3(%arg0: i32) -> (i32, i32, i32) {
    %c0_i32 = arith.constant 0 : i32
    %c0_i32_0 = arith.constant 0 : i32
    %c0_i32_1 = arith.constant 0 : i32
    return %arg0, %c0_i32, %c0_i32_0 : i32, i32, i32
  }
  func.func @transform_4(%arg0: i32) -> (i32, i32) {
    %c0_i32 = arith.constant 0 : i32
    %c0_i32_0 = arith.constant 0 : i32
    %c0_i32_1 = arith.constant 0 : i32
    return %c0_i32, %c0_i32_0 : i32, i32
  }
  func.func @transform_5(%arg0: i32) -> (i32, i32) {
    %c0_i32 = arith.constant 0 : i32
    %c0_i32_0 = arith.constant 0 : i32
    %c0_i32_1 = arith.constant 0 : i32
    return %c0_i32, %c0_i32_0 : i32, i32
  }
  func.func @transform_6(%arg0: i32) -> (i32, i32) {
    %c0_i32 = arith.constant 0 : i32
    %c0_i32_0 = arith.constant 0 : i32
    %c0_i32_1 = arith.constant 0 : i32
    return %c0_i32, %c0_i32_0 : i32, i32
  }
  func.func @transform_7(%arg0: i32) -> (i32, i32) {
    %c0_i32 = arith.constant 0 : i32
    %c0_i32_0 = arith.constant 0 : i32
    %c0_i32_1 = arith.constant 0 : i32
    return %c0_i32, %c0_i32_0 : i32, i32
  }
  func.func @transform_8(%arg0: i32) -> (i32, i32) {
    %c0_i32 = arith.constant 0 : i32
    %c0_i32_0 = arith.constant 0 : i32
    %c0_i32_1 = arith.constant 0 : i32
    return %c0_i32, %c0_i32_0 : i32, i32
  }
  func.func @transform_9(%arg0: i32) -> (i32, i32) {
    %c0_i32 = arith.constant 0 : i32
    %c0_i32_0 = arith.constant 0 : i32
    %c0_i32_1 = arith.constant 0 : i32
    return %c0_i32, %c0_i32_0 : i32, i32
  }
  func.func @transform_10(%arg0: i32) -> (i32, i32) {
    %c0_i32 = arith.constant 0 : i32
    %c0_i32_0 = arith.constant 0 : i32
    %c0_i32_1 = arith.constant 0 : i32
    return %c0_i32, %c0_i32_0 : i32, i32
  }
  func.func @transform_11(%arg0: i32) -> (i32, i32) {
    %c0_i32 = arith.constant 0 : i32
    %c0_i32_0 = arith.constant 0 : i32
    %c0_i32_1 = arith.constant 0 : i32
    return %c0_i32, %c0_i32_0 : i32, i32
  }
  func.func @transform_12(%arg0: i32) -> (i32, i32, i32) {
    %c0_i32 = arith.constant 0 : i32
    %c0_i32_0 = arith.constant 0 : i32
    %c0_i32_1 = arith.constant 0 : i32
    return %arg0, %c0_i32, %c0_i32_0 : i32, i32, i32
  }
}

module attributes {stable_mosaic.version = 11 : i64} {
  func.func @_self_attn_ln_kernel(%arg0: i32, %arg1: memref<1x8x32xf32, #tpu.memory_space<vmem>>, %arg2: memref<1x8x1xf32, #tpu.memory_space<vmem>>, %arg3: memref<1x1x8xf32, #tpu.memory_space<vmem>>, %arg4: memref<32x96xbf16, #tpu.memory_space<vmem>>, %arg5: memref<1x96xf32, #tpu.memory_space<vmem>>, %arg6: memref<32x32xbf16, #tpu.memory_space<vmem>>, %arg7: memref<1x32xf32, #tpu.memory_space<vmem>>, %arg8: memref<1x32xf32, #tpu.memory_space<vmem>>, %arg9: memref<1x32xf32, #tpu.memory_space<vmem>>, %arg10: memref<1x8x32xf32, #tpu.memory_space<vmem>>, %arg11: memref<8x32xf32, #tpu.memory_space<vmem>>) attributes {dimension_semantics = [#tpu.dimension_semantics<parallel>], iteration_bounds = array<i64: 2>, scalar_prefetch = 0 : i64, scratch_operands = 1 : i64, tpu.core_type = #tpu.core_type<tc>, window_params = [{transform_indices = @transform_0, window_bounds = array<i64: 1, 8, 32>}, {transform_indices = @transform_1, window_bounds = array<i64: 1, 8, 1>}, {transform_indices = @transform_2, window_bounds = array<i64: 1, 1, 8>}, {pipeline_mode = #tpu.pipeline_mode<synchronous>, transform_indices = @transform_3, window_bounds = array<i64: 32, 96>}, {pipeline_mode = #tpu.pipeline_mode<synchronous>, transform_indices = @transform_4, window_bounds = array<i64: 1, 96>}, {pipeline_mode = #tpu.pipeline_mode<synchronous>, transform_indices = @transform_5, window_bounds = array<i64: 32, 32>}, {pipeline_mode = #tpu.pipeline_mode<synchronous>, transform_indices = @transform_6, window_bounds = array<i64: 1, 32>}, {pipeline_mode = #tpu.pipeline_mode<synchronous>, transform_indices = @transform_7, window_bounds = array<i64: 1, 32>}, {pipeline_mode = #tpu.pipeline_mode<synchronous>, transform_indices = @transform_8, window_bounds = array<i64: 1, 32>}, {transform_indices = @transform_9, window_bounds = array<i64: 1, 8, 32>}]} {
    %c0 = arith.constant 0 : index
    %c0_0 = arith.constant 0 : index
    %c0_1 = arith.constant 0 : index
    %0 = vector.load %arg1[%c0, %c0_0, %c0_1] : memref<1x8x32xf32, #tpu.memory_space<vmem>>, vector<1x8x32xf32>
    %1 = vector.shape_cast %0 : vector<1x8x32xf32> to vector<8x32xf32>
    %2 = arith.truncf %1 : vector<8x32xf32> to vector<8x32xbf16>
    %c0_2 = arith.constant 0 : index
    %c0_3 = arith.constant 0 : index
    %3 = vector.load %arg4[%c0_2, %c0_3] : memref<32x96xbf16, #tpu.memory_space<vmem>>, vector<32x96xbf16>
    %cst = arith.constant dense<0.000000e+00> : vector<8x96xf32>
    %4 = tpu.matmul %2, %3, %cst {dimension_numbers = #tpu.dot_dimension_numbers<[1], [0], [0], [1], [0, 0, 1, 1], [], []>} : vector<8x32xbf16>, vector<32x96xbf16>, vector<8x96xf32> -> vector<8x96xf32>
    %c0_4 = arith.constant 0 : index
    %c0_5 = arith.constant 0 : index
    %5 = vector.load %arg5[%c0_4, %c0_5] : memref<1x96xf32, #tpu.memory_space<vmem>>, vector<1x96xf32>
    %6 = vector.broadcast %5 : vector<1x96xf32> to vector<8x96xf32>
    %7 = arith.addf %4, %6 : vector<8x96xf32>
    %8 = vector.extract_strided_slice %7 {offsets = [0, 0], sizes = [8, 32], strides = [1, 1]} : vector<8x96xf32> to vector<8x32xf32>
    %9 = vector.extract_strided_slice %7 {offsets = [0, 32], sizes = [8, 32], strides = [1, 1]} : vector<8x96xf32> to vector<8x32xf32>
    %10 = vector.extract_strided_slice %7 {offsets = [0, 64], sizes = [8, 32], strides = [1, 1]} : vector<8x96xf32> to vector<8x32xf32>
    %c0_6 = arith.constant 0 : index
    %c0_7 = arith.constant 0 : index
    %c0_8 = arith.constant 0 : index
    %11 = vector.load %arg2[%c0_6, %c0_7, %c0_8] : memref<1x8x1xf32, #tpu.memory_space<vmem>>, vector<1x8x1xf32>
    %12 = vector.shape_cast %11 : vector<1x8x1xf32> to vector<8x1xf32>
    %c0_9 = arith.constant 0 : index
    %c0_10 = arith.constant 0 : index
    %c0_11 = arith.constant 0 : index
    %13 = vector.load %arg3[%c0_9, %c0_10, %c0_11] : memref<1x1x8xf32, #tpu.memory_space<vmem>>, vector<1x1x8xf32>
    %14 = vector.shape_cast %13 : vector<1x1x8xf32> to vector<1x8xf32>
    %cst_12 = arith.constant 0.000000e+00 : f32
    %15 = vector.broadcast %cst_12 : f32 to vector<8x1xf32>
    %16 = arith.cmpf ogt, %12, %15 : vector<8x1xf32>
    %cst_13 = arith.constant 0.000000e+00 : f32
    %17 = vector.broadcast %cst_13 : f32 to vector<1x8xf32>
    %18 = arith.cmpf ogt, %14, %17 : vector<1x8xf32>
    %19 = vector.broadcast %16 : vector<8x1xi1> to vector<8x8xi1>
    %20 = vector.broadcast %18 : vector<1x8xi1> to vector<8x8xi1>
    %21 = arith.andi %19, %20 : vector<8x8xi1>
    %22 = tpu.iota {dimensions = array<i32: 0>} : vector<8x8xi32>
    %23 = tpu.iota {dimensions = array<i32: 1>} : vector<8x8xi32>
    %24 = arith.cmpi sle, %23, %22 : vector<8x8xi32>
    %25 = arith.andi %21, %24 : vector<8x8xi1>
    %26 = tpu.transpose %9, [1, 0] : vector<8x32xf32> -> vector<32x8xf32>
    %27 = arith.truncf %26 : vector<32x8xf32> to vector<32x8xbf16>
    %28 = arith.truncf %8 : vector<8x32xf32> to vector<8x32xbf16>
    %29 = arith.truncf %10 : vector<8x32xf32> to vector<8x32xbf16>
    %30 = vector.extract_strided_slice %28 {offsets = [0, 0], sizes = [8, 8], strides = [1, 1]} : vector<8x32xbf16> to vector<8x8xbf16>
    %31 = vector.extract_strided_slice %27 {offsets = [0, 0], sizes = [8, 8], strides = [1, 1]} : vector<32x8xbf16> to vector<8x8xbf16>
    %cst_14 = arith.constant dense<0.000000e+00> : vector<8x8xf32>
    %32 = tpu.matmul %30, %31, %cst_14 {dimension_numbers = #tpu.dot_dimension_numbers<[1], [0], [0], [1], [0, 0, 1, 1], [], []>} : vector<8x8xbf16>, vector<8x8xbf16>, vector<8x8xf32> -> vector<8x8xf32>
    %cst_15 = arith.constant -1.000000e+09 : f32
    %33 = vector.broadcast %cst_15 : f32 to vector<8x8xf32>
    %34 = arith.select %25, %32, %33 : vector<8x8xi1>, vector<8x8xf32>
    %cst_16 = arith.constant dense<0xFF800000> : vector<8xf32>
    %35 = vector.multi_reduction <maximumf>, %34, %cst_16 [1] : vector<8x8xf32> to vector<8xf32>
    %36 = vector.shape_cast %35 : vector<8xf32> to vector<8x1xf32>
    %37 = vector.broadcast %36 : vector<8x1xf32> to vector<8x8xf32>
    %38 = arith.subf %34, %37 : vector<8x8xf32>
    %39 = math.exp %38 : vector<8x8xf32>
    %cst_17 = arith.constant dense<0.000000e+00> : vector<8xf32>
    %40 = vector.multi_reduction <add>, %39, %cst_17 [1] : vector<8x8xf32> to vector<8xf32>
    %41 = vector.shape_cast %40 : vector<8xf32> to vector<8x1xf32>
    %42 = tpu.reciprocal %41 {approx = true} : vector<8x1xf32> -> vector<8x1xf32>
    %43 = vector.broadcast %42 : vector<8x1xf32> to vector<8x8xf32>
    %44 = arith.mulf %39, %43 : vector<8x8xf32>
    %45 = arith.truncf %44 : vector<8x8xf32> to vector<8x8xbf16>
    %46 = vector.extract_strided_slice %29 {offsets = [0, 0], sizes = [8, 8], strides = [1, 1]} : vector<8x32xbf16> to vector<8x8xbf16>
    %cst_18 = arith.constant dense<0.000000e+00> : vector<8x8xf32>
    %47 = tpu.matmul %45, %46, %cst_18 {dimension_numbers = #tpu.dot_dimension_numbers<[1], [0], [0], [1], [0, 0, 1, 1], [], []>} : vector<8x8xbf16>, vector<8x8xbf16>, vector<8x8xf32> -> vector<8x8xf32>
    %c0_19 = arith.constant 0 : index
    %c0_20 = arith.constant 0 : index
    %48 = vector.load %arg11[%c0_19, %c0_20] : memref<8x32xf32, #tpu.memory_space<vmem>>, vector<8x8xf32>
    tpu.vector_store %arg11[%c0_19, %c0_20], %47 {strides = array<i32>} : memref<8x32xf32, #tpu.memory_space<vmem>>, vector<8x8xf32>,
    %49 = vector.extract_strided_slice %28 {offsets = [0, 8], sizes = [8, 8], strides = [1, 1]} : vector<8x32xbf16> to vector<8x8xbf16>
    %50 = vector.extract_strided_slice %27 {offsets = [8, 0], sizes = [8, 8], strides = [1, 1]} : vector<32x8xbf16> to vector<8x8xbf16>
    %cst_21 = arith.constant dense<0.000000e+00> : vector<8x8xf32>
    %51 = tpu.matmul %49, %50, %cst_21 {dimension_numbers = #tpu.dot_dimension_numbers<[1], [0], [0], [1], [0, 0, 1, 1], [], []>} : vector<8x8xbf16>, vector<8x8xbf16>, vector<8x8xf32> -> vector<8x8xf32>
    %cst_22 = arith.constant -1.000000e+09 : f32
    %52 = vector.broadcast %cst_22 : f32 to vector<8x8xf32>
    %53 = arith.select %25, %51, %52 : vector<8x8xi1>, vector<8x8xf32>
    %cst_23 = arith.constant dense<0xFF800000> : vector<8xf32>
    %54 = vector.multi_reduction <maximumf>, %53, %cst_23 [1] : vector<8x8xf32> to vector<8xf32>
    %55 = vector.shape_cast %54 : vector<8xf32> to vector<8x1xf32>
    %56 = vector.broadcast %55 : vector<8x1xf32> to vector<8x8xf32>
    %57 = arith.subf %53, %56 : vector<8x8xf32>
    %58 = math.exp %57 : vector<8x8xf32>
    %cst_24 = arith.constant dense<0.000000e+00> : vector<8xf32>
    %59 = vector.multi_reduction <add>, %58, %cst_24 [1] : vector<8x8xf32> to vector<8xf32>
    %60 = vector.shape_cast %59 : vector<8xf32> to vector<8x1xf32>
    %61 = tpu.reciprocal %60 {approx = true} : vector<8x1xf32> -> vector<8x1xf32>
    %62 = vector.broadcast %61 : vector<8x1xf32> to vector<8x8xf32>
    %63 = arith.mulf %58, %62 : vector<8x8xf32>
    %64 = arith.truncf %63 : vector<8x8xf32> to vector<8x8xbf16>
    %65 = vector.extract_strided_slice %29 {offsets = [0, 8], sizes = [8, 8], strides = [1, 1]} : vector<8x32xbf16> to vector<8x8xbf16>
    %cst_25 = arith.constant dense<0.000000e+00> : vector<8x8xf32>
    %66 = tpu.matmul %64, %65, %cst_25 {dimension_numbers = #tpu.dot_dimension_numbers<[1], [0], [0], [1], [0, 0, 1, 1], [], []>} : vector<8x8xbf16>, vector<8x8xbf16>, vector<8x8xf32> -> vector<8x8xf32>
    %c0_26 = arith.constant 0 : index
    %c8 = arith.constant 8 : index
    %67 = vector.load %arg11[%c0_26, %c8] : memref<8x32xf32, #tpu.memory_space<vmem>>, vector<8x8xf32>
    tpu.vector_store %arg11[%c0_26, %c8], %66 {strides = array<i32>} : memref<8x32xf32, #tpu.memory_space<vmem>>, vector<8x8xf32>,
    %68 = vector.extract_strided_slice %28 {offsets = [0, 16], sizes = [8, 8], strides = [1, 1]} : vector<8x32xbf16> to vector<8x8xbf16>
    %69 = vector.extract_strided_slice %27 {offsets = [16, 0], sizes = [8, 8], strides = [1, 1]} : vector<32x8xbf16> to vector<8x8xbf16>
    %cst_27 = arith.constant dense<0.000000e+00> : vector<8x8xf32>
    %70 = tpu.matmul %68, %69, %cst_27 {dimension_numbers = #tpu.dot_dimension_numbers<[1], [0], [0], [1], [0, 0, 1, 1], [], []>} : vector<8x8xbf16>, vector<8x8xbf16>, vector<8x8xf32> -> vector<8x8xf32>
    %cst_28 = arith.constant -1.000000e+09 : f32
    %71 = vector.broadcast %cst_28 : f32 to vector<8x8xf32>
    %72 = arith.select %25, %70, %71 : vector<8x8xi1>, vector<8x8xf32>
    %cst_29 = arith.constant dense<0xFF800000> : vector<8xf32>
    %73 = vector.multi_reduction <maximumf>, %72, %cst_29 [1] : vector<8x8xf32> to vector<8xf32>
    %74 = vector.shape_cast %73 : vector<8xf32> to vector<8x1xf32>
    %75 = vector.broadcast %74 : vector<8x1xf32> to vector<8x8xf32>
    %76 = arith.subf %72, %75 : vector<8x8xf32>
    %77 = math.exp %76 : vector<8x8xf32>
    %cst_30 = arith.constant dense<0.000000e+00> : vector<8xf32>
    %78 = vector.multi_reduction <add>, %77, %cst_30 [1] : vector<8x8xf32> to vector<8xf32>
    %79 = vector.shape_cast %78 : vector<8xf32> to vector<8x1xf32>
    %80 = tpu.reciprocal %79 {approx = true} : vector<8x1xf32> -> vector<8x1xf32>
    %81 = vector.broadcast %80 : vector<8x1xf32> to vector<8x8xf32>
    %82 = arith.mulf %77, %81 : vector<8x8xf32>
    %83 = arith.truncf %82 : vector<8x8xf32> to vector<8x8xbf16>
    %84 = vector.extract_strided_slice %29 {offsets = [0, 16], sizes = [8, 8], strides = [1, 1]} : vector<8x32xbf16> to vector<8x8xbf16>
    %cst_31 = arith.constant dense<0.000000e+00> : vector<8x8xf32>
    %85 = tpu.matmul %83, %84, %cst_31 {dimension_numbers = #tpu.dot_dimension_numbers<[1], [0], [0], [1], [0, 0, 1, 1], [], []>} : vector<8x8xbf16>, vector<8x8xbf16>, vector<8x8xf32> -> vector<8x8xf32>
    %c0_32 = arith.constant 0 : index
    %c16 = arith.constant 16 : index
    %86 = vector.load %arg11[%c0_32, %c16] : memref<8x32xf32, #tpu.memory_space<vmem>>, vector<8x8xf32>
    tpu.vector_store %arg11[%c0_32, %c16], %85 {strides = array<i32>} : memref<8x32xf32, #tpu.memory_space<vmem>>, vector<8x8xf32>,
    %87 = vector.extract_strided_slice %28 {offsets = [0, 24], sizes = [8, 8], strides = [1, 1]} : vector<8x32xbf16> to vector<8x8xbf16>
    %88 = vector.extract_strided_slice %27 {offsets = [24, 0], sizes = [8, 8], strides = [1, 1]} : vector<32x8xbf16> to vector<8x8xbf16>
    %cst_33 = arith.constant dense<0.000000e+00> : vector<8x8xf32>
    %89 = tpu.matmul %87, %88, %cst_33 {dimension_numbers = #tpu.dot_dimension_numbers<[1], [0], [0], [1], [0, 0, 1, 1], [], []>} : vector<8x8xbf16>, vector<8x8xbf16>, vector<8x8xf32> -> vector<8x8xf32>
    %cst_34 = arith.constant -1.000000e+09 : f32
    %90 = vector.broadcast %cst_34 : f32 to vector<8x8xf32>
    %91 = arith.select %25, %89, %90 : vector<8x8xi1>, vector<8x8xf32>
    %cst_35 = arith.constant dense<0xFF800000> : vector<8xf32>
    %92 = vector.multi_reduction <maximumf>, %91, %cst_35 [1] : vector<8x8xf32> to vector<8xf32>
    %93 = vector.shape_cast %92 : vector<8xf32> to vector<8x1xf32>
    %94 = vector.broadcast %93 : vector<8x1xf32> to vector<8x8xf32>
    %95 = arith.subf %91, %94 : vector<8x8xf32>
    %96 = math.exp %95 : vector<8x8xf32>
    %cst_36 = arith.constant dense<0.000000e+00> : vector<8xf32>
    %97 = vector.multi_reduction <add>, %96, %cst_36 [1] : vector<8x8xf32> to vector<8xf32>
    %98 = vector.shape_cast %97 : vector<8xf32> to vector<8x1xf32>
    %99 = tpu.reciprocal %98 {approx = true} : vector<8x1xf32> -> vector<8x1xf32>
    %100 = vector.broadcast %99 : vector<8x1xf32> to vector<8x8xf32>
    %101 = arith.mulf %96, %100 : vector<8x8xf32>
    %102 = arith.truncf %101 : vector<8x8xf32> to vector<8x8xbf16>
    %103 = vector.extract_strided_slice %29 {offsets = [0, 24], sizes = [8, 8], strides = [1, 1]} : vector<8x32xbf16> to vector<8x8xbf16>
    %cst_37 = arith.constant dense<0.000000e+00> : vector<8x8xf32>
    %104 = tpu.matmul %102, %103, %cst_37 {dimension_numbers = #tpu.dot_dimension_numbers<[1], [0], [0], [1], [0, 0, 1, 1], [], []>} : vector<8x8xbf16>, vector<8x8xbf16>, vector<8x8xf32> -> vector<8x8xf32>
    %c0_38 = arith.constant 0 : index
    %c24 = arith.constant 24 : index
    %105 = vector.load %arg11[%c0_38, %c24] : memref<8x32xf32, #tpu.memory_space<vmem>>, vector<8x8xf32>
    tpu.vector_store %arg11[%c0_38, %c24], %104 {strides = array<i32>} : memref<8x32xf32, #tpu.memory_space<vmem>>, vector<8x8xf32>,
    %c0_39 = arith.constant 0 : index
    %c0_40 = arith.constant 0 : index
    %106 = vector.load %arg11[%c0_39, %c0_40] : memref<8x32xf32, #tpu.memory_space<vmem>>, vector<8x32xf32>
    %107 = arith.truncf %106 : vector<8x32xf32> to vector<8x32xbf16>
    %c0_41 = arith.constant 0 : index
    %c0_42 = arith.constant 0 : index
    %108 = vector.load %arg6[%c0_41, %c0_42] : memref<32x32xbf16, #tpu.memory_space<vmem>>, vector<32x32xbf16>
    %cst_43 = arith.constant dense<0.000000e+00> : vector<8x32xf32>
    %109 = tpu.matmul %107, %108, %cst_43 {dimension_numbers = #tpu.dot_dimension_numbers<[1], [0], [0], [1], [0, 0, 1, 1], [], []>} : vector<8x32xbf16>, vector<32x32xbf16>, vector<8x32xf32> -> vector<8x32xf32>
    %c0_44 = arith.constant 0 : index
    %c0_45 = arith.constant 0 : index
    %110 = vector.load %arg7[%c0_44, %c0_45] : memref<1x32xf32, #tpu.memory_space<vmem>>, vector<1x32xf32>
    %111 = vector.broadcast %110 : vector<1x32xf32> to vector<8x32xf32>
    %112 = arith.addf %109, %111 : vector<8x32xf32>
    %113 = arith.addf %1, %112 : vector<8x32xf32>
    %cst_46 = arith.constant dense<0.000000e+00> : vector<8xf32>
    %114 = vector.multi_reduction <add>, %113, %cst_46 [1] : vector<8x32xf32> to vector<8xf32>
    %115 = vector.shape_cast %114 : vector<8xf32> to vector<8x1xf32>
    %cst_47 = arith.constant 3.200000e+01 : f32
    %116 = vector.broadcast %cst_47 : f32 to vector<8x1xf32>
    %117 = arith.divf %115, %116 : vector<8x1xf32>
    %118 = vector.broadcast %117 : vector<8x1xf32> to vector<8x32xf32>
    %119 = arith.subf %113, %118 : vector<8x32xf32>
    %120 = arith.mulf %119, %119 : vector<8x32xf32>
    %cst_48 = arith.constant dense<0.000000e+00> : vector<8xf32>
    %121 = vector.multi_reduction <add>, %120, %cst_48 [1] : vector<8x32xf32> to vector<8xf32>
    %122 = vector.shape_cast %121 : vector<8xf32> to vector<8x1xf32>
    %cst_49 = arith.constant 3.200000e+01 : f32
    %123 = vector.broadcast %cst_49 : f32 to vector<8x1xf32>
    %124 = arith.divf %122, %123 : vector<8x1xf32>
    %125 = vector.broadcast %117 : vector<8x1xf32> to vector<8x32xf32>
    %126 = arith.subf %113, %125 : vector<8x32xf32>
    %cst_50 = arith.constant 9.99999974E-6 : f32
    %127 = vector.broadcast %cst_50 : f32 to vector<8x1xf32>
    %128 = arith.addf %124, %127 : vector<8x1xf32>
    %129 = math.rsqrt %128 : vector<8x1xf32>
    %130 = vector.broadcast %129 : vector<8x1xf32> to vector<8x32xf32>
    %131 = arith.mulf %126, %130 : vector<8x32xf32>
    %c0_51 = arith.constant 0 : index
    %c0_52 = arith.constant 0 : index
    %132 = vector.load %arg8[%c0_51, %c0_52] : memref<1x32xf32, #tpu.memory_space<vmem>>, vector<1x32xf32>
    %133 = vector.broadcast %132 : vector<1x32xf32> to vector<8x32xf32>
    %134 = arith.mulf %131, %133 : vector<8x32xf32>
    %c0_53 = arith.constant 0 : index
    %c0_54 = arith.constant 0 : index
    %135 = vector.load %arg9[%c0_53, %c0_54] : memref<1x32xf32, #tpu.memory_space<vmem>>, vector<1x32xf32>
    %136 = vector.broadcast %135 : vector<1x32xf32> to vector<8x32xf32>
    %137 = arith.addf %134, %136 : vector<8x32xf32>
    %c0_55 = arith.constant 0 : index
    %c0_56 = arith.constant 0 : index
    %c0_57 = arith.constant 0 : index
    %138 = vector.load %arg10[%c0_55, %c0_56, %c0_57] : memref<1x8x32xf32, #tpu.memory_space<vmem>>, vector<1x8x32xf32>
    %139 = vector.shape_cast %138 : vector<1x8x32xf32> to vector<8x32xf32>
    %140 = vector.shape_cast %137 : vector<8x32xf32> to vector<1x8x32xf32>
    tpu.vector_store %arg10[%c0_55, %c0_56, %c0_57], %140 {strides = array<i32>} : memref<1x8x32xf32, #tpu.memory_space<vmem>>, vector<1x8x32xf32>,
    return
  }
  func.func @transform_0(%arg0: i32) -> (i32, i32, i32) {
    %c0_i32 = arith.constant 0 : i32
    %c0_i32_0 = arith.constant 0 : i32
    %c0_i32_1 = arith.constant 0 : i32
    return %arg0, %c0_i32, %c0_i32_0 : i32, i32, i32
  }
  func.func @transform_1(%arg0: i32) -> (i32, i32, i32) {
    %c0_i32 = arith.constant 0 : i32
    %c0_i32_0 = arith.constant 0 : i32
    %c0_i32_1 = arith.constant 0 : i32
    return %arg0, %c0_i32, %c0_i32_0 : i32, i32, i32
  }
  func.func @transform_2(%arg0: i32) -> (i32, i32, i32) {
    %c0_i32 = arith.constant 0 : i32
    %c0_i32_0 = arith.constant 0 : i32
    %c0_i32_1 = arith.constant 0 : i32
    return %arg0, %c0_i32, %c0_i32_0 : i32, i32, i32
  }
  func.func @transform_3(%arg0: i32) -> (i32, i32) {
    %c0_i32 = arith.constant 0 : i32
    %c0_i32_0 = arith.constant 0 : i32
    %c0_i32_1 = arith.constant 0 : i32
    return %c0_i32, %c0_i32_0 : i32, i32
  }
  func.func @transform_4(%arg0: i32) -> (i32, i32) {
    %c0_i32 = arith.constant 0 : i32
    %c0_i32_0 = arith.constant 0 : i32
    %c0_i32_1 = arith.constant 0 : i32
    return %c0_i32, %c0_i32_0 : i32, i32
  }
  func.func @transform_5(%arg0: i32) -> (i32, i32) {
    %c0_i32 = arith.constant 0 : i32
    %c0_i32_0 = arith.constant 0 : i32
    %c0_i32_1 = arith.constant 0 : i32
    return %c0_i32, %c0_i32_0 : i32, i32
  }
  func.func @transform_6(%arg0: i32) -> (i32, i32) {
    %c0_i32 = arith.constant 0 : i32
    %c0_i32_0 = arith.constant 0 : i32
    %c0_i32_1 = arith.constant 0 : i32
    return %c0_i32, %c0_i32_0 : i32, i32
  }
  func.func @transform_7(%arg0: i32) -> (i32, i32) {
    %c0_i32 = arith.constant 0 : i32
    %c0_i32_0 = arith.constant 0 : i32
    %c0_i32_1 = arith.constant 0 : i32
    return %c0_i32, %c0_i32_0 : i32, i32
  }
  func.func @transform_8(%arg0: i32) -> (i32, i32) {
    %c0_i32 = arith.constant 0 : i32
    %c0_i32_0 = arith.constant 0 : i32
    %c0_i32_1 = arith.constant 0 : i32
    return %c0_i32, %c0_i32_0 : i32, i32
  }
  func.func @transform_9(%arg0: i32) -> (i32, i32, i32) {
    %c0_i32 = arith.constant 0 : i32
    %c0_i32_0 = arith.constant 0 : i32
    %c0_i32_1 = arith.constant 0 : i32
    return %arg0, %c0_i32, %c0_i32_0 : i32, i32, i32
  }
}

module attributes {stable_mosaic.version = 11 : i64} {
  func.func @_linear_kernel(%arg0: i32, %arg1: i32, %arg2: memref<16x32xf32, #tpu.memory_space<vmem>>, %arg3: memref<32x48xbf16, #tpu.memory_space<vmem>>, %arg4: memref<1x48xf32, #tpu.memory_space<vmem>>, %arg5: memref<16x48xf32, #tpu.memory_space<vmem>>) attributes {dimension_semantics = [#tpu.dimension_semantics<parallel>, #tpu.dimension_semantics<parallel>], iteration_bounds = array<i64: 1, 1>, scalar_prefetch = 0 : i64, scratch_operands = 0 : i64, tpu.core_type = #tpu.core_type<tc>, window_params = [{transform_indices = @transform_0, window_bounds = array<i64: 16, 32>}, {transform_indices = @transform_1, window_bounds = array<i64: 32, 48>}, {transform_indices = @transform_2, window_bounds = array<i64: 1, 48>}, {transform_indices = @transform_3, window_bounds = array<i64: 16, 48>}]} {
    %c0 = arith.constant 0 : index
    %c0_0 = arith.constant 0 : index
    %0 = vector.load %arg2[%c0, %c0_0] : memref<16x32xf32, #tpu.memory_space<vmem>>, vector<16x32xf32>
    %1 = arith.truncf %0 : vector<16x32xf32> to vector<16x32xbf16>
    %c0_1 = arith.constant 0 : index
    %c0_2 = arith.constant 0 : index
    %2 = vector.load %arg3[%c0_1, %c0_2] : memref<32x48xbf16, #tpu.memory_space<vmem>>, vector<32x48xbf16>
    %cst = arith.constant dense<0.000000e+00> : vector<16x48xf32>
    %3 = tpu.matmul %1, %2, %cst {dimension_numbers = #tpu.dot_dimension_numbers<[1], [0], [0], [1], [0, 0, 1, 1], [], []>} : vector<16x32xbf16>, vector<32x48xbf16>, vector<16x48xf32> -> vector<16x48xf32>
    %c0_3 = arith.constant 0 : index
    %c0_4 = arith.constant 0 : index
    %4 = vector.load %arg4[%c0_3, %c0_4] : memref<1x48xf32, #tpu.memory_space<vmem>>, vector<1x48xf32>
    %5 = vector.broadcast %4 : vector<1x48xf32> to vector<16x48xf32>
    %6 = arith.addf %3, %5 : vector<16x48xf32>
    %c0_5 = arith.constant 0 : index
    %c0_6 = arith.constant 0 : index
    %7 = vector.load %arg5[%c0_5, %c0_6] : memref<16x48xf32, #tpu.memory_space<vmem>>, vector<16x48xf32>
    tpu.vector_store %arg5[%c0_5, %c0_6], %6 {strides = array<i32>} : memref<16x48xf32, #tpu.memory_space<vmem>>, vector<16x48xf32>,
    return
  }
  func.func @transform_0(%arg0: i32, %arg1: i32) -> (i32, i32) {
    %c0_i32 = arith.constant 0 : i32
    %c0_i32_0 = arith.constant 0 : i32
    return %arg0, %c0_i32 : i32, i32
  }
  func.func @transform_1(%arg0: i32, %arg1: i32) -> (i32, i32) {
    %c0_i32 = arith.constant 0 : i32
    %c0_i32_0 = arith.constant 0 : i32
    return %c0_i32, %arg1 : i32, i32
  }
  func.func @transform_2(%arg0: i32, %arg1: i32) -> (i32, i32) {
    %c0_i32 = arith.constant 0 : i32
    %c0_i32_0 = arith.constant 0 : i32
    return %c0_i32, %arg1 : i32, i32
  }
  func.func @transform_3(%arg0: i32, %arg1: i32) -> (i32, i32) {
    %c0_i32 = arith.constant 0 : i32
    return %arg0, %arg1 : i32, i32
  }
}

</mosaic_0001>

<llo_original>
// kernel: transformer_forward.12
$region0: #{transformer_forward.12}
  #allocation0 [shape = 'u32[]', space=smem, size = 0x4, offset = 0x4, fixed_abs, tag = 'smem constant byte address 0x4 - core index']
  #allocation1 [shape = 'u32[72,128]{1,0:T(1,128)}', space=vmem, size = 0x9000, scoped, tag = 'internal scratch']
  %s0 = inlined_call_operand.vmem [shape: f32[16,32], index: 0, kind: input, shape index: {}]
  %s1 = inlined_call_operand.vmem [shape: bf16[32,64], index: 1, kind: input, shape index: {}]
  %s2 = inlined_call_operand.vmem [shape: f32[1,64], index: 2, kind: input, shape index: {}]
  %s3 = inlined_call_operand.vmem [shape: bf16[64,32], index: 3, kind: input, shape index: {}]
  %s4 = inlined_call_operand.vmem [shape: f32[1,32], index: 4, kind: input, shape index: {}]
  %s5 = inlined_call_operand.vmem [shape: f32[1,32], index: 5, kind: input, shape index: {}]
  %s6 = inlined_call_operand.vmem [shape: f32[1,32], index: 6, kind: input, shape index: {}]
  %s7 = inlined_call_operand.vmem [shape: f32[16,32], index: 7, kind: output, shape index: {}]
  %s8 = sld [smem:[#allocation0]]
  $region38: #{transformer_forward.12} parent=0
    _
  %s10 = ssub.s32 1, %s8
  %s11 = scalar_select 0, %s10, %s8
  // Predicated region
  $region2: #{transformer_forward.12} parent=0 // pred_check
    _
  $region3: #{transformer_forward.12} parent=0 // pred_check_branch
    %13 = sbr.rel (0) target = $region5
  $region4: #{transformer_forward.12} parent=0 // pred_region
    _
  $region5: #{transformer_forward.12} parent=0 // pred_fallthru
    _
  // Predicated region
  $region6: #{transformer_forward.12} parent=0 // pred_check
    _
  $region7: #{transformer_forward.12} parent=0 // pred_check_branch
    %15 = sbr.rel (0) target = $region9
  $region8: #{transformer_forward.12} parent=0 // pred_region
    _
  $region9: #{transformer_forward.12} parent=0 // pred_fallthru
    _
  // Predicated region
  $region10: #{transformer_forward.12} parent=0 // pred_check
    _
  $region11: #{transformer_forward.12} parent=0 // pred_check_branch
    %17 = sbr.rel (0) target = $region13
  $region12: #{transformer_forward.12} parent=0 // pred_region
    _
  $region13: #{transformer_forward.12} parent=0 // pred_fallthru
    _
  // Predicated region
  $region14: #{transformer_forward.12} parent=0 // pred_check
    _
  $region15: #{transformer_forward.12} parent=0 // pred_check_branch
    %19 = sbr.rel (0) target = $region17
  $region16: #{transformer_forward.12} parent=0 // pred_region
    _
  $region17: #{transformer_forward.12} parent=0 // pred_fallthru
    _
  // Predicated region
  $region18: #{transformer_forward.12} parent=0 // pred_check
    _
  $region19: #{transformer_forward.12} parent=0 // pred_check_branch
    %21 = sbr.rel (0) target = $region21
  $region20: #{transformer_forward.12} parent=0 // pred_region
    _
  $region21: #{transformer_forward.12} parent=0 // pred_fallthru
    _
  // Predicated region
  $region22: #{transformer_forward.12} parent=0 // pred_check
    _
  $region23: #{transformer_forward.12} parent=0 // pred_check_branch
    %23 = sbr.rel (0) target = $region25
  $region24: #{transformer_forward.12} parent=0 // pred_region
    _
  $region25: #{transformer_forward.12} parent=0 // pred_fallthru
    _
  // Predicated region
  $region26: #{transformer_forward.12} parent=0 // pred_check
    _
  $region27: #{transformer_forward.12} parent=0 // pred_check_branch
    %25 = sbr.rel (0) target = $region29
  $region28: #{transformer_forward.12} parent=0 // pred_region
    _
  $region29: #{transformer_forward.12} parent=0 // pred_fallthru
    _
  %v27 = vld [vmem:[%s0] sm:$0xff]
  %v28 = vld [vmem:[%s0 + $0x8] sm:$0xff]
  %v29 = vpack.c.bf16 %v28, %v27
  %v30 = vld [vmem:[%s1] sm:$0xf]
  %v31 = vld [vmem:[%s1 + $0x4] sm:$0xf]
  %v32 = vld [vmem:[%s1 + $0x8] sm:$0xf]
  %v33 = vld [vmem:[%s1 + $0xc] sm:$0xf]
  %v34 = vld [vmem:[%s2] sm:$0x1]
  %v36 = vperm.slane %v34, 0
  %v42 = vunpack.c.l.b16 %v30
  %v43 = vunpack.c.l.b16 %v31
  %v44 = vunpack.c.l.b16 %v32
  %v45 = vunpack.c.l.b16 %v33
  %v46 = vpack.c.b16 %v43, %v42
  %v47 = vpack.c.b16 %v45, %v44
  %vm50 = vcmask 261120
  %v52 = vsel %vm50, %v29, 0
  %54 = vmatpush.bf16.msra.mxu0 0
  %55 = vmatpush.bf16.msra.mxu0 0
  %56 = vmatpush.bf16.msra.mxu0 0
  %57 = vmatpush.bf16.msra.mxu0 0
  %58 = vmatpush.bf16.msra.mxu0 0
  %59 = vmatpush.bf16.msra.mxu0 0
  %60 = vmatpush.bf16.msra.mxu0 %v47
  %61 = vmatpush.bf16.msra.mxu0 %v46
  %62 = vmatmul.bf16.gmra.mxu0 %v52
  %v63 = vpop.f32.mrf.mxu0
  %v64 = vadd.f32 %v36, %v63
  %v65 = vpop.f32.mrf.mxu0
  %v66 = vadd.f32 %v36, %v65
  %67 = vdwg.mxu0
  %v68 = vmax.f32 %v64, 0.0
  %v69 = vmax.f32 %v66, 0.0
  %v70 = vpack.c.bf16 %v69, %v68
  %v71 = vld [vmem:[%s3] sm:$0xf]
  %v72 = vld [vmem:[%s3 + $0x4] sm:$0xf]
  %v73 = vld [vmem:[%s3 + $0x8] sm:$0xf]
  %v74 = vld [vmem:[%s3 + $0xc] sm:$0xf]
  %v75 = vld [vmem:[%s3 + $0x10] sm:$0xf]
  %v76 = vld [vmem:[%s3 + $0x14] sm:$0xf]
  %v77 = vld [vmem:[%s3 + $0x18] sm:$0xf]
  %v78 = vld [vmem:[%s3 + $0x1c] sm:$0xf]
  %v79 = vld [vmem:[%s4] sm:$0x1]
  %v81 = vperm.slane %v79, 0
  %v91 = vunpack.c.l.b16 %v71
  %v92 = vunpack.c.l.b16 %v72
  %v93 = vunpack.c.l.b16 %v73
  %v94 = vunpack.c.l.b16 %v74
  %v95 = vunpack.c.l.b16 %v75
  %v96 = vunpack.c.l.b16 %v76
  %v97 = vunpack.c.l.b16 %v77
  %v98 = vunpack.c.l.b16 %v78
  %v99 = vpack.c.b16 %v92, %v91
  %v100 = vpack.c.b16 %v94, %v93
  %v101 = vpack.c.b16 %v96, %v95
  %v102 = vpack.c.b16 %v98, %v97
  %vm107 = vcmask 523264
  %v109 = vsel %vm107, %v70, 0
  %111 = vmatpush.bf16.msra.mxu0 0
  %112 = vmatpush.bf16.msra.mxu0 0
  %113 = vmatpush.bf16.msra.mxu0 0
  %114 = vmatpush.bf16.msra.mxu0 0
  %115 = vmatpush.bf16.msra.mxu0 %v102
  %116 = vmatpush.bf16.msra.mxu0 %v101
  %117 = vmatpush.bf16.msra.mxu0 %v100
  %118 = vmatpush.bf16.msra.mxu0 %v99
  %119 = vmatmul.bf16.gmra.mxu0 %v109
  %v120 = vpop.f32.mrf.mxu0
  %v121 = vadd.f32 %v81, %v120
  %v122 = vpop.f32.mrf.mxu0
  %v123 = vadd.f32 %v81, %v122
  %124 = vdwg.mxu0
  %v125 = vadd.f32 %v27, %v121
  %v126 = vadd.f32 %v28, %v123
  %v127 = vsel %vm50, %v125, 0.0
  %128 = vadd.xlane.f32.xlu0 %v127
  %v129 = vpop.xlane.xlu0 %128
  %v130 = vsel %vm50, %v126, 0.0
  %131 = vadd.xlane.f32.xlu0 %v130
  %v132 = vpop.xlane.xlu0 %131
  %v133 = vrcp.pop 32.0
  %v134 = vmul.f32 32.0, %v133
  %v135 = vsub.f32 1.0, %v134
  %v136 = vmul.f32 %v133, %v135
  %v137 = vadd.f32 %v133, %v136
  %vm138 = vweird.f32 %v133
  %v139 = vsel %vm138, %v133, %v137
  %v140 = vmul.f32 %v129, %v139
  %v141 = vmul.f32 %v132, %v139
  %v142 = vsub.f32 %v125, %v140
  %v143 = vsub.f32 %v126, %v141
  %v144 = vmul.f32 %v142, %v142
  %v145 = vmul.f32 %v143, %v143
  %v146 = vsel %vm50, %v144, 0.0
  %147 = vadd.xlane.f32.xlu0 %v146
  %v148 = vpop.xlane.xlu0 %147
  %v149 = vsel %vm50, %v145, 0.0
  %150 = vadd.xlane.f32.xlu0 %v149
  %v151 = vpop.xlane.xlu0 %150
  %v152 = vmul.f32 %v148, %v139
  %v153 = vmul.f32 %v151, %v139
  %v154 = vadd.f32 %v152, 1e-05
  %v155 = vadd.f32 %v153, 1e-05
  %v156 = vrsqrt.pop %v154
  %v157 = vmul.f32 %v156, %v154
  %v158 = vmul.f32 %v157, %v156
  %v159 = vmul.f32 0.5, %v158
  %v160 = vsub.f32 1.5, %v159
  %v161 = vmul.f32 %v156, %v160
  %vm162 = vweird.f32 %v154
  %vm163 = vweird.f32 %v156
  %vm164 = vmor %vm162, %vm163
  %v165 = vsel %vm164, %v156, %v161
  %v166 = vrsqrt.pop %v155
  %v167 = vmul.f32 %v166, %v155
  %v168 = vmul.f32 %v167, %v166
  %v169 = vmul.f32 0.5, %v168
  %v170 = vsub.f32 1.5, %v169
  %v171 = vmul.f32 %v166, %v170
  %vm172 = vweird.f32 %v155
  %vm173 = vweird.f32 %v166
  %vm174 = vmor %vm172, %vm173
  %v175 = vsel %vm174, %v166, %v171
  %v176 = vmul.f32 %v142, %v165
  %v177 = vmul.f32 %v143, %v175
  %v178 = vld [vmem:[%s5] sm:$0x1]
  %v180 = vperm.slane %v178, 0
  %v182 = vmul.f32 %v176, %v180
  %v183 = vmul.f32 %v177, %v180
  %v184 = vld [vmem:[%s6] sm:$0x1]
  %v186 = vperm.slane %v184, 0
  %v188 = vadd.f32 %v182, %v186
  %v189 = vadd.f32 %v183, %v186
  %190 = vst.msk [vmem:[%s7] sm:$0xff] %vm50, %v188
  %191 = vst.msk [vmem:[%s7 + $0x8] sm:$0xff] %vm50, %v189
  // Predicated region
  $region30: #{transformer_forward.12} parent=0 // pred_check
    _
  $region31: #{transformer_forward.12} parent=0 // pred_check_branch
    %193 = sbr.rel (0) target = $region33
  $region32: #{transformer_forward.12} parent=0 // pred_region
    _
  $region33: #{transformer_forward.12} parent=0 // pred_fallthru
    _
  // Predicated region
  $region34: #{transformer_forward.12} parent=0 // pred_check
    _
  $region35: #{transformer_forward.12} parent=0 // pred_check_branch
    %195 = sbr.rel (0) target = $region37
  $region36: #{transformer_forward.12} parent=0 // pred_region
    _
  $region37: #{transformer_forward.12} parent=0 // pred_fallthru
    _

// kernel: transformer_forward.11
$region0: #{transformer_forward.11}
  #allocation0 [shape = 'u32[]', space=smem, size = 0x4, offset = 0x4, fixed_abs, tag = 'smem constant byte address 0x4 - core index']
  #allocation1 [shape = 'u32[72,128]{1,0:T(1,128)}', space=vmem, size = 0x9000, scoped, tag = 'internal scratch']
  #allocation2 [shape = 'f32[8,32]{1,0:T(8,128)}', space=vmem, size = 0x1000, scoped, tag = 'scratch operand']
  %s0 = inlined_call_operand.vmem [shape: f32[2,8,32], index: 0, kind: input, shape index: {}]
  %s1 = inlined_call_operand.vmem [shape: f32[2,8,1], index: 1, kind: input, shape index: {}]
  %s2 = inlined_call_operand.vmem [shape: f32[2,1,8], index: 2, kind: input, shape index: {}]
  %s3 = inlined_call_operand.vmem [shape: bf16[32,96], index: 3, kind: input, shape index: {}]
  %s4 = inlined_call_operand.vmem [shape: f32[1,96], index: 4, kind: input, shape index: {}]
  %s5 = inlined_call_operand.vmem [shape: bf16[32,32], index: 5, kind: input, shape index: {}]
  %s6 = inlined_call_operand.vmem [shape: f32[1,32], index: 6, kind: input, shape index: {}]
  %s7 = inlined_call_operand.vmem [shape: f32[1,32], index: 7, kind: input, shape index: {}]
  %s8 = inlined_call_operand.vmem [shape: f32[1,32], index: 8, kind: input, shape index: {}]
  %s9 = inlined_call_operand.vmem [shape: f32[2,8,32], index: 9, kind: output, shape index: {}]
  %s10 = sld [smem:[#allocation0]]
  $region69: #{transformer_forward.11} parent=0
    _
  %s12 = ssub.s32 1, %s10
  %s13 = scalar_select 0, %s12, %s10
  loop: start=0, step=1, limit=4
  $region2: #{transformer_forward.11} parent=0 // loop_pre_header
    _
  $region3: #{transformer_forward.11} parent=0 // loop_header
    %s15 = sphi 0, %s19
    %p16 = scmp.ge.s32.totalorder %s15, 4
    %s25 = sphi 0, %s27
    %s28 = sphi 0, %s25
    %s29 = sphi 0, %s28
    %s45 = sphi 0, %s29
    %s51 = sphi 0, %s53
    %s54 = sphi 0, %s51
    %s55 = sphi 0, %s54
    %s71 = sphi 0, %s55
    %s77 = sphi 0, %s79
    %s80 = sphi 0, %s77
    %s81 = sphi 0, %s80
    %s97 = sphi 0, %s81
    %s101 = sphi 0, %s101
    %s103 = sphi 0, %s101
    %s104 = sphi 0, %s103
    %s118 = sphi 0, %s104
    %s122 = sphi 0, %s122
    %s124 = sphi 0, %s122
    %s125 = sphi 0, %s124
    %s139 = sphi 0, %s125
    %s143 = sphi 0, %s143
    %s145 = sphi 0, %s143
    %s146 = sphi 0, %s145
    %s160 = sphi 0, %s146
    %s164 = sphi 0, %s164
    %s166 = sphi 0, %s164
    %s167 = sphi 0, %s166
    %s181 = sphi 0, %s167
    %s185 = sphi 0, %s185
    %s187 = sphi 0, %s185
    %s188 = sphi 0, %s187
    %s202 = sphi 0, %s188
    %s206 = sphi 0, %s206
    %s208 = sphi 0, %s206
    %s209 = sphi 0, %s208
    %s223 = sphi 0, %s209
    %s229 = sphi 0, %s231
    %s232 = sphi 0, %s229
    %s233 = sphi 0, %s232
    %s249 = sphi 0, %s233
  $region4: #{transformer_forward.11} parent=0 // loop_header_branch
    %18 = sbr.rel (%p16) target = $region8
  $region5: #{transformer_forward.11} parent=0 // loop_body
    %s20 = ssub.s32 %s15, 1
    %s21 = ssub.s32 %s15, 2
    %s22 = sadd.s32 %s15, 1
    %s23 = ssub.s32 %s15, %s22
    %p24 = scmp.eq.s32.totalorder %s23, 0
    %s26 = sadd.s32 %s25, 1
    %s27 = scalar_select %p24, %s25, %s26
    %p30 = pneg %p24
    %p31 = scmp.eq.s32.totalorder %s15, 1
    %p32 = por %p30, %p31
    %p33 = scmp.ne.s32.totalorder %s25, %s28
    %p34 = scmp.eq.s32.totalorder %s15, 0
    %p35 = por %p33, %p34
    %p36 = scmp.ne.s32.totalorder %s25, %s28
    %p37 = scmp.eq.s32.totalorder %s20, 1
    %p38 = por %p36, %p37
    %p39 = scmp.ne.s32.totalorder %s28, %s29
    %p40 = scmp.eq.s32.totalorder %s20, 0
    %p41 = por %p39, %p40
    %p42 = scmp.ne.s32.totalorder %s28, %s29
    %p43 = scmp.eq.s32.totalorder %s21, 1
    %p44 = por %p42, %p43
    %p46 = scmp.ne.s32.totalorder %s29, %s45
    %p47 = scmp.eq.s32.totalorder %s21, 0
    %p48 = por %p46, %p47
    %s49 = ssub.s32 %s15, %s22
    %p50 = scmp.eq.s32.totalorder %s49, 0
    %s52 = sadd.s32 %s51, 1
    %s53 = scalar_select %p50, %s51, %s52
    %p56 = pneg %p50
    %p57 = scmp.eq.s32.totalorder %s15, 1
    %p58 = por %p56, %p57
    %p59 = scmp.ne.s32.totalorder %s51, %s54
    %p60 = scmp.eq.s32.totalorder %s15, 0
    %p61 = por %p59, %p60
    %p62 = scmp.ne.s32.totalorder %s51, %s54
    %p63 = scmp.eq.s32.totalorder %s20, 1
    %p64 = por %p62, %p63
    %p65 = scmp.ne.s32.totalorder %s54, %s55
    %p66 = scmp.eq.s32.totalorder %s20, 0
    %p67 = por %p65, %p66
    %p68 = scmp.ne.s32.totalorder %s54, %s55
    %p69 = scmp.eq.s32.totalorder %s21, 1
    %p70 = por %p68, %p69
    %p72 = scmp.ne.s32.totalorder %s55, %s71
    %p73 = scmp.eq.s32.totalorder %s21, 0
    %p74 = por %p72, %p73
    %s75 = ssub.s32 %s15, %s22
    %p76 = scmp.eq.s32.totalorder %s75, 0
    %s78 = sadd.s32 %s77, 1
    %s79 = scalar_select %p76, %s77, %s78
    %p82 = pneg %p76
    %p83 = scmp.eq.s32.totalorder %s15, 1
    %p84 = por %p82, %p83
    %p85 = scmp.ne.s32.totalorder %s77, %s80
    %p86 = scmp.eq.s32.totalorder %s15, 0
    %p87 = por %p85, %p86
    %p88 = scmp.ne.s32.totalorder %s77, %s80
    %p89 = scmp.eq.s32.totalorder %s20, 1
    %p90 = por %p88, %p89
    %p91 = scmp.ne.s32.totalorder %s80, %s81
    %p92 = scmp.eq.s32.totalorder %s20, 0
    %p93 = por %p91, %p92
    %p94 = scmp.ne.s32.totalorder %s80, %s81
    %p95 = scmp.eq.s32.totalorder %s21, 1
    %p96 = por %p94, %p95
    %p98 = scmp.ne.s32.totalorder %s81, %s97
    %p99 = scmp.eq.s32.totalorder %s21, 0
    %p100 = por %p98, %p99
    %s102 = sadd.s32 %s101, 1
    %p105 = scmp.eq.s32.totalorder %s15, 1
    %p106 = scmp.ne.s32.totalorder %s101, %s103
    %p107 = scmp.eq.s32.totalorder %s15, 0
    %p108 = por %p106, %p107
    %p109 = scmp.ne.s32.totalorder %s101, %s103
    %p110 = scmp.eq.s32.totalorder %s20, 1
    %p111 = por %p109, %p110
    %p112 = scmp.ne.s32.totalorder %s103, %s104
    %p113 = scmp.eq.s32.totalorder %s20, 0
    %p114 = por %p112, %p113
    %p115 = scmp.ne.s32.totalorder %s103, %s104
    %p116 = scmp.eq.s32.totalorder %s21, 1
    %p117 = por %p115, %p116
    %p119 = scmp.ne.s32.totalorder %s104, %s118
    %p120 = scmp.eq.s32.totalorder %s21, 0
    %p121 = por %p119, %p120
    %s123 = sadd.s32 %s122, 1
    %p126 = scmp.eq.s32.totalorder %s15, 1
    %p127 = scmp.ne.s32.totalorder %s122, %s124
    %p128 = scmp.eq.s32.totalorder %s15, 0
    %p129 = por %p127, %p128
    %p130 = scmp.ne.s32.totalorder %s122, %s124
    %p131 = scmp.eq.s32.totalorder %s20, 1
    %p132 = por %p130, %p131
    %p133 = scmp.ne.s32.totalorder %s124, %s125
    %p134 = scmp.eq.s32.totalorder %s20, 0
    %p135 = por %p133, %p134
    %p136 = scmp.ne.s32.totalorder %s124, %s125
    %p137 = scmp.eq.s32.totalorder %s21, 1
    %p138 = por %p136, %p137
    %p140 = scmp.ne.s32.totalorder %s125, %s139
    %p141 = scmp.eq.s32.totalorder %s21, 0
    %p142 = por %p140, %p141
    %s144 = sadd.s32 %s143, 1
    %p147 = scmp.eq.s32.totalorder %s15, 1
    %p148 = scmp.ne.s32.totalorder %s143, %s145
    %p149 = scmp.eq.s32.totalorder %s15, 0
    %p150 = por %p148, %p149
    %p151 = scmp.ne.s32.totalorder %s143, %s145
    %p152 = scmp.eq.s32.totalorder %s20, 1
    %p153 = por %p151, %p152
    %p154 = scmp.ne.s32.totalorder %s145, %s146
    %p155 = scmp.eq.s32.totalorder %s20, 0
    %p156 = por %p154, %p155
    %p157 = scmp.ne.s32.totalorder %s145, %s146
    %p158 = scmp.eq.s32.totalorder %s21, 1
    %p159 = por %p157, %p158
    %p161 = scmp.ne.s32.totalorder %s146, %s160
    %p162 = scmp.eq.s32.totalorder %s21, 0
    %p163 = por %p161, %p162
    %s165 = sadd.s32 %s164, 1
    %p168 = scmp.eq.s32.totalorder %s15, 1
    %p169 = scmp.ne.s32.totalorder %s164, %s166
    %p170 = scmp.eq.s32.totalorder %s15, 0
    %p171 = por %p169, %p170
    %p172 = scmp.ne.s32.totalorder %s164, %s166
    %p173 = scmp.eq.s32.totalorder %s20, 1
    %p174 = por %p172, %p173
    %p175 = scmp.ne.s32.totalorder %s166, %s167
    %p176 = scmp.eq.s32.totalorder %s20, 0
    %p177 = por %p175, %p176
    %p178 = scmp.ne.s32.totalorder %s166, %s167
    %p179 = scmp.eq.s32.totalorder %s21, 1
    %p180 = por %p178, %p179
    %p182 = scmp.ne.s32.totalorder %s167, %s181
    %p183 = scmp.eq.s32.totalorder %s21, 0
    %p184 = por %p182, %p183
    %s186 = sadd.s32 %s185, 1
    %p189 = scmp.eq.s32.totalorder %s15, 1
    %p190 = scmp.ne.s32.totalorder %s185, %s187
    %p191 = scmp.eq.s32.totalorder %s15, 0
    %p192 = por %p190, %p191
    %p193 = scmp.ne.s32.totalorder %s185, %s187
    %p194 = scmp.eq.s32.totalorder %s20, 1
    %p195 = por %p193, %p194
    %p196 = scmp.ne.s32.totalorder %s187, %s188
    %p197 = scmp.eq.s32.totalorder %s20, 0
    %p198 = por %p196, %p197
    %p199 = scmp.ne.s32.totalorder %s187, %s188
    %p200 = scmp.eq.s32.totalorder %s21, 1
    %p201 = por %p199, %p200
    %p203 = scmp.ne.s32.totalorder %s188, %s202
    %p204 = scmp.eq.s32.totalorder %s21, 0
    %p205 = por %p203, %p204
    %s207 = sadd.s32 %s206, 1
    %p210 = scmp.eq.s32.totalorder %s15, 1
    %p211 = scmp.ne.s32.totalorder %s206, %s208
    %p212 = scmp.eq.s32.totalorder %s15, 0
    %p213 = por %p211, %p212
    %p214 = scmp.ne.s32.totalorder %s206, %s208
    %p215 = scmp.eq.s32.totalorder %s20, 1
    %p216 = por %p214, %p215
    %p217 = scmp.ne.s32.totalorder %s208, %s209
    %p218 = scmp.eq.s32.totalorder %s20, 0
    %p219 = por %p217, %p218
    %p220 = scmp.ne.s32.totalorder %s208, %s209
    %p221 = scmp.eq.s32.totalorder %s21, 1
    %p222 = por %p220, %p221
    %p224 = scmp.ne.s32.totalorder %s209, %s223
    %p225 = scmp.eq.s32.totalorder %s21, 0
    %p226 = por %p224, %p225
    %s227 = ssub.s32 %s15, %s22
    %p228 = scmp.eq.s32.totalorder %s227, 0
    %s230 = sadd.s32 %s229, 1
    %s231 = scalar_select %p228, %s229, %s230
    %p234 = pneg %p228
    %p235 = scmp.eq.s32.totalorder %s15, 1
    %p236 = por %p234, %p235
    %p237 = scmp.ne.s32.totalorder %s229, %s232
    %p238 = scmp.eq.s32.totalorder %s15, 0
    %p239 = por %p237, %p238
    %p240 = scmp.ne.s32.totalorder %s229, %s232
    %p241 = scmp.eq.s32.totalorder %s20, 1
    %p242 = por %p240, %p241
    %p243 = scmp.ne.s32.totalorder %s232, %s233
    %p244 = scmp.eq.s32.totalorder %s20, 0
    %p245 = por %p243, %p244
    %p246 = scmp.ne.s32.totalorder %s232, %s233
    %p247 = scmp.eq.s32.totalorder %s21, 1
    %p248 = por %p246, %p247
    %p250 = scmp.ne.s32.totalorder %s233, %s249
    %p251 = scmp.eq.s32.totalorder %s21, 0
    %p252 = por %p250, %p251
    %p253 = scmp.le.s32.totalorder 1, %s15
    %p254 = scmp.lt.s32.totalorder %s15, 3
    %p255 = pnand %p253, %p254
    %p256 = pneg %p255
    // Predicated region
    $region9: #{transformer_forward.11} parent=5 // pred_check
      _
    $region10: #{transformer_forward.11} parent=5 // pred_check_branch
      %258 = sbr.rel (%p255) target = $region12
    $region11: #{transformer_forward.11} parent=5 // pred_region
      %s259 = ssub.s32 %s15, 1
      // Predicated region
      $region13: #{transformer_forward.11} parent=11 // pred_check
        %p260 = pneg %p114
      $region14: #{transformer_forward.11} parent=11 // pred_check_branch
        %262 = sbr.rel (%p260) target = $region16
      $region15: #{transformer_forward.11} parent=11 // pred_region
        _
      $region16: #{transformer_forward.11} parent=11 // pred_fallthru
        _
      // Predicated region
      $region17: #{transformer_forward.11} parent=11 // pred_check
        %p263 = pneg %p135
      $region18: #{transformer_forward.11} parent=11 // pred_check_branch
        %265 = sbr.rel (%p263) target = $region20
      $region19: #{transformer_forward.11} parent=11 // pred_region
        _
      $region20: #{transformer_forward.11} parent=11 // pred_fallthru
        _
      // Predicated region
      $region21: #{transformer_forward.11} parent=11 // pred_check
        %p266 = pneg %p156
      $region22: #{transformer_forward.11} parent=11 // pred_check_branch
        %268 = sbr.rel (%p266) target = $region24
      $region23: #{transformer_forward.11} parent=11 // pred_region
        _
      $region24: #{transformer_forward.11} parent=11 // pred_fallthru
        _
      // Predicated region
      $region25: #{transformer_forward.11} parent=11 // pred_check
        %p269 = pneg %p177
      $region26: #{transformer_forward.11} parent=11 // pred_check_branch
        %271 = sbr.rel (%p269) target = $region28
      $region27: #{transformer_forward.11} parent=11 // pred_region
        _
      $region28: #{transformer_forward.11} parent=11 // pred_fallthru
        _
      // Predicated region
      $region29: #{transformer_forward.11} parent=11 // pred_check
        %p272 = pneg %p198
      $region30: #{transformer_forward.11} parent=11 // pred_check_branch
        %274 = sbr.rel (%p272) target = $region32
      $region31: #{transformer_forward.11} parent=11 // pred_region
        _
      $region32: #{transformer_forward.11} parent=11 // pred_fallthru
        _
      // Predicated region
      $region33: #{transformer_forward.11} parent=11 // pred_check
        %p275 = pneg %p219
      $region34: #{transformer_forward.11} parent=11 // pred_check_branch
        %277 = sbr.rel (%p275) target = $region36
      $region35: #{transformer_forward.11} parent=11 // pred_region
        _
      $region36: #{transformer_forward.11} parent=11 // pred_fallthru
        _
    $region12: #{transformer_forward.11} parent=5 // pred_fallthru
      _
    %p278 = scmp.lt.s32.totalorder %s15, 2
    // Predicated region
    $region37: #{transformer_forward.11} parent=5 // pred_check
      %p279 = pneg %p278
    $region38: #{transformer_forward.11} parent=5 // pred_check_branch
      %281 = sbr.rel (%p279) target = $region40
    $region39: #{transformer_forward.11} parent=5 // pred_region
      // Predicated region
      $region41: #{transformer_forward.11} parent=39 // pred_check
        %p282 = pneg %p35
      $region42: #{transformer_forward.11} parent=39 // pred_check_branch
        %284 = sbr.rel (%p282) target = $region44
      $region43: #{transformer_forward.11} parent=39 // pred_region
        %p285 = scmp.lt.s32.totalorder %s15, 1
        %s286 = scalar_select %p285, %s15, 1
        %s287 = smul.addr %s286, 8
        %s288 = scalar_lea.vmem %s0, %s287
      $region44: #{transformer_forward.11} parent=39 // pred_fallthru
        _
      // Predicated region
      $region45: #{transformer_forward.11} parent=39 // pred_check
        %p289 = pneg %p61
      $region46: #{transformer_forward.11} parent=39 // pred_check_branch
        %291 = sbr.rel (%p289) target = $region48
      $region47: #{transformer_forward.11} parent=39 // pred_region
        %p292 = scmp.lt.s32.totalorder %s15, 1
        %s293 = scalar_select %p292, %s15, 1
        %s294 = smul.addr %s293, 8
        %s295 = scalar_lea.vmem %s1, %s294
      $region48: #{transformer_forward.11} parent=39 // pred_fallthru
        _
      // Predicated region
      $region49: #{transformer_forward.11} parent=39 // pred_check
        %p296 = pneg %p87
      $region50: #{transformer_forward.11} parent=39 // pred_check_branch
        %298 = sbr.rel (%p296) target = $region52
      $region51: #{transformer_forward.11} parent=39 // pred_region
        %p299 = scmp.lt.s32.totalorder %s15, 1
        %s300 = scalar_select %p299, %s15, 1
        %s301 = scalar_lea.vmem %s2, %s300
      $region52: #{transformer_forward.11} parent=39 // pred_fallthru
        _
    $region40: #{transformer_forward.11} parent=5 // pred_fallthru
      _
    %p302 = scmp.le.s32.totalorder 1, %s15
    %p303 = scmp.lt.s32.totalorder %s15, 3
    %p304 = pnand %p302, %p303
    %p305 = pneg %p304
    // Predicated region
    $region53: #{transformer_forward.11} parent=5 // pred_check
      _
    $region54: #{transformer_forward.11} parent=5 // pred_check_branch
      %307 = sbr.rel (%p304) target = $region56
    $region55: #{transformer_forward.11} parent=5 // pred_region
      %s308 = ssub.s32 %s15, 1
      %p309 = scmp.lt.s32.totalorder %s20, 1
      %s310 = scalar_select %p309, %s20, 1
      %s311 = smul.addr %s310, 8
      %s312 = scalar_lea.vmem %s0, %s311
      %p313 = pneg %p41
      %p314 = pneg %p38
      %p315 = scmp.lt.s32.totalorder %s20, 1
      %s316 = scalar_select %p315, %s20, 1
      %s317 = smul.addr %s316, 8
      %s318 = scalar_lea.vmem %s1, %s317
      %p319 = pneg %p67
      %p320 = pneg %p64
      %p321 = scmp.lt.s32.totalorder %s20, 1
      %s322 = scalar_select %p321, %s20, 1
      %s323 = scalar_lea.vmem %s2, %s322
      %p324 = pneg %p93
      %p325 = pneg %p90
      %p326 = pneg %p114
      %p327 = pneg %p111
      %p328 = pneg %p135
      %p329 = pneg %p132
      %p330 = pneg %p156
      %p331 = pneg %p153
      %p332 = pneg %p177
      %p333 = pneg %p174
      %p334 = pneg %p198
      %p335 = pneg %p195
      %p336 = pneg %p219
      %p337 = pneg %p216
      %p338 = pneg %p245
      %p339 = pneg %p242
      %p340 = scmp.lt.s32.totalorder %s20, 1
      %s341 = scalar_select %p340, %s20, 1
      %s342 = smul.addr %s341, 8
      %s343 = scalar_lea.vmem %s9, %s342
      %p344 = scmp.lt.s32.totalorder %s20, 1
      %s345 = scalar_select %p344, %s20, 1
      %s346 = smul.addr %s345, 8
      %s347 = scalar_lea.vmem %s0, %s346
      %p348 = scmp.lt.s32.totalorder %s20, 1
      %s349 = scalar_select %p348, %s20, 1
      %s350 = smul.addr %s349, 8
      %s351 = scalar_lea.vmem %s1, %s350
      %p352 = scmp.lt.s32.totalorder %s20, 1
      %s353 = scalar_select %p352, %s20, 1
      %s354 = scalar_lea.vmem %s2, %s353
      %p355 = scmp.lt.s32.totalorder %s20, 1
      %s356 = scalar_select %p355, %s20, 1
      %s357 = smul.addr %s356, 8
      %s358 = scalar_lea.vmem %s9, %s357
      %v360 = vld [vmem:[%s347] sm:$0xff]
      %v361 = vpack.c.bf16 %v360, %v360
      %v362 = vld [vmem:[%s3] sm:$0xf]
      %v363 = vld [vmem:[%s3 + $0x4] sm:$0xf]
      %v364 = vld [vmem:[%s3 + $0x8] sm:$0xf]
      %v365 = vld [vmem:[%s3 + $0xc] sm:$0xf]
      %v366 = vld [vmem:[%s4] sm:$0x1]
      %v368 = vperm.slane %v366, 0
      %v374 = vunpack.c.l.b16 %v362
      %v375 = vunpack.c.l.b16 %v363
      %v376 = vunpack.c.l.b16 %v364
      %v377 = vunpack.c.l.b16 %v365
      %v378 = vpack.c.b16 %v375, %v374
      %v379 = vpack.c.b16 %v377, %v376
      %vm382 = vcmask 261120
      %v384 = vsel %vm382, %v361, 0
      %386 = vmatpush.bf16.msra.mxu0 0
      %387 = vmatpush.bf16.msra.mxu0 0
      %388 = vmatpush.bf16.msra.mxu0 0
      %389 = vmatpush.bf16.msra.mxu0 0
      %390 = vmatpush.bf16.msra.mxu0 0
      %391 = vmatpush.bf16.msra.mxu0 0
      %392 = vmatpush.bf16.msra.mxu0 %v379
      %393 = vmatpush.bf16.msra.mxu0 %v378
      %394 = vmatmul.bf16.gmra.mxu0 %v384
      %v395 = vpop.f32.mrf.mxu0
      %v396 = vadd.f32 %v368, %v395
      %v397 = vpop.f32.mrf.mxu0
      %398 = vdwg.mxu0
      %v399 = vld [vmem:[%s351] sm:$0xff]
      %v400 = vld [vmem:[%s354] sm:$0x1]
      %vm401 = vcmp.gt.f32.partialorder %v399, 0.0
      %vm402 = vcmp.gt.f32.partialorder %v400, 0.0
      %v403 = vsel %vm401, 1, 0
      %404 = vset.pattern.permute.xlu0 0
      %405 = vperm.xlu0 %404, %v403
      %v406 = vpop.permute.xlu0 %405
      %vm407 = vcmp.eq.s32.totalorder %v406, 1
      %v408 = vsel %vm402, 1, 0
      %v409 = vperm.slane %v408, 0
      %vm410 = vcmp.eq.s32.totalorder %v409, 1
      %vm411 = vmand %vm407, %vm410
      %413 = vrot.lane.b32.xlu0 %v396, 96
      %v414 = vpop.permute.xlu0 %413
      %416 = vxpose.xlu0.b32.start [1/16] %v414, 128
      %417 = vxpose.xlu0.b32.cont [2/16] 0.0, 128
      %418 = vxpose.xlu0.b32.cont [3/16] 0.0, 128
      %419 = vxpose.xlu0.b32.cont [4/16] 0.0, 128
      %420 = vxpose.xlu0.b32.cont [5/16] 0.0, 128
      %421 = vxpose.xlu0.b32.cont [6/16] 0.0, 128
      %422 = vxpose.xlu0.b32.cont [7/16] 0.0, 128
      %423 = vxpose.xlu0.b32.cont [8/16] 0.0, 128
      %424 = vxpose.xlu0.b32.cont [9/16] 0.0, 128
      %425 = vxpose.xlu0.b32.cont [10/16] 0.0, 128
      %426 = vxpose.xlu0.b32.cont [11/16] 0.0, 128
      %427 = vxpose.xlu0.b32.cont [12/16] 0.0, 128
      %428 = vxpose.xlu0.b32.cont [13/16] 0.0, 128
      %429 = vxpose.xlu0.b32.cont [14/16] 0.0, 128
      %430 = vxpose.xlu0.b32.cont [15/16] 0.0, 128
      %431 = vxpose.xlu0.b32.end [16/16] 0.0, 128
      %v432 = vpop.trf.xlu0
      %v433 = vpop.trf.xlu0
      %v434 = vpop.trf.xlu0
      %v435 = vpop.trf.xlu0
      %v436 = vpop.trf.xlu0
      %v437 = vpop.trf.xlu0
      %v438 = vpop.trf.xlu0
      %v439 = vpop.trf.xlu0
      %v440 = vpop.trf.xlu0
      %v441 = vpop.trf.xlu0
      %v442 = vpop.trf.xlu0
      %v443 = vpop.trf.xlu0
      %v444 = vpop.trf.xlu0
      %v445 = vpop.trf.xlu0
      %v446 = vpop.trf.xlu0
      %v447 = vpop.trf.xlu0
      %v448 = vpack.c.bf16 %v432, %v432
      %v449 = vpack.c.bf16 %v433, %v433
      %v450 = vpack.c.bf16 %v434, %v434
      %v451 = vpack.c.bf16 %v435, %v435
      %v452 = vpack.c.bf16 %v396, %v396
      %vm453 = vcmask 64512
      %v455 = vsel %vm453, %v452, 0
      %vm457 = vcmask 1043456
      %v459 = vsel %vm457, %v448, 0
      %461 = vmatpush.bf16.msra.mxu0 0
      %462 = vmatpush.bf16.msra.mxu0 0
      %463 = vmatpush.bf16.msra.mxu0 0
      %464 = vmatpush.bf16.msra.mxu0 0
      %465 = vmatpush.bf16.msra.mxu0 0
      %466 = vmatpush.bf16.msra.mxu0 0
      %467 = vmatpush.bf16.msra.mxu0 0
      %468 = vmatpush.bf16.msra.mxu0 %v459
      %469 = vmatmul.bf16.gmra.mxu0 %v455
      %v470 = vpop.f32.mrf.mxu0
      %v471 = vadd.f32 0.0, %v470
      %v472 = vpop.f32.mrf.mxu0
      %473 = vdwg.mxu0
      %v474 = vsel %vm411, %v471, -1e+09
      %v475 = vsel %vm453, %v474, -inf
      %476 = vmax.xlane.f32.xlu0 %v475
      %v477 = vpop.xlane.xlu0 %476
      %v478 = vsub.f32 %v474, %v477
      %v479 = vmul.f32 %v478, 1.442695
      %v480 = vpow.pop %v479
      %v481 = vsel %vm453, %v480, 0.0
      %482 = vadd.xlane.f32.xlu0 %v481
      %v483 = vpop.xlane.xlu0 %482
      %v484 = vrcp.pop %v483
      %v485 = vmul.f32 %v480, %v484
      %v486 = vpack.c.bf16 %v485, %v485
      %v488 = vunpack.c.l.b16 %v452
      %v489 = vpack.c.b16 %v488, %v488
      %490 = vrot.lane.b32.xlu0 %v489, 64
      %v491 = vpop.permute.xlu0 %490
      %v493 = vsel %vm453, %v486, 0
      %v496 = vsel %vm457, %v491, 0
      %498 = vmatpush.bf16.msra.mxu0 0
      %499 = vmatpush.bf16.msra.mxu0 0
      %500 = vmatpush.bf16.msra.mxu0 0
      %501 = vmatpush.bf16.msra.mxu0 0
      %502 = vmatpush.bf16.msra.mxu0 0
      %503 = vmatpush.bf16.msra.mxu0 0
      %504 = vmatpush.bf16.msra.mxu0 0
      %505 = vmatpush.bf16.msra.mxu0 %v496
      %506 = vmatmul.bf16.gmra.mxu0 %v493
      %v507 = vpop.f32.mrf.mxu0
      %v508 = vadd.f32 0.0, %v507
      %v509 = vpop.f32.mrf.mxu0
      %510 = vdwg.mxu0
      %511 = vst.msk [vmem:[#allocation2] sm:$0xff] %vm453, %v508
      %512 = vrot.lane.b32.xlu0 %v489, 120
      %v513 = vpop.permute.xlu0 %512
      %v515 = vsel %vm453, %v513, 0
      %v518 = vsel %vm457, %v449, 0
      %520 = vmatpush.bf16.msra.mxu0 0
      %521 = vmatpush.bf16.msra.mxu0 0
      %522 = vmatpush.bf16.msra.mxu0 0
      %523 = vmatpush.bf16.msra.mxu0 0
      %524 = vmatpush.bf16.msra.mxu0 0
      %525 = vmatpush.bf16.msra.mxu0 0
      %526 = vmatpush.bf16.msra.mxu0 0
      %527 = vmatpush.bf16.msra.mxu0 %v518
      %528 = vmatmul.bf16.gmra.mxu0 %v515
      %v529 = vpop.f32.mrf.mxu0
      %v530 = vadd.f32 0.0, %v529
      %v531 = vpop.f32.mrf.mxu0
      %532 = vdwg.mxu0
      %v533 = vsel %vm411, %v530, -1e+09
      %v534 = vsel %vm453, %v533, -inf
      %535 = vmax.xlane.f32.xlu0 %v534
      %v536 = vpop.xlane.xlu0 %535
      %v537 = vsub.f32 %v533, %v536
      %v538 = vmul.f32 %v537, 1.442695
      %v539 = vpow.pop %v538
      %v540 = vsel %vm453, %v539, 0.0
      %541 = vadd.xlane.f32.xlu0 %v540
      %v542 = vpop.xlane.xlu0 %541
      %v543 = vrcp.pop %v542
      %v544 = vmul.f32 %v539, %v543
      %v545 = vpack.c.bf16 %v544, %v544
      %546 = vrot.lane.b32.xlu0 %v489, 56
      %v547 = vpop.permute.xlu0 %546
      %v549 = vsel %vm453, %v545, 0
      %v552 = vsel %vm457, %v547, 0
      %554 = vmatpush.bf16.msra.mxu0 0
      %555 = vmatpush.bf16.msra.mxu0 0
      %556 = vmatpush.bf16.msra.mxu0 0
      %557 = vmatpush.bf16.msra.mxu0 0
      %558 = vmatpush.bf16.msra.mxu0 0
      %559 = vmatpush.bf16.msra.mxu0 0
      %560 = vmatpush.bf16.msra.mxu0 0
      %561 = vmatpush.bf16.msra.mxu0 %v552
      %562 = vmatmul.bf16.gmra.mxu0 %v549
      %v563 = vpop.f32.mrf.mxu0
      %v564 = vadd.f32 0.0, %v563
      %v565 = vpop.f32.mrf.mxu0
      %566 = vdwg.mxu0
      %568 = vrot.lane.b32.xlu0 %v564, 8
      %v569 = vpop.permute.xlu0 %568
      %vm571 = vcmask 130112
      %572 = vst.msk [vmem:[#allocation2] sm:$0xff] %vm571, %v569
      %573 = vrot.lane.b32.xlu0 %v489, 112
      %v574 = vpop.permute.xlu0 %573
      %v576 = vsel %vm453, %v574, 0
      %v579 = vsel %vm457, %v450, 0
      %581 = vmatpush.bf16.msra.mxu0 0
      %582 = vmatpush.bf16.msra.mxu0 0
      %583 = vmatpush.bf16.msra.mxu0 0
      %584 = vmatpush.bf16.msra.mxu0 0
      %585 = vmatpush.bf16.msra.mxu0 0
      %586 = vmatpush.bf16.msra.mxu0 0
      %587 = vmatpush.bf16.msra.mxu0 0
      %588 = vmatpush.bf16.msra.mxu0 %v579
      %589 = vmatmul.bf16.gmra.mxu0 %v576
      %v590 = vpop.f32.mrf.mxu0
      %v591 = vadd.f32 0.0, %v590
      %v592 = vpop.f32.mrf.mxu0
      %593 = vdwg.mxu0
      %v594 = vsel %vm411, %v591, -1e+09
      %v595 = vsel %vm453, %v594, -inf
      %596 = vmax.xlane.f32.xlu0 %v595
      %v597 = vpop.xlane.xlu0 %596
      %v598 = vsub.f32 %v594, %v597
      %v599 = vmul.f32 %v598, 1.442695
      %v600 = vpow.pop %v599
      %v601 = vsel %vm453, %v600, 0.0
      %602 = vadd.xlane.f32.xlu0 %v601
      %v603 = vpop.xlane.xlu0 %602
      %v604 = vrcp.pop %v603
      %v605 = vmul.f32 %v600, %v604
      %v606 = vpack.c.bf16 %v605, %v605
      %607 = vrot.lane.b32.xlu0 %v489, 48
      %v608 = vpop.permute.xlu0 %607
      %v610 = vsel %vm453, %v606, 0
      %v613 = vsel %vm457, %v608, 0
      %615 = vmatpush.bf16.msra.mxu0 0
      %616 = vmatpush.bf16.msra.mxu0 0
      %617 = vmatpush.bf16.msra.mxu0 0
      %618 = vmatpush.bf16.msra.mxu0 0
      %619 = vmatpush.bf16.msra.mxu0 0
      %620 = vmatpush.bf16.msra.mxu0 0
      %621 = vmatpush.bf16.msra.mxu0 0
      %622 = vmatpush.bf16.msra.mxu0 %v613
      %623 = vmatmul.bf16.gmra.mxu0 %v610
      %v624 = vpop.f32.mrf.mxu0
      %v625 = vadd.f32 0.0, %v624
      %v626 = vpop.f32.mrf.mxu0
      %627 = vdwg.mxu0
      %629 = vrot.lane.b32.xlu0 %v625, 16
      %v630 = vpop.permute.xlu0 %629
      %vm632 = vcmask 195712
      %633 = vst.msk [vmem:[#allocation2] sm:$0xff] %vm632, %v630
      %634 = vrot.lane.b32.xlu0 %v489, 104
      %v635 = vpop.permute.xlu0 %634
      %v637 = vsel %vm453, %v635, 0
      %v640 = vsel %vm457, %v451, 0
      %642 = vmatpush.bf16.msra.mxu0 0
      %643 = vmatpush.bf16.msra.mxu0 0
      %644 = vmatpush.bf16.msra.mxu0 0
      %645 = vmatpush.bf16.msra.mxu0 0
      %646 = vmatpush.bf16.msra.mxu0 0
      %647 = vmatpush.bf16.msra.mxu0 0
      %648 = vmatpush.bf16.msra.mxu0 0
      %649 = vmatpush.bf16.msra.mxu0 %v640
      %650 = vmatmul.bf16.gmra.mxu0 %v637
      %v651 = vpop.f32.mrf.mxu0
      %v652 = vadd.f32 0.0, %v651
      %v653 = vpop.f32.mrf.mxu0
      %654 = vdwg.mxu0
      %v655 = vsel %vm411, %v652, -1e+09
      %v656 = vsel %vm453, %v655, -inf
      %657 = vmax.xlane.f32.xlu0 %v656
      %v658 = vpop.xlane.xlu0 %657
      %v659 = vsub.f32 %v655, %v658
      %v660 = vmul.f32 %v659, 1.442695
      %v661 = vpow.pop %v660
      %v662 = vsel %vm453, %v661, 0.0
      %663 = vadd.xlane.f32.xlu0 %v662
      %v664 = vpop.xlane.xlu0 %663
      %v665 = vrcp.pop %v664
      %v666 = vmul.f32 %v661, %v665
      %v667 = vpack.c.bf16 %v666, %v666
      %668 = vrot.lane.b32.xlu0 %v489, 40
      %v669 = vpop.permute.xlu0 %668
      %v671 = vsel %vm453, %v667, 0
      %v674 = vsel %vm457, %v669, 0
      %676 = vmatpush.bf16.msra.mxu0 0
      %677 = vmatpush.bf16.msra.mxu0 0
      %678 = vmatpush.bf16.msra.mxu0 0
      %679 = vmatpush.bf16.msra.mxu0 0
      %680 = vmatpush.bf16.msra.mxu0 0
      %681 = vmatpush.bf16.msra.mxu0 0
      %682 = vmatpush.bf16.msra.mxu0 0
      %683 = vmatpush.bf16.msra.mxu0 %v674
      %684 = vmatmul.bf16.gmra.mxu0 %v671
      %v685 = vpop.f32.mrf.mxu0
      %v686 = vadd.f32 0.0, %v685
      %v687 = vpop.f32.mrf.mxu0
      %688 = vdwg.mxu0
      %690 = vrot.lane.b32.xlu0 %v686, 24
      %v691 = vpop.permute.xlu0 %690
      %vm693 = vcmask 261312
      %694 = vst.msk [vmem:[#allocation2] sm:$0xff] %vm693, %v691
      %v695 = vld [vmem:[#allocation2] sm:$0xff]
      %v696 = vpack.c.bf16 %v695, %v695
      %v697 = vld [vmem:[%s5] sm:$0xf]
      %v698 = vld [vmem:[%s5 + $0x4] sm:$0xf]
      %v699 = vld [vmem:[%s5 + $0x8] sm:$0xf]
      %v700 = vld [vmem:[%s5 + $0xc] sm:$0xf]
      %v701 = vld [vmem:[%s6] sm:$0x1]
      %v703 = vperm.slane %v701, 0
      %v709 = vunpack.c.l.b16 %v697
      %v710 = vunpack.c.l.b16 %v698
      %v711 = vunpack.c.l.b16 %v699
      %v712 = vunpack.c.l.b16 %v700
      %v713 = vpack.c.b16 %v710, %v709
      %v714 = vpack.c.b16 %v712, %v711
      %v718 = vsel %vm382, %v696, 0
      %720 = vmatpush.bf16.msra.mxu0 0
      %721 = vmatpush.bf16.msra.mxu0 0
      %722 = vmatpush.bf16.msra.mxu0 0
      %723 = vmatpush.bf16.msra.mxu0 0
      %724 = vmatpush.bf16.msra.mxu0 0
      %725 = vmatpush.bf16.msra.mxu0 0
      %726 = vmatpush.bf16.msra.mxu0 %v714
      %727 = vmatpush.bf16.msra.mxu0 %v713
      %728 = vmatmul.bf16.gmra.mxu0 %v718
      %v729 = vpop.f32.mrf.mxu0
      %v730 = vadd.f32 %v703, %v729
      %v731 = vpop.f32.mrf.mxu0
      %732 = vdwg.mxu0
      %v733 = vadd.f32 %v360, %v730
      %v734 = vsel %vm382, %v733, 0.0
      %735 = vadd.xlane.f32.xlu0 %v734
      %v736 = vpop.xlane.xlu0 %735
      %v737 = vrcp.pop 32.0
      %v738 = vmul.f32 32.0, %v737
      %v739 = vsub.f32 1.0, %v738
      %v740 = vmul.f32 %v737, %v739
      %v741 = vadd.f32 %v737, %v740
      %vm742 = vweird.f32 %v737
      %v743 = vsel %vm742, %v737, %v741
      %v744 = vmul.f32 %v736, %v743
      %v745 = vsub.f32 %v733, %v744
      %v746 = vmul.f32 %v745, %v745
      %v747 = vsel %vm382, %v746, 0.0
      %748 = vadd.xlane.f32.xlu0 %v747
      %v749 = vpop.xlane.xlu0 %748
      %v750 = vmul.f32 %v749, %v743
      %v751 = vadd.f32 %v750, 1e-05
      %v752 = vrsqrt.pop %v751
      %v753 = vmul.f32 %v752, %v751
      %v754 = vmul.f32 %v753, %v752
      %v755 = vmul.f32 0.5, %v754
      %v756 = vsub.f32 1.5, %v755
      %v757 = vmul.f32 %v752, %v756
      %vm758 = vweird.f32 %v751
      %vm759 = vweird.f32 %v752
      %vm760 = vmor %vm758, %vm759
      %v761 = vsel %vm760, %v752, %v757
      %v762 = vmul.f32 %v745, %v761
      %v763 = vld [vmem:[%s7] sm:$0x1]
      %v765 = vperm.slane %v763, 0
      %v767 = vmul.f32 %v762, %v765
      %v768 = vld [vmem:[%s8] sm:$0x1]
      %v770 = vperm.slane %v768, 0
      %v772 = vadd.f32 %v767, %v770
      %773 = vst.msk [vmem:[%s358] sm:$0xff] %vm382, %v772
      %p774 = scmp.lt.s32.totalorder %s20, 1
      %s775 = scalar_select %p774, %s20, 1
      %s776 = smul.addr %s775, 8
      %s777 = scalar_lea.vmem %s9, %s776
      // Predicated region
      $region57: #{transformer_forward.11} parent=55 // pred_check
        %p778 = pneg %p242
      $region58: #{transformer_forward.11} parent=55 // pred_check_branch
        %780 = sbr.rel (%p778) target = $region60
      $region59: #{transformer_forward.11} parent=55 // pred_region
        _
      $region60: #{transformer_forward.11} parent=55 // pred_fallthru
        _
    $region56: #{transformer_forward.11} parent=5 // pred_fallthru
      _
    %p781 = scmp.le.s32.totalorder 2, %s15
    // Predicated region
    $region61: #{transformer_forward.11} parent=5 // pred_check
      %p782 = pneg %p781
    $region62: #{transformer_forward.11} parent=5 // pred_check_branch
      %784 = sbr.rel (%p782) target = $region64
    $region63: #{transformer_forward.11} parent=5 // pred_region
      %s785 = ssub.s32 %s15, 2
      // Predicated region
      $region65: #{transformer_forward.11} parent=63 // pred_check
        %p786 = pneg %p248
      $region66: #{transformer_forward.11} parent=63 // pred_check_branch
        %788 = sbr.rel (%p786) target = $region68
      $region67: #{transformer_forward.11} parent=63 // pred_region
        %p789 = scmp.lt.s32.totalorder %s21, 1
        %s790 = scalar_select %p789, %s21, 1
        %s791 = smul.addr %s790, 8
        %s792 = scalar_lea.vmem %s9, %s791
      $region68: #{transformer_forward.11} parent=63 // pred_fallthru
        _
    $region64: #{transformer_forward.11} parent=5 // pred_fallthru
      _
  $region6: #{transformer_forward.11} parent=0 // loop_footer
    %s19 = sadd.s32 1, %s15
  $region7: #{transformer_forward.11} parent=0 // loop_footer_branch
    %14 = sbr.rel target = $region3
  $region8: #{transformer_forward.11} parent=0 // loop_exit
    _

// kernel: transformer_forward.15
$region0: #{transformer_forward.15}
  #allocation0 [shape = 'u32[]', space=smem, size = 0x4, offset = 0x4, fixed_abs, tag = 'smem constant byte address 0x4 - core index']
  #allocation1 [shape = 'u32[72,128]{1,0:T(1,128)}', space=vmem, size = 0x9000, scoped, tag = 'internal scratch']
  #allocation2 [shape = 'f32[8,32]{1,0:T(8,128)}', space=vmem, size = 0x1000, scoped, tag = 'scratch operand']
  %s0 = inlined_call_operand.vmem [shape: f32[2,8,32], index: 0, kind: input, shape index: {}]
  %s1 = inlined_call_operand.vmem [shape: f32[2,8,1], index: 1, kind: input, shape index: {}]
  %s2 = inlined_call_operand.vmem [shape: f32[2,1,8], index: 2, kind: input, shape index: {}]
  %s3 = inlined_call_operand.vmem [shape: bf16[32,96], index: 3, kind: input, shape index: {}]
  %s4 = inlined_call_operand.vmem [shape: f32[1,96], index: 4, kind: input, shape index: {}]
  %s5 = inlined_call_operand.vmem [shape: bf16[32,32], index: 5, kind: input, shape index: {}]
  %s6 = inlined_call_operand.vmem [shape: f32[1,32], index: 6, kind: input, shape index: {}]
  %s7 = inlined_call_operand.vmem [shape: f32[1,32], index: 7, kind: input, shape index: {}]
  %s8 = inlined_call_operand.vmem [shape: f32[1,32], index: 8, kind: input, shape index: {}]
  %s9 = inlined_call_operand.vmem [shape: f32[2,8,32], index: 9, kind: output, shape index: {}]
  %s10 = sld [smem:[#allocation0]]
  $region69: #{transformer_forward.15} parent=0
    _
  %s12 = ssub.s32 1, %s10
  %s13 = scalar_select 0, %s12, %s10
  loop: start=0, step=1, limit=4
  $region2: #{transformer_forward.15} parent=0 // loop_pre_header
    _
  $region3: #{transformer_forward.15} parent=0 // loop_header
    %s15 = sphi 0, %s19
    %p16 = scmp.ge.s32.totalorder %s15, 4
    %s25 = sphi 0, %s27
    %s28 = sphi 0, %s25
    %s29 = sphi 0, %s28
    %s45 = sphi 0, %s29
    %s51 = sphi 0, %s53
    %s54 = sphi 0, %s51
    %s55 = sphi 0, %s54
    %s71 = sphi 0, %s55
    %s77 = sphi 0, %s79
    %s80 = sphi 0, %s77
    %s81 = sphi 0, %s80
    %s97 = sphi 0, %s81
    %s101 = sphi 0, %s101
    %s103 = sphi 0, %s101
    %s104 = sphi 0, %s103
    %s118 = sphi 0, %s104
    %s122 = sphi 0, %s122
    %s124 = sphi 0, %s122
    %s125 = sphi 0, %s124
    %s139 = sphi 0, %s125
    %s143 = sphi 0, %s143
    %s145 = sphi 0, %s143
    %s146 = sphi 0, %s145
    %s160 = sphi 0, %s146
    %s164 = sphi 0, %s164
    %s166 = sphi 0, %s164
    %s167 = sphi 0, %s166
    %s181 = sphi 0, %s167
    %s185 = sphi 0, %s185
    %s187 = sphi 0, %s185
    %s188 = sphi 0, %s187
    %s202 = sphi 0, %s188
    %s206 = sphi 0, %s206
    %s208 = sphi 0, %s206
    %s209 = sphi 0, %s208
    %s223 = sphi 0, %s209
    %s229 = sphi 0, %s231
    %s232 = sphi 0, %s229
    %s233 = sphi 0, %s232
    %s249 = sphi 0, %s233
  $region4: #{transformer_forward.15} parent=0 // loop_header_branch
    %18 = sbr.rel (%p16) target = $region8
  $region5: #{transformer_forward.15} parent=0 // loop_body
    %s20 = ssub.s32 %s15, 1
    %s21 = ssub.s32 %s15, 2
    %s22 = sadd.s32 %s15, 1
    %s23 = ssub.s32 %s15, %s22
    %p24 = scmp.eq.s32.totalorder %s23, 0
    %s26 = sadd.s32 %s25, 1
    %s27 = scalar_select %p24, %s25, %s26
    %p30 = pneg %p24
    %p31 = scmp.eq.s32.totalorder %s15, 1
    %p32 = por %p30, %p31
    %p33 = scmp.ne.s32.totalorder %s25, %s28
    %p34 = scmp.eq.s32.totalorder %s15, 0
    %p35 = por %p33, %p34
    %p36 = scmp.ne.s32.totalorder %s25, %s28
    %p37 = scmp.eq.s32.totalorder %s20, 1
    %p38 = por %p36, %p37
    %p39 = scmp.ne.s32.totalorder %s28, %s29
    %p40 = scmp.eq.s32.totalorder %s20, 0
    %p41 = por %p39, %p40
    %p42 = scmp.ne.s32.totalorder %s28, %s29
    %p43 = scmp.eq.s32.totalorder %s21, 1
    %p44 = por %p42, %p43
    %p46 = scmp.ne.s32.totalorder %s29, %s45
    %p47 = scmp.eq.s32.totalorder %s21, 0
    %p48 = por %p46, %p47
    %s49 = ssub.s32 %s15, %s22
    %p50 = scmp.eq.s32.totalorder %s49, 0
    %s52 = sadd.s32 %s51, 1
    %s53 = scalar_select %p50, %s51, %s52
    %p56 = pneg %p50
    %p57 = scmp.eq.s32.totalorder %s15, 1
    %p58 = por %p56, %p57
    %p59 = scmp.ne.s32.totalorder %s51, %s54
    %p60 = scmp.eq.s32.totalorder %s15, 0
    %p61 = por %p59, %p60
    %p62 = scmp.ne.s32.totalorder %s51, %s54
    %p63 = scmp.eq.s32.totalorder %s20, 1
    %p64 = por %p62, %p63
    %p65 = scmp.ne.s32.totalorder %s54, %s55
    %p66 = scmp.eq.s32.totalorder %s20, 0
    %p67 = por %p65, %p66
    %p68 = scmp.ne.s32.totalorder %s54, %s55
    %p69 = scmp.eq.s32.totalorder %s21, 1
    %p70 = por %p68, %p69
    %p72 = scmp.ne.s32.totalorder %s55, %s71
    %p73 = scmp.eq.s32.totalorder %s21, 0
    %p74 = por %p72, %p73
    %s75 = ssub.s32 %s15, %s22
    %p76 = scmp.eq.s32.totalorder %s75, 0
    %s78 = sadd.s32 %s77, 1
    %s79 = scalar_select %p76, %s77, %s78
    %p82 = pneg %p76
    %p83 = scmp.eq.s32.totalorder %s15, 1
    %p84 = por %p82, %p83
    %p85 = scmp.ne.s32.totalorder %s77, %s80
    %p86 = scmp.eq.s32.totalorder %s15, 0
    %p87 = por %p85, %p86
    %p88 = scmp.ne.s32.totalorder %s77, %s80
    %p89 = scmp.eq.s32.totalorder %s20, 1
    %p90 = por %p88, %p89
    %p91 = scmp.ne.s32.totalorder %s80, %s81
    %p92 = scmp.eq.s32.totalorder %s20, 0
    %p93 = por %p91, %p92
    %p94 = scmp.ne.s32.totalorder %s80, %s81
    %p95 = scmp.eq.s32.totalorder %s21, 1
    %p96 = por %p94, %p95
    %p98 = scmp.ne.s32.totalorder %s81, %s97
    %p99 = scmp.eq.s32.totalorder %s21, 0
    %p100 = por %p98, %p99
    %s102 = sadd.s32 %s101, 1
    %p105 = scmp.eq.s32.totalorder %s15, 1
    %p106 = scmp.ne.s32.totalorder %s101, %s103
    %p107 = scmp.eq.s32.totalorder %s15, 0
    %p108 = por %p106, %p107
    %p109 = scmp.ne.s32.totalorder %s101, %s103
    %p110 = scmp.eq.s32.totalorder %s20, 1
    %p111 = por %p109, %p110
    %p112 = scmp.ne.s32.totalorder %s103, %s104
    %p113 = scmp.eq.s32.totalorder %s20, 0
    %p114 = por %p112, %p113
    %p115 = scmp.ne.s32.totalorder %s103, %s104
    %p116 = scmp.eq.s32.totalorder %s21, 1
    %p117 = por %p115, %p116
    %p119 = scmp.ne.s32.totalorder %s104, %s118
    %p120 = scmp.eq.s32.totalorder %s21, 0
    %p121 = por %p119, %p120
    %s123 = sadd.s32 %s122, 1
    %p126 = scmp.eq.s32.totalorder %s15, 1
    %p127 = scmp.ne.s32.totalorder %s122, %s124
    %p128 = scmp.eq.s32.totalorder %s15, 0
    %p129 = por %p127, %p128
    %p130 = scmp.ne.s32.totalorder %s122, %s124
    %p131 = scmp.eq.s32.totalorder %s20, 1
    %p132 = por %p130, %p131
    %p133 = scmp.ne.s32.totalorder %s124, %s125
    %p134 = scmp.eq.s32.totalorder %s20, 0
    %p135 = por %p133, %p134
    %p136 = scmp.ne.s32.totalorder %s124, %s125
    %p137 = scmp.eq.s32.totalorder %s21, 1
    %p138 = por %p136, %p137
    %p140 = scmp.ne.s32.totalorder %s125, %s139
    %p141 = scmp.eq.s32.totalorder %s21, 0
    %p142 = por %p140, %p141
    %s144 = sadd.s32 %s143, 1
    %p147 = scmp.eq.s32.totalorder %s15, 1
    %p148 = scmp.ne.s32.totalorder %s143, %s145
    %p149 = scmp.eq.s32.totalorder %s15, 0
    %p150 = por %p148, %p149
    %p151 = scmp.ne.s32.totalorder %s143, %s145
    %p152 = scmp.eq.s32.totalorder %s20, 1
    %p153 = por %p151, %p152
    %p154 = scmp.ne.s32.totalorder %s145, %s146
    %p155 = scmp.eq.s32.totalorder %s20, 0
    %p156 = por %p154, %p155
    %p157 = scmp.ne.s32.totalorder %s145, %s146
    %p158 = scmp.eq.s32.totalorder %s21, 1
    %p159 = por %p157, %p158
    %p161 = scmp.ne.s32.totalorder %s146, %s160
    %p162 = scmp.eq.s32.totalorder %s21, 0
    %p163 = por %p161, %p162
    %s165 = sadd.s32 %s164, 1
    %p168 = scmp.eq.s32.totalorder %s15, 1
    %p169 = scmp.ne.s32.totalorder %s164, %s166
    %p170 = scmp.eq.s32.totalorder %s15, 0
    %p171 = por %p169, %p170
    %p172 = scmp.ne.s32.totalorder %s164, %s166
    %p173 = scmp.eq.s32.totalorder %s20, 1
    %p174 = por %p172, %p173
    %p175 = scmp.ne.s32.totalorder %s166, %s167
    %p176 = scmp.eq.s32.totalorder %s20, 0
    %p177 = por %p175, %p176
    %p178 = scmp.ne.s32.totalorder %s166, %s167
    %p179 = scmp.eq.s32.totalorder %s21, 1
    %p180 = por %p178, %p179
    %p182 = scmp.ne.s32.totalorder %s167, %s181
    %p183 = scmp.eq.s32.totalorder %s21, 0
    %p184 = por %p182, %p183
    %s186 = sadd.s32 %s185, 1
    %p189 = scmp.eq.s32.totalorder %s15, 1
    %p190 = scmp.ne.s32.totalorder %s185, %s187
    %p191 = scmp.eq.s32.totalorder %s15, 0
    %p192 = por %p190, %p191
    %p193 = scmp.ne.s32.totalorder %s185, %s187
    %p194 = scmp.eq.s32.totalorder %s20, 1
    %p195 = por %p193, %p194
    %p196 = scmp.ne.s32.totalorder %s187, %s188
    %p197 = scmp.eq.s32.totalorder %s20, 0
    %p198 = por %p196, %p197
    %p199 = scmp.ne.s32.totalorder %s187, %s188
    %p200 = scmp.eq.s32.totalorder %s21, 1
    %p201 = por %p199, %p200
    %p203 = scmp.ne.s32.totalorder %s188, %s202
    %p204 = scmp.eq.s32.totalorder %s21, 0
    %p205 = por %p203, %p204
    %s207 = sadd.s32 %s206, 1
    %p210 = scmp.eq.s32.totalorder %s15, 1
    %p211 = scmp.ne.s32.totalorder %s206, %s208
    %p212 = scmp.eq.s32.totalorder %s15, 0
    %p213 = por %p211, %p212
    %p214 = scmp.ne.s32.totalorder %s206, %s208
    %p215 = scmp.eq.s32.totalorder %s20, 1
    %p216 = por %p214, %p215
    %p217 = scmp.ne.s32.totalorder %s208, %s209
    %p218 = scmp.eq.s32.totalorder %s20, 0
    %p219 = por %p217, %p218
    %p220 = scmp.ne.s32.totalorder %s208, %s209
    %p221 = scmp.eq.s32.totalorder %s21, 1
    %p222 = por %p220, %p221
    %p224 = scmp.ne.s32.totalorder %s209, %s223
    %p225 = scmp.eq.s32.totalorder %s21, 0
    %p226 = por %p224, %p225
    %s227 = ssub.s32 %s15, %s22
    %p228 = scmp.eq.s32.totalorder %s227, 0
    %s230 = sadd.s32 %s229, 1
    %s231 = scalar_select %p228, %s229, %s230
    %p234 = pneg %p228
    %p235 = scmp.eq.s32.totalorder %s15, 1
    %p236 = por %p234, %p235
    %p237 = scmp.ne.s32.totalorder %s229, %s232
    %p238 = scmp.eq.s32.totalorder %s15, 0
    %p239 = por %p237, %p238
    %p240 = scmp.ne.s32.totalorder %s229, %s232
    %p241 = scmp.eq.s32.totalorder %s20, 1
    %p242 = por %p240, %p241
    %p243 = scmp.ne.s32.totalorder %s232, %s233
    %p244 = scmp.eq.s32.totalorder %s20, 0
    %p245 = por %p243, %p244
    %p246 = scmp.ne.s32.totalorder %s232, %s233
    %p247 = scmp.eq.s32.totalorder %s21, 1
    %p248 = por %p246, %p247
    %p250 = scmp.ne.s32.totalorder %s233, %s249
    %p251 = scmp.eq.s32.totalorder %s21, 0
    %p252 = por %p250, %p251
    %p253 = scmp.le.s32.totalorder 1, %s15
    %p254 = scmp.lt.s32.totalorder %s15, 3
    %p255 = pnand %p253, %p254
    %p256 = pneg %p255
    // Predicated region
    $region9: #{transformer_forward.15} parent=5 // pred_check
      _
    $region10: #{transformer_forward.15} parent=5 // pred_check_branch
      %258 = sbr.rel (%p255) target = $region12
    $region11: #{transformer_forward.15} parent=5 // pred_region
      %s259 = ssub.s32 %s15, 1
      // Predicated region
      $region13: #{transformer_forward.15} parent=11 // pred_check
        %p260 = pneg %p114
      $region14: #{transformer_forward.15} parent=11 // pred_check_branch
        %262 = sbr.rel (%p260) target = $region16
      $region15: #{transformer_forward.15} parent=11 // pred_region
        _
      $region16: #{transformer_forward.15} parent=11 // pred_fallthru
        _
      // Predicated region
      $region17: #{transformer_forward.15} parent=11 // pred_check
        %p263 = pneg %p135
      $region18: #{transformer_forward.15} parent=11 // pred_check_branch
        %265 = sbr.rel (%p263) target = $region20
      $region19: #{transformer_forward.15} parent=11 // pred_region
        _
      $region20: #{transformer_forward.15} parent=11 // pred_fallthru
        _
      // Predicated region
      $region21: #{transformer_forward.15} parent=11 // pred_check
        %p266 = pneg %p156
      $region22: #{transformer_forward.15} parent=11 // pred_check_branch
        %268 = sbr.rel (%p266) target = $region24
      $region23: #{transformer_forward.15} parent=11 // pred_region
        _
      $region24: #{transformer_forward.15} parent=11 // pred_fallthru
        _
      // Predicated region
      $region25: #{transformer_forward.15} parent=11 // pred_check
        %p269 = pneg %p177
      $region26: #{transformer_forward.15} parent=11 // pred_check_branch
        %271 = sbr.rel (%p269) target = $region28
      $region27: #{transformer_forward.15} parent=11 // pred_region
        _
      $region28: #{transformer_forward.15} parent=11 // pred_fallthru
        _
      // Predicated region
      $region29: #{transformer_forward.15} parent=11 // pred_check
        %p272 = pneg %p198
      $region30: #{transformer_forward.15} parent=11 // pred_check_branch
        %274 = sbr.rel (%p272) target = $region32
      $region31: #{transformer_forward.15} parent=11 // pred_region
        _
      $region32: #{transformer_forward.15} parent=11 // pred_fallthru
        _
      // Predicated region
      $region33: #{transformer_forward.15} parent=11 // pred_check
        %p275 = pneg %p219
      $region34: #{transformer_forward.15} parent=11 // pred_check_branch
        %277 = sbr.rel (%p275) target = $region36
      $region35: #{transformer_forward.15} parent=11 // pred_region
        _
      $region36: #{transformer_forward.15} parent=11 // pred_fallthru
        _
    $region12: #{transformer_forward.15} parent=5 // pred_fallthru
      _
    %p278 = scmp.lt.s32.totalorder %s15, 2
    // Predicated region
    $region37: #{transformer_forward.15} parent=5 // pred_check
      %p279 = pneg %p278
    $region38: #{transformer_forward.15} parent=5 // pred_check_branch
      %281 = sbr.rel (%p279) target = $region40
    $region39: #{transformer_forward.15} parent=5 // pred_region
      // Predicated region
      $region41: #{transformer_forward.15} parent=39 // pred_check
        %p282 = pneg %p35
      $region42: #{transformer_forward.15} parent=39 // pred_check_branch
        %284 = sbr.rel (%p282) target = $region44
      $region43: #{transformer_forward.15} parent=39 // pred_region
        %p285 = scmp.lt.s32.totalorder %s15, 1
        %s286 = scalar_select %p285, %s15, 1
        %s287 = smul.addr %s286, 8
        %s288 = scalar_lea.vmem %s0, %s287
      $region44: #{transformer_forward.15} parent=39 // pred_fallthru
        _
      // Predicated region
      $region45: #{transformer_forward.15} parent=39 // pred_check
        %p289 = pneg %p61
      $region46: #{transformer_forward.15} parent=39 // pred_check_branch
        %291 = sbr.rel (%p289) target = $region48
      $region47: #{transformer_forward.15} parent=39 // pred_region
        %p292 = scmp.lt.s32.totalorder %s15, 1
        %s293 = scalar_select %p292, %s15, 1
        %s294 = smul.addr %s293, 8
        %s295 = scalar_lea.vmem %s1, %s294
      $region48: #{transformer_forward.15} parent=39 // pred_fallthru
        _
      // Predicated region
      $region49: #{transformer_forward.15} parent=39 // pred_check
        %p296 = pneg %p87
      $region50: #{transformer_forward.15} parent=39 // pred_check_branch
        %298 = sbr.rel (%p296) target = $region52
      $region51: #{transformer_forward.15} parent=39 // pred_region
        %p299 = scmp.lt.s32.totalorder %s15, 1
        %s300 = scalar_select %p299, %s15, 1
        %s301 = scalar_lea.vmem %s2, %s300
      $region52: #{transformer_forward.15} parent=39 // pred_fallthru
        _
    $region40: #{transformer_forward.15} parent=5 // pred_fallthru
      _
    %p302 = scmp.le.s32.totalorder 1, %s15
    %p303 = scmp.lt.s32.totalorder %s15, 3
    %p304 = pnand %p302, %p303
    %p305 = pneg %p304
    // Predicated region
    $region53: #{transformer_forward.15} parent=5 // pred_check
      _
    $region54: #{transformer_forward.15} parent=5 // pred_check_branch
      %307 = sbr.rel (%p304) target = $region56
    $region55: #{transformer_forward.15} parent=5 // pred_region
      %s308 = ssub.s32 %s15, 1
      %p309 = scmp.lt.s32.totalorder %s20, 1
      %s310 = scalar_select %p309, %s20, 1
      %s311 = smul.addr %s310, 8
      %s312 = scalar_lea.vmem %s0, %s311
      %p313 = pneg %p41
      %p314 = pneg %p38
      %p315 = scmp.lt.s32.totalorder %s20, 1
      %s316 = scalar_select %p315, %s20, 1
      %s317 = smul.addr %s316, 8
      %s318 = scalar_lea.vmem %s1, %s317
      %p319 = pneg %p67
      %p320 = pneg %p64
      %p321 = scmp.lt.s32.totalorder %s20, 1
      %s322 = scalar_select %p321, %s20, 1
      %s323 = scalar_lea.vmem %s2, %s322
      %p324 = pneg %p93
      %p325 = pneg %p90
      %p326 = pneg %p114
      %p327 = pneg %p111
      %p328 = pneg %p135
      %p329 = pneg %p132
      %p330 = pneg %p156
      %p331 = pneg %p153
      %p332 = pneg %p177
      %p333 = pneg %p174
      %p334 = pneg %p198
      %p335 = pneg %p195
      %p336 = pneg %p219
      %p337 = pneg %p216
      %p338 = pneg %p245
      %p339 = pneg %p242
      %p340 = scmp.lt.s32.totalorder %s20, 1
      %s341 = scalar_select %p340, %s20, 1
      %s342 = smul.addr %s341, 8
      %s343 = scalar_lea.vmem %s9, %s342
      %p344 = scmp.lt.s32.totalorder %s20, 1
      %s345 = scalar_select %p344, %s20, 1
      %s346 = smul.addr %s345, 8
      %s347 = scalar_lea.vmem %s0, %s346
      %p348 = scmp.lt.s32.totalorder %s20, 1
      %s349 = scalar_select %p348, %s20, 1
      %s350 = smul.addr %s349, 8
      %s351 = scalar_lea.vmem %s1, %s350
      %p352 = scmp.lt.s32.totalorder %s20, 1
      %s353 = scalar_select %p352, %s20, 1
      %s354 = scalar_lea.vmem %s2, %s353
      %p355 = scmp.lt.s32.totalorder %s20, 1
      %s356 = scalar_select %p355, %s20, 1
      %s357 = smul.addr %s356, 8
      %s358 = scalar_lea.vmem %s9, %s357
      %v360 = vld [vmem:[%s347] sm:$0xff]
      %v361 = vpack.c.bf16 %v360, %v360
      %v362 = vld [vmem:[%s3] sm:$0xf]
      %v363 = vld [vmem:[%s3 + $0x4] sm:$0xf]
      %v364 = vld [vmem:[%s3 + $0x8] sm:$0xf]
      %v365 = vld [vmem:[%s3 + $0xc] sm:$0xf]
      %v366 = vld [vmem:[%s4] sm:$0x1]
      %v368 = vperm.slane %v366, 0
      %v374 = vunpack.c.l.b16 %v362
      %v375 = vunpack.c.l.b16 %v363
      %v376 = vunpack.c.l.b16 %v364
      %v377 = vunpack.c.l.b16 %v365
      %v378 = vpack.c.b16 %v375, %v374
      %v379 = vpack.c.b16 %v377, %v376
      %vm382 = vcmask 261120
      %v384 = vsel %vm382, %v361, 0
      %386 = vmatpush.bf16.msra.mxu0 0
      %387 = vmatpush.bf16.msra.mxu0 0
      %388 = vmatpush.bf16.msra.mxu0 0
      %389 = vmatpush.bf16.msra.mxu0 0
      %390 = vmatpush.bf16.msra.mxu0 0
      %391 = vmatpush.bf16.msra.mxu0 0
      %392 = vmatpush.bf16.msra.mxu0 %v379
      %393 = vmatpush.bf16.msra.mxu0 %v378
      %394 = vmatmul.bf16.gmra.mxu0 %v384
      %v395 = vpop.f32.mrf.mxu0
      %v396 = vadd.f32 %v368, %v395
      %v397 = vpop.f32.mrf.mxu0
      %398 = vdwg.mxu0
      %v399 = vld [vmem:[%s351] sm:$0xff]
      %v400 = vld [vmem:[%s354] sm:$0x1]
      %vm401 = vcmp.gt.f32.partialorder %v399, 0.0
      %vm402 = vcmp.gt.f32.partialorder %v400, 0.0
      %v403 = vsel %vm401, 1, 0
      %404 = vset.pattern.permute.xlu0 0
      %405 = vperm.xlu0 %404, %v403
      %v406 = vpop.permute.xlu0 %405
      %vm407 = vcmp.eq.s32.totalorder %v406, 1
      %v408 = vsel %vm402, 1, 0
      %v409 = vperm.slane %v408, 0
      %vm410 = vcmp.eq.s32.totalorder %v409, 1
      %vm411 = vmand %vm407, %vm410
      %v412 = vlaneseq
      %v413 = vshrl.u32 %v412, 7
      %v414 = vlaneseq
      %v415 = vand.u32 %v414, 127
      %vm416 = vcmp.le.s32.totalorder %v415, %v413
      %vm417 = vmand %vm411, %vm416
      %419 = vrot.lane.b32.xlu0 %v396, 96
      %v420 = vpop.permute.xlu0 %419
      %422 = vxpose.xlu0.b32.start [1/16] %v420, 128
      %423 = vxpose.xlu0.b32.cont [2/16] 0.0, 128
      %424 = vxpose.xlu0.b32.cont [3/16] 0.0, 128
      %425 = vxpose.xlu0.b32.cont [4/16] 0.0, 128
      %426 = vxpose.xlu0.b32.cont [5/16] 0.0, 128
      %427 = vxpose.xlu0.b32.cont [6/16] 0.0, 128
      %428 = vxpose.xlu0.b32.cont [7/16] 0.0, 128
      %429 = vxpose.xlu0.b32.cont [8/16] 0.0, 128
      %430 = vxpose.xlu0.b32.cont [9/16] 0.0, 128
      %431 = vxpose.xlu0.b32.cont [10/16] 0.0, 128
      %432 = vxpose.xlu0.b32.cont [11/16] 0.0, 128
      %433 = vxpose.xlu0.b32.cont [12/16] 0.0, 128
      %434 = vxpose.xlu0.b32.cont [13/16] 0.0, 128
      %435 = vxpose.xlu0.b32.cont [14/16] 0.0, 128
      %436 = vxpose.xlu0.b32.cont [15/16] 0.0, 128
      %437 = vxpose.xlu0.b32.end [16/16] 0.0, 128
      %v438 = vpop.trf.xlu0
      %v439 = vpop.trf.xlu0
      %v440 = vpop.trf.xlu0
      %v441 = vpop.trf.xlu0
      %v442 = vpop.trf.xlu0
      %v443 = vpop.trf.xlu0
      %v444 = vpop.trf.xlu0
      %v445 = vpop.trf.xlu0
      %v446 = vpop.trf.xlu0
      %v447 = vpop.trf.xlu0
      %v448 = vpop.trf.xlu0
      %v449 = vpop.trf.xlu0
      %v450 = vpop.trf.xlu0
      %v451 = vpop.trf.xlu0
      %v452 = vpop.trf.xlu0
      %v453 = vpop.trf.xlu0
      %v454 = vpack.c.bf16 %v438, %v438
      %v455 = vpack.c.bf16 %v439, %v439
      %v456 = vpack.c.bf16 %v440, %v440
      %v457 = vpack.c.bf16 %v441, %v441
      %v458 = vpack.c.bf16 %v396, %v396
      %vm459 = vcmask 64512
      %v461 = vsel %vm459, %v458, 0
      %vm463 = vcmask 1043456
      %v465 = vsel %vm463, %v454, 0
      %467 = vmatpush.bf16.msra.mxu0 0
      %468 = vmatpush.bf16.msra.mxu0 0
      %469 = vmatpush.bf16.msra.mxu0 0
      %470 = vmatpush.bf16.msra.mxu0 0
      %471 = vmatpush.bf16.msra.mxu0 0
      %472 = vmatpush.bf16.msra.mxu0 0
      %473 = vmatpush.bf16.msra.mxu0 0
      %474 = vmatpush.bf16.msra.mxu0 %v465
      %475 = vmatmul.bf16.gmra.mxu0 %v461
      %v476 = vpop.f32.mrf.mxu0
      %v477 = vadd.f32 0.0, %v476
      %v478 = vpop.f32.mrf.mxu0
      %479 = vdwg.mxu0
      %v480 = vsel %vm417, %v477, -1e+09
      %v481 = vsel %vm459, %v480, -inf
      %482 = vmax.xlane.f32.xlu0 %v481
      %v483 = vpop.xlane.xlu0 %482
      %v484 = vsub.f32 %v480, %v483
      %v485 = vmul.f32 %v484, 1.442695
      %v486 = vpow.pop %v485
      %v487 = vsel %vm459, %v486, 0.0
      %488 = vadd.xlane.f32.xlu0 %v487
      %v489 = vpop.xlane.xlu0 %488
      %v490 = vrcp.pop %v489
      %v491 = vmul.f32 %v486, %v490
      %v492 = vpack.c.bf16 %v491, %v491
      %v494 = vunpack.c.l.b16 %v458
      %v495 = vpack.c.b16 %v494, %v494
      %496 = vrot.lane.b32.xlu0 %v495, 64
      %v497 = vpop.permute.xlu0 %496
      %v499 = vsel %vm459, %v492, 0
      %v502 = vsel %vm463, %v497, 0
      %504 = vmatpush.bf16.msra.mxu0 0
      %505 = vmatpush.bf16.msra.mxu0 0
      %506 = vmatpush.bf16.msra.mxu0 0
      %507 = vmatpush.bf16.msra.mxu0 0
      %508 = vmatpush.bf16.msra.mxu0 0
      %509 = vmatpush.bf16.msra.mxu0 0
      %510 = vmatpush.bf16.msra.mxu0 0
      %511 = vmatpush.bf16.msra.mxu0 %v502
      %512 = vmatmul.bf16.gmra.mxu0 %v499
      %v513 = vpop.f32.mrf.mxu0
      %v514 = vadd.f32 0.0, %v513
      %v515 = vpop.f32.mrf.mxu0
      %516 = vdwg.mxu0
      %517 = vst.msk [vmem:[#allocation2] sm:$0xff] %vm459, %v514
      %518 = vrot.lane.b32.xlu0 %v495, 120
      %v519 = vpop.permute.xlu0 %518
      %v521 = vsel %vm459, %v519, 0
      %v524 = vsel %vm463, %v455, 0
      %526 = vmatpush.bf16.msra.mxu0 0
      %527 = vmatpush.bf16.msra.mxu0 0
      %528 = vmatpush.bf16.msra.mxu0 0
      %529 = vmatpush.bf16.msra.mxu0 0
      %530 = vmatpush.bf16.msra.mxu0 0
      %531 = vmatpush.bf16.msra.mxu0 0
      %532 = vmatpush.bf16.msra.mxu0 0
      %533 = vmatpush.bf16.msra.mxu0 %v524
      %534 = vmatmul.bf16.gmra.mxu0 %v521
      %v535 = vpop.f32.mrf.mxu0
      %v536 = vadd.f32 0.0, %v535
      %v537 = vpop.f32.mrf.mxu0
      %538 = vdwg.mxu0
      %v539 = vsel %vm417, %v536, -1e+09
      %v540 = vsel %vm459, %v539, -inf
      %541 = vmax.xlane.f32.xlu0 %v540
      %v542 = vpop.xlane.xlu0 %541
      %v543 = vsub.f32 %v539, %v542
      %v544 = vmul.f32 %v543, 1.442695
      %v545 = vpow.pop %v544
      %v546 = vsel %vm459, %v545, 0.0
      %547 = vadd.xlane.f32.xlu0 %v546
      %v548 = vpop.xlane.xlu0 %547
      %v549 = vrcp.pop %v548
      %v550 = vmul.f32 %v545, %v549
      %v551 = vpack.c.bf16 %v550, %v550
      %552 = vrot.lane.b32.xlu0 %v495, 56
      %v553 = vpop.permute.xlu0 %552
      %v555 = vsel %vm459, %v551, 0
      %v558 = vsel %vm463, %v553, 0
      %560 = vmatpush.bf16.msra.mxu0 0
      %561 = vmatpush.bf16.msra.mxu0 0
      %562 = vmatpush.bf16.msra.mxu0 0
      %563 = vmatpush.bf16.msra.mxu0 0
      %564 = vmatpush.bf16.msra.mxu0 0
      %565 = vmatpush.bf16.msra.mxu0 0
      %566 = vmatpush.bf16.msra.mxu0 0
      %567 = vmatpush.bf16.msra.mxu0 %v558
      %568 = vmatmul.bf16.gmra.mxu0 %v555
      %v569 = vpop.f32.mrf.mxu0
      %v570 = vadd.f32 0.0, %v569
      %v571 = vpop.f32.mrf.mxu0
      %572 = vdwg.mxu0
      %574 = vrot.lane.b32.xlu0 %v570, 8
      %v575 = vpop.permute.xlu0 %574
      %vm577 = vcmask 130112
      %578 = vst.msk [vmem:[#allocation2] sm:$0xff] %vm577, %v575
      %579 = vrot.lane.b32.xlu0 %v495, 112
      %v580 = vpop.permute.xlu0 %579
      %v582 = vsel %vm459, %v580, 0
      %v585 = vsel %vm463, %v456, 0
      %587 = vmatpush.bf16.msra.mxu0 0
      %588 = vmatpush.bf16.msra.mxu0 0
      %589 = vmatpush.bf16.msra.mxu0 0
      %590 = vmatpush.bf16.msra.mxu0 0
      %591 = vmatpush.bf16.msra.mxu0 0
      %592 = vmatpush.bf16.msra.mxu0 0
      %593 = vmatpush.bf16.msra.mxu0 0
      %594 = vmatpush.bf16.msra.mxu0 %v585
      %595 = vmatmul.bf16.gmra.mxu0 %v582
      %v596 = vpop.f32.mrf.mxu0
      %v597 = vadd.f32 0.0, %v596
      %v598 = vpop.f32.mrf.mxu0
      %599 = vdwg.mxu0
      %v600 = vsel %vm417, %v597, -1e+09
      %v601 = vsel %vm459, %v600, -inf
      %602 = vmax.xlane.f32.xlu0 %v601
      %v603 = vpop.xlane.xlu0 %602
      %v604 = vsub.f32 %v600, %v603
      %v605 = vmul.f32 %v604, 1.442695
      %v606 = vpow.pop %v605
      %v607 = vsel %vm459, %v606, 0.0
      %608 = vadd.xlane.f32.xlu0 %v607
      %v609 = vpop.xlane.xlu0 %608
      %v610 = vrcp.pop %v609
      %v611 = vmul.f32 %v606, %v610
      %v612 = vpack.c.bf16 %v611, %v611
      %613 = vrot.lane.b32.xlu0 %v495, 48
      %v614 = vpop.permute.xlu0 %613
      %v616 = vsel %vm459, %v612, 0
      %v619 = vsel %vm463, %v614, 0
      %621 = vmatpush.bf16.msra.mxu0 0
      %622 = vmatpush.bf16.msra.mxu0 0
      %623 = vmatpush.bf16.msra.mxu0 0
      %624 = vmatpush.bf16.msra.mxu0 0
      %625 = vmatpush.bf16.msra.mxu0 0
      %626 = vmatpush.bf16.msra.mxu0 0
      %627 = vmatpush.bf16.msra.mxu0 0
      %628 = vmatpush.bf16.msra.mxu0 %v619
      %629 = vmatmul.bf16.gmra.mxu0 %v616
      %v630 = vpop.f32.mrf.mxu0
      %v631 = vadd.f32 0.0, %v630
      %v632 = vpop.f32.mrf.mxu0
      %633 = vdwg.mxu0
      %635 = vrot.lane.b32.xlu0 %v631, 16
      %v636 = vpop.permute.xlu0 %635
      %vm638 = vcmask 195712
      %639 = vst.msk [vmem:[#allocation2] sm:$0xff] %vm638, %v636
      %640 = vrot.lane.b32.xlu0 %v495, 104
      %v641 = vpop.permute.xlu0 %640
      %v643 = vsel %vm459, %v641, 0
      %v646 = vsel %vm463, %v457, 0
      %648 = vmatpush.bf16.msra.mxu0 0
      %649 = vmatpush.bf16.msra.mxu0 0
      %650 = vmatpush.bf16.msra.mxu0 0
      %651 = vmatpush.bf16.msra.mxu0 0
      %652 = vmatpush.bf16.msra.mxu0 0
      %653 = vmatpush.bf16.msra.mxu0 0
      %654 = vmatpush.bf16.msra.mxu0 0
      %655 = vmatpush.bf16.msra.mxu0 %v646
      %656 = vmatmul.bf16.gmra.mxu0 %v643
      %v657 = vpop.f32.mrf.mxu0
      %v658 = vadd.f32 0.0, %v657
      %v659 = vpop.f32.mrf.mxu0
      %660 = vdwg.mxu0
      %v661 = vsel %vm417, %v658, -1e+09
      %v662 = vsel %vm459, %v661, -inf
      %663 = vmax.xlane.f32.xlu0 %v662
      %v664 = vpop.xlane.xlu0 %663
      %v665 = vsub.f32 %v661, %v664
      %v666 = vmul.f32 %v665, 1.442695
      %v667 = vpow.pop %v666
      %v668 = vsel %vm459, %v667, 0.0
      %669 = vadd.xlane.f32.xlu0 %v668
      %v670 = vpop.xlane.xlu0 %669
      %v671 = vrcp.pop %v670
      %v672 = vmul.f32 %v667, %v671
      %v673 = vpack.c.bf16 %v672, %v672
      %674 = vrot.lane.b32.xlu0 %v495, 40
      %v675 = vpop.permute.xlu0 %674
      %v677 = vsel %vm459, %v673, 0
      %v680 = vsel %vm463, %v675, 0
      %682 = vmatpush.bf16.msra.mxu0 0
      %683 = vmatpush.bf16.msra.mxu0 0
      %684 = vmatpush.bf16.msra.mxu0 0
      %685 = vmatpush.bf16.msra.mxu0 0
      %686 = vmatpush.bf16.msra.mxu0 0
      %687 = vmatpush.bf16.msra.mxu0 0
      %688 = vmatpush.bf16.msra.mxu0 0
      %689 = vmatpush.bf16.msra.mxu0 %v680
      %690 = vmatmul.bf16.gmra.mxu0 %v677
      %v691 = vpop.f32.mrf.mxu0
      %v692 = vadd.f32 0.0, %v691
      %v693 = vpop.f32.mrf.mxu0
      %694 = vdwg.mxu0
      %696 = vrot.lane.b32.xlu0 %v692, 24
      %v697 = vpop.permute.xlu0 %696
      %vm699 = vcmask 261312
      %700 = vst.msk [vmem:[#allocation2] sm:$0xff] %vm699, %v697
      %v701 = vld [vmem:[#allocation2] sm:$0xff]
      %v702 = vpack.c.bf16 %v701, %v701
      %v703 = vld [vmem:[%s5] sm:$0xf]
      %v704 = vld [vmem:[%s5 + $0x4] sm:$0xf]
      %v705 = vld [vmem:[%s5 + $0x8] sm:$0xf]
      %v706 = vld [vmem:[%s5 + $0xc] sm:$0xf]
      %v707 = vld [vmem:[%s6] sm:$0x1]
      %v709 = vperm.slane %v707, 0
      %v715 = vunpack.c.l.b16 %v703
      %v716 = vunpack.c.l.b16 %v704
      %v717 = vunpack.c.l.b16 %v705
      %v718 = vunpack.c.l.b16 %v706
      %v719 = vpack.c.b16 %v716, %v715
      %v720 = vpack.c.b16 %v718, %v717
      %v724 = vsel %vm382, %v702, 0
      %726 = vmatpush.bf16.msra.mxu0 0
      %727 = vmatpush.bf16.msra.mxu0 0
      %728 = vmatpush.bf16.msra.mxu0 0
      %729 = vmatpush.bf16.msra.mxu0 0
      %730 = vmatpush.bf16.msra.mxu0 0
      %731 = vmatpush.bf16.msra.mxu0 0
      %732 = vmatpush.bf16.msra.mxu0 %v720
      %733 = vmatpush.bf16.msra.mxu0 %v719
      %734 = vmatmul.bf16.gmra.mxu0 %v724
      %v735 = vpop.f32.mrf.mxu0
      %v736 = vadd.f32 %v709, %v735
      %v737 = vpop.f32.mrf.mxu0
      %738 = vdwg.mxu0
      %v739 = vadd.f32 %v360, %v736
      %v740 = vsel %vm382, %v739, 0.0
      %741 = vadd.xlane.f32.xlu0 %v740
      %v742 = vpop.xlane.xlu0 %741
      %v743 = vrcp.pop 32.0
      %v744 = vmul.f32 32.0, %v743
      %v745 = vsub.f32 1.0, %v744
      %v746 = vmul.f32 %v743, %v745
      %v747 = vadd.f32 %v743, %v746
      %vm748 = vweird.f32 %v743
      %v749 = vsel %vm748, %v743, %v747
      %v750 = vmul.f32 %v742, %v749
      %v751 = vsub.f32 %v739, %v750
      %v752 = vmul.f32 %v751, %v751
      %v753 = vsel %vm382, %v752, 0.0
      %754 = vadd.xlane.f32.xlu0 %v753
      %v755 = vpop.xlane.xlu0 %754
      %v756 = vmul.f32 %v755, %v749
      %v757 = vadd.f32 %v756, 1e-05
      %v758 = vrsqrt.pop %v757
      %v759 = vmul.f32 %v758, %v757
      %v760 = vmul.f32 %v759, %v758
      %v761 = vmul.f32 0.5, %v760
      %v762 = vsub.f32 1.5, %v761
      %v763 = vmul.f32 %v758, %v762
      %vm764 = vweird.f32 %v757
      %vm765 = vweird.f32 %v758
      %vm766 = vmor %vm764, %vm765
      %v767 = vsel %vm766, %v758, %v763
      %v768 = vmul.f32 %v751, %v767
      %v769 = vld [vmem:[%s7] sm:$0x1]
      %v771 = vperm.slane %v769, 0
      %v773 = vmul.f32 %v768, %v771
      %v774 = vld [vmem:[%s8] sm:$0x1]
      %v776 = vperm.slane %v774, 0
      %v778 = vadd.f32 %v773, %v776
      %779 = vst.msk [vmem:[%s358] sm:$0xff] %vm382, %v778
      %p780 = scmp.lt.s32.totalorder %s20, 1
      %s781 = scalar_select %p780, %s20, 1
      %s782 = smul.addr %s781, 8
      %s783 = scalar_lea.vmem %s9, %s782
      // Predicated region
      $region57: #{transformer_forward.15} parent=55 // pred_check
        %p784 = pneg %p242
      $region58: #{transformer_forward.15} parent=55 // pred_check_branch
        %786 = sbr.rel (%p784) target = $region60
      $region59: #{transformer_forward.15} parent=55 // pred_region
        _
      $region60: #{transformer_forward.15} parent=55 // pred_fallthru
        _
    $region56: #{transformer_forward.15} parent=5 // pred_fallthru
      _
    %p787 = scmp.le.s32.totalorder 2, %s15
    // Predicated region
    $region61: #{transformer_forward.15} parent=5 // pred_check
      %p788 = pneg %p787
    $region62: #{transformer_forward.15} parent=5 // pred_check_branch
      %790 = sbr.rel (%p788) target = $region64
    $region63: #{transformer_forward.15} parent=5 // pred_region
      %s791 = ssub.s32 %s15, 2
      // Predicated region
      $region65: #{transformer_forward.15} parent=63 // pred_check
        %p792 = pneg %p248
      $region66: #{transformer_forward.15} parent=63 // pred_check_branch
        %794 = sbr.rel (%p792) target = $region68
      $region67: #{transformer_forward.15} parent=63 // pred_region
        %p795 = scmp.lt.s32.totalorder %s21, 1
        %s796 = scalar_select %p795, %s21, 1
        %s797 = smul.addr %s796, 8
        %s798 = scalar_lea.vmem %s9, %s797
      $region68: #{transformer_forward.15} parent=63 // pred_fallthru
        _
    $region64: #{transformer_forward.15} parent=5 // pred_fallthru
      _
  $region6: #{transformer_forward.15} parent=0 // loop_footer
    %s19 = sadd.s32 1, %s15
  $region7: #{transformer_forward.15} parent=0 // loop_footer_branch
    %14 = sbr.rel target = $region3
  $region8: #{transformer_forward.15} parent=0 // loop_exit
    _

// kernel: transformer_forward.16
$region0: #{transformer_forward.16}
  #allocation0 [shape = 'u32[]', space=smem, size = 0x4, offset = 0x4, fixed_abs, tag = 'smem constant byte address 0x4 - core index']
  #allocation1 [shape = 'u32[72,128]{1,0:T(1,128)}', space=vmem, size = 0x9000, scoped, tag = 'internal scratch']
  #allocation2 [shape = 'f32[8,32]{1,0:T(8,128)}', space=vmem, size = 0x1000, scoped, tag = 'scratch operand']
  %s0 = inlined_call_operand.vmem [shape: f32[2,8,32], index: 0, kind: input, shape index: {}]
  %s1 = inlined_call_operand.vmem [shape: f32[2,8,32], index: 1, kind: input, shape index: {}]
  %s2 = inlined_call_operand.vmem [shape: f32[2,8,1], index: 2, kind: input, shape index: {}]
  %s3 = inlined_call_operand.vmem [shape: f32[2,1,8], index: 3, kind: input, shape index: {}]
  %s4 = inlined_call_operand.vmem [shape: bf16[32,32], index: 4, kind: input, shape index: {}]
  %s5 = inlined_call_operand.vmem [shape: f32[1,32], index: 5, kind: input, shape index: {}]
  %s6 = inlined_call_operand.vmem [shape: bf16[32,64], index: 6, kind: input, shape index: {}]
  %s7 = inlined_call_operand.vmem [shape: f32[1,64], index: 7, kind: input, shape index: {}]
  %s8 = inlined_call_operand.vmem [shape: bf16[32,32], index: 8, kind: input, shape index: {}]
  %s9 = inlined_call_operand.vmem [shape: f32[1,32], index: 9, kind: input, shape index: {}]
  %s10 = inlined_call_operand.hbm [shape: f32[1,32], index: 10, kind: input, shape index: {}]
  %s11 = inlined_call_operand.hbm [shape: f32[1,32], index: 11, kind: input, shape index: {}]
  %s12 = inlined_call_operand.vmem [shape: f32[2,8,32], index: 12, kind: output, shape index: {}]
  %s13 = sld [smem:[#allocation0]]
  $region89: #{transformer_forward.16} parent=0
    _
  %s15 = ssub.s32 1, %s13
  %s16 = scalar_select 0, %s15, %s13
  $region1: #{transformer_forward.16} parent=0
    #allocation3 [shape = 'u8[512]{0}', space=vmem, size = 0x400, scoped, tag = 'input window, operand 10, single buffered']
    #allocation4 [shape = 's32[2]{0}', space=sflag, size = 0x8, scoped, tag = 'scoped memory for transformer_forward.16']
    #allocation5 [shape = 'u8[512]{0}', space=vmem, size = 0x400, scoped, tag = 'input window, operand 11, single buffered']
    #allocation6 [shape = 's32[1]{0}', space=sflag, size = 0x4, scoped, tag = 'scoped memory for transformer_forward.16']
    %17 = vsyncpa [#allocation4], 0
    %18 = vsyncpa [#allocation6], 0
    loop: start=0, step=1, limit=4
    $region2: #{transformer_forward.16} parent=1 // loop_pre_header
      _
    $region3: #{transformer_forward.16} parent=1 // loop_header
      %s20 = sphi 0, %s24
      %p21 = scmp.ge.s32.totalorder %s20, 4
      %s30 = sphi 0, %s32
      %s33 = sphi 0, %s30
      %s34 = sphi 0, %s33
      %s50 = sphi 0, %s34
      %s56 = sphi 0, %s58
      %s59 = sphi 0, %s56
      %s60 = sphi 0, %s59
      %s76 = sphi 0, %s60
      %s82 = sphi 0, %s84
      %s85 = sphi 0, %s82
      %s86 = sphi 0, %s85
      %s102 = sphi 0, %s86
      %s108 = sphi 0, %s110
      %s111 = sphi 0, %s108
      %s112 = sphi 0, %s111
      %s128 = sphi 0, %s112
      %s132 = sphi 0, %s132
      %s134 = sphi 0, %s132
      %s135 = sphi 0, %s134
      %s149 = sphi 0, %s135
      %s153 = sphi 0, %s153
      %s155 = sphi 0, %s153
      %s156 = sphi 0, %s155
      %s170 = sphi 0, %s156
      %s174 = sphi 0, %s174
      %s176 = sphi 0, %s174
      %s177 = sphi 0, %s176
      %s191 = sphi 0, %s177
      %s195 = sphi 0, %s195
      %s197 = sphi 0, %s195
      %s198 = sphi 0, %s197
      %s212 = sphi 0, %s198
      %s216 = sphi 0, %s216
      %s218 = sphi 0, %s216
      %s219 = sphi 0, %s218
      %s233 = sphi 0, %s219
      %s237 = sphi 0, %s237
      %s239 = sphi 0, %s237
      %s240 = sphi 0, %s239
      %s254 = sphi 0, %s240
      %s258 = sphi 0, %s258
      %s260 = sphi 0, %s258
      %s261 = sphi 0, %s260
      %s275 = sphi 0, %s261
      %s279 = sphi 0, %s279
      %s281 = sphi 0, %s279
      %s282 = sphi 0, %s281
      %s296 = sphi 0, %s282
      %s302 = sphi 0, %s304
      %s305 = sphi 0, %s302
      %s306 = sphi 0, %s305
      %s322 = sphi 0, %s306
    $region4: #{transformer_forward.16} parent=1 // loop_header_branch
      %23 = sbr.rel (%p21) target = $region8
    $region5: #{transformer_forward.16} parent=1 // loop_body
      %s25 = ssub.s32 %s20, 1
      %s26 = ssub.s32 %s20, 2
      %s27 = sadd.s32 %s20, 1
      %s28 = ssub.s32 %s20, %s27
      %p29 = scmp.eq.s32.totalorder %s28, 0
      %s31 = sadd.s32 %s30, 1
      %s32 = scalar_select %p29, %s30, %s31
      %p35 = pneg %p29
      %p36 = scmp.eq.s32.totalorder %s20, 1
      %p37 = por %p35, %p36
      %p38 = scmp.ne.s32.totalorder %s30, %s33
      %p39 = scmp.eq.s32.totalorder %s20, 0
      %p40 = por %p38, %p39
      %p41 = scmp.ne.s32.totalorder %s30, %s33
      %p42 = scmp.eq.s32.totalorder %s25, 1
      %p43 = por %p41, %p42
      %p44 = scmp.ne.s32.totalorder %s33, %s34
      %p45 = scmp.eq.s32.totalorder %s25, 0
      %p46 = por %p44, %p45
      %p47 = scmp.ne.s32.totalorder %s33, %s34
      %p48 = scmp.eq.s32.totalorder %s26, 1
      %p49 = por %p47, %p48
      %p51 = scmp.ne.s32.totalorder %s34, %s50
      %p52 = scmp.eq.s32.totalorder %s26, 0
      %p53 = por %p51, %p52
      %s54 = ssub.s32 %s20, %s27
      %p55 = scmp.eq.s32.totalorder %s54, 0
      %s57 = sadd.s32 %s56, 1
      %s58 = scalar_select %p55, %s56, %s57
      %p61 = pneg %p55
      %p62 = scmp.eq.s32.totalorder %s20, 1
      %p63 = por %p61, %p62
      %p64 = scmp.ne.s32.totalorder %s56, %s59
      %p65 = scmp.eq.s32.totalorder %s20, 0
      %p66 = por %p64, %p65
      %p67 = scmp.ne.s32.totalorder %s56, %s59
      %p68 = scmp.eq.s32.totalorder %s25, 1
      %p69 = por %p67, %p68
      %p70 = scmp.ne.s32.totalorder %s59, %s60
      %p71 = scmp.eq.s32.totalorder %s25, 0
      %p72 = por %p70, %p71
      %p73 = scmp.ne.s32.totalorder %s59, %s60
      %p74 = scmp.eq.s32.totalorder %s26, 1
      %p75 = por %p73, %p74
      %p77 = scmp.ne.s32.totalorder %s60, %s76
      %p78 = scmp.eq.s32.totalorder %s26, 0
      %p79 = por %p77, %p78
      %s80 = ssub.s32 %s20, %s27
      %p81 = scmp.eq.s32.totalorder %s80, 0
      %s83 = sadd.s32 %s82, 1
      %s84 = scalar_select %p81, %s82, %s83
      %p87 = pneg %p81
      %p88 = scmp.eq.s32.totalorder %s20, 1
      %p89 = por %p87, %p88
      %p90 = scmp.ne.s32.totalorder %s82, %s85
      %p91 = scmp.eq.s32.totalorder %s20, 0
      %p92 = por %p90, %p91
      %p93 = scmp.ne.s32.totalorder %s82, %s85
      %p94 = scmp.eq.s32.totalorder %s25, 1
      %p95 = por %p93, %p94
      %p96 = scmp.ne.s32.totalorder %s85, %s86
      %p97 = scmp.eq.s32.totalorder %s25, 0
      %p98 = por %p96, %p97
      %p99 = scmp.ne.s32.totalorder %s85, %s86
      %p100 = scmp.eq.s32.totalorder %s26, 1
      %p101 = por %p99, %p100
      %p103 = scmp.ne.s32.totalorder %s86, %s102
      %p104 = scmp.eq.s32.totalorder %s26, 0
      %p105 = por %p103, %p104
      %s106 = ssub.s32 %s20, %s27
      %p107 = scmp.eq.s32.totalorder %s106, 0
      %s109 = sadd.s32 %s108, 1
      %s110 = scalar_select %p107, %s108, %s109
      %p113 = pneg %p107
      %p114 = scmp.eq.s32.totalorder %s20, 1
      %p115 = por %p113, %p114
      %p116 = scmp.ne.s32.totalorder %s108, %s111
      %p117 = scmp.eq.s32.totalorder %s20, 0
      %p118 = por %p116, %p117
      %p119 = scmp.ne.s32.totalorder %s108, %s111
      %p120 = scmp.eq.s32.totalorder %s25, 1
      %p121 = por %p119, %p120
      %p122 = scmp.ne.s32.totalorder %s111, %s112
      %p123 = scmp.eq.s32.totalorder %s25, 0
      %p124 = por %p122, %p123
      %p125 = scmp.ne.s32.totalorder %s111, %s112
      %p126 = scmp.eq.s32.totalorder %s26, 1
      %p127 = por %p125, %p126
      %p129 = scmp.ne.s32.totalorder %s112, %s128
      %p130 = scmp.eq.s32.totalorder %s26, 0
      %p131 = por %p129, %p130
      %s133 = sadd.s32 %s132, 1
      %p136 = scmp.eq.s32.totalorder %s20, 1
      %p137 = scmp.ne.s32.totalorder %s132, %s134
      %p138 = scmp.eq.s32.totalorder %s20, 0
      %p139 = por %p137, %p138
      %p140 = scmp.ne.s32.totalorder %s132, %s134
      %p141 = scmp.eq.s32.totalorder %s25, 1
      %p142 = por %p140, %p141
      %p143 = scmp.ne.s32.totalorder %s134, %s135
      %p144 = scmp.eq.s32.totalorder %s25, 0
      %p145 = por %p143, %p144
      %p146 = scmp.ne.s32.totalorder %s134, %s135
      %p147 = scmp.eq.s32.totalorder %s26, 1
      %p148 = por %p146, %p147
      %p150 = scmp.ne.s32.totalorder %s135, %s149
      %p151 = scmp.eq.s32.totalorder %s26, 0
      %p152 = por %p150, %p151
      %s154 = sadd.s32 %s153, 1
      %p157 = scmp.eq.s32.totalorder %s20, 1
      %p158 = scmp.ne.s32.totalorder %s153, %s155
      %p159 = scmp.eq.s32.totalorder %s20, 0
      %p160 = por %p158, %p159
      %p161 = scmp.ne.s32.totalorder %s153, %s155
      %p162 = scmp.eq.s32.totalorder %s25, 1
      %p163 = por %p161, %p162
      %p164 = scmp.ne.s32.totalorder %s155, %s156
      %p165 = scmp.eq.s32.totalorder %s25, 0
      %p166 = por %p164, %p165
      %p167 = scmp.ne.s32.totalorder %s155, %s156
      %p168 = scmp.eq.s32.totalorder %s26, 1
      %p169 = por %p167, %p168
      %p171 = scmp.ne.s32.totalorder %s156, %s170
      %p172 = scmp.eq.s32.totalorder %s26, 0
      %p173 = por %p171, %p172
      %s175 = sadd.s32 %s174, 1
      %p178 = scmp.eq.s32.totalorder %s20, 1
      %p179 = scmp.ne.s32.totalorder %s174, %s176
      %p180 = scmp.eq.s32.totalorder %s20, 0
      %p181 = por %p179, %p180
      %p182 = scmp.ne.s32.totalorder %s174, %s176
      %p183 = scmp.eq.s32.totalorder %s25, 1
      %p184 = por %p182, %p183
      %p185 = scmp.ne.s32.totalorder %s176, %s177
      %p186 = scmp.eq.s32.totalorder %s25, 0
      %p187 = por %p185, %p186
      %p188 = scmp.ne.s32.totalorder %s176, %s177
      %p189 = scmp.eq.s32.totalorder %s26, 1
      %p190 = por %p188, %p189
      %p192 = scmp.ne.s32.totalorder %s177, %s191
      %p193 = scmp.eq.s32.totalorder %s26, 0
      %p194 = por %p192, %p193
      %s196 = sadd.s32 %s195, 1
      %p199 = scmp.eq.s32.totalorder %s20, 1
      %p200 = scmp.ne.s32.totalorder %s195, %s197
      %p201 = scmp.eq.s32.totalorder %s20, 0
      %p202 = por %p200, %p201
      %p203 = scmp.ne.s32.totalorder %s195, %s197
      %p204 = scmp.eq.s32.totalorder %s25, 1
      %p205 = por %p203, %p204
      %p206 = scmp.ne.s32.totalorder %s197, %s198
      %p207 = scmp.eq.s32.totalorder %s25, 0
      %p208 = por %p206, %p207
      %p209 = scmp.ne.s32.totalorder %s197, %s198
      %p210 = scmp.eq.s32.totalorder %s26, 1
      %p211 = por %p209, %p210
      %p213 = scmp.ne.s32.totalorder %s198, %s212
      %p214 = scmp.eq.s32.totalorder %s26, 0
      %p215 = por %p213, %p214
      %s217 = sadd.s32 %s216, 1
      %p220 = scmp.eq.s32.totalorder %s20, 1
      %p221 = scmp.ne.s32.totalorder %s216, %s218
      %p222 = scmp.eq.s32.totalorder %s20, 0
      %p223 = por %p221, %p222
      %p224 = scmp.ne.s32.totalorder %s216, %s218
      %p225 = scmp.eq.s32.totalorder %s25, 1
      %p226 = por %p224, %p225
      %p227 = scmp.ne.s32.totalorder %s218, %s219
      %p228 = scmp.eq.s32.totalorder %s25, 0
      %p229 = por %p227, %p228
      %p230 = scmp.ne.s32.totalorder %s218, %s219
      %p231 = scmp.eq.s32.totalorder %s26, 1
      %p232 = por %p230, %p231
      %p234 = scmp.ne.s32.totalorder %s219, %s233
      %p235 = scmp.eq.s32.totalorder %s26, 0
      %p236 = por %p234, %p235
      %s238 = sadd.s32 %s237, 1
      %p241 = scmp.eq.s32.totalorder %s20, 1
      %p242 = scmp.ne.s32.totalorder %s237, %s239
      %p243 = scmp.eq.s32.totalorder %s20, 0
      %p244 = por %p242, %p243
      %p245 = scmp.ne.s32.totalorder %s237, %s239
      %p246 = scmp.eq.s32.totalorder %s25, 1
      %p247 = por %p245, %p246
      %p248 = scmp.ne.s32.totalorder %s239, %s240
      %p249 = scmp.eq.s32.totalorder %s25, 0
      %p250 = por %p248, %p249
      %p251 = scmp.ne.s32.totalorder %s239, %s240
      %p252 = scmp.eq.s32.totalorder %s26, 1
      %p253 = por %p251, %p252
      %p255 = scmp.ne.s32.totalorder %s240, %s254
      %p256 = scmp.eq.s32.totalorder %s26, 0
      %p257 = por %p255, %p256
      %s259 = sadd.s32 %s258, 1
      %p262 = scmp.eq.s32.totalorder %s20, 1
      %p263 = scmp.ne.s32.totalorder %s258, %s260
      %p264 = scmp.eq.s32.totalorder %s20, 0
      %p265 = por %p263, %p264
      %p266 = scmp.ne.s32.totalorder %s258, %s260
      %p267 = scmp.eq.s32.totalorder %s25, 1
      %p268 = por %p266, %p267
      %p269 = scmp.ne.s32.totalorder %s260, %s261
      %p270 = scmp.eq.s32.totalorder %s25, 0
      %p271 = por %p269, %p270
      %p272 = scmp.ne.s32.totalorder %s260, %s261
      %p273 = scmp.eq.s32.totalorder %s26, 1
      %p274 = por %p272, %p273
      %p276 = scmp.ne.s32.totalorder %s261, %s275
      %p277 = scmp.eq.s32.totalorder %s26, 0
      %p278 = por %p276, %p277
      %s280 = sadd.s32 %s279, 1
      %p283 = scmp.eq.s32.totalorder %s20, 1
      %p284 = scmp.ne.s32.totalorder %s279, %s281
      %p285 = scmp.eq.s32.totalorder %s20, 0
      %p286 = por %p284, %p285
      %p287 = scmp.ne.s32.totalorder %s279, %s281
      %p288 = scmp.eq.s32.totalorder %s25, 1
      %p289 = por %p287, %p288
      %p290 = scmp.ne.s32.totalorder %s281, %s282
      %p291 = scmp.eq.s32.totalorder %s25, 0
      %p292 = por %p290, %p291
      %p293 = scmp.ne.s32.totalorder %s281, %s282
      %p294 = scmp.eq.s32.totalorder %s26, 1
      %p295 = por %p293, %p294
      %p297 = scmp.ne.s32.totalorder %s282, %s296
      %p298 = scmp.eq.s32.totalorder %s26, 0
      %p299 = por %p297, %p298
      %s300 = ssub.s32 %s20, %s27
      %p301 = scmp.eq.s32.totalorder %s300, 0
      %s303 = sadd.s32 %s302, 1
      %s304 = scalar_select %p301, %s302, %s303
      %p307 = pneg %p301
      %p308 = scmp.eq.s32.totalorder %s20, 1
      %p309 = por %p307, %p308
      %p310 = scmp.ne.s32.totalorder %s302, %s305
      %p311 = scmp.eq.s32.totalorder %s20, 0
      %p312 = por %p310, %p311
      %p313 = scmp.ne.s32.totalorder %s302, %s305
      %p314 = scmp.eq.s32.totalorder %s25, 1
      %p315 = por %p313, %p314
      %p316 = scmp.ne.s32.totalorder %s305, %s306
      %p317 = scmp.eq.s32.totalorder %s25, 0
      %p318 = por %p316, %p317
      %p319 = scmp.ne.s32.totalorder %s305, %s306
      %p320 = scmp.eq.s32.totalorder %s26, 1
      %p321 = por %p319, %p320
      %p323 = scmp.ne.s32.totalorder %s306, %s322
      %p324 = scmp.eq.s32.totalorder %s26, 0
      %p325 = por %p323, %p324
      %p326 = scmp.le.s32.totalorder 1, %s20
      %p327 = scmp.lt.s32.totalorder %s20, 3
      %p328 = pnand %p326, %p327
      %p329 = pneg %p328
      // Predicated region
      $region9: #{transformer_forward.16} parent=5 // pred_check
        _
      $region10: #{transformer_forward.16} parent=5 // pred_check_branch
        %331 = sbr.rel (%p328) target = $region12
      $region11: #{transformer_forward.16} parent=5 // pred_region
        %s332 = ssub.s32 %s20, 1
        // Predicated region
        $region13: #{transformer_forward.16} parent=11 // pred_check
          %p333 = pneg %p145
        $region14: #{transformer_forward.16} parent=11 // pred_check_branch
          %335 = sbr.rel (%p333) target = $region16
        $region15: #{transformer_forward.16} parent=11 // pred_region
          _
        $region16: #{transformer_forward.16} parent=11 // pred_fallthru
          _
        // Predicated region
        $region17: #{transformer_forward.16} parent=11 // pred_check
          %p336 = pneg %p166
        $region18: #{transformer_forward.16} parent=11 // pred_check_branch
          %338 = sbr.rel (%p336) target = $region20
        $region19: #{transformer_forward.16} parent=11 // pred_region
          _
        $region20: #{transformer_forward.16} parent=11 // pred_fallthru
          _
        // Predicated region
        $region21: #{transformer_forward.16} parent=11 // pred_check
          %p339 = pneg %p187
        $region22: #{transformer_forward.16} parent=11 // pred_check_branch
          %341 = sbr.rel (%p339) target = $region24
        $region23: #{transformer_forward.16} parent=11 // pred_region
          _
        $region24: #{transformer_forward.16} parent=11 // pred_fallthru
          _
        // Predicated region
        $region25: #{transformer_forward.16} parent=11 // pred_check
          %p342 = pneg %p208
        $region26: #{transformer_forward.16} parent=11 // pred_check_branch
          %344 = sbr.rel (%p342) target = $region28
        $region27: #{transformer_forward.16} parent=11 // pred_region
          _
        $region28: #{transformer_forward.16} parent=11 // pred_fallthru
          _
        // Predicated region
        $region29: #{transformer_forward.16} parent=11 // pred_check
          %p345 = pneg %p229
        $region30: #{transformer_forward.16} parent=11 // pred_check_branch
          %347 = sbr.rel (%p345) target = $region32
        $region31: #{transformer_forward.16} parent=11 // pred_region
          _
        $region32: #{transformer_forward.16} parent=11 // pred_fallthru
          _
        // Predicated region
        $region33: #{transformer_forward.16} parent=11 // pred_check
          %p348 = pneg %p250
        $region34: #{transformer_forward.16} parent=11 // pred_check_branch
          %350 = sbr.rel (%p348) target = $region36
        $region35: #{transformer_forward.16} parent=11 // pred_region
          _
        $region36: #{transformer_forward.16} parent=11 // pred_fallthru
          _
        // Predicated region
        $region37: #{transformer_forward.16} parent=11 // pred_check
          %p351 = pneg %p271
        $region38: #{transformer_forward.16} parent=11 // pred_check_branch
          %353 = sbr.rel (%p351) target = $region40
        $region39: #{transformer_forward.16} parent=11 // pred_region
          %355 = vsyncadd [#allocation4], 0
          %s357 = sshll.u32 %s10, 4
          %s358 = int_to_ptr.hbm [resolvable:$true] %s357
          %s359 = sshll.u32 [#allocation3], 4
          %s360 = int_to_ptr.vmem [resolvable:$true] %s359
          %362 = dma.hbm_to_vmem [thread:$0]  %s358, 16, %s360, [#allocation4]
        $region40: #{transformer_forward.16} parent=11 // pred_fallthru
          _
        // Predicated region
        $region41: #{transformer_forward.16} parent=11 // pred_check
          %p363 = pneg %p292
        $region42: #{transformer_forward.16} parent=11 // pred_check_branch
          %365 = sbr.rel (%p363) target = $region44
        $region43: #{transformer_forward.16} parent=11 // pred_region
          %367 = vsyncadd [#allocation6], 0
          %s369 = sshll.u32 %s11, 4
          %s370 = int_to_ptr.hbm [resolvable:$true] %s369
          %s371 = sshll.u32 [#allocation5], 4
          %s372 = int_to_ptr.vmem [resolvable:$true] %s371
          %374 = dma.hbm_to_vmem [thread:$0]  %s370, 16, %s372, [#allocation6]
        $region44: #{transformer_forward.16} parent=11 // pred_fallthru
          _
      $region12: #{transformer_forward.16} parent=5 // pred_fallthru
        _
      %p375 = scmp.lt.s32.totalorder %s20, 2
      // Predicated region
      $region45: #{transformer_forward.16} parent=5 // pred_check
        %p376 = pneg %p375
      $region46: #{transformer_forward.16} parent=5 // pred_check_branch
        %378 = sbr.rel (%p376) target = $region48
      $region47: #{transformer_forward.16} parent=5 // pred_region
        // Predicated region
        $region49: #{transformer_forward.16} parent=47 // pred_check
          %p379 = pneg %p40
        $region50: #{transformer_forward.16} parent=47 // pred_check_branch
          %381 = sbr.rel (%p379) target = $region52
        $region51: #{transformer_forward.16} parent=47 // pred_region
          %p382 = scmp.lt.s32.totalorder %s20, 1
          %s383 = scalar_select %p382, %s20, 1
          %s384 = smul.addr %s383, 8
          %s385 = scalar_lea.vmem %s0, %s384
        $region52: #{transformer_forward.16} parent=47 // pred_fallthru
          _
        // Predicated region
        $region53: #{transformer_forward.16} parent=47 // pred_check
          %p386 = pneg %p66
        $region54: #{transformer_forward.16} parent=47 // pred_check_branch
          %388 = sbr.rel (%p386) target = $region56
        $region55: #{transformer_forward.16} parent=47 // pred_region
          %p389 = scmp.lt.s32.totalorder %s20, 1
          %s390 = scalar_select %p389, %s20, 1
          %s391 = smul.addr %s390, 8
          %s392 = scalar_lea.vmem %s1, %s391
        $region56: #{transformer_forward.16} parent=47 // pred_fallthru
          _
        // Predicated region
        $region57: #{transformer_forward.16} parent=47 // pred_check
          %p393 = pneg %p92
        $region58: #{transformer_forward.16} parent=47 // pred_check_branch
          %395 = sbr.rel (%p393) target = $region60
        $region59: #{transformer_forward.16} parent=47 // pred_region
          %p396 = scmp.lt.s32.totalorder %s20, 1
          %s397 = scalar_select %p396, %s20, 1
          %s398 = smul.addr %s397, 8
          %s399 = scalar_lea.vmem %s2, %s398
        $region60: #{transformer_forward.16} parent=47 // pred_fallthru
          _
        // Predicated region
        $region61: #{transformer_forward.16} parent=47 // pred_check
          %p400 = pneg %p118
        $region62: #{transformer_forward.16} parent=47 // pred_check_branch
          %402 = sbr.rel (%p400) target = $region64
        $region63: #{transformer_forward.16} parent=47 // pred_region
          %p403 = scmp.lt.s32.totalorder %s20, 1
          %s404 = scalar_select %p403, %s20, 1
          %s405 = scalar_lea.vmem %s3, %s404
        $region64: #{transformer_forward.16} parent=47 // pred_fallthru
          _
      $region48: #{transformer_forward.16} parent=5 // pred_fallthru
        _
      %p406 = scmp.le.s32.totalorder 1, %s20
      %p407 = scmp.lt.s32.totalorder %s20, 3
      %p408 = pnand %p406, %p407
      %p409 = pneg %p408
      // Predicated region
      $region65: #{transformer_forward.16} parent=5 // pred_check
        _
      $region66: #{transformer_forward.16} parent=5 // pred_check_branch
        %411 = sbr.rel (%p408) target = $region68
      $region67: #{transformer_forward.16} parent=5 // pred_region
        %s412 = ssub.s32 %s20, 1
        // Predicated region
        $region69: #{transformer_forward.16} parent=67 // pred_check
          %p413 = pneg %p271
        $region70: #{transformer_forward.16} parent=67 // pred_check_branch
          %415 = sbr.rel (%p413) target = $region72
        $region71: #{transformer_forward.16} parent=67 // pred_region
          %417 = dma.done [#allocation4], 16
        $region72: #{transformer_forward.16} parent=67 // pred_fallthru
          _
        // Predicated region
        $region73: #{transformer_forward.16} parent=67 // pred_check
          %p418 = pneg %p292
        $region74: #{transformer_forward.16} parent=67 // pred_check_branch
          %420 = sbr.rel (%p418) target = $region76
        $region75: #{transformer_forward.16} parent=67 // pred_region
          %422 = dma.done [#allocation6], 16
        $region76: #{transformer_forward.16} parent=67 // pred_fallthru
          _
        %p423 = scmp.lt.s32.totalorder %s25, 1
        %s424 = scalar_select %p423, %s25, 1
        %s425 = smul.addr %s424, 8
        %s426 = scalar_lea.vmem %s0, %s425
        %p427 = pneg %p46
        %p428 = pneg %p43
        %p429 = scmp.lt.s32.totalorder %s25, 1
        %s430 = scalar_select %p429, %s25, 1
        %s431 = smul.addr %s430, 8
        %s432 = scalar_lea.vmem %s1, %s431
        %p433 = pneg %p72
        %p434 = pneg %p69
        %p435 = scmp.lt.s32.totalorder %s25, 1
        %s436 = scalar_select %p435, %s25, 1
        %s437 = smul.addr %s436, 8
        %s438 = scalar_lea.vmem %s2, %s437
        %p439 = pneg %p98
        %p440 = pneg %p95
        %p441 = scmp.lt.s32.totalorder %s25, 1
        %s442 = scalar_select %p441, %s25, 1
        %s443 = scalar_lea.vmem %s3, %s442
        %p444 = pneg %p124
        %p445 = pneg %p121
        %p446 = pneg %p145
        %p447 = pneg %p142
        %p448 = pneg %p166
        %p449 = pneg %p163
        %p450 = pneg %p187
        %p451 = pneg %p184
        %p452 = pneg %p208
        %p453 = pneg %p205
        %p454 = pneg %p229
        %p455 = pneg %p226
        %p456 = pneg %p250
        %p457 = pneg %p247
        %p458 = pneg %p271
        %p459 = pneg %p268
        %p460 = pneg %p292
        %p461 = pneg %p289
        %p462 = pneg %p318
        %p463 = pneg %p315
        %p464 = scmp.lt.s32.totalorder %s25, 1
        %s465 = scalar_select %p464, %s25, 1
        %s466 = smul.addr %s465, 8
        %s467 = scalar_lea.vmem %s12, %s466
        %p468 = scmp.lt.s32.totalorder %s25, 1
        %s469 = scalar_select %p468, %s25, 1
        %s470 = smul.addr %s469, 8
        %s471 = scalar_lea.vmem %s0, %s470
        %p472 = scmp.lt.s32.totalorder %s25, 1
        %s473 = scalar_select %p472, %s25, 1
        %s474 = smul.addr %s473, 8
        %s475 = scalar_lea.vmem %s1, %s474
        %p476 = scmp.lt.s32.totalorder %s25, 1
        %s477 = scalar_select %p476, %s25, 1
        %s478 = smul.addr %s477, 8
        %s479 = scalar_lea.vmem %s2, %s478
        %p480 = scmp.lt.s32.totalorder %s25, 1
        %s481 = scalar_select %p480, %s25, 1
        %s482 = scalar_lea.vmem %s3, %s481
        %p483 = scmp.lt.s32.totalorder %s25, 1
        %s484 = scalar_select %p483, %s25, 1
        %s485 = smul.addr %s484, 8
        %s486 = scalar_lea.vmem %s12, %s485
        %v488 = vld [vmem:[%s471] sm:$0xff]
        %v489 = vld [vmem:[%s475] sm:$0xff]
        %v490 = vpack.c.bf16 %v488, %v488
        %v491 = vld [vmem:[%s4] sm:$0xf]
        %v492 = vld [vmem:[%s4 + $0x4] sm:$0xf]
        %v493 = vld [vmem:[%s4 + $0x8] sm:$0xf]
        %v494 = vld [vmem:[%s4 + $0xc] sm:$0xf]
        %v495 = vld [vmem:[%s5] sm:$0x1]
        %v497 = vperm.slane %v495, 0
        %v503 = vunpack.c.l.b16 %v491
        %v504 = vunpack.c.l.b16 %v492
        %v505 = vunpack.c.l.b16 %v493
        %v506 = vunpack.c.l.b16 %v494
        %v507 = vpack.c.b16 %v504, %v503
        %v508 = vpack.c.b16 %v506, %v505
        %vm511 = vcmask 261120
        %v513 = vsel %vm511, %v490, 0
        %515 = vmatpush.bf16.msra.mxu0 0
        %516 = vmatpush.bf16.msra.mxu0 0
        %517 = vmatpush.bf16.msra.mxu0 0
        %518 = vmatpush.bf16.msra.mxu0 0
        %519 = vmatpush.bf16.msra.mxu0 0
        %520 = vmatpush.bf16.msra.mxu0 0
        %521 = vmatpush.bf16.msra.mxu0 %v508
        %522 = vmatpush.bf16.msra.mxu0 %v507
        %523 = vmatmul.bf16.gmra.mxu0 %v513
        %v524 = vpop.f32.mrf.mxu0
        %v525 = vadd.f32 %v497, %v524
        %v526 = vpop.f32.mrf.mxu0
        %527 = vdwg.mxu0
        %v528 = vpack.c.bf16 %v489, %v489
        %v529 = vld [vmem:[%s6] sm:$0xf]
        %v530 = vld [vmem:[%s6 + $0x4] sm:$0xf]
        %v531 = vld [vmem:[%s6 + $0x8] sm:$0xf]
        %v532 = vld [vmem:[%s6 + $0xc] sm:$0xf]
        %v533 = vld [vmem:[%s7] sm:$0x1]
        %v535 = vperm.slane %v533, 0
        %v541 = vunpack.c.l.b16 %v529
        %v542 = vunpack.c.l.b16 %v530
        %v543 = vunpack.c.l.b16 %v531
        %v544 = vunpack.c.l.b16 %v532
        %v545 = vpack.c.b16 %v542, %v541
        %v546 = vpack.c.b16 %v544, %v543
        %v550 = vsel %vm511, %v528, 0
        %552 = vmatpush.bf16.msra.mxu0 0
        %553 = vmatpush.bf16.msra.mxu0 0
        %554 = vmatpush.bf16.msra.mxu0 0
        %555 = vmatpush.bf16.msra.mxu0 0
        %556 = vmatpush.bf16.msra.mxu0 0
        %557 = vmatpush.bf16.msra.mxu0 0
        %558 = vmatpush.bf16.msra.mxu0 %v546
        %559 = vmatpush.bf16.msra.mxu0 %v545
        %560 = vmatmul.bf16.gmra.mxu0 %v550
        %v561 = vpop.f32.mrf.mxu0
        %v562 = vadd.f32 %v535, %v561
        %v563 = vpop.f32.mrf.mxu0
        %564 = vdwg.mxu0
        %v565 = vld [vmem:[%s479] sm:$0xff]
        %v566 = vld [vmem:[%s482] sm:$0x1]
        %vm567 = vcmp.gt.f32.partialorder %v565, 0.0
        %vm568 = vcmp.gt.f32.partialorder %v566, 0.0
        %v569 = vsel %vm567, 1, 0
        %570 = vset.pattern.permute.xlu0 0
        %571 = vperm.xlu0 %570, %v569
        %v572 = vpop.permute.xlu0 %571
        %vm573 = vcmp.eq.s32.totalorder %v572, 1
        %v574 = vsel %vm568, 1, 0
        %v575 = vperm.slane %v574, 0
        %vm576 = vcmp.eq.s32.totalorder %v575, 1
        %vm577 = vmand %vm573, %vm576
        %578 = vxpose.xlu0.b32.start [1/16] %v562, 128
        %579 = vxpose.xlu0.b32.cont [2/16] 0.0, 128
        %580 = vxpose.xlu0.b32.cont [3/16] 0.0, 128
        %581 = vxpose.xlu0.b32.cont [4/16] 0.0, 128
        %582 = vxpose.xlu0.b32.cont [5/16] 0.0, 128
        %583 = vxpose.xlu0.b32.cont [6/16] 0.0, 128
        %584 = vxpose.xlu0.b32.cont [7/16] 0.0, 128
        %585 = vxpose.xlu0.b32.cont [8/16] 0.0, 128
        %586 = vxpose.xlu0.b32.cont [9/16] 0.0, 128
        %587 = vxpose.xlu0.b32.cont [10/16] 0.0, 128
        %588 = vxpose.xlu0.b32.cont [11/16] 0.0, 128
        %589 = vxpose.xlu0.b32.cont [12/16] 0.0, 128
        %590 = vxpose.xlu0.b32.cont [13/16] 0.0, 128
        %591 = vxpose.xlu0.b32.cont [14/16] 0.0, 128
        %592 = vxpose.xlu0.b32.cont [15/16] 0.0, 128
        %593 = vxpose.xlu0.b32.end [16/16] 0.0, 128
        %v594 = vpop.trf.xlu0
        %v595 = vpop.trf.xlu0
        %v596 = vpop.trf.xlu0
        %v597 = vpop.trf.xlu0
        %v598 = vpop.trf.xlu0
        %v599 = vpop.trf.xlu0
        %v600 = vpop.trf.xlu0
        %v601 = vpop.trf.xlu0
        %v602 = vpop.trf.xlu0
        %v603 = vpop.trf.xlu0
        %v604 = vpop.trf.xlu0
        %v605 = vpop.trf.xlu0
        %v606 = vpop.trf.xlu0
        %v607 = vpop.trf.xlu0
        %v608 = vpop.trf.xlu0
        %v609 = vpop.trf.xlu0
        %v610 = vpack.c.bf16 %v594, %v594
        %v611 = vpack.c.bf16 %v595, %v595
        %v612 = vpack.c.bf16 %v596, %v596
        %v613 = vpack.c.bf16 %v597, %v597
        %v614 = vpack.c.bf16 %v525, %v525
        %v615 = vpack.c.bf16 %v562, %v562
        %vm616 = vcmask 64512
        %v618 = vsel %vm616, %v614, 0
        %vm620 = vcmask 1043456
        %v622 = vsel %vm620, %v610, 0
        %624 = vmatpush.bf16.msra.mxu0 0
        %625 = vmatpush.bf16.msra.mxu0 0
        %626 = vmatpush.bf16.msra.mxu0 0
        %627 = vmatpush.bf16.msra.mxu0 0
        %628 = vmatpush.bf16.msra.mxu0 0
        %629 = vmatpush.bf16.msra.mxu0 0
        %630 = vmatpush.bf16.msra.mxu0 0
        %631 = vmatpush.bf16.msra.mxu0 %v622
        %632 = vmatmul.bf16.gmra.mxu0 %v618
        %v633 = vpop.f32.mrf.mxu0
        %v634 = vadd.f32 0.0, %v633
        %v635 = vpop.f32.mrf.mxu0
        %636 = vdwg.mxu0
        %v637 = vsel %vm577, %v634, -1e+09
        %v638 = vsel %vm616, %v637, -inf
        %639 = vmax.xlane.f32.xlu0 %v638
        %v640 = vpop.xlane.xlu0 %639
        %v641 = vsub.f32 %v637, %v640
        %v642 = vmul.f32 %v641, 1.442695
        %v643 = vpow.pop %v642
        %v644 = vsel %vm616, %v643, 0.0
        %645 = vadd.xlane.f32.xlu0 %v644
        %v646 = vpop.xlane.xlu0 %645
        %v647 = vrcp.pop %v646
        %v648 = vmul.f32 %v643, %v647
        %v649 = vpack.c.bf16 %v648, %v648
        %v651 = vunpack.c.l.b16 %v615
        %v652 = vpack.c.b16 %v651, %v651
        %653 = vrot.lane.b32.xlu0 %v652, 96
        %v654 = vpop.permute.xlu0 %653
        %v656 = vsel %vm616, %v649, 0
        %v659 = vsel %vm620, %v654, 0
        %661 = vmatpush.bf16.msra.mxu0 0
        %662 = vmatpush.bf16.msra.mxu0 0
        %663 = vmatpush.bf16.msra.mxu0 0
        %664 = vmatpush.bf16.msra.mxu0 0
        %665 = vmatpush.bf16.msra.mxu0 0
        %666 = vmatpush.bf16.msra.mxu0 0
        %667 = vmatpush.bf16.msra.mxu0 0
        %668 = vmatpush.bf16.msra.mxu0 %v659
        %669 = vmatmul.bf16.gmra.mxu0 %v656
        %v670 = vpop.f32.mrf.mxu0
        %v671 = vadd.f32 0.0, %v670
        %v672 = vpop.f32.mrf.mxu0
        %673 = vdwg.mxu0
        %674 = vst.msk [vmem:[#allocation2] sm:$0xff] %vm616, %v671
        %v676 = vunpack.c.l.b16 %v614
        %v677 = vpack.c.b16 %v676, %v676
        %678 = vrot.lane.b32.xlu0 %v677, 120
        %v679 = vpop.permute.xlu0 %678
        %v681 = vsel %vm616, %v679, 0
        %v684 = vsel %vm620, %v611, 0
        %686 = vmatpush.bf16.msra.mxu0 0
        %687 = vmatpush.bf16.msra.mxu0 0
        %688 = vmatpush.bf16.msra.mxu0 0
        %689 = vmatpush.bf16.msra.mxu0 0
        %690 = vmatpush.bf16.msra.mxu0 0
        %691 = vmatpush.bf16.msra.mxu0 0
        %692 = vmatpush.bf16.msra.mxu0 0
        %693 = vmatpush.bf16.msra.mxu0 %v684
        %694 = vmatmul.bf16.gmra.mxu0 %v681
        %v695 = vpop.f32.mrf.mxu0
        %v696 = vadd.f32 0.0, %v695
        %v697 = vpop.f32.mrf.mxu0
        %698 = vdwg.mxu0
        %v699 = vsel %vm577, %v696, -1e+09
        %v700 = vsel %vm616, %v699, -inf
        %701 = vmax.xlane.f32.xlu0 %v700
        %v702 = vpop.xlane.xlu0 %701
        %v703 = vsub.f32 %v699, %v702
        %v704 = vmul.f32 %v703, 1.442695
        %v705 = vpow.pop %v704
        %v706 = vsel %vm616, %v705, 0.0
        %707 = vadd.xlane.f32.xlu0 %v706
        %v708 = vpop.xlane.xlu0 %707
        %v709 = vrcp.pop %v708
        %v710 = vmul.f32 %v705, %v709
        %v711 = vpack.c.bf16 %v710, %v710
        %712 = vrot.lane.b32.xlu0 %v652, 88
        %v713 = vpop.permute.xlu0 %712
        %v715 = vsel %vm616, %v711, 0
        %v718 = vsel %vm620, %v713, 0
        %720 = vmatpush.bf16.msra.mxu0 0
        %721 = vmatpush.bf16.msra.mxu0 0
        %722 = vmatpush.bf16.msra.mxu0 0
        %723 = vmatpush.bf16.msra.mxu0 0
        %724 = vmatpush.bf16.msra.mxu0 0
        %725 = vmatpush.bf16.msra.mxu0 0
        %726 = vmatpush.bf16.msra.mxu0 0
        %727 = vmatpush.bf16.msra.mxu0 %v718
        %728 = vmatmul.bf16.gmra.mxu0 %v715
        %v729 = vpop.f32.mrf.mxu0
        %v730 = vadd.f32 0.0, %v729
        %v731 = vpop.f32.mrf.mxu0
        %732 = vdwg.mxu0
        %734 = vrot.lane.b32.xlu0 %v730, 8
        %v735 = vpop.permute.xlu0 %734
        %vm737 = vcmask 130112
        %738 = vst.msk [vmem:[#allocation2] sm:$0xff] %vm737, %v735
        %739 = vrot.lane.b32.xlu0 %v677, 112
        %v740 = vpop.permute.xlu0 %739
        %v742 = vsel %vm616, %v740, 0
        %v745 = vsel %vm620, %v612, 0
        %747 = vmatpush.bf16.msra.mxu0 0
        %748 = vmatpush.bf16.msra.mxu0 0
        %749 = vmatpush.bf16.msra.mxu0 0
        %750 = vmatpush.bf16.msra.mxu0 0
        %751 = vmatpush.bf16.msra.mxu0 0
        %752 = vmatpush.bf16.msra.mxu0 0
        %753 = vmatpush.bf16.msra.mxu0 0
        %754 = vmatpush.bf16.msra.mxu0 %v745
        %755 = vmatmul.bf16.gmra.mxu0 %v742
        %v756 = vpop.f32.mrf.mxu0
        %v757 = vadd.f32 0.0, %v756
        %v758 = vpop.f32.mrf.mxu0
        %759 = vdwg.mxu0
        %v760 = vsel %vm577, %v757, -1e+09
        %v761 = vsel %vm616, %v760, -inf
        %762 = vmax.xlane.f32.xlu0 %v761
        %v763 = vpop.xlane.xlu0 %762
        %v764 = vsub.f32 %v760, %v763
        %v765 = vmul.f32 %v764, 1.442695
        %v766 = vpow.pop %v765
        %v767 = vsel %vm616, %v766, 0.0
        %768 = vadd.xlane.f32.xlu0 %v767
        %v769 = vpop.xlane.xlu0 %768
        %v770 = vrcp.pop %v769
        %v771 = vmul.f32 %v766, %v770
        %v772 = vpack.c.bf16 %v771, %v771
        %773 = vrot.lane.b32.xlu0 %v652, 80
        %v774 = vpop.permute.xlu0 %773
        %v776 = vsel %vm616, %v772, 0
        %v779 = vsel %vm620, %v774, 0
        %781 = vmatpush.bf16.msra.mxu0 0
        %782 = vmatpush.bf16.msra.mxu0 0
        %783 = vmatpush.bf16.msra.mxu0 0
        %784 = vmatpush.bf16.msra.mxu0 0
        %785 = vmatpush.bf16.msra.mxu0 0
        %786 = vmatpush.bf16.msra.mxu0 0
        %787 = vmatpush.bf16.msra.mxu0 0
        %788 = vmatpush.bf16.msra.mxu0 %v779
        %789 = vmatmul.bf16.gmra.mxu0 %v776
        %v790 = vpop.f32.mrf.mxu0
        %v791 = vadd.f32 0.0, %v790
        %v792 = vpop.f32.mrf.mxu0
        %793 = vdwg.mxu0
        %795 = vrot.lane.b32.xlu0 %v791, 16
        %v796 = vpop.permute.xlu0 %795
        %vm798 = vcmask 195712
        %799 = vst.msk [vmem:[#allocation2] sm:$0xff] %vm798, %v796
        %800 = vrot.lane.b32.xlu0 %v677, 104
        %v801 = vpop.permute.xlu0 %800
        %v803 = vsel %vm616, %v801, 0
        %v806 = vsel %vm620, %v613, 0
        %808 = vmatpush.bf16.msra.mxu0 0
        %809 = vmatpush.bf16.msra.mxu0 0
        %810 = vmatpush.bf16.msra.mxu0 0
        %811 = vmatpush.bf16.msra.mxu0 0
        %812 = vmatpush.bf16.msra.mxu0 0
        %813 = vmatpush.bf16.msra.mxu0 0
        %814 = vmatpush.bf16.msra.mxu0 0
        %815 = vmatpush.bf16.msra.mxu0 %v806
        %816 = vmatmul.bf16.gmra.mxu0 %v803
        %v817 = vpop.f32.mrf.mxu0
        %v818 = vadd.f32 0.0, %v817
        %v819 = vpop.f32.mrf.mxu0
        %820 = vdwg.mxu0
        %v821 = vsel %vm577, %v818, -1e+09
        %v822 = vsel %vm616, %v821, -inf
        %823 = vmax.xlane.f32.xlu0 %v822
        %v824 = vpop.xlane.xlu0 %823
        %v825 = vsub.f32 %v821, %v824
        %v826 = vmul.f32 %v825, 1.442695
        %v827 = vpow.pop %v826
        %v828 = vsel %vm616, %v827, 0.0
        %829 = vadd.xlane.f32.xlu0 %v828
        %v830 = vpop.xlane.xlu0 %829
        %v831 = vrcp.pop %v830
        %v832 = vmul.f32 %v827, %v831
        %v833 = vpack.c.bf16 %v832, %v832
        %834 = vrot.lane.b32.xlu0 %v652, 72
        %v835 = vpop.permute.xlu0 %834
        %v837 = vsel %vm616, %v833, 0
        %v840 = vsel %vm620, %v835, 0
        %842 = vmatpush.bf16.msra.mxu0 0
        %843 = vmatpush.bf16.msra.mxu0 0
        %844 = vmatpush.bf16.msra.mxu0 0
        %845 = vmatpush.bf16.msra.mxu0 0
        %846 = vmatpush.bf16.msra.mxu0 0
        %847 = vmatpush.bf16.msra.mxu0 0
        %848 = vmatpush.bf16.msra.mxu0 0
        %849 = vmatpush.bf16.msra.mxu0 %v840
        %850 = vmatmul.bf16.gmra.mxu0 %v837
        %v851 = vpop.f32.mrf.mxu0
        %v852 = vadd.f32 0.0, %v851
        %v853 = vpop.f32.mrf.mxu0
        %854 = vdwg.mxu0
        %856 = vrot.lane.b32.xlu0 %v852, 24
        %v857 = vpop.permute.xlu0 %856
        %vm859 = vcmask 261312
        %860 = vst.msk [vmem:[#allocation2] sm:$0xff] %vm859, %v857
        %v861 = vld [vmem:[#allocation2] sm:$0xff]
        %v862 = vpack.c.bf16 %v861, %v861
        %v863 = vld [vmem:[%s8] sm:$0xf]
        %v864 = vld [vmem:[%s8 + $0x4] sm:$0xf]
        %v865 = vld [vmem:[%s8 + $0x8] sm:$0xf]
        %v866 = vld [vmem:[%s8 + $0xc] sm:$0xf]
        %v867 = vld [vmem:[%s9] sm:$0x1]
        %v869 = vperm.slane %v867, 0
        %v875 = vunpack.c.l.b16 %v863
        %v876 = vunpack.c.l.b16 %v864
        %v877 = vunpack.c.l.b16 %v865
        %v878 = vunpack.c.l.b16 %v866
        %v879 = vpack.c.b16 %v876, %v875
        %v880 = vpack.c.b16 %v878, %v877
        %v884 = vsel %vm511, %v862, 0
        %886 = vmatpush.bf16.msra.mxu0 0
        %887 = vmatpush.bf16.msra.mxu0 0
        %888 = vmatpush.bf16.msra.mxu0 0
        %889 = vmatpush.bf16.msra.mxu0 0
        %890 = vmatpush.bf16.msra.mxu0 0
        %891 = vmatpush.bf16.msra.mxu0 0
        %892 = vmatpush.bf16.msra.mxu0 %v880
        %893 = vmatpush.bf16.msra.mxu0 %v879
        %894 = vmatmul.bf16.gmra.mxu0 %v884
        %v895 = vpop.f32.mrf.mxu0
        %v896 = vadd.f32 %v869, %v895
        %v897 = vpop.f32.mrf.mxu0
        %898 = vdwg.mxu0
        %v899 = vadd.f32 %v488, %v896
        %v900 = vsel %vm511, %v899, 0.0
        %901 = vadd.xlane.f32.xlu0 %v900
        %v902 = vpop.xlane.xlu0 %901
        %v903 = vrcp.pop 32.0
        %v904 = vmul.f32 32.0, %v903
        %v905 = vsub.f32 1.0, %v904
        %v906 = vmul.f32 %v903, %v905
        %v907 = vadd.f32 %v903, %v906
        %vm908 = vweird.f32 %v903
        %v909 = vsel %vm908, %v903, %v907
        %v910 = vmul.f32 %v902, %v909
        %v911 = vsub.f32 %v899, %v910
        %v912 = vmul.f32 %v911, %v911
        %v913 = vsel %vm511, %v912, 0.0
        %914 = vadd.xlane.f32.xlu0 %v913
        %v915 = vpop.xlane.xlu0 %914
        %v916 = vmul.f32 %v915, %v909
        %v917 = vadd.f32 %v916, 1e-05
        %v918 = vrsqrt.pop %v917
        %v919 = vmul.f32 %v918, %v917
        %v920 = vmul.f32 %v919, %v918
        %v921 = vmul.f32 0.5, %v920
        %v922 = vsub.f32 1.5, %v921
        %v923 = vmul.f32 %v918, %v922
        %vm924 = vweird.f32 %v917
        %vm925 = vweird.f32 %v918
        %vm926 = vmor %vm924, %vm925
        %v927 = vsel %vm926, %v918, %v923
        %v928 = vmul.f32 %v911, %v927
        %v929 = vld [vmem:[#allocation3] sm:$0x1]
        %v931 = vperm.slane %v929, 0
        %v933 = vmul.f32 %v928, %v931
        %v934 = vld [vmem:[#allocation5] sm:$0x1]
        %v936 = vperm.slane %v934, 0
        %v938 = vadd.f32 %v933, %v936
        %939 = vst.msk [vmem:[%s486] sm:$0xff] %vm511, %v938
        %p940 = scmp.lt.s32.totalorder %s25, 1
        %s941 = scalar_select %p940, %s25, 1
        %s942 = smul.addr %s941, 8
        %s943 = scalar_lea.vmem %s12, %s942
        // Predicated region
        $region77: #{transformer_forward.16} parent=67 // pred_check
          %p944 = pneg %p315
        $region78: #{transformer_forward.16} parent=67 // pred_check_branch
          %946 = sbr.rel (%p944) target = $region80
        $region79: #{transformer_forward.16} parent=67 // pred_region
          _
        $region80: #{transformer_forward.16} parent=67 // pred_fallthru
          _
      $region68: #{transformer_forward.16} parent=5 // pred_fallthru
        _
      %p947 = scmp.le.s32.totalorder 2, %s20
      // Predicated region
      $region81: #{transformer_forward.16} parent=5 // pred_check
        %p948 = pneg %p947
      $region82: #{transformer_forward.16} parent=5 // pred_check_branch
        %950 = sbr.rel (%p948) target = $region84
      $region83: #{transformer_forward.16} parent=5 // pred_region
        %s951 = ssub.s32 %s20, 2
        // Predicated region
        $region85: #{transformer_forward.16} parent=83 // pred_check
          %p952 = pneg %p321
        $region86: #{transformer_forward.16} parent=83 // pred_check_branch
          %954 = sbr.rel (%p952) target = $region88
        $region87: #{transformer_forward.16} parent=83 // pred_region
          %p955 = scmp.lt.s32.totalorder %s26, 1
          %s956 = scalar_select %p955, %s26, 1
          %s957 = smul.addr %s956, 8
          %s958 = scalar_lea.vmem %s12, %s957
        $region88: #{transformer_forward.16} parent=83 // pred_fallthru
          _
      $region84: #{transformer_forward.16} parent=5 // pred_fallthru
        _
    $region6: #{transformer_forward.16} parent=1 // loop_footer
      %s24 = sadd.s32 1, %s20
    $region7: #{transformer_forward.16} parent=1 // loop_footer_branch
      %19 = sbr.rel target = $region3
    $region8: #{transformer_forward.16} parent=1 // loop_exit
      _
    %959 = vsyncpa [#allocation4], 1
    %s960 = scalar_lea.sflag [#allocation4], 1
    %961 = vsyncpa %s960, 1
    %962 = vsyncpa [#allocation6], 1

// kernel: transformer_forward.17
$region0: #{transformer_forward.17}
  #allocation0 [shape = 'u32[]', space=smem, size = 0x4, offset = 0x4, fixed_abs, tag = 'smem constant byte address 0x4 - core index']
  #allocation1 [shape = 'u32[72,128]{1,0:T(1,128)}', space=vmem, size = 0x9000, scoped, tag = 'internal scratch']
  %s0 = inlined_call_operand.vmem [shape: f32[16,32], index: 0, kind: input, shape index: {}]
  %s1 = inlined_call_operand.vmem [shape: bf16[32,64], index: 1, kind: input, shape index: {}]
  %s2 = inlined_call_operand.vmem [shape: f32[1,64], index: 2, kind: input, shape index: {}]
  %s3 = inlined_call_operand.vmem [shape: bf16[64,32], index: 3, kind: input, shape index: {}]
  %s4 = inlined_call_operand.hbm [shape: f32[1,32], index: 4, kind: input, shape index: {}]
  %s5 = inlined_call_operand.hbm [shape: f32[1,32], index: 5, kind: input, shape index: {}]
  %s6 = inlined_call_operand.hbm [shape: f32[1,32], index: 6, kind: input, shape index: {}]
  %s7 = inlined_call_operand.vmem [shape: f32[16,32], index: 7, kind: output, shape index: {}]
  %s8 = sld [smem:[#allocation0]]
  $region50: #{transformer_forward.17} parent=0
    _
  %s10 = ssub.s32 1, %s8
  %s11 = scalar_select 0, %s10, %s8
  $region1: #{transformer_forward.17} parent=0
    #allocation2 [shape = 'u8[512]{0}', space=vmem, size = 0x400, scoped, tag = 'input window, operand 4, single buffered']
    #allocation3 [shape = 's32[1]{0}', space=sflag, size = 0x4, scoped, tag = 'scoped memory for transformer_forward.17']
    #allocation4 [shape = 'u8[512]{0}', space=vmem, size = 0x400, scoped, tag = 'input window, operand 5, single buffered']
    #allocation5 [shape = 's32[1]{0}', space=sflag, size = 0x4, scoped, tag = 'scoped memory for transformer_forward.17']
    #allocation6 [shape = 'u8[512]{0}', space=vmem, size = 0x400, scoped, tag = 'input window, operand 6, single buffered']
    %12 = vsyncpa [#allocation3], 0
    %13 = vsyncpa [#allocation5], 0
    // Predicated region
    $region2: #{transformer_forward.17} parent=1 // pred_check
      _
    $region3: #{transformer_forward.17} parent=1 // pred_check_branch
      %15 = sbr.rel (0) target = $region5
    $region4: #{transformer_forward.17} parent=1 // pred_region
      _
    $region5: #{transformer_forward.17} parent=1 // pred_fallthru
      _
    // Predicated region
    $region6: #{transformer_forward.17} parent=1 // pred_check
      _
    $region7: #{transformer_forward.17} parent=1 // pred_check_branch
      %17 = sbr.rel (0) target = $region9
    $region8: #{transformer_forward.17} parent=1 // pred_region
      _
    $region9: #{transformer_forward.17} parent=1 // pred_fallthru
      _
    // Predicated region
    $region10: #{transformer_forward.17} parent=1 // pred_check
      _
    $region11: #{transformer_forward.17} parent=1 // pred_check_branch
      %19 = sbr.rel (0) target = $region13
    $region12: #{transformer_forward.17} parent=1 // pred_region
      _
    $region13: #{transformer_forward.17} parent=1 // pred_fallthru
      _
    // Predicated region
    $region14: #{transformer_forward.17} parent=1 // pred_check
      _
    $region15: #{transformer_forward.17} parent=1 // pred_check_branch
      %21 = sbr.rel (0) target = $region17
    $region16: #{transformer_forward.17} parent=1 // pred_region
      _
    $region17: #{transformer_forward.17} parent=1 // pred_fallthru
      _
    // Predicated region
    $region18: #{transformer_forward.17} parent=1 // pred_check
      _
    $region19: #{transformer_forward.17} parent=1 // pred_check_branch
      %23 = sbr.rel (0) target = $region21
    $region20: #{transformer_forward.17} parent=1 // pred_region
      %25 = vsyncadd [#allocation3], 0
      %s27 = sshll.u32 %s4, 4
      %s28 = int_to_ptr.hbm [resolvable:$true] %s27
      %s29 = sshll.u32 [#allocation2], 4
      %s30 = int_to_ptr.vmem [resolvable:$true] %s29
      %32 = dma.hbm_to_vmem [thread:$0]  %s28, 16, %s30, [#allocation3]
    $region21: #{transformer_forward.17} parent=1 // pred_fallthru
      _
    // Predicated region
    $region22: #{transformer_forward.17} parent=1 // pred_check
      _
    $region23: #{transformer_forward.17} parent=1 // pred_check_branch
      %34 = sbr.rel (0) target = $region25
    $region24: #{transformer_forward.17} parent=1 // pred_region
      %36 = vsyncadd [#allocation5], 0
      %s38 = sshll.u32 %s5, 4
      %s39 = int_to_ptr.hbm [resolvable:$true] %s38
      %s40 = sshll.u32 [#allocation4], 4
      %s41 = int_to_ptr.vmem [resolvable:$true] %s40
      %43 = dma.hbm_to_vmem [thread:$0]  %s39, 16, %s41, [#allocation5]
    $region25: #{transformer_forward.17} parent=1 // pred_fallthru
      _
    // Predicated region
    $region26: #{transformer_forward.17} parent=1 // pred_check
      _
    $region27: #{transformer_forward.17} parent=1 // pred_check_branch
      %45 = sbr.rel (0) target = $region29
    $region28: #{transformer_forward.17} parent=1 // pred_region
      %47 = vsyncadd [#allocation5], 0
      %s49 = sshll.u32 %s6, 4
      %s50 = int_to_ptr.hbm [resolvable:$true] %s49
      %s51 = sshll.u32 [#allocation6], 4
      %s52 = int_to_ptr.vmem [resolvable:$true] %s51
      %54 = dma.hbm_to_vmem [thread:$0]  %s50, 16, %s52, [#allocation5]
    $region29: #{transformer_forward.17} parent=1 // pred_fallthru
      _
    // Predicated region
    $region30: #{transformer_forward.17} parent=1 // pred_check
      _
    $region31: #{transformer_forward.17} parent=1 // pred_check_branch
      %56 = sbr.rel (0) target = $region33
    $region32: #{transformer_forward.17} parent=1 // pred_region
      %58 = dma.done [#allocation3], 16
    $region33: #{transformer_forward.17} parent=1 // pred_fallthru
      _
    // Predicated region
    $region34: #{transformer_forward.17} parent=1 // pred_check
      _
    $region35: #{transformer_forward.17} parent=1 // pred_check_branch
      %60 = sbr.rel (0) target = $region37
    $region36: #{transformer_forward.17} parent=1 // pred_region
      %62 = dma.done [#allocation5], 16
    $region37: #{transformer_forward.17} parent=1 // pred_fallthru
      _
    // Predicated region
    $region38: #{transformer_forward.17} parent=1 // pred_check
      _
    $region39: #{transformer_forward.17} parent=1 // pred_check_branch
      %64 = sbr.rel (0) target = $region41
    $region40: #{transformer_forward.17} parent=1 // pred_region
      %66 = dma.done [#allocation5], 16
    $region41: #{transformer_forward.17} parent=1 // pred_fallthru
      _
    %v68 = vld [vmem:[%s0] sm:$0xff]
    %v69 = vld [vmem:[%s0 + $0x8] sm:$0xff]
    %v70 = vpack.c.bf16 %v69, %v68
    %v71 = vld [vmem:[%s1] sm:$0xf]
    %v72 = vld [vmem:[%s1 + $0x4] sm:$0xf]
    %v73 = vld [vmem:[%s1 + $0x8] sm:$0xf]
    %v74 = vld [vmem:[%s1 + $0xc] sm:$0xf]
    %v75 = vld [vmem:[%s2] sm:$0x1]
    %v77 = vperm.slane %v75, 0
    %v83 = vunpack.c.l.b16 %v71
    %v84 = vunpack.c.l.b16 %v72
    %v85 = vunpack.c.l.b16 %v73
    %v86 = vunpack.c.l.b16 %v74
    %v87 = vpack.c.b16 %v84, %v83
    %v88 = vpack.c.b16 %v86, %v85
    %vm91 = vcmask 261120
    %v93 = vsel %vm91, %v70, 0
    %95 = vmatpush.bf16.msra.mxu0 0
    %96 = vmatpush.bf16.msra.mxu0 0
    %97 = vmatpush.bf16.msra.mxu0 0
    %98 = vmatpush.bf16.msra.mxu0 0
    %99 = vmatpush.bf16.msra.mxu0 0
    %100 = vmatpush.bf16.msra.mxu0 0
    %101 = vmatpush.bf16.msra.mxu0 %v88
    %102 = vmatpush.bf16.msra.mxu0 %v87
    %103 = vmatmul.bf16.gmra.mxu0 %v93
    %v104 = vpop.f32.mrf.mxu0
    %v105 = vadd.f32 %v77, %v104
    %v106 = vpop.f32.mrf.mxu0
    %v107 = vadd.f32 %v77, %v106
    %108 = vdwg.mxu0
    %v109 = vmax.f32 %v105, 0.0
    %v110 = vmax.f32 %v107, 0.0
    %v111 = vpack.c.bf16 %v110, %v109
    %v112 = vld [vmem:[%s3] sm:$0xf]
    %v113 = vld [vmem:[%s3 + $0x4] sm:$0xf]
    %v114 = vld [vmem:[%s3 + $0x8] sm:$0xf]
    %v115 = vld [vmem:[%s3 + $0xc] sm:$0xf]
    %v116 = vld [vmem:[%s3 + $0x10] sm:$0xf]
    %v117 = vld [vmem:[%s3 + $0x14] sm:$0xf]
    %v118 = vld [vmem:[%s3 + $0x18] sm:$0xf]
    %v119 = vld [vmem:[%s3 + $0x1c] sm:$0xf]
    %v120 = vld [vmem:[#allocation2] sm:$0x1]
    %v122 = vperm.slane %v120, 0
    %v132 = vunpack.c.l.b16 %v112
    %v133 = vunpack.c.l.b16 %v113
    %v134 = vunpack.c.l.b16 %v114
    %v135 = vunpack.c.l.b16 %v115
    %v136 = vunpack.c.l.b16 %v116
    %v137 = vunpack.c.l.b16 %v117
    %v138 = vunpack.c.l.b16 %v118
    %v139 = vunpack.c.l.b16 %v119
    %v140 = vpack.c.b16 %v133, %v132
    %v141 = vpack.c.b16 %v135, %v134
    %v142 = vpack.c.b16 %v137, %v136
    %v143 = vpack.c.b16 %v139, %v138
    %vm148 = vcmask 523264
    %v150 = vsel %vm148, %v111, 0
    %152 = vmatpush.bf16.msra.mxu0 0
    %153 = vmatpush.bf16.msra.mxu0 0
    %154 = vmatpush.bf16.msra.mxu0 0
    %155 = vmatpush.bf16.msra.mxu0 0
    %156 = vmatpush.bf16.msra.mxu0 %v143
    %157 = vmatpush.bf16.msra.mxu0 %v142
    %158 = vmatpush.bf16.msra.mxu0 %v141
    %159 = vmatpush.bf16.msra.mxu0 %v140
    %160 = vmatmul.bf16.gmra.mxu0 %v150
    %v161 = vpop.f32.mrf.mxu0
    %v162 = vadd.f32 %v122, %v161
    %v163 = vpop.f32.mrf.mxu0
    %v164 = vadd.f32 %v122, %v163
    %165 = vdwg.mxu0
    %v166 = vadd.f32 %v68, %v162
    %v167 = vadd.f32 %v69, %v164
    %v168 = vsel %vm91, %v166, 0.0
    %169 = vadd.xlane.f32.xlu0 %v168
    %v170 = vpop.xlane.xlu0 %169
    %v171 = vsel %vm91, %v167, 0.0
    %172 = vadd.xlane.f32.xlu0 %v171
    %v173 = vpop.xlane.xlu0 %172
    %v174 = vrcp.pop 32.0
    %v175 = vmul.f32 32.0, %v174
    %v176 = vsub.f32 1.0, %v175
    %v177 = vmul.f32 %v174, %v176
    %v178 = vadd.f32 %v174, %v177
    %vm179 = vweird.f32 %v174
    %v180 = vsel %vm179, %v174, %v178
    %v181 = vmul.f32 %v170, %v180
    %v182 = vmul.f32 %v173, %v180
    %v183 = vsub.f32 %v166, %v181
    %v184 = vsub.f32 %v167, %v182
    %v185 = vmul.f32 %v183, %v183
    %v186 = vmul.f32 %v184, %v184
    %v187 = vsel %vm91, %v185, 0.0
    %188 = vadd.xlane.f32.xlu0 %v187
    %v189 = vpop.xlane.xlu0 %188
    %v190 = vsel %vm91, %v186, 0.0
    %191 = vadd.xlane.f32.xlu0 %v190
    %v192 = vpop.xlane.xlu0 %191
    %v193 = vmul.f32 %v189, %v180
    %v194 = vmul.f32 %v192, %v180
    %v195 = vadd.f32 %v193, 1e-05
    %v196 = vadd.f32 %v194, 1e-05
    %v197 = vrsqrt.pop %v195
    %v198 = vmul.f32 %v197, %v195
    %v199 = vmul.f32 %v198, %v197
    %v200 = vmul.f32 0.5, %v199
    %v201 = vsub.f32 1.5, %v200
    %v202 = vmul.f32 %v197, %v201
    %vm203 = vweird.f32 %v195
    %vm204 = vweird.f32 %v197
    %vm205 = vmor %vm203, %vm204
    %v206 = vsel %vm205, %v197, %v202
    %v207 = vrsqrt.pop %v196
    %v208 = vmul.f32 %v207, %v196
    %v209 = vmul.f32 %v208, %v207
    %v210 = vmul.f32 0.5, %v209
    %v211 = vsub.f32 1.5, %v210
    %v212 = vmul.f32 %v207, %v211
    %vm213 = vweird.f32 %v196
    %vm214 = vweird.f32 %v207
    %vm215 = vmor %vm213, %vm214
    %v216 = vsel %vm215, %v207, %v212
    %v217 = vmul.f32 %v183, %v206
    %v218 = vmul.f32 %v184, %v216
    %v219 = vld [vmem:[#allocation4] sm:$0x1]
    %v221 = vperm.slane %v219, 0
    %v223 = vmul.f32 %v217, %v221
    %v224 = vmul.f32 %v218, %v221
    %v225 = vld [vmem:[#allocation6] sm:$0x1]
    %v227 = vperm.slane %v225, 0
    %v229 = vadd.f32 %v223, %v227
    %v230 = vadd.f32 %v224, %v227
    %231 = vst.msk [vmem:[%s7] sm:$0xff] %vm91, %v229
    %232 = vst.msk [vmem:[%s7 + $0x8] sm:$0xff] %vm91, %v230
    // Predicated region
    $region42: #{transformer_forward.17} parent=1 // pred_check
      _
    $region43: #{transformer_forward.17} parent=1 // pred_check_branch
      %234 = sbr.rel (0) target = $region45
    $region44: #{transformer_forward.17} parent=1 // pred_region
      _
    $region45: #{transformer_forward.17} parent=1 // pred_fallthru
      _
    // Predicated region
    $region46: #{transformer_forward.17} parent=1 // pred_check
      _
    $region47: #{transformer_forward.17} parent=1 // pred_check_branch
      %236 = sbr.rel (0) target = $region49
    $region48: #{transformer_forward.17} parent=1 // pred_region
      _
    $region49: #{transformer_forward.17} parent=1 // pred_fallthru
      _
    %237 = vsyncpa [#allocation3], 1
    %238 = vsyncpa [#allocation5], 1

// kernel: transformer_forward.18
$region0: #{transformer_forward.18}
  #allocation0 [shape = 'u32[]', space=smem, size = 0x4, offset = 0x4, fixed_abs, tag = 'smem constant byte address 0x4 - core index']
  #allocation1 [shape = 'u32[72,128]{1,0:T(1,128)}', space=vmem, size = 0x9000, scoped, tag = 'internal scratch']
  #allocation2 [shape = 'f32[8,32]{1,0:T(8,128)}', space=vmem, size = 0x1000, scoped, tag = 'scratch operand']
  %s0 = inlined_call_operand.vmem [shape: f32[2,8,32], index: 0, kind: input, shape index: {}]
  %s1 = inlined_call_operand.vmem [shape: f32[2,8,1], index: 1, kind: input, shape index: {}]
  %s2 = inlined_call_operand.vmem [shape: f32[2,1,8], index: 2, kind: input, shape index: {}]
  %s3 = inlined_call_operand.vmem [shape: bf16[32,96], index: 3, kind: input, shape index: {}]
  %s4 = inlined_call_operand.hbm [shape: f32[1,96], index: 4, kind: input, shape index: {}]
  %s5 = inlined_call_operand.vmem [shape: bf16[32,32], index: 5, kind: input, shape index: {}]
  %s6 = inlined_call_operand.hbm [shape: f32[1,32], index: 6, kind: input, shape index: {}]
  %s7 = inlined_call_operand.hbm [shape: f32[1,32], index: 7, kind: input, shape index: {}]
  %s8 = inlined_call_operand.hbm [shape: f32[1,32], index: 8, kind: input, shape index: {}]
  %s9 = inlined_call_operand.vmem [shape: f32[2,8,32], index: 9, kind: output, shape index: {}]
  %s10 = sld [smem:[#allocation0]]
  $region85: #{transformer_forward.18} parent=0
    _
  %s12 = ssub.s32 1, %s10
  %s13 = scalar_select 0, %s12, %s10
  $region1: #{transformer_forward.18} parent=0
    #allocation3 [shape = 'u8[512]{0}', space=vmem, size = 0x400, scoped, tag = 'input window, operand 4, single buffered']
    #allocation4 [shape = 's32[2]{0}', space=sflag, size = 0x8, scoped, tag = 'scoped memory for transformer_forward.18']
    #allocation5 [shape = 'u8[512]{0}', space=vmem, size = 0x400, scoped, tag = 'input window, operand 6, single buffered']
    #allocation6 [shape = 's32[1]{0}', space=sflag, size = 0x4, scoped, tag = 'scoped memory for transformer_forward.18']
    #allocation7 [shape = 'u8[512]{0}', space=vmem, size = 0x400, scoped, tag = 'input window, operand 7, single buffered']
    #allocation8 [shape = 'u8[512]{0}', space=vmem, size = 0x400, scoped, tag = 'input window, operand 8, single buffered']
    #allocation9 [shape = 's32[1]{0}', space=sflag, size = 0x4, scoped, tag = 'scoped memory for transformer_forward.18']
    %14 = vsyncpa [#allocation4], 0
    %15 = vsyncpa [#allocation6], 0
    %16 = vsyncpa [#allocation9], 0
    loop: start=0, step=1, limit=4
    $region2: #{transformer_forward.18} parent=1 // loop_pre_header
      _
    $region3: #{transformer_forward.18} parent=1 // loop_header
      %s18 = sphi 0, %s22
      %p19 = scmp.ge.s32.totalorder %s18, 4
      %s28 = sphi 0, %s30
      %s31 = sphi 0, %s28
      %s32 = sphi 0, %s31
      %s48 = sphi 0, %s32
      %s54 = sphi 0, %s56
      %s57 = sphi 0, %s54
      %s58 = sphi 0, %s57
      %s74 = sphi 0, %s58
      %s80 = sphi 0, %s82
      %s83 = sphi 0, %s80
      %s84 = sphi 0, %s83
      %s100 = sphi 0, %s84
      %s104 = sphi 0, %s104
      %s106 = sphi 0, %s104
      %s107 = sphi 0, %s106
      %s121 = sphi 0, %s107
      %s125 = sphi 0, %s125
      %s127 = sphi 0, %s125
      %s128 = sphi 0, %s127
      %s142 = sphi 0, %s128
      %s146 = sphi 0, %s146
      %s148 = sphi 0, %s146
      %s149 = sphi 0, %s148
      %s163 = sphi 0, %s149
      %s167 = sphi 0, %s167
      %s169 = sphi 0, %s167
      %s170 = sphi 0, %s169
      %s184 = sphi 0, %s170
      %s188 = sphi 0, %s188
      %s190 = sphi 0, %s188
      %s191 = sphi 0, %s190
      %s205 = sphi 0, %s191
      %s209 = sphi 0, %s209
      %s211 = sphi 0, %s209
      %s212 = sphi 0, %s211
      %s226 = sphi 0, %s212
      %s232 = sphi 0, %s234
      %s235 = sphi 0, %s232
      %s236 = sphi 0, %s235
      %s252 = sphi 0, %s236
    $region4: #{transformer_forward.18} parent=1 // loop_header_branch
      %21 = sbr.rel (%p19) target = $region8
    $region5: #{transformer_forward.18} parent=1 // loop_body
      %s23 = ssub.s32 %s18, 1
      %s24 = ssub.s32 %s18, 2
      %s25 = sadd.s32 %s18, 1
      %s26 = ssub.s32 %s18, %s25
      %p27 = scmp.eq.s32.totalorder %s26, 0
      %s29 = sadd.s32 %s28, 1
      %s30 = scalar_select %p27, %s28, %s29
      %p33 = pneg %p27
      %p34 = scmp.eq.s32.totalorder %s18, 1
      %p35 = por %p33, %p34
      %p36 = scmp.ne.s32.totalorder %s28, %s31
      %p37 = scmp.eq.s32.totalorder %s18, 0
      %p38 = por %p36, %p37
      %p39 = scmp.ne.s32.totalorder %s28, %s31
      %p40 = scmp.eq.s32.totalorder %s23, 1
      %p41 = por %p39, %p40
      %p42 = scmp.ne.s32.totalorder %s31, %s32
      %p43 = scmp.eq.s32.totalorder %s23, 0
      %p44 = por %p42, %p43
      %p45 = scmp.ne.s32.totalorder %s31, %s32
      %p46 = scmp.eq.s32.totalorder %s24, 1
      %p47 = por %p45, %p46
      %p49 = scmp.ne.s32.totalorder %s32, %s48
      %p50 = scmp.eq.s32.totalorder %s24, 0
      %p51 = por %p49, %p50
      %s52 = ssub.s32 %s18, %s25
      %p53 = scmp.eq.s32.totalorder %s52, 0
      %s55 = sadd.s32 %s54, 1
      %s56 = scalar_select %p53, %s54, %s55
      %p59 = pneg %p53
      %p60 = scmp.eq.s32.totalorder %s18, 1
      %p61 = por %p59, %p60
      %p62 = scmp.ne.s32.totalorder %s54, %s57
      %p63 = scmp.eq.s32.totalorder %s18, 0
      %p64 = por %p62, %p63
      %p65 = scmp.ne.s32.totalorder %s54, %s57
      %p66 = scmp.eq.s32.totalorder %s23, 1
      %p67 = por %p65, %p66
      %p68 = scmp.ne.s32.totalorder %s57, %s58
      %p69 = scmp.eq.s32.totalorder %s23, 0
      %p70 = por %p68, %p69
      %p71 = scmp.ne.s32.totalorder %s57, %s58
      %p72 = scmp.eq.s32.totalorder %s24, 1
      %p73 = por %p71, %p72
      %p75 = scmp.ne.s32.totalorder %s58, %s74
      %p76 = scmp.eq.s32.totalorder %s24, 0
      %p77 = por %p75, %p76
      %s78 = ssub.s32 %s18, %s25
      %p79 = scmp.eq.s32.totalorder %s78, 0
      %s81 = sadd.s32 %s80, 1
      %s82 = scalar_select %p79, %s80, %s81
      %p85 = pneg %p79
      %p86 = scmp.eq.s32.totalorder %s18, 1
      %p87 = por %p85, %p86
      %p88 = scmp.ne.s32.totalorder %s80, %s83
      %p89 = scmp.eq.s32.totalorder %s18, 0
      %p90 = por %p88, %p89
      %p91 = scmp.ne.s32.totalorder %s80, %s83
      %p92 = scmp.eq.s32.totalorder %s23, 1
      %p93 = por %p91, %p92
      %p94 = scmp.ne.s32.totalorder %s83, %s84
      %p95 = scmp.eq.s32.totalorder %s23, 0
      %p96 = por %p94, %p95
      %p97 = scmp.ne.s32.totalorder %s83, %s84
      %p98 = scmp.eq.s32.totalorder %s24, 1
      %p99 = por %p97, %p98
      %p101 = scmp.ne.s32.totalorder %s84, %s100
      %p102 = scmp.eq.s32.totalorder %s24, 0
      %p103 = por %p101, %p102
      %s105 = sadd.s32 %s104, 1
      %p108 = scmp.eq.s32.totalorder %s18, 1
      %p109 = scmp.ne.s32.totalorder %s104, %s106
      %p110 = scmp.eq.s32.totalorder %s18, 0
      %p111 = por %p109, %p110
      %p112 = scmp.ne.s32.totalorder %s104, %s106
      %p113 = scmp.eq.s32.totalorder %s23, 1
      %p114 = por %p112, %p113
      %p115 = scmp.ne.s32.totalorder %s106, %s107
      %p116 = scmp.eq.s32.totalorder %s23, 0
      %p117 = por %p115, %p116
      %p118 = scmp.ne.s32.totalorder %s106, %s107
      %p119 = scmp.eq.s32.totalorder %s24, 1
      %p120 = por %p118, %p119
      %p122 = scmp.ne.s32.totalorder %s107, %s121
      %p123 = scmp.eq.s32.totalorder %s24, 0
      %p124 = por %p122, %p123
      %s126 = sadd.s32 %s125, 1
      %p129 = scmp.eq.s32.totalorder %s18, 1
      %p130 = scmp.ne.s32.totalorder %s125, %s127
      %p131 = scmp.eq.s32.totalorder %s18, 0
      %p132 = por %p130, %p131
      %p133 = scmp.ne.s32.totalorder %s125, %s127
      %p134 = scmp.eq.s32.totalorder %s23, 1
      %p135 = por %p133, %p134
      %p136 = scmp.ne.s32.totalorder %s127, %s128
      %p137 = scmp.eq.s32.totalorder %s23, 0
      %p138 = por %p136, %p137
      %p139 = scmp.ne.s32.totalorder %s127, %s128
      %p140 = scmp.eq.s32.totalorder %s24, 1
      %p141 = por %p139, %p140
      %p143 = scmp.ne.s32.totalorder %s128, %s142
      %p144 = scmp.eq.s32.totalorder %s24, 0
      %p145 = por %p143, %p144
      %s147 = sadd.s32 %s146, 1
      %p150 = scmp.eq.s32.totalorder %s18, 1
      %p151 = scmp.ne.s32.totalorder %s146, %s148
      %p152 = scmp.eq.s32.totalorder %s18, 0
      %p153 = por %p151, %p152
      %p154 = scmp.ne.s32.totalorder %s146, %s148
      %p155 = scmp.eq.s32.totalorder %s23, 1
      %p156 = por %p154, %p155
      %p157 = scmp.ne.s32.totalorder %s148, %s149
      %p158 = scmp.eq.s32.totalorder %s23, 0
      %p159 = por %p157, %p158
      %p160 = scmp.ne.s32.totalorder %s148, %s149
      %p161 = scmp.eq.s32.totalorder %s24, 1
      %p162 = por %p160, %p161
      %p164 = scmp.ne.s32.totalorder %s149, %s163
      %p165 = scmp.eq.s32.totalorder %s24, 0
      %p166 = por %p164, %p165
      %s168 = sadd.s32 %s167, 1
      %p171 = scmp.eq.s32.totalorder %s18, 1
      %p172 = scmp.ne.s32.totalorder %s167, %s169
      %p173 = scmp.eq.s32.totalorder %s18, 0
      %p174 = por %p172, %p173
      %p175 = scmp.ne.s32.totalorder %s167, %s169
      %p176 = scmp.eq.s32.totalorder %s23, 1
      %p177 = por %p175, %p176
      %p178 = scmp.ne.s32.totalorder %s169, %s170
      %p179 = scmp.eq.s32.totalorder %s23, 0
      %p180 = por %p178, %p179
      %p181 = scmp.ne.s32.totalorder %s169, %s170
      %p182 = scmp.eq.s32.totalorder %s24, 1
      %p183 = por %p181, %p182
      %p185 = scmp.ne.s32.totalorder %s170, %s184
      %p186 = scmp.eq.s32.totalorder %s24, 0
      %p187 = por %p185, %p186
      %s189 = sadd.s32 %s188, 1
      %p192 = scmp.eq.s32.totalorder %s18, 1
      %p193 = scmp.ne.s32.totalorder %s188, %s190
      %p194 = scmp.eq.s32.totalorder %s18, 0
      %p195 = por %p193, %p194
      %p196 = scmp.ne.s32.totalorder %s188, %s190
      %p197 = scmp.eq.s32.totalorder %s23, 1
      %p198 = por %p196, %p197
      %p199 = scmp.ne.s32.totalorder %s190, %s191
      %p200 = scmp.eq.s32.totalorder %s23, 0
      %p201 = por %p199, %p200
      %p202 = scmp.ne.s32.totalorder %s190, %s191
      %p203 = scmp.eq.s32.totalorder %s24, 1
      %p204 = por %p202, %p203
      %p206 = scmp.ne.s32.totalorder %s191, %s205
      %p207 = scmp.eq.s32.totalorder %s24, 0
      %p208 = por %p206, %p207
      %s210 = sadd.s32 %s209, 1
      %p213 = scmp.eq.s32.totalorder %s18, 1
      %p214 = scmp.ne.s32.totalorder %s209, %s211
      %p215 = scmp.eq.s32.totalorder %s18, 0
      %p216 = por %p214, %p215
      %p217 = scmp.ne.s32.totalorder %s209, %s211
      %p218 = scmp.eq.s32.totalorder %s23, 1
      %p219 = por %p217, %p218
      %p220 = scmp.ne.s32.totalorder %s211, %s212
      %p221 = scmp.eq.s32.totalorder %s23, 0
      %p222 = por %p220, %p221
      %p223 = scmp.ne.s32.totalorder %s211, %s212
      %p224 = scmp.eq.s32.totalorder %s24, 1
      %p225 = por %p223, %p224
      %p227 = scmp.ne.s32.totalorder %s212, %s226
      %p228 = scmp.eq.s32.totalorder %s24, 0
      %p229 = por %p227, %p228
      %s230 = ssub.s32 %s18, %s25
      %p231 = scmp.eq.s32.totalorder %s230, 0
      %s233 = sadd.s32 %s232, 1
      %s234 = scalar_select %p231, %s232, %s233
      %p237 = pneg %p231
      %p238 = scmp.eq.s32.totalorder %s18, 1
      %p239 = por %p237, %p238
      %p240 = scmp.ne.s32.totalorder %s232, %s235
      %p241 = scmp.eq.s32.totalorder %s18, 0
      %p242 = por %p240, %p241
      %p243 = scmp.ne.s32.totalorder %s232, %s235
      %p244 = scmp.eq.s32.totalorder %s23, 1
      %p245 = por %p243, %p244
      %p246 = scmp.ne.s32.totalorder %s235, %s236
      %p247 = scmp.eq.s32.totalorder %s23, 0
      %p248 = por %p246, %p247
      %p249 = scmp.ne.s32.totalorder %s235, %s236
      %p250 = scmp.eq.s32.totalorder %s24, 1
      %p251 = por %p249, %p250
      %p253 = scmp.ne.s32.totalorder %s236, %s252
      %p254 = scmp.eq.s32.totalorder %s24, 0
      %p255 = por %p253, %p254
      %p256 = scmp.le.s32.totalorder 1, %s18
      %p257 = scmp.lt.s32.totalorder %s18, 3
      %p258 = pnand %p256, %p257
      %p259 = pneg %p258
      // Predicated region
      $region9: #{transformer_forward.18} parent=5 // pred_check
        _
      $region10: #{transformer_forward.18} parent=5 // pred_check_branch
        %261 = sbr.rel (%p258) target = $region12
      $region11: #{transformer_forward.18} parent=5 // pred_region
        %s262 = ssub.s32 %s18, 1
        // Predicated region
        $region13: #{transformer_forward.18} parent=11 // pred_check
          %p263 = pneg %p117
        $region14: #{transformer_forward.18} parent=11 // pred_check_branch
          %265 = sbr.rel (%p263) target = $region16
        $region15: #{transformer_forward.18} parent=11 // pred_region
          _
        $region16: #{transformer_forward.18} parent=11 // pred_fallthru
          _
        // Predicated region
        $region17: #{transformer_forward.18} parent=11 // pred_check
          %p266 = pneg %p138
        $region18: #{transformer_forward.18} parent=11 // pred_check_branch
          %268 = sbr.rel (%p266) target = $region20
        $region19: #{transformer_forward.18} parent=11 // pred_region
          %270 = vsyncadd [#allocation4], 0
          %s272 = sshll.u32 %s4, 4
          %s273 = int_to_ptr.hbm [resolvable:$true] %s272
          %s274 = sshll.u32 [#allocation3], 4
          %s275 = int_to_ptr.vmem [resolvable:$true] %s274
          %277 = dma.hbm_to_vmem [thread:$0]  %s273, 16, %s275, [#allocation4]
        $region20: #{transformer_forward.18} parent=11 // pred_fallthru
          _
        // Predicated region
        $region21: #{transformer_forward.18} parent=11 // pred_check
          %p278 = pneg %p159
        $region22: #{transformer_forward.18} parent=11 // pred_check_branch
          %280 = sbr.rel (%p278) target = $region24
        $region23: #{transformer_forward.18} parent=11 // pred_region
          _
        $region24: #{transformer_forward.18} parent=11 // pred_fallthru
          _
        // Predicated region
        $region25: #{transformer_forward.18} parent=11 // pred_check
          %p281 = pneg %p180
        $region26: #{transformer_forward.18} parent=11 // pred_check_branch
          %283 = sbr.rel (%p281) target = $region28
        $region27: #{transformer_forward.18} parent=11 // pred_region
          %285 = vsyncadd [#allocation6], 0
          %s287 = sshll.u32 %s6, 4
          %s288 = int_to_ptr.hbm [resolvable:$true] %s287
          %s289 = sshll.u32 [#allocation5], 4
          %s290 = int_to_ptr.vmem [resolvable:$true] %s289
          %292 = dma.hbm_to_vmem [thread:$0]  %s288, 16, %s290, [#allocation6]
        $region28: #{transformer_forward.18} parent=11 // pred_fallthru
          _
        // Predicated region
        $region29: #{transformer_forward.18} parent=11 // pred_check
          %p293 = pneg %p201
        $region30: #{transformer_forward.18} parent=11 // pred_check_branch
          %295 = sbr.rel (%p293) target = $region32
        $region31: #{transformer_forward.18} parent=11 // pred_region
          %297 = vsyncadd [#allocation6], 0
          %s299 = sshll.u32 %s7, 4
          %s300 = int_to_ptr.hbm [resolvable:$true] %s299
          %s301 = sshll.u32 [#allocation7], 4
          %s302 = int_to_ptr.vmem [resolvable:$true] %s301
          %304 = dma.hbm_to_vmem [thread:$0]  %s300, 16, %s302, [#allocation6]
        $region32: #{transformer_forward.18} parent=11 // pred_fallthru
          _
        // Predicated region
        $region33: #{transformer_forward.18} parent=11 // pred_check
          %p305 = pneg %p222
        $region34: #{transformer_forward.18} parent=11 // pred_check_branch
          %307 = sbr.rel (%p305) target = $region36
        $region35: #{transformer_forward.18} parent=11 // pred_region
          %309 = vsyncadd [#allocation9], 0
          %s311 = sshll.u32 %s8, 4
          %s312 = int_to_ptr.hbm [resolvable:$true] %s311
          %s313 = sshll.u32 [#allocation8], 4
          %s314 = int_to_ptr.vmem [resolvable:$true] %s313
          %316 = dma.hbm_to_vmem [thread:$0]  %s312, 16, %s314, [#allocation9]
        $region36: #{transformer_forward.18} parent=11 // pred_fallthru
          _
      $region12: #{transformer_forward.18} parent=5 // pred_fallthru
        _
      %p317 = scmp.lt.s32.totalorder %s18, 2
      // Predicated region
      $region37: #{transformer_forward.18} parent=5 // pred_check
        %p318 = pneg %p317
      $region38: #{transformer_forward.18} parent=5 // pred_check_branch
        %320 = sbr.rel (%p318) target = $region40
      $region39: #{transformer_forward.18} parent=5 // pred_region
        // Predicated region
        $region41: #{transformer_forward.18} parent=39 // pred_check
          %p321 = pneg %p38
        $region42: #{transformer_forward.18} parent=39 // pred_check_branch
          %323 = sbr.rel (%p321) target = $region44
        $region43: #{transformer_forward.18} parent=39 // pred_region
          %p324 = scmp.lt.s32.totalorder %s18, 1
          %s325 = scalar_select %p324, %s18, 1
          %s326 = smul.addr %s325, 8
          %s327 = scalar_lea.vmem %s0, %s326
        $region44: #{transformer_forward.18} parent=39 // pred_fallthru
          _
        // Predicated region
        $region45: #{transformer_forward.18} parent=39 // pred_check
          %p328 = pneg %p64
        $region46: #{transformer_forward.18} parent=39 // pred_check_branch
          %330 = sbr.rel (%p328) target = $region48
        $region47: #{transformer_forward.18} parent=39 // pred_region
          %p331 = scmp.lt.s32.totalorder %s18, 1
          %s332 = scalar_select %p331, %s18, 1
          %s333 = smul.addr %s332, 8
          %s334 = scalar_lea.vmem %s1, %s333
        $region48: #{transformer_forward.18} parent=39 // pred_fallthru
          _
        // Predicated region
        $region49: #{transformer_forward.18} parent=39 // pred_check
          %p335 = pneg %p90
        $region50: #{transformer_forward.18} parent=39 // pred_check_branch
          %337 = sbr.rel (%p335) target = $region52
        $region51: #{transformer_forward.18} parent=39 // pred_region
          %p338 = scmp.lt.s32.totalorder %s18, 1
          %s339 = scalar_select %p338, %s18, 1
          %s340 = scalar_lea.vmem %s2, %s339
        $region52: #{transformer_forward.18} parent=39 // pred_fallthru
          _
      $region40: #{transformer_forward.18} parent=5 // pred_fallthru
        _
      %p341 = scmp.le.s32.totalorder 1, %s18
      %p342 = scmp.lt.s32.totalorder %s18, 3
      %p343 = pnand %p341, %p342
      %p344 = pneg %p343
      // Predicated region
      $region53: #{transformer_forward.18} parent=5 // pred_check
        _
      $region54: #{transformer_forward.18} parent=5 // pred_check_branch
        %346 = sbr.rel (%p343) target = $region56
      $region55: #{transformer_forward.18} parent=5 // pred_region
        %s347 = ssub.s32 %s18, 1
        // Predicated region
        $region57: #{transformer_forward.18} parent=55 // pred_check
          %p348 = pneg %p138
        $region58: #{transformer_forward.18} parent=55 // pred_check_branch
          %350 = sbr.rel (%p348) target = $region60
        $region59: #{transformer_forward.18} parent=55 // pred_region
          %352 = dma.done [#allocation4], 16
        $region60: #{transformer_forward.18} parent=55 // pred_fallthru
          _
        // Predicated region
        $region61: #{transformer_forward.18} parent=55 // pred_check
          %p353 = pneg %p180
        $region62: #{transformer_forward.18} parent=55 // pred_check_branch
          %355 = sbr.rel (%p353) target = $region64
        $region63: #{transformer_forward.18} parent=55 // pred_region
          %357 = dma.done [#allocation6], 16
        $region64: #{transformer_forward.18} parent=55 // pred_fallthru
          _
        // Predicated region
        $region65: #{transformer_forward.18} parent=55 // pred_check
          %p358 = pneg %p201
        $region66: #{transformer_forward.18} parent=55 // pred_check_branch
          %360 = sbr.rel (%p358) target = $region68
        $region67: #{transformer_forward.18} parent=55 // pred_region
          %362 = dma.done [#allocation6], 16
        $region68: #{transformer_forward.18} parent=55 // pred_fallthru
          _
        // Predicated region
        $region69: #{transformer_forward.18} parent=55 // pred_check
          %p363 = pneg %p222
        $region70: #{transformer_forward.18} parent=55 // pred_check_branch
          %365 = sbr.rel (%p363) target = $region72
        $region71: #{transformer_forward.18} parent=55 // pred_region
          %367 = dma.done [#allocation9], 16
        $region72: #{transformer_forward.18} parent=55 // pred_fallthru
          _
        %p368 = scmp.lt.s32.totalorder %s23, 1
        %s369 = scalar_select %p368, %s23, 1
        %s370 = smul.addr %s369, 8
        %s371 = scalar_lea.vmem %s0, %s370
        %p372 = pneg %p44
        %p373 = pneg %p41
        %p374 = scmp.lt.s32.totalorder %s23, 1
        %s375 = scalar_select %p374, %s23, 1
        %s376 = smul.addr %s375, 8
        %s377 = scalar_lea.vmem %s1, %s376
        %p378 = pneg %p70
        %p379 = pneg %p67
        %p380 = scmp.lt.s32.totalorder %s23, 1
        %s381 = scalar_select %p380, %s23, 1
        %s382 = scalar_lea.vmem %s2, %s381
        %p383 = pneg %p96
        %p384 = pneg %p93
        %p385 = pneg %p117
        %p386 = pneg %p114
        %p387 = pneg %p138
        %p388 = pneg %p135
        %p389 = pneg %p159
        %p390 = pneg %p156
        %p391 = pneg %p180
        %p392 = pneg %p177
        %p393 = pneg %p201
        %p394 = pneg %p198
        %p395 = pneg %p222
        %p396 = pneg %p219
        %p397 = pneg %p248
        %p398 = pneg %p245
        %p399 = scmp.lt.s32.totalorder %s23, 1
        %s400 = scalar_select %p399, %s23, 1
        %s401 = smul.addr %s400, 8
        %s402 = scalar_lea.vmem %s9, %s401
        %p403 = scmp.lt.s32.totalorder %s23, 1
        %s404 = scalar_select %p403, %s23, 1
        %s405 = smul.addr %s404, 8
        %s406 = scalar_lea.vmem %s0, %s405
        %p407 = scmp.lt.s32.totalorder %s23, 1
        %s408 = scalar_select %p407, %s23, 1
        %s409 = smul.addr %s408, 8
        %s410 = scalar_lea.vmem %s1, %s409
        %p411 = scmp.lt.s32.totalorder %s23, 1
        %s412 = scalar_select %p411, %s23, 1
        %s413 = scalar_lea.vmem %s2, %s412
        %p414 = scmp.lt.s32.totalorder %s23, 1
        %s415 = scalar_select %p414, %s23, 1
        %s416 = smul.addr %s415, 8
        %s417 = scalar_lea.vmem %s9, %s416
        %v419 = vld [vmem:[%s406] sm:$0xff]
        %v420 = vpack.c.bf16 %v419, %v419
        %v421 = vld [vmem:[%s3] sm:$0xf]
        %v422 = vld [vmem:[%s3 + $0x4] sm:$0xf]
        %v423 = vld [vmem:[%s3 + $0x8] sm:$0xf]
        %v424 = vld [vmem:[%s3 + $0xc] sm:$0xf]
        %v425 = vld [vmem:[#allocation3] sm:$0x1]
        %v427 = vperm.slane %v425, 0
        %v433 = vunpack.c.l.b16 %v421
        %v434 = vunpack.c.l.b16 %v422
        %v435 = vunpack.c.l.b16 %v423
        %v436 = vunpack.c.l.b16 %v424
        %v437 = vpack.c.b16 %v434, %v433
        %v438 = vpack.c.b16 %v436, %v435
        %vm441 = vcmask 261120
        %v443 = vsel %vm441, %v420, 0
        %445 = vmatpush.bf16.msra.mxu0 0
        %446 = vmatpush.bf16.msra.mxu0 0
        %447 = vmatpush.bf16.msra.mxu0 0
        %448 = vmatpush.bf16.msra.mxu0 0
        %449 = vmatpush.bf16.msra.mxu0 0
        %450 = vmatpush.bf16.msra.mxu0 0
        %451 = vmatpush.bf16.msra.mxu0 %v438
        %452 = vmatpush.bf16.msra.mxu0 %v437
        %453 = vmatmul.bf16.gmra.mxu0 %v443
        %v454 = vpop.f32.mrf.mxu0
        %v455 = vadd.f32 %v427, %v454
        %v456 = vpop.f32.mrf.mxu0
        %457 = vdwg.mxu0
        %v458 = vld [vmem:[%s410] sm:$0xff]
        %v459 = vld [vmem:[%s413] sm:$0x1]
        %vm460 = vcmp.gt.f32.partialorder %v458, 0.0
        %vm461 = vcmp.gt.f32.partialorder %v459, 0.0
        %v462 = vsel %vm460, 1, 0
        %463 = vset.pattern.permute.xlu0 0
        %464 = vperm.xlu0 %463, %v462
        %v465 = vpop.permute.xlu0 %464
        %vm466 = vcmp.eq.s32.totalorder %v465, 1
        %v467 = vsel %vm461, 1, 0
        %v468 = vperm.slane %v467, 0
        %vm469 = vcmp.eq.s32.totalorder %v468, 1
        %vm470 = vmand %vm466, %vm469
        %v471 = vlaneseq
        %v472 = vshrl.u32 %v471, 7
        %v473 = vlaneseq
        %v474 = vand.u32 %v473, 127
        %vm475 = vcmp.le.s32.totalorder %v474, %v472
        %vm476 = vmand %vm470, %vm475
        %478 = vrot.lane.b32.xlu0 %v455, 96
        %v479 = vpop.permute.xlu0 %478
        %481 = vxpose.xlu0.b32.start [1/16] %v479, 128
        %482 = vxpose.xlu0.b32.cont [2/16] 0.0, 128
        %483 = vxpose.xlu0.b32.cont [3/16] 0.0, 128
        %484 = vxpose.xlu0.b32.cont [4/16] 0.0, 128
        %485 = vxpose.xlu0.b32.cont [5/16] 0.0, 128
        %486 = vxpose.xlu0.b32.cont [6/16] 0.0, 128
        %487 = vxpose.xlu0.b32.cont [7/16] 0.0, 128
        %488 = vxpose.xlu0.b32.cont [8/16] 0.0, 128
        %489 = vxpose.xlu0.b32.cont [9/16] 0.0, 128
        %490 = vxpose.xlu0.b32.cont [10/16] 0.0, 128
        %491 = vxpose.xlu0.b32.cont [11/16] 0.0, 128
        %492 = vxpose.xlu0.b32.cont [12/16] 0.0, 128
        %493 = vxpose.xlu0.b32.cont [13/16] 0.0, 128
        %494 = vxpose.xlu0.b32.cont [14/16] 0.0, 128
        %495 = vxpose.xlu0.b32.cont [15/16] 0.0, 128
        %496 = vxpose.xlu0.b32.end [16/16] 0.0, 128
        %v497 = vpop.trf.xlu0
        %v498 = vpop.trf.xlu0
        %v499 = vpop.trf.xlu0
        %v500 = vpop.trf.xlu0
        %v501 = vpop.trf.xlu0
        %v502 = vpop.trf.xlu0
        %v503 = vpop.trf.xlu0
        %v504 = vpop.trf.xlu0
        %v505 = vpop.trf.xlu0
        %v506 = vpop.trf.xlu0
        %v507 = vpop.trf.xlu0
        %v508 = vpop.trf.xlu0
        %v509 = vpop.trf.xlu0
        %v510 = vpop.trf.xlu0
        %v511 = vpop.trf.xlu0
        %v512 = vpop.trf.xlu0
        %v513 = vpack.c.bf16 %v497, %v497
        %v514 = vpack.c.bf16 %v498, %v498
        %v515 = vpack.c.bf16 %v499, %v499
        %v516 = vpack.c.bf16 %v500, %v500
        %v517 = vpack.c.bf16 %v455, %v455
        %vm518 = vcmask 64512
        %v520 = vsel %vm518, %v517, 0
        %vm522 = vcmask 1043456
        %v524 = vsel %vm522, %v513, 0
        %526 = vmatpush.bf16.msra.mxu0 0
        %527 = vmatpush.bf16.msra.mxu0 0
        %528 = vmatpush.bf16.msra.mxu0 0
        %529 = vmatpush.bf16.msra.mxu0 0
        %530 = vmatpush.bf16.msra.mxu0 0
        %531 = vmatpush.bf16.msra.mxu0 0
        %532 = vmatpush.bf16.msra.mxu0 0
        %533 = vmatpush.bf16.msra.mxu0 %v524
        %534 = vmatmul.bf16.gmra.mxu0 %v520
        %v535 = vpop.f32.mrf.mxu0
        %v536 = vadd.f32 0.0, %v535
        %v537 = vpop.f32.mrf.mxu0
        %538 = vdwg.mxu0
        %v539 = vsel %vm476, %v536, -1e+09
        %v540 = vsel %vm518, %v539, -inf
        %541 = vmax.xlane.f32.xlu0 %v540
        %v542 = vpop.xlane.xlu0 %541
        %v543 = vsub.f32 %v539, %v542
        %v544 = vmul.f32 %v543, 1.442695
        %v545 = vpow.pop %v544
        %v546 = vsel %vm518, %v545, 0.0
        %547 = vadd.xlane.f32.xlu0 %v546
        %v548 = vpop.xlane.xlu0 %547
        %v549 = vrcp.pop %v548
        %v550 = vmul.f32 %v545, %v549
        %v551 = vpack.c.bf16 %v550, %v550
        %v553 = vunpack.c.l.b16 %v517
        %v554 = vpack.c.b16 %v553, %v553
        %555 = vrot.lane.b32.xlu0 %v554, 64
        %v556 = vpop.permute.xlu0 %555
        %v558 = vsel %vm518, %v551, 0
        %v561 = vsel %vm522, %v556, 0
        %563 = vmatpush.bf16.msra.mxu0 0
        %564 = vmatpush.bf16.msra.mxu0 0
        %565 = vmatpush.bf16.msra.mxu0 0
        %566 = vmatpush.bf16.msra.mxu0 0
        %567 = vmatpush.bf16.msra.mxu0 0
        %568 = vmatpush.bf16.msra.mxu0 0
        %569 = vmatpush.bf16.msra.mxu0 0
        %570 = vmatpush.bf16.msra.mxu0 %v561
        %571 = vmatmul.bf16.gmra.mxu0 %v558
        %v572 = vpop.f32.mrf.mxu0
        %v573 = vadd.f32 0.0, %v572
        %v574 = vpop.f32.mrf.mxu0
        %575 = vdwg.mxu0
        %576 = vst.msk [vmem:[#allocation2] sm:$0xff] %vm518, %v573
        %577 = vrot.lane.b32.xlu0 %v554, 120
        %v578 = vpop.permute.xlu0 %577
        %v580 = vsel %vm518, %v578, 0
        %v583 = vsel %vm522, %v514, 0
        %585 = vmatpush.bf16.msra.mxu0 0
        %586 = vmatpush.bf16.msra.mxu0 0
        %587 = vmatpush.bf16.msra.mxu0 0
        %588 = vmatpush.bf16.msra.mxu0 0
        %589 = vmatpush.bf16.msra.mxu0 0
        %590 = vmatpush.bf16.msra.mxu0 0
        %591 = vmatpush.bf16.msra.mxu0 0
        %592 = vmatpush.bf16.msra.mxu0 %v583
        %593 = vmatmul.bf16.gmra.mxu0 %v580
        %v594 = vpop.f32.mrf.mxu0
        %v595 = vadd.f32 0.0, %v594
        %v596 = vpop.f32.mrf.mxu0
        %597 = vdwg.mxu0
        %v598 = vsel %vm476, %v595, -1e+09
        %v599 = vsel %vm518, %v598, -inf
        %600 = vmax.xlane.f32.xlu0 %v599
        %v601 = vpop.xlane.xlu0 %600
        %v602 = vsub.f32 %v598, %v601
        %v603 = vmul.f32 %v602, 1.442695
        %v604 = vpow.pop %v603
        %v605 = vsel %vm518, %v604, 0.0
        %606 = vadd.xlane.f32.xlu0 %v605
        %v607 = vpop.xlane.xlu0 %606
        %v608 = vrcp.pop %v607
        %v609 = vmul.f32 %v604, %v608
        %v610 = vpack.c.bf16 %v609, %v609
        %611 = vrot.lane.b32.xlu0 %v554, 56
        %v612 = vpop.permute.xlu0 %611
        %v614 = vsel %vm518, %v610, 0
        %v617 = vsel %vm522, %v612, 0
        %619 = vmatpush.bf16.msra.mxu0 0
        %620 = vmatpush.bf16.msra.mxu0 0
        %621 = vmatpush.bf16.msra.mxu0 0
        %622 = vmatpush.bf16.msra.mxu0 0
        %623 = vmatpush.bf16.msra.mxu0 0
        %624 = vmatpush.bf16.msra.mxu0 0
        %625 = vmatpush.bf16.msra.mxu0 0
        %626 = vmatpush.bf16.msra.mxu0 %v617
        %627 = vmatmul.bf16.gmra.mxu0 %v614
        %v628 = vpop.f32.mrf.mxu0
        %v629 = vadd.f32 0.0, %v628
        %v630 = vpop.f32.mrf.mxu0
        %631 = vdwg.mxu0
        %633 = vrot.lane.b32.xlu0 %v629, 8
        %v634 = vpop.permute.xlu0 %633
        %vm636 = vcmask 130112
        %637 = vst.msk [vmem:[#allocation2] sm:$0xff] %vm636, %v634
        %638 = vrot.lane.b32.xlu0 %v554, 112
        %v639 = vpop.permute.xlu0 %638
        %v641 = vsel %vm518, %v639, 0
        %v644 = vsel %vm522, %v515, 0
        %646 = vmatpush.bf16.msra.mxu0 0
        %647 = vmatpush.bf16.msra.mxu0 0
        %648 = vmatpush.bf16.msra.mxu0 0
        %649 = vmatpush.bf16.msra.mxu0 0
        %650 = vmatpush.bf16.msra.mxu0 0
        %651 = vmatpush.bf16.msra.mxu0 0
        %652 = vmatpush.bf16.msra.mxu0 0
        %653 = vmatpush.bf16.msra.mxu0 %v644
        %654 = vmatmul.bf16.gmra.mxu0 %v641
        %v655 = vpop.f32.mrf.mxu0
        %v656 = vadd.f32 0.0, %v655
        %v657 = vpop.f32.mrf.mxu0
        %658 = vdwg.mxu0
        %v659 = vsel %vm476, %v656, -1e+09
        %v660 = vsel %vm518, %v659, -inf
        %661 = vmax.xlane.f32.xlu0 %v660
        %v662 = vpop.xlane.xlu0 %661
        %v663 = vsub.f32 %v659, %v662
        %v664 = vmul.f32 %v663, 1.442695
        %v665 = vpow.pop %v664
        %v666 = vsel %vm518, %v665, 0.0
        %667 = vadd.xlane.f32.xlu0 %v666
        %v668 = vpop.xlane.xlu0 %667
        %v669 = vrcp.pop %v668
        %v670 = vmul.f32 %v665, %v669
        %v671 = vpack.c.bf16 %v670, %v670
        %672 = vrot.lane.b32.xlu0 %v554, 48
        %v673 = vpop.permute.xlu0 %672
        %v675 = vsel %vm518, %v671, 0
        %v678 = vsel %vm522, %v673, 0
        %680 = vmatpush.bf16.msra.mxu0 0
        %681 = vmatpush.bf16.msra.mxu0 0
        %682 = vmatpush.bf16.msra.mxu0 0
        %683 = vmatpush.bf16.msra.mxu0 0
        %684 = vmatpush.bf16.msra.mxu0 0
        %685 = vmatpush.bf16.msra.mxu0 0
        %686 = vmatpush.bf16.msra.mxu0 0
        %687 = vmatpush.bf16.msra.mxu0 %v678
        %688 = vmatmul.bf16.gmra.mxu0 %v675
        %v689 = vpop.f32.mrf.mxu0
        %v690 = vadd.f32 0.0, %v689
        %v691 = vpop.f32.mrf.mxu0
        %692 = vdwg.mxu0
        %694 = vrot.lane.b32.xlu0 %v690, 16
        %v695 = vpop.permute.xlu0 %694
        %vm697 = vcmask 195712
        %698 = vst.msk [vmem:[#allocation2] sm:$0xff] %vm697, %v695
        %699 = vrot.lane.b32.xlu0 %v554, 104
        %v700 = vpop.permute.xlu0 %699
        %v702 = vsel %vm518, %v700, 0
        %v705 = vsel %vm522, %v516, 0
        %707 = vmatpush.bf16.msra.mxu0 0
        %708 = vmatpush.bf16.msra.mxu0 0
        %709 = vmatpush.bf16.msra.mxu0 0
        %710 = vmatpush.bf16.msra.mxu0 0
        %711 = vmatpush.bf16.msra.mxu0 0
        %712 = vmatpush.bf16.msra.mxu0 0
        %713 = vmatpush.bf16.msra.mxu0 0
        %714 = vmatpush.bf16.msra.mxu0 %v705
        %715 = vmatmul.bf16.gmra.mxu0 %v702
        %v716 = vpop.f32.mrf.mxu0
        %v717 = vadd.f32 0.0, %v716
        %v718 = vpop.f32.mrf.mxu0
        %719 = vdwg.mxu0
        %v720 = vsel %vm476, %v717, -1e+09
        %v721 = vsel %vm518, %v720, -inf
        %722 = vmax.xlane.f32.xlu0 %v721
        %v723 = vpop.xlane.xlu0 %722
        %v724 = vsub.f32 %v720, %v723
        %v725 = vmul.f32 %v724, 1.442695
        %v726 = vpow.pop %v725
        %v727 = vsel %vm518, %v726, 0.0
        %728 = vadd.xlane.f32.xlu0 %v727
        %v729 = vpop.xlane.xlu0 %728
        %v730 = vrcp.pop %v729
        %v731 = vmul.f32 %v726, %v730
        %v732 = vpack.c.bf16 %v731, %v731
        %733 = vrot.lane.b32.xlu0 %v554, 40
        %v734 = vpop.permute.xlu0 %733
        %v736 = vsel %vm518, %v732, 0
        %v739 = vsel %vm522, %v734, 0
        %741 = vmatpush.bf16.msra.mxu0 0
        %742 = vmatpush.bf16.msra.mxu0 0
        %743 = vmatpush.bf16.msra.mxu0 0
        %744 = vmatpush.bf16.msra.mxu0 0
        %745 = vmatpush.bf16.msra.mxu0 0
        %746 = vmatpush.bf16.msra.mxu0 0
        %747 = vmatpush.bf16.msra.mxu0 0
        %748 = vmatpush.bf16.msra.mxu0 %v739
        %749 = vmatmul.bf16.gmra.mxu0 %v736
        %v750 = vpop.f32.mrf.mxu0
        %v751 = vadd.f32 0.0, %v750
        %v752 = vpop.f32.mrf.mxu0
        %753 = vdwg.mxu0
        %755 = vrot.lane.b32.xlu0 %v751, 24
        %v756 = vpop.permute.xlu0 %755
        %vm758 = vcmask 261312
        %759 = vst.msk [vmem:[#allocation2] sm:$0xff] %vm758, %v756
        %v760 = vld [vmem:[#allocation2] sm:$0xff]
        %v761 = vpack.c.bf16 %v760, %v760
        %v762 = vld [vmem:[%s5] sm:$0xf]
        %v763 = vld [vmem:[%s5 + $0x4] sm:$0xf]
        %v764 = vld [vmem:[%s5 + $0x8] sm:$0xf]
        %v765 = vld [vmem:[%s5 + $0xc] sm:$0xf]
        %v766 = vld [vmem:[#allocation5] sm:$0x1]
        %v768 = vperm.slane %v766, 0
        %v774 = vunpack.c.l.b16 %v762
        %v775 = vunpack.c.l.b16 %v763
        %v776 = vunpack.c.l.b16 %v764
        %v777 = vunpack.c.l.b16 %v765
        %v778 = vpack.c.b16 %v775, %v774
        %v779 = vpack.c.b16 %v777, %v776
        %v783 = vsel %vm441, %v761, 0
        %785 = vmatpush.bf16.msra.mxu0 0
        %786 = vmatpush.bf16.msra.mxu0 0
        %787 = vmatpush.bf16.msra.mxu0 0
        %788 = vmatpush.bf16.msra.mxu0 0
        %789 = vmatpush.bf16.msra.mxu0 0
        %790 = vmatpush.bf16.msra.mxu0 0
        %791 = vmatpush.bf16.msra.mxu0 %v779
        %792 = vmatpush.bf16.msra.mxu0 %v778
        %793 = vmatmul.bf16.gmra.mxu0 %v783
        %v794 = vpop.f32.mrf.mxu0
        %v795 = vadd.f32 %v768, %v794
        %v796 = vpop.f32.mrf.mxu0
        %797 = vdwg.mxu0
        %v798 = vadd.f32 %v419, %v795
        %v799 = vsel %vm441, %v798, 0.0
        %800 = vadd.xlane.f32.xlu0 %v799
        %v801 = vpop.xlane.xlu0 %800
        %v802 = vrcp.pop 32.0
        %v803 = vmul.f32 32.0, %v802
        %v804 = vsub.f32 1.0, %v803
        %v805 = vmul.f32 %v802, %v804
        %v806 = vadd.f32 %v802, %v805
        %vm807 = vweird.f32 %v802
        %v808 = vsel %vm807, %v802, %v806
        %v809 = vmul.f32 %v801, %v808
        %v810 = vsub.f32 %v798, %v809
        %v811 = vmul.f32 %v810, %v810
        %v812 = vsel %vm441, %v811, 0.0
        %813 = vadd.xlane.f32.xlu0 %v812
        %v814 = vpop.xlane.xlu0 %813
        %v815 = vmul.f32 %v814, %v808
        %v816 = vadd.f32 %v815, 1e-05
        %v817 = vrsqrt.pop %v816
        %v818 = vmul.f32 %v817, %v816
        %v819 = vmul.f32 %v818, %v817
        %v820 = vmul.f32 0.5, %v819
        %v821 = vsub.f32 1.5, %v820
        %v822 = vmul.f32 %v817, %v821
        %vm823 = vweird.f32 %v816
        %vm824 = vweird.f32 %v817
        %vm825 = vmor %vm823, %vm824
        %v826 = vsel %vm825, %v817, %v822
        %v827 = vmul.f32 %v810, %v826
        %v828 = vld [vmem:[#allocation7] sm:$0x1]
        %v830 = vperm.slane %v828, 0
        %v832 = vmul.f32 %v827, %v830
        %v833 = vld [vmem:[#allocation8] sm:$0x1]
        %v835 = vperm.slane %v833, 0
        %v837 = vadd.f32 %v832, %v835
        %838 = vst.msk [vmem:[%s417] sm:$0xff] %vm441, %v837
        %p839 = scmp.lt.s32.totalorder %s23, 1
        %s840 = scalar_select %p839, %s23, 1
        %s841 = smul.addr %s840, 8
        %s842 = scalar_lea.vmem %s9, %s841
        // Predicated region
        $region73: #{transformer_forward.18} parent=55 // pred_check
          %p843 = pneg %p245
        $region74: #{transformer_forward.18} parent=55 // pred_check_branch
          %845 = sbr.rel (%p843) target = $region76
        $region75: #{transformer_forward.18} parent=55 // pred_region
          _
        $region76: #{transformer_forward.18} parent=55 // pred_fallthru
          _
      $region56: #{transformer_forward.18} parent=5 // pred_fallthru
        _
      %p846 = scmp.le.s32.totalorder 2, %s18
      // Predicated region
      $region77: #{transformer_forward.18} parent=5 // pred_check
        %p847 = pneg %p846
      $region78: #{transformer_forward.18} parent=5 // pred_check_branch
        %849 = sbr.rel (%p847) target = $region80
      $region79: #{transformer_forward.18} parent=5 // pred_region
        %s850 = ssub.s32 %s18, 2
        // Predicated region
        $region81: #{transformer_forward.18} parent=79 // pred_check
          %p851 = pneg %p251
        $region82: #{transformer_forward.18} parent=79 // pred_check_branch
          %853 = sbr.rel (%p851) target = $region84
        $region83: #{transformer_forward.18} parent=79 // pred_region
          %p854 = scmp.lt.s32.totalorder %s24, 1
          %s855 = scalar_select %p854, %s24, 1
          %s856 = smul.addr %s855, 8
          %s857 = scalar_lea.vmem %s9, %s856
        $region84: #{transformer_forward.18} parent=79 // pred_fallthru
          _
      $region80: #{transformer_forward.18} parent=5 // pred_fallthru
        _
    $region6: #{transformer_forward.18} parent=1 // loop_footer
      %s22 = sadd.s32 1, %s18
    $region7: #{transformer_forward.18} parent=1 // loop_footer_branch
      %17 = sbr.rel target = $region3
    $region8: #{transformer_forward.18} parent=1 // loop_exit
      _
    %858 = vsyncpa [#allocation4], 1
    %s859 = scalar_lea.sflag [#allocation4], 1
    %860 = vsyncpa %s859, 1
    %861 = vsyncpa [#allocation6], 1
    %862 = vsyncpa [#allocation9], 1

// kernel: transformer_forward.19
$region0: #{transformer_forward.19}
  #allocation0 [shape = 'u32[]', space=smem, size = 0x4, offset = 0x4, fixed_abs, tag = 'smem constant byte address 0x4 - core index']
  #allocation1 [shape = 'u32[72,128]{1,0:T(1,128)}', space=vmem, size = 0x9000, scoped, tag = 'internal scratch']
  #allocation2 [shape = 'f32[8,32]{1,0:T(8,128)}', space=vmem, size = 0x1000, scoped, tag = 'scratch operand']
  %s0 = inlined_call_operand.vmem [shape: f32[2,8,32], index: 0, kind: input, shape index: {}]
  %s1 = inlined_call_operand.vmem [shape: f32[2,8,32], index: 1, kind: input, shape index: {}]
  %s2 = inlined_call_operand.vmem [shape: f32[2,8,1], index: 2, kind: input, shape index: {}]
  %s3 = inlined_call_operand.vmem [shape: f32[2,1,8], index: 3, kind: input, shape index: {}]
  %s4 = inlined_call_operand.vmem [shape: bf16[32,32], index: 4, kind: input, shape index: {}]
  %s5 = inlined_call_operand.hbm [shape: f32[1,32], index: 5, kind: input, shape index: {}]
  %s6 = inlined_call_operand.vmem [shape: bf16[32,64], index: 6, kind: input, shape index: {}]
  %s7 = inlined_call_operand.hbm [shape: f32[1,64], index: 7, kind: input, shape index: {}]
  %s8 = inlined_call_operand.vmem [shape: bf16[32,32], index: 8, kind: input, shape index: {}]
  %s9 = inlined_call_operand.hbm [shape: f32[1,32], index: 9, kind: input, shape index: {}]
  %s10 = inlined_call_operand.hbm [shape: f32[1,32], index: 10, kind: input, shape index: {}]
  %s11 = inlined_call_operand.hbm [shape: f32[1,32], index: 11, kind: input, shape index: {}]
  %s12 = inlined_call_operand.vmem [shape: f32[2,8,32], index: 12, kind: output, shape index: {}]
  %s13 = sld [smem:[#allocation0]]
  $region101: #{transformer_forward.19} parent=0
    _
  %s15 = ssub.s32 1, %s13
  %s16 = scalar_select 0, %s15, %s13
  $region1: #{transformer_forward.19} parent=0
    #allocation3 [shape = 'u8[512]{0}', space=vmem, size = 0x400, scoped, tag = 'input window, operand 5, single buffered']
    #allocation4 [shape = 's32[2]{0}', space=sflag, size = 0x8, scoped, tag = 'scoped memory for transformer_forward.19']
    #allocation5 [shape = 'u8[512]{0}', space=vmem, size = 0x400, scoped, tag = 'input window, operand 7, single buffered']
    #allocation6 [shape = 's32[1]{0}', space=sflag, size = 0x4, scoped, tag = 'scoped memory for transformer_forward.19']
    #allocation7 [shape = 'u8[512]{0}', space=vmem, size = 0x400, scoped, tag = 'input window, operand 9, single buffered']
    #allocation8 [shape = 'u8[512]{0}', space=vmem, size = 0x400, scoped, tag = 'input window, operand 10, single buffered']
    #allocation9 [shape = 's32[1]{0}', space=sflag, size = 0x4, scoped, tag = 'scoped memory for transformer_forward.19']
    #allocation10 [shape = 'u8[512]{0}', space=vmem, size = 0x400, scoped, tag = 'input window, operand 11, single buffered']
    %17 = vsyncpa [#allocation4], 0
    %18 = vsyncpa [#allocation6], 0
    %19 = vsyncpa [#allocation9], 0
    loop: start=0, step=1, limit=4
    $region2: #{transformer_forward.19} parent=1 // loop_pre_header
      _
    $region3: #{transformer_forward.19} parent=1 // loop_header
      %s21 = sphi 0, %s25
      %p22 = scmp.ge.s32.totalorder %s21, 4
      %s31 = sphi 0, %s33
      %s34 = sphi 0, %s31
      %s35 = sphi 0, %s34
      %s51 = sphi 0, %s35
      %s57 = sphi 0, %s59
      %s60 = sphi 0, %s57
      %s61 = sphi 0, %s60
      %s77 = sphi 0, %s61
      %s83 = sphi 0, %s85
      %s86 = sphi 0, %s83
      %s87 = sphi 0, %s86
      %s103 = sphi 0, %s87
      %s109 = sphi 0, %s111
      %s112 = sphi 0, %s109
      %s113 = sphi 0, %s112
      %s129 = sphi 0, %s113
      %s133 = sphi 0, %s133
      %s135 = sphi 0, %s133
      %s136 = sphi 0, %s135
      %s150 = sphi 0, %s136
      %s154 = sphi 0, %s154
      %s156 = sphi 0, %s154
      %s157 = sphi 0, %s156
      %s171 = sphi 0, %s157
      %s175 = sphi 0, %s175
      %s177 = sphi 0, %s175
      %s178 = sphi 0, %s177
      %s192 = sphi 0, %s178
      %s196 = sphi 0, %s196
      %s198 = sphi 0, %s196
      %s199 = sphi 0, %s198
      %s213 = sphi 0, %s199
      %s217 = sphi 0, %s217
      %s219 = sphi 0, %s217
      %s220 = sphi 0, %s219
      %s234 = sphi 0, %s220
      %s238 = sphi 0, %s238
      %s240 = sphi 0, %s238
      %s241 = sphi 0, %s240
      %s255 = sphi 0, %s241
      %s259 = sphi 0, %s259
      %s261 = sphi 0, %s259
      %s262 = sphi 0, %s261
      %s276 = sphi 0, %s262
      %s280 = sphi 0, %s280
      %s282 = sphi 0, %s280
      %s283 = sphi 0, %s282
      %s297 = sphi 0, %s283
      %s303 = sphi 0, %s305
      %s306 = sphi 0, %s303
      %s307 = sphi 0, %s306
      %s323 = sphi 0, %s307
    $region4: #{transformer_forward.19} parent=1 // loop_header_branch
      %24 = sbr.rel (%p22) target = $region8
    $region5: #{transformer_forward.19} parent=1 // loop_body
      %s26 = ssub.s32 %s21, 1
      %s27 = ssub.s32 %s21, 2
      %s28 = sadd.s32 %s21, 1
      %s29 = ssub.s32 %s21, %s28
      %p30 = scmp.eq.s32.totalorder %s29, 0
      %s32 = sadd.s32 %s31, 1
      %s33 = scalar_select %p30, %s31, %s32
      %p36 = pneg %p30
      %p37 = scmp.eq.s32.totalorder %s21, 1
      %p38 = por %p36, %p37
      %p39 = scmp.ne.s32.totalorder %s31, %s34
      %p40 = scmp.eq.s32.totalorder %s21, 0
      %p41 = por %p39, %p40
      %p42 = scmp.ne.s32.totalorder %s31, %s34
      %p43 = scmp.eq.s32.totalorder %s26, 1
      %p44 = por %p42, %p43
      %p45 = scmp.ne.s32.totalorder %s34, %s35
      %p46 = scmp.eq.s32.totalorder %s26, 0
      %p47 = por %p45, %p46
      %p48 = scmp.ne.s32.totalorder %s34, %s35
      %p49 = scmp.eq.s32.totalorder %s27, 1
      %p50 = por %p48, %p49
      %p52 = scmp.ne.s32.totalorder %s35, %s51
      %p53 = scmp.eq.s32.totalorder %s27, 0
      %p54 = por %p52, %p53
      %s55 = ssub.s32 %s21, %s28
      %p56 = scmp.eq.s32.totalorder %s55, 0
      %s58 = sadd.s32 %s57, 1
      %s59 = scalar_select %p56, %s57, %s58
      %p62 = pneg %p56
      %p63 = scmp.eq.s32.totalorder %s21, 1
      %p64 = por %p62, %p63
      %p65 = scmp.ne.s32.totalorder %s57, %s60
      %p66 = scmp.eq.s32.totalorder %s21, 0
      %p67 = por %p65, %p66
      %p68 = scmp.ne.s32.totalorder %s57, %s60
      %p69 = scmp.eq.s32.totalorder %s26, 1
      %p70 = por %p68, %p69
      %p71 = scmp.ne.s32.totalorder %s60, %s61
      %p72 = scmp.eq.s32.totalorder %s26, 0
      %p73 = por %p71, %p72
      %p74 = scmp.ne.s32.totalorder %s60, %s61
      %p75 = scmp.eq.s32.totalorder %s27, 1
      %p76 = por %p74, %p75
      %p78 = scmp.ne.s32.totalorder %s61, %s77
      %p79 = scmp.eq.s32.totalorder %s27, 0
      %p80 = por %p78, %p79
      %s81 = ssub.s32 %s21, %s28
      %p82 = scmp.eq.s32.totalorder %s81, 0
      %s84 = sadd.s32 %s83, 1
      %s85 = scalar_select %p82, %s83, %s84
      %p88 = pneg %p82
      %p89 = scmp.eq.s32.totalorder %s21, 1
      %p90 = por %p88, %p89
      %p91 = scmp.ne.s32.totalorder %s83, %s86
      %p92 = scmp.eq.s32.totalorder %s21, 0
      %p93 = por %p91, %p92
      %p94 = scmp.ne.s32.totalorder %s83, %s86
      %p95 = scmp.eq.s32.totalorder %s26, 1
      %p96 = por %p94, %p95
      %p97 = scmp.ne.s32.totalorder %s86, %s87
      %p98 = scmp.eq.s32.totalorder %s26, 0
      %p99 = por %p97, %p98
      %p100 = scmp.ne.s32.totalorder %s86, %s87
      %p101 = scmp.eq.s32.totalorder %s27, 1
      %p102 = por %p100, %p101
      %p104 = scmp.ne.s32.totalorder %s87, %s103
      %p105 = scmp.eq.s32.totalorder %s27, 0
      %p106 = por %p104, %p105
      %s107 = ssub.s32 %s21, %s28
      %p108 = scmp.eq.s32.totalorder %s107, 0
      %s110 = sadd.s32 %s109, 1
      %s111 = scalar_select %p108, %s109, %s110
      %p114 = pneg %p108
      %p115 = scmp.eq.s32.totalorder %s21, 1
      %p116 = por %p114, %p115
      %p117 = scmp.ne.s32.totalorder %s109, %s112
      %p118 = scmp.eq.s32.totalorder %s21, 0
      %p119 = por %p117, %p118
      %p120 = scmp.ne.s32.totalorder %s109, %s112
      %p121 = scmp.eq.s32.totalorder %s26, 1
      %p122 = por %p120, %p121
      %p123 = scmp.ne.s32.totalorder %s112, %s113
      %p124 = scmp.eq.s32.totalorder %s26, 0
      %p125 = por %p123, %p124
      %p126 = scmp.ne.s32.totalorder %s112, %s113
      %p127 = scmp.eq.s32.totalorder %s27, 1
      %p128 = por %p126, %p127
      %p130 = scmp.ne.s32.totalorder %s113, %s129
      %p131 = scmp.eq.s32.totalorder %s27, 0
      %p132 = por %p130, %p131
      %s134 = sadd.s32 %s133, 1
      %p137 = scmp.eq.s32.totalorder %s21, 1
      %p138 = scmp.ne.s32.totalorder %s133, %s135
      %p139 = scmp.eq.s32.totalorder %s21, 0
      %p140 = por %p138, %p139
      %p141 = scmp.ne.s32.totalorder %s133, %s135
      %p142 = scmp.eq.s32.totalorder %s26, 1
      %p143 = por %p141, %p142
      %p144 = scmp.ne.s32.totalorder %s135, %s136
      %p145 = scmp.eq.s32.totalorder %s26, 0
      %p146 = por %p144, %p145
      %p147 = scmp.ne.s32.totalorder %s135, %s136
      %p148 = scmp.eq.s32.totalorder %s27, 1
      %p149 = por %p147, %p148
      %p151 = scmp.ne.s32.totalorder %s136, %s150
      %p152 = scmp.eq.s32.totalorder %s27, 0
      %p153 = por %p151, %p152
      %s155 = sadd.s32 %s154, 1
      %p158 = scmp.eq.s32.totalorder %s21, 1
      %p159 = scmp.ne.s32.totalorder %s154, %s156
      %p160 = scmp.eq.s32.totalorder %s21, 0
      %p161 = por %p159, %p160
      %p162 = scmp.ne.s32.totalorder %s154, %s156
      %p163 = scmp.eq.s32.totalorder %s26, 1
      %p164 = por %p162, %p163
      %p165 = scmp.ne.s32.totalorder %s156, %s157
      %p166 = scmp.eq.s32.totalorder %s26, 0
      %p167 = por %p165, %p166
      %p168 = scmp.ne.s32.totalorder %s156, %s157
      %p169 = scmp.eq.s32.totalorder %s27, 1
      %p170 = por %p168, %p169
      %p172 = scmp.ne.s32.totalorder %s157, %s171
      %p173 = scmp.eq.s32.totalorder %s27, 0
      %p174 = por %p172, %p173
      %s176 = sadd.s32 %s175, 1
      %p179 = scmp.eq.s32.totalorder %s21, 1
      %p180 = scmp.ne.s32.totalorder %s175, %s177
      %p181 = scmp.eq.s32.totalorder %s21, 0
      %p182 = por %p180, %p181
      %p183 = scmp.ne.s32.totalorder %s175, %s177
      %p184 = scmp.eq.s32.totalorder %s26, 1
      %p185 = por %p183, %p184
      %p186 = scmp.ne.s32.totalorder %s177, %s178
      %p187 = scmp.eq.s32.totalorder %s26, 0
      %p188 = por %p186, %p187
      %p189 = scmp.ne.s32.totalorder %s177, %s178
      %p190 = scmp.eq.s32.totalorder %s27, 1
      %p191 = por %p189, %p190
      %p193 = scmp.ne.s32.totalorder %s178, %s192
      %p194 = scmp.eq.s32.totalorder %s27, 0
      %p195 = por %p193, %p194
      %s197 = sadd.s32 %s196, 1
      %p200 = scmp.eq.s32.totalorder %s21, 1
      %p201 = scmp.ne.s32.totalorder %s196, %s198
      %p202 = scmp.eq.s32.totalorder %s21, 0
      %p203 = por %p201, %p202
      %p204 = scmp.ne.s32.totalorder %s196, %s198
      %p205 = scmp.eq.s32.totalorder %s26, 1
      %p206 = por %p204, %p205
      %p207 = scmp.ne.s32.totalorder %s198, %s199
      %p208 = scmp.eq.s32.totalorder %s26, 0
      %p209 = por %p207, %p208
      %p210 = scmp.ne.s32.totalorder %s198, %s199
      %p211 = scmp.eq.s32.totalorder %s27, 1
      %p212 = por %p210, %p211
      %p214 = scmp.ne.s32.totalorder %s199, %s213
      %p215 = scmp.eq.s32.totalorder %s27, 0
      %p216 = por %p214, %p215
      %s218 = sadd.s32 %s217, 1
      %p221 = scmp.eq.s32.totalorder %s21, 1
      %p222 = scmp.ne.s32.totalorder %s217, %s219
      %p223 = scmp.eq.s32.totalorder %s21, 0
      %p224 = por %p222, %p223
      %p225 = scmp.ne.s32.totalorder %s217, %s219
      %p226 = scmp.eq.s32.totalorder %s26, 1
      %p227 = por %p225, %p226
      %p228 = scmp.ne.s32.totalorder %s219, %s220
      %p229 = scmp.eq.s32.totalorder %s26, 0
      %p230 = por %p228, %p229
      %p231 = scmp.ne.s32.totalorder %s219, %s220
      %p232 = scmp.eq.s32.totalorder %s27, 1
      %p233 = por %p231, %p232
      %p235 = scmp.ne.s32.totalorder %s220, %s234
      %p236 = scmp.eq.s32.totalorder %s27, 0
      %p237 = por %p235, %p236
      %s239 = sadd.s32 %s238, 1
      %p242 = scmp.eq.s32.totalorder %s21, 1
      %p243 = scmp.ne.s32.totalorder %s238, %s240
      %p244 = scmp.eq.s32.totalorder %s21, 0
      %p245 = por %p243, %p244
      %p246 = scmp.ne.s32.totalorder %s238, %s240
      %p247 = scmp.eq.s32.totalorder %s26, 1
      %p248 = por %p246, %p247
      %p249 = scmp.ne.s32.totalorder %s240, %s241
      %p250 = scmp.eq.s32.totalorder %s26, 0
      %p251 = por %p249, %p250
      %p252 = scmp.ne.s32.totalorder %s240, %s241
      %p253 = scmp.eq.s32.totalorder %s27, 1
      %p254 = por %p252, %p253
      %p256 = scmp.ne.s32.totalorder %s241, %s255
      %p257 = scmp.eq.s32.totalorder %s27, 0
      %p258 = por %p256, %p257
      %s260 = sadd.s32 %s259, 1
      %p263 = scmp.eq.s32.totalorder %s21, 1
      %p264 = scmp.ne.s32.totalorder %s259, %s261
      %p265 = scmp.eq.s32.totalorder %s21, 0
      %p266 = por %p264, %p265
      %p267 = scmp.ne.s32.totalorder %s259, %s261
      %p268 = scmp.eq.s32.totalorder %s26, 1
      %p269 = por %p267, %p268
      %p270 = scmp.ne.s32.totalorder %s261, %s262
      %p271 = scmp.eq.s32.totalorder %s26, 0
      %p272 = por %p270, %p271
      %p273 = scmp.ne.s32.totalorder %s261, %s262
      %p274 = scmp.eq.s32.totalorder %s27, 1
      %p275 = por %p273, %p274
      %p277 = scmp.ne.s32.totalorder %s262, %s276
      %p278 = scmp.eq.s32.totalorder %s27, 0
      %p279 = por %p277, %p278
      %s281 = sadd.s32 %s280, 1
      %p284 = scmp.eq.s32.totalorder %s21, 1
      %p285 = scmp.ne.s32.totalorder %s280, %s282
      %p286 = scmp.eq.s32.totalorder %s21, 0
      %p287 = por %p285, %p286
      %p288 = scmp.ne.s32.totalorder %s280, %s282
      %p289 = scmp.eq.s32.totalorder %s26, 1
      %p290 = por %p288, %p289
      %p291 = scmp.ne.s32.totalorder %s282, %s283
      %p292 = scmp.eq.s32.totalorder %s26, 0
      %p293 = por %p291, %p292
      %p294 = scmp.ne.s32.totalorder %s282, %s283
      %p295 = scmp.eq.s32.totalorder %s27, 1
      %p296 = por %p294, %p295
      %p298 = scmp.ne.s32.totalorder %s283, %s297
      %p299 = scmp.eq.s32.totalorder %s27, 0
      %p300 = por %p298, %p299
      %s301 = ssub.s32 %s21, %s28
      %p302 = scmp.eq.s32.totalorder %s301, 0
      %s304 = sadd.s32 %s303, 1
      %s305 = scalar_select %p302, %s303, %s304
      %p308 = pneg %p302
      %p309 = scmp.eq.s32.totalorder %s21, 1
      %p310 = por %p308, %p309
      %p311 = scmp.ne.s32.totalorder %s303, %s306
      %p312 = scmp.eq.s32.totalorder %s21, 0
      %p313 = por %p311, %p312
      %p314 = scmp.ne.s32.totalorder %s303, %s306
      %p315 = scmp.eq.s32.totalorder %s26, 1
      %p316 = por %p314, %p315
      %p317 = scmp.ne.s32.totalorder %s306, %s307
      %p318 = scmp.eq.s32.totalorder %s26, 0
      %p319 = por %p317, %p318
      %p320 = scmp.ne.s32.totalorder %s306, %s307
      %p321 = scmp.eq.s32.totalorder %s27, 1
      %p322 = por %p320, %p321
      %p324 = scmp.ne.s32.totalorder %s307, %s323
      %p325 = scmp.eq.s32.totalorder %s27, 0
      %p326 = por %p324, %p325
      %p327 = scmp.le.s32.totalorder 1, %s21
      %p328 = scmp.lt.s32.totalorder %s21, 3
      %p329 = pnand %p327, %p328
      %p330 = pneg %p329
      // Predicated region
      $region9: #{transformer_forward.19} parent=5 // pred_check
        _
      $region10: #{transformer_forward.19} parent=5 // pred_check_branch
        %332 = sbr.rel (%p329) target = $region12
      $region11: #{transformer_forward.19} parent=5 // pred_region
        %s333 = ssub.s32 %s21, 1
        // Predicated region
        $region13: #{transformer_forward.19} parent=11 // pred_check
          %p334 = pneg %p146
        $region14: #{transformer_forward.19} parent=11 // pred_check_branch
          %336 = sbr.rel (%p334) target = $region16
        $region15: #{transformer_forward.19} parent=11 // pred_region
          _
        $region16: #{transformer_forward.19} parent=11 // pred_fallthru
          _
        // Predicated region
        $region17: #{transformer_forward.19} parent=11 // pred_check
          %p337 = pneg %p167
        $region18: #{transformer_forward.19} parent=11 // pred_check_branch
          %339 = sbr.rel (%p337) target = $region20
        $region19: #{transformer_forward.19} parent=11 // pred_region
          %341 = vsyncadd [#allocation4], 0
          %s343 = sshll.u32 %s5, 4
          %s344 = int_to_ptr.hbm [resolvable:$true] %s343
          %s345 = sshll.u32 [#allocation3], 4
          %s346 = int_to_ptr.vmem [resolvable:$true] %s345
          %348 = dma.hbm_to_vmem [thread:$0]  %s344, 16, %s346, [#allocation4]
        $region20: #{transformer_forward.19} parent=11 // pred_fallthru
          _
        // Predicated region
        $region21: #{transformer_forward.19} parent=11 // pred_check
          %p349 = pneg %p188
        $region22: #{transformer_forward.19} parent=11 // pred_check_branch
          %351 = sbr.rel (%p349) target = $region24
        $region23: #{transformer_forward.19} parent=11 // pred_region
          _
        $region24: #{transformer_forward.19} parent=11 // pred_fallthru
          _
        // Predicated region
        $region25: #{transformer_forward.19} parent=11 // pred_check
          %p352 = pneg %p209
        $region26: #{transformer_forward.19} parent=11 // pred_check_branch
          %354 = sbr.rel (%p352) target = $region28
        $region27: #{transformer_forward.19} parent=11 // pred_region
          %356 = vsyncadd [#allocation6], 0
          %s358 = sshll.u32 %s7, 4
          %s359 = int_to_ptr.hbm [resolvable:$true] %s358
          %s360 = sshll.u32 [#allocation5], 4
          %s361 = int_to_ptr.vmem [resolvable:$true] %s360
          %363 = dma.hbm_to_vmem [thread:$0]  %s359, 16, %s361, [#allocation6]
        $region28: #{transformer_forward.19} parent=11 // pred_fallthru
          _
        // Predicated region
        $region29: #{transformer_forward.19} parent=11 // pred_check
          %p364 = pneg %p230
        $region30: #{transformer_forward.19} parent=11 // pred_check_branch
          %366 = sbr.rel (%p364) target = $region32
        $region31: #{transformer_forward.19} parent=11 // pred_region
          _
        $region32: #{transformer_forward.19} parent=11 // pred_fallthru
          _
        // Predicated region
        $region33: #{transformer_forward.19} parent=11 // pred_check
          %p367 = pneg %p251
        $region34: #{transformer_forward.19} parent=11 // pred_check_branch
          %369 = sbr.rel (%p367) target = $region36
        $region35: #{transformer_forward.19} parent=11 // pred_region
          %371 = vsyncadd [#allocation6], 0
          %s373 = sshll.u32 %s9, 4
          %s374 = int_to_ptr.hbm [resolvable:$true] %s373
          %s375 = sshll.u32 [#allocation7], 4
          %s376 = int_to_ptr.vmem [resolvable:$true] %s375
          %378 = dma.hbm_to_vmem [thread:$0]  %s374, 16, %s376, [#allocation6]
        $region36: #{transformer_forward.19} parent=11 // pred_fallthru
          _
        // Predicated region
        $region37: #{transformer_forward.19} parent=11 // pred_check
          %p379 = pneg %p272
        $region38: #{transformer_forward.19} parent=11 // pred_check_branch
          %381 = sbr.rel (%p379) target = $region40
        $region39: #{transformer_forward.19} parent=11 // pred_region
          %383 = vsyncadd [#allocation9], 0
          %s385 = sshll.u32 %s10, 4
          %s386 = int_to_ptr.hbm [resolvable:$true] %s385
          %s387 = sshll.u32 [#allocation8], 4
          %s388 = int_to_ptr.vmem [resolvable:$true] %s387
          %390 = dma.hbm_to_vmem [thread:$0]  %s386, 16, %s388, [#allocation9]
        $region40: #{transformer_forward.19} parent=11 // pred_fallthru
          _
        // Predicated region
        $region41: #{transformer_forward.19} parent=11 // pred_check
          %p391 = pneg %p293
        $region42: #{transformer_forward.19} parent=11 // pred_check_branch
          %393 = sbr.rel (%p391) target = $region44
        $region43: #{transformer_forward.19} parent=11 // pred_region
          %395 = vsyncadd [#allocation9], 0
          %s397 = sshll.u32 %s11, 4
          %s398 = int_to_ptr.hbm [resolvable:$true] %s397
          %s399 = sshll.u32 [#allocation10], 4
          %s400 = int_to_ptr.vmem [resolvable:$true] %s399
          %402 = dma.hbm_to_vmem [thread:$0]  %s398, 16, %s400, [#allocation9]
        $region44: #{transformer_forward.19} parent=11 // pred_fallthru
          _
      $region12: #{transformer_forward.19} parent=5 // pred_fallthru
        _
      %p403 = scmp.lt.s32.totalorder %s21, 2
      // Predicated region
      $region45: #{transformer_forward.19} parent=5 // pred_check
        %p404 = pneg %p403
      $region46: #{transformer_forward.19} parent=5 // pred_check_branch
        %406 = sbr.rel (%p404) target = $region48
      $region47: #{transformer_forward.19} parent=5 // pred_region
        // Predicated region
        $region49: #{transformer_forward.19} parent=47 // pred_check
          %p407 = pneg %p41
        $region50: #{transformer_forward.19} parent=47 // pred_check_branch
          %409 = sbr.rel (%p407) target = $region52
        $region51: #{transformer_forward.19} parent=47 // pred_region
          %p410 = scmp.lt.s32.totalorder %s21, 1
          %s411 = scalar_select %p410, %s21, 1
          %s412 = smul.addr %s411, 8
          %s413 = scalar_lea.vmem %s0, %s412
        $region52: #{transformer_forward.19} parent=47 // pred_fallthru
          _
        // Predicated region
        $region53: #{transformer_forward.19} parent=47 // pred_check
          %p414 = pneg %p67
        $region54: #{transformer_forward.19} parent=47 // pred_check_branch
          %416 = sbr.rel (%p414) target = $region56
        $region55: #{transformer_forward.19} parent=47 // pred_region
          %p417 = scmp.lt.s32.totalorder %s21, 1
          %s418 = scalar_select %p417, %s21, 1
          %s419 = smul.addr %s418, 8
          %s420 = scalar_lea.vmem %s1, %s419
        $region56: #{transformer_forward.19} parent=47 // pred_fallthru
          _
        // Predicated region
        $region57: #{transformer_forward.19} parent=47 // pred_check
          %p421 = pneg %p93
        $region58: #{transformer_forward.19} parent=47 // pred_check_branch
          %423 = sbr.rel (%p421) target = $region60
        $region59: #{transformer_forward.19} parent=47 // pred_region
          %p424 = scmp.lt.s32.totalorder %s21, 1
          %s425 = scalar_select %p424, %s21, 1
          %s426 = smul.addr %s425, 8
          %s427 = scalar_lea.vmem %s2, %s426
        $region60: #{transformer_forward.19} parent=47 // pred_fallthru
          _
        // Predicated region
        $region61: #{transformer_forward.19} parent=47 // pred_check
          %p428 = pneg %p119
        $region62: #{transformer_forward.19} parent=47 // pred_check_branch
          %430 = sbr.rel (%p428) target = $region64
        $region63: #{transformer_forward.19} parent=47 // pred_region
          %p431 = scmp.lt.s32.totalorder %s21, 1
          %s432 = scalar_select %p431, %s21, 1
          %s433 = scalar_lea.vmem %s3, %s432
        $region64: #{transformer_forward.19} parent=47 // pred_fallthru
          _
      $region48: #{transformer_forward.19} parent=5 // pred_fallthru
        _
      %p434 = scmp.le.s32.totalorder 1, %s21
      %p435 = scmp.lt.s32.totalorder %s21, 3
      %p436 = pnand %p434, %p435
      %p437 = pneg %p436
      // Predicated region
      $region65: #{transformer_forward.19} parent=5 // pred_check
        _
      $region66: #{transformer_forward.19} parent=5 // pred_check_branch
        %439 = sbr.rel (%p436) target = $region68
      $region67: #{transformer_forward.19} parent=5 // pred_region
        %s440 = ssub.s32 %s21, 1
        // Predicated region
        $region69: #{transformer_forward.19} parent=67 // pred_check
          %p441 = pneg %p167
        $region70: #{transformer_forward.19} parent=67 // pred_check_branch
          %443 = sbr.rel (%p441) target = $region72
        $region71: #{transformer_forward.19} parent=67 // pred_region
          %445 = dma.done [#allocation4], 16
        $region72: #{transformer_forward.19} parent=67 // pred_fallthru
          _
        // Predicated region
        $region73: #{transformer_forward.19} parent=67 // pred_check
          %p446 = pneg %p209
        $region74: #{transformer_forward.19} parent=67 // pred_check_branch
          %448 = sbr.rel (%p446) target = $region76
        $region75: #{transformer_forward.19} parent=67 // pred_region
          %450 = dma.done [#allocation6], 16
        $region76: #{transformer_forward.19} parent=67 // pred_fallthru
          _
        // Predicated region
        $region77: #{transformer_forward.19} parent=67 // pred_check
          %p451 = pneg %p251
        $region78: #{transformer_forward.19} parent=67 // pred_check_branch
          %453 = sbr.rel (%p451) target = $region80
        $region79: #{transformer_forward.19} parent=67 // pred_region
          %455 = dma.done [#allocation6], 16
        $region80: #{transformer_forward.19} parent=67 // pred_fallthru
          _
        // Predicated region
        $region81: #{transformer_forward.19} parent=67 // pred_check
          %p456 = pneg %p272
        $region82: #{transformer_forward.19} parent=67 // pred_check_branch
          %458 = sbr.rel (%p456) target = $region84
        $region83: #{transformer_forward.19} parent=67 // pred_region
          %460 = dma.done [#allocation9], 16
        $region84: #{transformer_forward.19} parent=67 // pred_fallthru
          _
        // Predicated region
        $region85: #{transformer_forward.19} parent=67 // pred_check
          %p461 = pneg %p293
        $region86: #{transformer_forward.19} parent=67 // pred_check_branch
          %463 = sbr.rel (%p461) target = $region88
        $region87: #{transformer_forward.19} parent=67 // pred_region
          %465 = dma.done [#allocation9], 16
        $region88: #{transformer_forward.19} parent=67 // pred_fallthru
          _
        %p466 = scmp.lt.s32.totalorder %s26, 1
        %s467 = scalar_select %p466, %s26, 1
        %s468 = smul.addr %s467, 8
        %s469 = scalar_lea.vmem %s0, %s468
        %p470 = pneg %p47
        %p471 = pneg %p44
        %p472 = scmp.lt.s32.totalorder %s26, 1
        %s473 = scalar_select %p472, %s26, 1
        %s474 = smul.addr %s473, 8
        %s475 = scalar_lea.vmem %s1, %s474
        %p476 = pneg %p73
        %p477 = pneg %p70
        %p478 = scmp.lt.s32.totalorder %s26, 1
        %s479 = scalar_select %p478, %s26, 1
        %s480 = smul.addr %s479, 8
        %s481 = scalar_lea.vmem %s2, %s480
        %p482 = pneg %p99
        %p483 = pneg %p96
        %p484 = scmp.lt.s32.totalorder %s26, 1
        %s485 = scalar_select %p484, %s26, 1
        %s486 = scalar_lea.vmem %s3, %s485
        %p487 = pneg %p125
        %p488 = pneg %p122
        %p489 = pneg %p146
        %p490 = pneg %p143
        %p491 = pneg %p167
        %p492 = pneg %p164
        %p493 = pneg %p188
        %p494 = pneg %p185
        %p495 = pneg %p209
        %p496 = pneg %p206
        %p497 = pneg %p230
        %p498 = pneg %p227
        %p499 = pneg %p251
        %p500 = pneg %p248
        %p501 = pneg %p272
        %p502 = pneg %p269
        %p503 = pneg %p293
        %p504 = pneg %p290
        %p505 = pneg %p319
        %p506 = pneg %p316
        %p507 = scmp.lt.s32.totalorder %s26, 1
        %s508 = scalar_select %p507, %s26, 1
        %s509 = smul.addr %s508, 8
        %s510 = scalar_lea.vmem %s12, %s509
        %p511 = scmp.lt.s32.totalorder %s26, 1
        %s512 = scalar_select %p511, %s26, 1
        %s513 = smul.addr %s512, 8
        %s514 = scalar_lea.vmem %s0, %s513
        %p515 = scmp.lt.s32.totalorder %s26, 1
        %s516 = scalar_select %p515, %s26, 1
        %s517 = smul.addr %s516, 8
        %s518 = scalar_lea.vmem %s1, %s517
        %p519 = scmp.lt.s32.totalorder %s26, 1
        %s520 = scalar_select %p519, %s26, 1
        %s521 = smul.addr %s520, 8
        %s522 = scalar_lea.vmem %s2, %s521
        %p523 = scmp.lt.s32.totalorder %s26, 1
        %s524 = scalar_select %p523, %s26, 1
        %s525 = scalar_lea.vmem %s3, %s524
        %p526 = scmp.lt.s32.totalorder %s26, 1
        %s527 = scalar_select %p526, %s26, 1
        %s528 = smul.addr %s527, 8
        %s529 = scalar_lea.vmem %s12, %s528
        %v531 = vld [vmem:[%s514] sm:$0xff]
        %v532 = vld [vmem:[%s518] sm:$0xff]
        %v533 = vpack.c.bf16 %v531, %v531
        %v534 = vld [vmem:[%s4] sm:$0xf]
        %v535 = vld [vmem:[%s4 + $0x4] sm:$0xf]
        %v536 = vld [vmem:[%s4 + $0x8] sm:$0xf]
        %v537 = vld [vmem:[%s4 + $0xc] sm:$0xf]
        %v538 = vld [vmem:[#allocation3] sm:$0x1]
        %v540 = vperm.slane %v538, 0
        %v546 = vunpack.c.l.b16 %v534
        %v547 = vunpack.c.l.b16 %v535
        %v548 = vunpack.c.l.b16 %v536
        %v549 = vunpack.c.l.b16 %v537
        %v550 = vpack.c.b16 %v547, %v546
        %v551 = vpack.c.b16 %v549, %v548
        %vm554 = vcmask 261120
        %v556 = vsel %vm554, %v533, 0
        %558 = vmatpush.bf16.msra.mxu0 0
        %559 = vmatpush.bf16.msra.mxu0 0
        %560 = vmatpush.bf16.msra.mxu0 0
        %561 = vmatpush.bf16.msra.mxu0 0
        %562 = vmatpush.bf16.msra.mxu0 0
        %563 = vmatpush.bf16.msra.mxu0 0
        %564 = vmatpush.bf16.msra.mxu0 %v551
        %565 = vmatpush.bf16.msra.mxu0 %v550
        %566 = vmatmul.bf16.gmra.mxu0 %v556
        %v567 = vpop.f32.mrf.mxu0
        %v568 = vadd.f32 %v540, %v567
        %v569 = vpop.f32.mrf.mxu0
        %570 = vdwg.mxu0
        %v571 = vpack.c.bf16 %v532, %v532
        %v572 = vld [vmem:[%s6] sm:$0xf]
        %v573 = vld [vmem:[%s6 + $0x4] sm:$0xf]
        %v574 = vld [vmem:[%s6 + $0x8] sm:$0xf]
        %v575 = vld [vmem:[%s6 + $0xc] sm:$0xf]
        %v576 = vld [vmem:[#allocation5] sm:$0x1]
        %v578 = vperm.slane %v576, 0
        %v584 = vunpack.c.l.b16 %v572
        %v585 = vunpack.c.l.b16 %v573
        %v586 = vunpack.c.l.b16 %v574
        %v587 = vunpack.c.l.b16 %v575
        %v588 = vpack.c.b16 %v585, %v584
        %v589 = vpack.c.b16 %v587, %v586
        %v593 = vsel %vm554, %v571, 0
        %595 = vmatpush.bf16.msra.mxu0 0
        %596 = vmatpush.bf16.msra.mxu0 0
        %597 = vmatpush.bf16.msra.mxu0 0
        %598 = vmatpush.bf16.msra.mxu0 0
        %599 = vmatpush.bf16.msra.mxu0 0
        %600 = vmatpush.bf16.msra.mxu0 0
        %601 = vmatpush.bf16.msra.mxu0 %v589
        %602 = vmatpush.bf16.msra.mxu0 %v588
        %603 = vmatmul.bf16.gmra.mxu0 %v593
        %v604 = vpop.f32.mrf.mxu0
        %v605 = vadd.f32 %v578, %v604
        %v606 = vpop.f32.mrf.mxu0
        %607 = vdwg.mxu0
        %v608 = vld [vmem:[%s522] sm:$0xff]
        %v609 = vld [vmem:[%s525] sm:$0x1]
        %vm610 = vcmp.gt.f32.partialorder %v608, 0.0
        %vm611 = vcmp.gt.f32.partialorder %v609, 0.0
        %v612 = vsel %vm610, 1, 0
        %613 = vset.pattern.permute.xlu0 0
        %614 = vperm.xlu0 %613, %v612
        %v615 = vpop.permute.xlu0 %614
        %vm616 = vcmp.eq.s32.totalorder %v615, 1
        %v617 = vsel %vm611, 1, 0
        %v618 = vperm.slane %v617, 0
        %vm619 = vcmp.eq.s32.totalorder %v618, 1
        %vm620 = vmand %vm616, %vm619
        %621 = vxpose.xlu0.b32.start [1/16] %v605, 128
        %622 = vxpose.xlu0.b32.cont [2/16] 0.0, 128
        %623 = vxpose.xlu0.b32.cont [3/16] 0.0, 128
        %624 = vxpose.xlu0.b32.cont [4/16] 0.0, 128
        %625 = vxpose.xlu0.b32.cont [5/16] 0.0, 128
        %626 = vxpose.xlu0.b32.cont [6/16] 0.0, 128
        %627 = vxpose.xlu0.b32.cont [7/16] 0.0, 128
        %628 = vxpose.xlu0.b32.cont [8/16] 0.0, 128
        %629 = vxpose.xlu0.b32.cont [9/16] 0.0, 128
        %630 = vxpose.xlu0.b32.cont [10/16] 0.0, 128
        %631 = vxpose.xlu0.b32.cont [11/16] 0.0, 128
        %632 = vxpose.xlu0.b32.cont [12/16] 0.0, 128
        %633 = vxpose.xlu0.b32.cont [13/16] 0.0, 128
        %634 = vxpose.xlu0.b32.cont [14/16] 0.0, 128
        %635 = vxpose.xlu0.b32.cont [15/16] 0.0, 128
        %636 = vxpose.xlu0.b32.end [16/16] 0.0, 128
        %v637 = vpop.trf.xlu0
        %v638 = vpop.trf.xlu0
        %v639 = vpop.trf.xlu0
        %v640 = vpop.trf.xlu0
        %v641 = vpop.trf.xlu0
        %v642 = vpop.trf.xlu0
        %v643 = vpop.trf.xlu0
        %v644 = vpop.trf.xlu0
        %v645 = vpop.trf.xlu0
        %v646 = vpop.trf.xlu0
        %v647 = vpop.trf.xlu0
        %v648 = vpop.trf.xlu0
        %v649 = vpop.trf.xlu0
        %v650 = vpop.trf.xlu0
        %v651 = vpop.trf.xlu0
        %v652 = vpop.trf.xlu0
        %v653 = vpack.c.bf16 %v637, %v637
        %v654 = vpack.c.bf16 %v638, %v638
        %v655 = vpack.c.bf16 %v639, %v639
        %v656 = vpack.c.bf16 %v640, %v640
        %v657 = vpack.c.bf16 %v568, %v568
        %v658 = vpack.c.bf16 %v605, %v605
        %vm659 = vcmask 64512
        %v661 = vsel %vm659, %v657, 0
        %vm663 = vcmask 1043456
        %v665 = vsel %vm663, %v653, 0
        %667 = vmatpush.bf16.msra.mxu0 0
        %668 = vmatpush.bf16.msra.mxu0 0
        %669 = vmatpush.bf16.msra.mxu0 0
        %670 = vmatpush.bf16.msra.mxu0 0
        %671 = vmatpush.bf16.msra.mxu0 0
        %672 = vmatpush.bf16.msra.mxu0 0
        %673 = vmatpush.bf16.msra.mxu0 0
        %674 = vmatpush.bf16.msra.mxu0 %v665
        %675 = vmatmul.bf16.gmra.mxu0 %v661
        %v676 = vpop.f32.mrf.mxu0
        %v677 = vadd.f32 0.0, %v676
        %v678 = vpop.f32.mrf.mxu0
        %679 = vdwg.mxu0
        %v680 = vsel %vm620, %v677, -1e+09
        %v681 = vsel %vm659, %v680, -inf
        %682 = vmax.xlane.f32.xlu0 %v681
        %v683 = vpop.xlane.xlu0 %682
        %v684 = vsub.f32 %v680, %v683
        %v685 = vmul.f32 %v684, 1.442695
        %v686 = vpow.pop %v685
        %v687 = vsel %vm659, %v686, 0.0
        %688 = vadd.xlane.f32.xlu0 %v687
        %v689 = vpop.xlane.xlu0 %688
        %v690 = vrcp.pop %v689
        %v691 = vmul.f32 %v686, %v690
        %v692 = vpack.c.bf16 %v691, %v691
        %v694 = vunpack.c.l.b16 %v658
        %v695 = vpack.c.b16 %v694, %v694
        %696 = vrot.lane.b32.xlu0 %v695, 96
        %v697 = vpop.permute.xlu0 %696
        %v699 = vsel %vm659, %v692, 0
        %v702 = vsel %vm663, %v697, 0
        %704 = vmatpush.bf16.msra.mxu0 0
        %705 = vmatpush.bf16.msra.mxu0 0
        %706 = vmatpush.bf16.msra.mxu0 0
        %707 = vmatpush.bf16.msra.mxu0 0
        %708 = vmatpush.bf16.msra.mxu0 0
        %709 = vmatpush.bf16.msra.mxu0 0
        %710 = vmatpush.bf16.msra.mxu0 0
        %711 = vmatpush.bf16.msra.mxu0 %v702
        %712 = vmatmul.bf16.gmra.mxu0 %v699
        %v713 = vpop.f32.mrf.mxu0
        %v714 = vadd.f32 0.0, %v713
        %v715 = vpop.f32.mrf.mxu0
        %716 = vdwg.mxu0
        %717 = vst.msk [vmem:[#allocation2] sm:$0xff] %vm659, %v714
        %v719 = vunpack.c.l.b16 %v657
        %v720 = vpack.c.b16 %v719, %v719
        %721 = vrot.lane.b32.xlu0 %v720, 120
        %v722 = vpop.permute.xlu0 %721
        %v724 = vsel %vm659, %v722, 0
        %v727 = vsel %vm663, %v654, 0
        %729 = vmatpush.bf16.msra.mxu0 0
        %730 = vmatpush.bf16.msra.mxu0 0
        %731 = vmatpush.bf16.msra.mxu0 0
        %732 = vmatpush.bf16.msra.mxu0 0
        %733 = vmatpush.bf16.msra.mxu0 0
        %734 = vmatpush.bf16.msra.mxu0 0
        %735 = vmatpush.bf16.msra.mxu0 0
        %736 = vmatpush.bf16.msra.mxu0 %v727
        %737 = vmatmul.bf16.gmra.mxu0 %v724
        %v738 = vpop.f32.mrf.mxu0
        %v739 = vadd.f32 0.0, %v738
        %v740 = vpop.f32.mrf.mxu0
        %741 = vdwg.mxu0
        %v742 = vsel %vm620, %v739, -1e+09
        %v743 = vsel %vm659, %v742, -inf
        %744 = vmax.xlane.f32.xlu0 %v743
        %v745 = vpop.xlane.xlu0 %744
        %v746 = vsub.f32 %v742, %v745
        %v747 = vmul.f32 %v746, 1.442695
        %v748 = vpow.pop %v747
        %v749 = vsel %vm659, %v748, 0.0
        %750 = vadd.xlane.f32.xlu0 %v749
        %v751 = vpop.xlane.xlu0 %750
        %v752 = vrcp.pop %v751
        %v753 = vmul.f32 %v748, %v752
        %v754 = vpack.c.bf16 %v753, %v753
        %755 = vrot.lane.b32.xlu0 %v695, 88
        %v756 = vpop.permute.xlu0 %755
        %v758 = vsel %vm659, %v754, 0
        %v761 = vsel %vm663, %v756, 0
        %763 = vmatpush.bf16.msra.mxu0 0
        %764 = vmatpush.bf16.msra.mxu0 0
        %765 = vmatpush.bf16.msra.mxu0 0
        %766 = vmatpush.bf16.msra.mxu0 0
        %767 = vmatpush.bf16.msra.mxu0 0
        %768 = vmatpush.bf16.msra.mxu0 0
        %769 = vmatpush.bf16.msra.mxu0 0
        %770 = vmatpush.bf16.msra.mxu0 %v761
        %771 = vmatmul.bf16.gmra.mxu0 %v758
        %v772 = vpop.f32.mrf.mxu0
        %v773 = vadd.f32 0.0, %v772
        %v774 = vpop.f32.mrf.mxu0
        %775 = vdwg.mxu0
        %777 = vrot.lane.b32.xlu0 %v773, 8
        %v778 = vpop.permute.xlu0 %777
        %vm780 = vcmask 130112
        %781 = vst.msk [vmem:[#allocation2] sm:$0xff] %vm780, %v778
        %782 = vrot.lane.b32.xlu0 %v720, 112
        %v783 = vpop.permute.xlu0 %782
        %v785 = vsel %vm659, %v783, 0
        %v788 = vsel %vm663, %v655, 0
        %790 = vmatpush.bf16.msra.mxu0 0
        %791 = vmatpush.bf16.msra.mxu0 0
        %792 = vmatpush.bf16.msra.mxu0 0
        %793 = vmatpush.bf16.msra.mxu0 0
        %794 = vmatpush.bf16.msra.mxu0 0
        %795 = vmatpush.bf16.msra.mxu0 0
        %796 = vmatpush.bf16.msra.mxu0 0
        %797 = vmatpush.bf16.msra.mxu0 %v788
        %798 = vmatmul.bf16.gmra.mxu0 %v785
        %v799 = vpop.f32.mrf.mxu0
        %v800 = vadd.f32 0.0, %v799
        %v801 = vpop.f32.mrf.mxu0
        %802 = vdwg.mxu0
        %v803 = vsel %vm620, %v800, -1e+09
        %v804 = vsel %vm659, %v803, -inf
        %805 = vmax.xlane.f32.xlu0 %v804
        %v806 = vpop.xlane.xlu0 %805
        %v807 = vsub.f32 %v803, %v806
        %v808 = vmul.f32 %v807, 1.442695
        %v809 = vpow.pop %v808
        %v810 = vsel %vm659, %v809, 0.0
        %811 = vadd.xlane.f32.xlu0 %v810
        %v812 = vpop.xlane.xlu0 %811
        %v813 = vrcp.pop %v812
        %v814 = vmul.f32 %v809, %v813
        %v815 = vpack.c.bf16 %v814, %v814
        %816 = vrot.lane.b32.xlu0 %v695, 80
        %v817 = vpop.permute.xlu0 %816
        %v819 = vsel %vm659, %v815, 0
        %v822 = vsel %vm663, %v817, 0
        %824 = vmatpush.bf16.msra.mxu0 0
        %825 = vmatpush.bf16.msra.mxu0 0
        %826 = vmatpush.bf16.msra.mxu0 0
        %827 = vmatpush.bf16.msra.mxu0 0
        %828 = vmatpush.bf16.msra.mxu0 0
        %829 = vmatpush.bf16.msra.mxu0 0
        %830 = vmatpush.bf16.msra.mxu0 0
        %831 = vmatpush.bf16.msra.mxu0 %v822
        %832 = vmatmul.bf16.gmra.mxu0 %v819
        %v833 = vpop.f32.mrf.mxu0
        %v834 = vadd.f32 0.0, %v833
        %v835 = vpop.f32.mrf.mxu0
        %836 = vdwg.mxu0
        %838 = vrot.lane.b32.xlu0 %v834, 16
        %v839 = vpop.permute.xlu0 %838
        %vm841 = vcmask 195712
        %842 = vst.msk [vmem:[#allocation2] sm:$0xff] %vm841, %v839
        %843 = vrot.lane.b32.xlu0 %v720, 104
        %v844 = vpop.permute.xlu0 %843
        %v846 = vsel %vm659, %v844, 0
        %v849 = vsel %vm663, %v656, 0
        %851 = vmatpush.bf16.msra.mxu0 0
        %852 = vmatpush.bf16.msra.mxu0 0
        %853 = vmatpush.bf16.msra.mxu0 0
        %854 = vmatpush.bf16.msra.mxu0 0
        %855 = vmatpush.bf16.msra.mxu0 0
        %856 = vmatpush.bf16.msra.mxu0 0
        %857 = vmatpush.bf16.msra.mxu0 0
        %858 = vmatpush.bf16.msra.mxu0 %v849
        %859 = vmatmul.bf16.gmra.mxu0 %v846
        %v860 = vpop.f32.mrf.mxu0
        %v861 = vadd.f32 0.0, %v860
        %v862 = vpop.f32.mrf.mxu0
        %863 = vdwg.mxu0
        %v864 = vsel %vm620, %v861, -1e+09
        %v865 = vsel %vm659, %v864, -inf
        %866 = vmax.xlane.f32.xlu0 %v865
        %v867 = vpop.xlane.xlu0 %866
        %v868 = vsub.f32 %v864, %v867
        %v869 = vmul.f32 %v868, 1.442695
        %v870 = vpow.pop %v869
        %v871 = vsel %vm659, %v870, 0.0
        %872 = vadd.xlane.f32.xlu0 %v871
        %v873 = vpop.xlane.xlu0 %872
        %v874 = vrcp.pop %v873
        %v875 = vmul.f32 %v870, %v874
        %v876 = vpack.c.bf16 %v875, %v875
        %877 = vrot.lane.b32.xlu0 %v695, 72
        %v878 = vpop.permute.xlu0 %877
        %v880 = vsel %vm659, %v876, 0
        %v883 = vsel %vm663, %v878, 0
        %885 = vmatpush.bf16.msra.mxu0 0
        %886 = vmatpush.bf16.msra.mxu0 0
        %887 = vmatpush.bf16.msra.mxu0 0
        %888 = vmatpush.bf16.msra.mxu0 0
        %889 = vmatpush.bf16.msra.mxu0 0
        %890 = vmatpush.bf16.msra.mxu0 0
        %891 = vmatpush.bf16.msra.mxu0 0
        %892 = vmatpush.bf16.msra.mxu0 %v883
        %893 = vmatmul.bf16.gmra.mxu0 %v880
        %v894 = vpop.f32.mrf.mxu0
        %v895 = vadd.f32 0.0, %v894
        %v896 = vpop.f32.mrf.mxu0
        %897 = vdwg.mxu0
        %899 = vrot.lane.b32.xlu0 %v895, 24
        %v900 = vpop.permute.xlu0 %899
        %vm902 = vcmask 261312
        %903 = vst.msk [vmem:[#allocation2] sm:$0xff] %vm902, %v900
        %v904 = vld [vmem:[#allocation2] sm:$0xff]
        %v905 = vpack.c.bf16 %v904, %v904
        %v906 = vld [vmem:[%s8] sm:$0xf]
        %v907 = vld [vmem:[%s8 + $0x4] sm:$0xf]
        %v908 = vld [vmem:[%s8 + $0x8] sm:$0xf]
        %v909 = vld [vmem:[%s8 + $0xc] sm:$0xf]
        %v910 = vld [vmem:[#allocation7] sm:$0x1]
        %v912 = vperm.slane %v910, 0
        %v918 = vunpack.c.l.b16 %v906
        %v919 = vunpack.c.l.b16 %v907
        %v920 = vunpack.c.l.b16 %v908
        %v921 = vunpack.c.l.b16 %v909
        %v922 = vpack.c.b16 %v919, %v918
        %v923 = vpack.c.b16 %v921, %v920
        %v927 = vsel %vm554, %v905, 0
        %929 = vmatpush.bf16.msra.mxu0 0
        %930 = vmatpush.bf16.msra.mxu0 0
        %931 = vmatpush.bf16.msra.mxu0 0
        %932 = vmatpush.bf16.msra.mxu0 0
        %933 = vmatpush.bf16.msra.mxu0 0
        %934 = vmatpush.bf16.msra.mxu0 0
        %935 = vmatpush.bf16.msra.mxu0 %v923
        %936 = vmatpush.bf16.msra.mxu0 %v922
        %937 = vmatmul.bf16.gmra.mxu0 %v927
        %v938 = vpop.f32.mrf.mxu0
        %v939 = vadd.f32 %v912, %v938
        %v940 = vpop.f32.mrf.mxu0
        %941 = vdwg.mxu0
        %v942 = vadd.f32 %v531, %v939
        %v943 = vsel %vm554, %v942, 0.0
        %944 = vadd.xlane.f32.xlu0 %v943
        %v945 = vpop.xlane.xlu0 %944
        %v946 = vrcp.pop 32.0
        %v947 = vmul.f32 32.0, %v946
        %v948 = vsub.f32 1.0, %v947
        %v949 = vmul.f32 %v946, %v948
        %v950 = vadd.f32 %v946, %v949
        %vm951 = vweird.f32 %v946
        %v952 = vsel %vm951, %v946, %v950
        %v953 = vmul.f32 %v945, %v952
        %v954 = vsub.f32 %v942, %v953
        %v955 = vmul.f32 %v954, %v954
        %v956 = vsel %vm554, %v955, 0.0
        %957 = vadd.xlane.f32.xlu0 %v956
        %v958 = vpop.xlane.xlu0 %957
        %v959 = vmul.f32 %v958, %v952
        %v960 = vadd.f32 %v959, 1e-05
        %v961 = vrsqrt.pop %v960
        %v962 = vmul.f32 %v961, %v960
        %v963 = vmul.f32 %v962, %v961
        %v964 = vmul.f32 0.5, %v963
        %v965 = vsub.f32 1.5, %v964
        %v966 = vmul.f32 %v961, %v965
        %vm967 = vweird.f32 %v960
        %vm968 = vweird.f32 %v961
        %vm969 = vmor %vm967, %vm968
        %v970 = vsel %vm969, %v961, %v966
        %v971 = vmul.f32 %v954, %v970
        %v972 = vld [vmem:[#allocation8] sm:$0x1]
        %v974 = vperm.slane %v972, 0
        %v976 = vmul.f32 %v971, %v974
        %v977 = vld [vmem:[#allocation10] sm:$0x1]
        %v979 = vperm.slane %v977, 0
        %v981 = vadd.f32 %v976, %v979
        %982 = vst.msk [vmem:[%s529] sm:$0xff] %vm554, %v981
        %p983 = scmp.lt.s32.totalorder %s26, 1
        %s984 = scalar_select %p983, %s26, 1
        %s985 = smul.addr %s984, 8
        %s986 = scalar_lea.vmem %s12, %s985
        // Predicated region
        $region89: #{transformer_forward.19} parent=67 // pred_check
          %p987 = pneg %p316
        $region90: #{transformer_forward.19} parent=67 // pred_check_branch
          %989 = sbr.rel (%p987) target = $region92
        $region91: #{transformer_forward.19} parent=67 // pred_region
          _
        $region92: #{transformer_forward.19} parent=67 // pred_fallthru
          _
      $region68: #{transformer_forward.19} parent=5 // pred_fallthru
        _
      %p990 = scmp.le.s32.totalorder 2, %s21
      // Predicated region
      $region93: #{transformer_forward.19} parent=5 // pred_check
        %p991 = pneg %p990
      $region94: #{transformer_forward.19} parent=5 // pred_check_branch
        %993 = sbr.rel (%p991) target = $region96
      $region95: #{transformer_forward.19} parent=5 // pred_region
        %s994 = ssub.s32 %s21, 2
        // Predicated region
        $region97: #{transformer_forward.19} parent=95 // pred_check
          %p995 = pneg %p322
        $region98: #{transformer_forward.19} parent=95 // pred_check_branch
          %997 = sbr.rel (%p995) target = $region100
        $region99: #{transformer_forward.19} parent=95 // pred_region
          %p998 = scmp.lt.s32.totalorder %s27, 1
          %s999 = scalar_select %p998, %s27, 1
          %s1000 = smul.addr %s999, 8
          %s1001 = scalar_lea.vmem %s12, %s1000
        $region100: #{transformer_forward.19} parent=95 // pred_fallthru
          _
      $region96: #{transformer_forward.19} parent=5 // pred_fallthru
        _
    $region6: #{transformer_forward.19} parent=1 // loop_footer
      %s25 = sadd.s32 1, %s21
    $region7: #{transformer_forward.19} parent=1 // loop_footer_branch
      %20 = sbr.rel target = $region3
    $region8: #{transformer_forward.19} parent=1 // loop_exit
      _
    %1002 = vsyncpa [#allocation4], 1
    %s1003 = scalar_lea.sflag [#allocation4], 1
    %1004 = vsyncpa %s1003, 1
    %1005 = vsyncpa [#allocation6], 1
    %1006 = vsyncpa [#allocation9], 1

// kernel: transformer_forward.21
$region0: #{transformer_forward.21}
  #allocation0 [shape = 'u32[]', space=smem, size = 0x4, offset = 0x4, fixed_abs, tag = 'smem constant byte address 0x4 - core index']
  #allocation1 [shape = 'u32[72,128]{1,0:T(1,128)}', space=vmem, size = 0x9000, scoped, tag = 'internal scratch']
  %s0 = inlined_call_operand.vmem [shape: f32[16,32], index: 0, kind: input, shape index: {}]
  %s1 = inlined_call_operand.vmem [shape: bf16[32,48], index: 1, kind: input, shape index: {}]
  %s2 = inlined_call_operand.vmem [shape: f32[1,48], index: 2, kind: input, shape index: {}]
  %s3 = inlined_call_operand.hbm [shape: f32[16,48], index: 3, kind: output, shape index: {}]
  %s4 = sld [smem:[#allocation0]]
  $region22: #{transformer_forward.21} parent=0
    _
  %s6 = ssub.s32 1, %s4
  %s7 = scalar_select 0, %s6, %s4
  $region1: #{transformer_forward.21} parent=0
    #allocation2 [shape = 'u8[8192]{0}', space=vmem, size = 0x2000, scoped, tag = 'output window, operand 0, single buffered']
    #allocation3 [shape = 's32[1]{0}', space=sflag, size = 0x4, scoped, tag = 'scoped memory for transformer_forward.21']
    %8 = vsyncpa [#allocation3], 0
    // Predicated region
    $region2: #{transformer_forward.21} parent=1 // pred_check
      _
    $region3: #{transformer_forward.21} parent=1 // pred_check_branch
      %10 = sbr.rel (0) target = $region5
    $region4: #{transformer_forward.21} parent=1 // pred_region
      _
    $region5: #{transformer_forward.21} parent=1 // pred_fallthru
      _
    // Predicated region
    $region6: #{transformer_forward.21} parent=1 // pred_check
      _
    $region7: #{transformer_forward.21} parent=1 // pred_check_branch
      %12 = sbr.rel (0) target = $region9
    $region8: #{transformer_forward.21} parent=1 // pred_region
      _
    $region9: #{transformer_forward.21} parent=1 // pred_fallthru
      _
    // Predicated region
    $region10: #{transformer_forward.21} parent=1 // pred_check
      _
    $region11: #{transformer_forward.21} parent=1 // pred_check_branch
      %14 = sbr.rel (0) target = $region13
    $region12: #{transformer_forward.21} parent=1 // pred_region
      _
    $region13: #{transformer_forward.21} parent=1 // pred_fallthru
      _
    %v16 = vld [vmem:[%s0] sm:$0xff]
    %v17 = vld [vmem:[%s0 + $0x8] sm:$0xff]
    %v18 = vpack.c.bf16 %v17, %v16
    %v19 = vld [vmem:[%s1] sm:$0xf]
    %v20 = vld [vmem:[%s1 + $0x4] sm:$0xf]
    %v21 = vld [vmem:[%s1 + $0x8] sm:$0xf]
    %v22 = vld [vmem:[%s1 + $0xc] sm:$0xf]
    %v23 = vld [vmem:[%s2] sm:$0x1]
    %v25 = vperm.slane %v23, 0
    %v31 = vunpack.c.l.b16 %v19
    %v32 = vunpack.c.l.b16 %v20
    %v33 = vunpack.c.l.b16 %v21
    %v34 = vunpack.c.l.b16 %v22
    %v35 = vpack.c.b16 %v32, %v31
    %v36 = vpack.c.b16 %v34, %v33
    %vm39 = vcmask 261120
    %v41 = vsel %vm39, %v18, 0
    %43 = vmatpush.bf16.msra.mxu0 0
    %44 = vmatpush.bf16.msra.mxu0 0
    %45 = vmatpush.bf16.msra.mxu0 0
    %46 = vmatpush.bf16.msra.mxu0 0
    %47 = vmatpush.bf16.msra.mxu0 0
    %48 = vmatpush.bf16.msra.mxu0 0
    %49 = vmatpush.bf16.msra.mxu0 %v36
    %50 = vmatpush.bf16.msra.mxu0 %v35
    %51 = vmatmul.bf16.gmra.mxu0 %v41
    %v52 = vpop.f32.mrf.mxu0
    %v53 = vadd.f32 %v25, %v52
    %v54 = vpop.f32.mrf.mxu0
    %v55 = vadd.f32 %v25, %v54
    %56 = vdwg.mxu0
    %vm57 = vcmask 392192
    %58 = vst.msk [vmem:[#allocation2] sm:$0xff] %vm57, %v53
    %59 = vst.msk [vmem:[#allocation2 + $0x8] sm:$0xff] %vm57, %v55
    // Predicated region
    $region14: #{transformer_forward.21} parent=1 // pred_check
      _
    $region15: #{transformer_forward.21} parent=1 // pred_check_branch
      %61 = sbr.rel (0) target = $region17
    $region16: #{transformer_forward.21} parent=1 // pred_region
      %63 = vsyncadd [#allocation3], 0
      %s64 = sshll.u32 [#allocation2], 4
      %s65 = int_to_ptr.vmem [resolvable:$true] %s64
      %s66 = sshll.u32 %s3, 4
      %s67 = int_to_ptr.hbm [resolvable:$true] %s66
      %72 = dma.vmem_to_hbm [thread:$0]  %s65, 256, %s67, [#allocation3], 128, 128, 8
    $region17: #{transformer_forward.21} parent=1 // pred_fallthru
      _
    // Predicated region
    $region18: #{transformer_forward.21} parent=1 // pred_check
      _
    $region19: #{transformer_forward.21} parent=1 // pred_check_branch
      %74 = sbr.rel (0) target = $region21
    $region20: #{transformer_forward.21} parent=1 // pred_region
      %76 = dma.done [#allocation3], 256
    $region21: #{transformer_forward.21} parent=1 // pred_fallthru
      _
    %77 = vsyncpa [#allocation3], 1

</llo_original>
